<compile_context>
chip_gen: v7x
topology: tpu7x:2x2x1
jax: 0.10.0
libtpu: 0.0.40
codegen_flags: <defaults>
</compile_context>

<pallas_src>
import functools
import math

import jax
import jax.numpy as jnp
from jax import lax
from jax.experimental import pallas as pl
from jax.experimental.pallas import tpu as pltpu


# --------------------------------------------------------------------------
# tiling helper
# --------------------------------------------------------------------------
def _row_tile(m: int, cap: int = 256) -> int:
    """Largest multiple-of-8 divisor of m that is <= cap, preferring a grid of
    >= 2 steps (keeps both v7x TensorCores busy); falls back to full extent."""
    if m >= 16:
        cap = min(cap, m // 2)
    if m <= cap:
        return m
    for t in range(cap - cap % 8, 7, -8):
        if m % t == 0:
            return t
    return m


# --------------------------------------------------------------------------
# positional-encoding table (the `pe` buffer from __init__, squeezed)
# --------------------------------------------------------------------------
def make_positional_encoding(max_seq_len: int, d_model: int) -> jnp.ndarray:
    position = jnp.arange(max_seq_len, dtype=jnp.float32)[:, None]
    div_term = jnp.exp(
        jnp.arange(0, d_model, 2, dtype=jnp.float32) * (-math.log(10000.0) / d_model)
    )
    angles = position * div_term
    pe = jnp.zeros((max_seq_len, d_model), dtype=jnp.float32)
    pe = pe.at[:, 0::2].set(jnp.sin(angles))
    pe = pe.at[:, 1::2].set(jnp.cos(angles))
    return pe


# --------------------------------------------------------------------------
# kernel 1: encoder input linear + positional-encoding add (fused)
# --------------------------------------------------------------------------
def _enc_input_kernel(src_ref, w_ref, b_ref, pe_ref, o_ref):
    x = jnp.dot(src_ref[0], w_ref[...], preferred_element_type=jnp.float32)
    o_ref[0] = (x + b_ref[...] + pe_ref[...]).astype(o_ref.dtype)


def encoder_input_posenc(src, w, b, pe):
    """src: (B, S, K); w: (Kp, D) zero-padded at init; pe: (max_seq_len, D)."""
    B, S, K = src.shape
    Kp, D = w.shape
    if K < Kp:                           # tiny one-time pad of the raw input only
        src = jnp.pad(src, ((0, 0), (0, 0), (0, Kp - K)))
    return pl.pallas_call(
        _enc_input_kernel,
        out_shape=jax.ShapeDtypeStruct((B, S, D), jnp.float32),
        grid=(B,),
        in_specs=[
            pl.BlockSpec((1, S, Kp), lambda bi: (bi, 0, 0)),
            pl.BlockSpec((Kp, D), lambda bi: (0, 0)),
            pl.BlockSpec((1, D), lambda bi: (0, 0)),
            pl.BlockSpec((S, D), lambda bi: (0, 0)),
        ],
        out_specs=pl.BlockSpec((1, S, D), lambda bi: (bi, 0, 0)),
        compiler_params=pltpu.CompilerParams(dimension_semantics=("parallel",)),
    )(src, w, b.reshape(1, D), pe[:S].astype(jnp.float32))


# --------------------------------------------------------------------------
# kernel 2: small linear (decoder input layer / final output mapping)
# --------------------------------------------------------------------------
def _linear_kernel(x_ref, w_ref, b_ref, o_ref):
    acc = jnp.dot(x_ref[...], w_ref[...], preferred_element_type=jnp.float32)
    o_ref[...] = (acc + b_ref[...]).astype(o_ref.dtype)


def linear(x2d, w, b):
    """x2d: (M, K); w: (Kp, N) (K-dim possibly zero-padded at init); b: (N,)."""
    M, K = x2d.shape
    Kp, N = w.shape
    if K < Kp:
        x2d = jnp.pad(x2d, ((0, 0), (0, Kp - K)))
    tm = _row_tile(M)
    return pl.pallas_call(
        _linear_kernel,
        out_shape=jax.ShapeDtypeStruct((M, N), jnp.float32),
        grid=(M // tm,),
        in_specs=[
            pl.BlockSpec((tm, Kp), lambda i: (i, 0)),
            pl.BlockSpec((Kp, N), lambda i: (0, 0)),
            pl.BlockSpec((1, N), lambda i: (0, 0)),
        ],
        out_specs=pl.BlockSpec((tm, N), lambda i: (i, 0)),
        compiler_params=pltpu.CompilerParams(dimension_semantics=("parallel",)),
    )(x2d, w, b.reshape(1, N))


# --------------------------------------------------------------------------
# kernel 3: fused multi-head attention + residual + LayerNorm
#   one grid step per batch element; all heads handled in-kernel; no JAX-level
#   head transposes; optional additive mask; optional separate KV source.
# --------------------------------------------------------------------------
def _mha_ln_kernel(*refs, n_heads, scale, eps, self_attn, has_mask):
    it = iter(refs)
    xq_ref = next(it)
    xkv_ref = xq_ref if self_attn else next(it)
    wqkv_ref = next(it)
    bqkv_ref = next(it)
    wo_ref = next(it)
    bo_ref = next(it)
    mask_ref = next(it) if has_mask else None
    g_ref = next(it)
    beta_ref = next(it)
    o_ref = next(it)

    xq = xq_ref[0]                                  # (Sq, D)
    D = xq.shape[-1]
    Dh = D // n_heads
    wqkv = wqkv_ref[...]                            # (D, 3D)  fused QKV weight
    bqkv = bqkv_ref[...]                            # (1, 3D)

    if self_attn:
        qkv = jnp.dot(xq, wqkv, preferred_element_type=jnp.float32) + bqkv
        q = qkv[:, :D]
        k = qkv[:, D:2 * D]
        v = qkv[:, 2 * D:]
    else:
        xkv = xkv_ref[0]                            # (Sk, D)
        q = jnp.dot(xq, wqkv[:, :D], preferred_element_type=jnp.float32) + bqkv[:, :D]
        kv = jnp.dot(xkv, wqkv[:, D:], preferred_element_type=jnp.float32) + bqkv[:, D:]
        k = kv[:, :D]
        v = kv[:, D:]

    wo = wo_ref[...]                                # (D, D)
    mask = mask_ref[...] if has_mask else None
    o_acc = jnp.zeros((xq.shape[0], D), jnp.float32)
    for h in range(n_heads):                        # static unroll over heads
        sl = slice(h * Dh, (h + 1) * Dh)
        s = lax.dot_general(q[:, sl], k[:, sl], (((1,), (1,)), ((), ())),
                            preferred_element_type=jnp.float32) * scale
        if has_mask:
            s = s + mask
        mx = jnp.max(s, axis=-1, keepdims=True)
        p = jnp.exp(s - mx)
        l = jnp.sum(p, axis=-1, keepdims=True)
        p = p * pl.reciprocal(l, approx=True)       # EUP slot, keeps VPU free
        ctx = jnp.dot(p, v[:, sl], preferred_element_type=jnp.float32)      # (Sq, Dh)
        o_acc = o_acc + jnp.dot(ctx, wo[sl, :],
                                preferred_element_type=jnp.float32)         # (Sq, D)

    y = xq + o_acc + bo_ref[...]                    # residual add
    mean = jnp.mean(y, axis=-1, keepdims=True)
    c = y - mean
    var = jnp.mean(c * c, axis=-1, keepdims=True)
    yn = c * lax.rsqrt(var + eps)
    o_ref[0] = (yn * g_ref[...] + beta_ref[...]).astype(o_ref.dtype)


def fused_mha_ln(x_q, x_kv, ap, ln_g, ln_b, mask, *, n_heads, eps=1e-5, self_attn):
    B, Sq, D = x_q.shape
    Sk = x_kv.shape[1]
    has_mask = mask is not None
    kernel = functools.partial(_mha_ln_kernel, n_heads=n_heads,
                               scale=1.0 / math.sqrt(D // n_heads), eps=eps,
                               self_attn=self_attn, has_mask=has_mask)
    inputs = [x_q]
    in_specs = [pl.BlockSpec((1, Sq, D), lambda b: (b, 0, 0))]
    if not self_attn:
        inputs.append(x_kv)
        in_specs.append(pl.BlockSpec((1, Sk, D), lambda b: (b, 0, 0)))
    inputs += [ap["w_qkv"], ap["b_qkv"], ap["w_o"], ap["b_o"]]
    in_specs += [
        pl.BlockSpec((D, 3 * D), lambda b: (0, 0)),
        pl.BlockSpec((1, 3 * D), lambda b: (0, 0)),
        pl.BlockSpec((D, D), lambda b: (0, 0)),
        pl.BlockSpec((1, D), lambda b: (0, 0)),
    ]
    if has_mask:
        inputs.append(mask.astype(jnp.float32))
        in_specs.append(pl.BlockSpec((Sq, Sk), lambda b: (0, 0)))
    inputs += [ln_g.reshape(1, D), ln_b.reshape(1, D)]
    in_specs += [pl.BlockSpec((1, D), lambda b: (0, 0)),
                 pl.BlockSpec((1, D), lambda b: (0, 0))]
    return pl.pallas_call(
        kernel,
        out_shape=jax.ShapeDtypeStruct((B, Sq, D), x_q.dtype),
        grid=(B,),                                  # B >= 2 -> both v7x TCs busy
        in_specs=in_specs,
        out_specs=pl.BlockSpec((1, Sq, D), lambda b: (b, 0, 0)),
        compiler_params=pltpu.CompilerParams(
            dimension_semantics=("parallel",),
            vmem_limit_bytes=48 * 1024 * 1024),     # weight-resident, budget for v7x
    )(*inputs)


# --------------------------------------------------------------------------
# kernel 4: fused FFN (W1 + ReLU + W2) + residual + LayerNorm
# --------------------------------------------------------------------------
def _ffn_ln_kernel(x_ref, w1_ref, b1_ref, w2_ref, b2_ref, g_ref, beta_ref, o_ref, *, eps):
    x = x_ref[...]                                   # (tm, D)
    h = jnp.dot(x, w1_ref[...], preferred_element_type=jnp.float32) + b1_ref[...]
    h = jnp.maximum(h, 0.0)
    y = jnp.dot(h, w2_ref[...], preferred_element_type=jnp.float32) + b2_ref[...]
    y = x + y                                        # residual add
    mean = jnp.mean(y, axis=-1, keepdims=True)
    c = y - mean
    var = jnp.mean(c * c, axis=-1, keepdims=True)
    o_ref[...] = ((c * lax.rsqrt(var + eps)) * g_ref[...] + beta_ref[...]).astype(o_ref.dtype)


def fused_ffn_ln(x2d, w1, b1, w2, b2, g, beta, *, eps=1e-5):
    M, D = x2d.shape
    FF = w1.shape[1]
    tm = _row_tile(M)
    return pl.pallas_call(
        functools.partial(_ffn_ln_kernel, eps=eps),
        out_shape=jax.ShapeDtypeStruct((M, D), x2d.dtype),
        grid=(M // tm,),
        in_specs=[
            pl.BlockSpec((tm, D), lambda i: (i, 0)),
            pl.BlockSpec((D, FF), lambda i: (0, 0)),
            pl.BlockSpec((1, FF), lambda i: (0, 0)),
            pl.BlockSpec((FF, D), lambda i: (0, 0)),
            pl.BlockSpec((1, D), lambda i: (0, 0)),
            pl.BlockSpec((1, D), lambda i: (0, 0)),
            pl.BlockSpec((1, D), lambda i: (0, 0)),
        ],
        out_specs=pl.BlockSpec((tm, D), lambda i: (i, 0)),
        compiler_params=pltpu.CompilerParams(
            dimension_semantics=("parallel",),
            vmem_limit_bytes=48 * 1024 * 1024),
    )(x2d, w1, b1.reshape(1, FF), w2, b2.reshape(1, D), g.reshape(1, D), beta.reshape(1, D))


# --------------------------------------------------------------------------
# transformer building blocks (only layout plumbing outside the kernels)
# --------------------------------------------------------------------------
def encoder_layer(x, p, *, n_heads, eps=1e-5):
    B, S, D = x.shape
    x = fused_mha_ln(x, x, p["attn"], p["ln1_g"], p["ln1_b"], None,
                     n_heads=n_heads, eps=eps, self_attn=True)
    y = fused_ffn_ln(x.reshape(B * S, D), p["w1"], p["b1"], p["w2"], p["b2"],
                     p["ln2_g"], p["ln2_b"], eps=eps)
    return y.reshape(B, S, D)


def decoder_layer(x, memory, p, tgt_mask, mem_mask, *, n_heads, eps=1e-5):
    B, S, D = x.shape
    x = fused_mha_ln(x, x, p["self_attn"], p["ln1_g"], p["ln1_b"], tgt_mask,
                     n_heads=n_heads, eps=eps, self_attn=True)
    x = fused_mha_ln(x, memory, p["cross_attn"], p["ln2_g"], p["ln2_b"], mem_mask,
                     n_heads=n_heads, eps=eps, self_attn=False)
    y = fused_ffn_ln(x.reshape(B * S, D), p["w1"], p["b1"], p["w2"], p["b2"],
                     p["ln3_g"], p["ln3_b"], eps=eps)
    return y.reshape(B, S, D)


def time_series_transformer(src, tgt, params, *, n_heads, src_mask=None, tgt_mask=None):
    """Forward pass of the PyTorch TimeSeriesTransformer (batch_first=True, eval)."""
    B, Ss, _ = src.shape
    _, St, _ = tgt.shape
    D = params["enc_in_w"].shape[1]
    # encoder_input_layer + positional encoding (one fused kernel) + encoder stack
    x = encoder_input_posenc(src, params["enc_in_w"], params["enc_in_b"], params["pe"])
    for lp in params["enc_layers"]:
        x = encoder_layer(x, lp, n_heads=n_heads)
    memory = x
    # decoder_input_layer (the reference applies NO positional encoding here)
    y = linear(tgt.reshape(B * St, -1), params["dec_in_w"],
               params["dec_in_b"]).reshape(B, St, D)
    for lp in params["dec_layers"]:
        y = decoder_layer(y, memory, lp, tgt_mask, src_mask, n_heads=n_heads)
    out = linear(y.reshape(B * St, D), params["out_w"], params["out_b"])
    return out.reshape(B, St, -1)


# --------------------------------------------------------------------------
# parameter construction (deterministic); QKV weights fused, ragged K padded once
# --------------------------------------------------------------------------
def init_params(key, *, input_size, dim_val, n_enc, n_dec, ff_enc, ff_dec,
                num_pred, max_seq_len):
    def dense(k, fan_in, fan_out):
        k1, k2 = jax.random.split(k)
        bound = 1.0 / math.sqrt(fan_in)
        w = jax.random.uniform(k1, (fan_in, fan_out), jnp.float32, -bound, bound)
        b = jax.random.uniform(k2, (fan_out,), jnp.float32, -bound, bound)
        return w, b

    keys = iter(jax.random.split(key, 512))

    def attn_params(d):
        wq, bq = dense(next(keys), d, d)
        wk, bk = dense(next(keys), d, d)
        wv, bv = dense(next(keys), d, d)
        wo, bo = dense(next(keys), d, d)
        return dict(w_qkv=jnp.concatenate([wq, wk, wv], axis=1),       # fused (D, 3D)
                    b_qkv=jnp.concatenate([bq, bk, bv]).reshape(1, 3 * d),
                    w_o=wo, b_o=bo.reshape(1, d))

    def pad_rows(w):                                 # zero-pad contraction dim ONCE
        pad = (-w.shape[0]) % 8
        return jnp.pad(w, ((0, pad), (0, 0))) if pad else w

    params = {}
    w, b = dense(next(keys), input_size, dim_val)
    params["enc_in_w"], params["enc_in_b"] = pad_rows(w), b
    w, b = dense(next(keys), num_pred, dim_val)
    params["dec_in_w"], params["dec_in_b"] = pad_rows(w), b
    params["out_w"], params["out_b"] = dense(next(keys), dim_val, num_pred)
    params["pe"] = make_positional_encoding(max_seq_len, dim_val)

    def ffn_block(d, ff):
        w1, b1 = dense(next(keys), d, ff)
        w2, b2 = dense(next(keys), ff, d)
        return w1, b1, w2, b2

    enc_layers = []
    for _ in range(n_enc):
        w1, b1, w2, b2 = ffn_block(dim_val, ff_enc)
        enc_layers.append(dict(attn=attn_params(dim_val), w1=w1, b1=b1, w2=w2, b2=b2,
                               ln1_g=jnp.ones(dim_val, jnp.float32),
                               ln1_b=jnp.zeros(dim_val, jnp.float32),
                               ln2_g=jnp.ones(dim_val, jnp.float32),
                               ln2_b=jnp.zeros(dim_val, jnp.float32)))
    params["enc_layers"] = enc_layers

    dec_layers = []
    for _ in range(n_dec):
        w1, b1, w2, b2 = ffn_block(dim_val, ff_dec)
        dec_layers.append(dict(self_attn=attn_params(dim_val),
                               cross_attn=attn_params(dim_val),
                               w1=w1, b1=b1, w2=w2, b2=b2,
                               ln1_g=jnp.ones(dim_val, jnp.float32),
                               ln1_b=jnp.zeros(dim_val, jnp.float32),
                               ln2_g=jnp.ones(dim_val, jnp.float32),
                               ln2_b=jnp.zeros(dim_val, jnp.float32),
                               ln3_g=jnp.ones(dim_val, jnp.float32),
                               ln3_b=jnp.zeros(dim_val, jnp.float32)))
    params["dec_layers"] = dec_layers
    return params


# --------------------------------------------------------------------------
# pure-JAX reference (same math, eval mode) for correctness checking
# --------------------------------------------------------------------------
def _ref_linear(x, w, b):
    return jnp.dot(x, w, precision=lax.Precision.HIGHEST) + b


def _ref_ln(x, g, b, eps=1e-5):
    m = jnp.mean(x, -1, keepdims=True)
    v = jnp.mean((x - m) ** 2, -1, keepdims=True)
    return (x - m) * lax.rsqrt(v + eps) * g + b


def _ref_mha(q_in, kv_in, p, mask, n_heads):
    B, Sq, D = q_in.shape
    Sk = kv_in.shape[1]
    Dh = D // n_heads
    wq, wk, wv = p["w_qkv"][:, :D], p["w_qkv"][:, D:2 * D], p["w_qkv"][:, 2 * D:]
    bq, bk, bv = p["b_qkv"][0, :D], p["b_qkv"][0, D:2 * D], p["b_qkv"][0, 2 * D:]
    q = _ref_linear(q_in, wq, bq).reshape(B, Sq, n_heads, Dh).transpose(0, 2, 1, 3)
    k = _ref_linear(kv_in, wk, bk).reshape(B, Sk, n_heads, Dh).transpose(0, 2, 1, 3)
    v = _ref_linear(kv_in, wv, bv).reshape(B, Sk, n_heads, Dh).transpose(0, 2, 1, 3)
    s = jnp.einsum("bhqd,bhkd->bhqk", q, k,
                   precision=lax.Precision.HIGHEST) / math.sqrt(Dh)
    if mask is not None:
        s = s + mask
    a = jax.nn.softmax(s, axis=-1)
    o = jnp.einsum("bhqk,bhkd->bhqd", a, v, precision=lax.Precision.HIGHEST)
    o = o.transpose(0, 2, 1, 3).reshape(B, Sq, D)
    return _ref_linear(o, p["w_o"], p["b_o"][0])


def _ref_forward(src, tgt, params, n_heads, tgt_mask=None, src_mask=None):
    x = _ref_linear(src, params["enc_in_w"][:src.shape[-1]], params["enc_in_b"])
    x = x + params["pe"][:x.shape[1]][None, :, :]
    for p in params["enc_layers"]:
        a = _ref_mha(x, x, p["attn"], None, n_heads)
        x = _ref_ln(x + a, p["ln1_g"], p["ln1_b"])
        h = jnp.maximum(_ref_linear(x, p["w1"], p["b1"]), 0.0)
        h = _ref_linear(h, p["w2"], p["b2"])
        x = _ref_ln(x + h, p["ln2_g"], p["ln2_b"])
    y = _ref_linear(tgt, params["dec_in_w"][:tgt.shape[-1]], params["dec_in_b"])
    for p in params["dec_layers"]:
        a = _ref_mha(y, y, p["self_attn"], tgt_mask, n_heads)
        y = _ref_ln(y + a, p["ln1_g"], p["ln1_b"])
        a = _ref_mha(y, x, p["cross_attn"], src_mask, n_heads)
        y = _ref_ln(y + a, p["ln2_g"], p["ln2_b"])
        h = jnp.maximum(_ref_linear(y, p["w1"], p["b1"]), 0.0)
        h = _ref_linear(h, p["w2"], p["b2"])
        y = _ref_ln(y + h, p["ln3_g"], p["ln3_b"])
    return _ref_linear(y, params["out_w"], params["out_b"])


# --------------------------------------------------------------------------
# demo
# --------------------------------------------------------------------------
if __name__ == "__main__":
    # Small shapes consistent with the module (scaled-down hyperparameters).
    B = 2
    SRC_SEQ = 8          # encoder sequence length
    DEC_SEQ = 8          # decoder sequence length
    INPUT_SIZE = 4       # input features per timestep
    DIM_VAL = 32         # d_model
    N_HEADS = 4
    N_ENC = 2
    N_DEC = 2
    FF = 64              # feedforward width
    NUM_PRED = 1
    MAX_SEQ_LEN = 16

    root = jax.random.PRNGKey(0)
    k_src, k_tgt, k_par = jax.random.split(root, 3)
    src = jax.random.normal(k_src, (B, SRC_SEQ, INPUT_SIZE), jnp.float32)
    tgt = jax.random.normal(k_tgt, (B, DEC_SEQ, NUM_PRED), jnp.float32)
    params = init_params(k_par, input_size=INPUT_SIZE, dim_val=DIM_VAL,
                         n_enc=N_ENC, n_dec=N_DEC, ff_enc=FF, ff_dec=FF,
                         num_pred=NUM_PRED, max_seq_len=MAX_SEQ_LEN)

    # Causal mask for the decoder self-attention (additive).
    tgt_mask = jnp.where(jnp.triu(jnp.ones((DEC_SEQ, DEC_SEQ), bool), k=1),
                         -1e9, 0.0).astype(jnp.float32)

    fwd = jax.jit(functools.partial(time_series_transformer, n_heads=N_HEADS))
    out = fwd(src, tgt, params, tgt_mask=tgt_mask)
    out = jax.block_until_ready(out)

    ref = _ref_forward(src, tgt, params, N_HEADS, tgt_mask=tgt_mask, src_mask=None)
    assert out.shape == (B, DEC_SEQ, NUM_PRED)
    max_err = float(jnp.max(jnp.abs(out - ref)))
    # Tolerance accounts for the EUP approximate reciprocal in the softmax.
    assert jnp.allclose(out, ref, atol=1e-2, rtol=1e-2), max_err

    print("KERNEL_OK")
</pallas_src>

<mosaic_0001>
module attributes {stable_mosaic.version = 11 : i64} {
  func.func @_enc_input_kernel(%arg0: i32, %arg1: memref<1x8x8xf32, #tpu.memory_space<vmem>>, %arg2: memref<8x32xf32, #tpu.memory_space<vmem>>, %arg3: memref<1x32xf32, #tpu.memory_space<vmem>>, %arg4: memref<8x32xf32, #tpu.memory_space<vmem>>, %arg5: memref<1x8x32xf32, #tpu.memory_space<vmem>>) attributes {dimension_semantics = [#tpu.dimension_semantics<parallel>], iteration_bounds = array<i64: 2>, scalar_prefetch = 0 : i64, scratch_operands = 0 : i64, tpu.core_type = #tpu.core_type<tc>, window_params = [{transform_indices = @transform_0, window_bounds = array<i64: 1, 8, 8>}, {pipeline_mode = #tpu.pipeline_mode<synchronous>, transform_indices = @transform_1, window_bounds = array<i64: 8, 32>}, {pipeline_mode = #tpu.pipeline_mode<synchronous>, transform_indices = @transform_2, window_bounds = array<i64: 1, 32>}, {pipeline_mode = #tpu.pipeline_mode<synchronous>, transform_indices = @transform_3, window_bounds = array<i64: 8, 32>}, {transform_indices = @transform_4, window_bounds = array<i64: 1, 8, 32>}]} {
    %c0 = arith.constant 0 : index
    %c0_0 = arith.constant 0 : index
    %c0_1 = arith.constant 0 : index
    %0 = vector.load %arg1[%c0, %c0_0, %c0_1] : memref<1x8x8xf32, #tpu.memory_space<vmem>>, vector<1x8x8xf32>
    %1 = vector.shape_cast %0 : vector<1x8x8xf32> to vector<8x8xf32>
    %c0_2 = arith.constant 0 : index
    %c0_3 = arith.constant 0 : index
    %2 = vector.load %arg2[%c0_2, %c0_3] : memref<8x32xf32, #tpu.memory_space<vmem>>, vector<8x32xf32>
    %cst = arith.constant dense<0.000000e+00> : vector<8x32xf32>
    %3 = tpu.matmul %1, %2, %cst {dimension_numbers = #tpu.dot_dimension_numbers<[1], [0], [0], [1], [0, 0, 1, 1], [], []>} : vector<8x8xf32>, vector<8x32xf32>, vector<8x32xf32> -> vector<8x32xf32>
    %c0_4 = arith.constant 0 : index
    %c0_5 = arith.constant 0 : index
    %4 = vector.load %arg3[%c0_4, %c0_5] : memref<1x32xf32, #tpu.memory_space<vmem>>, vector<1x32xf32>
    %5 = vector.broadcast %4 : vector<1x32xf32> to vector<8x32xf32>
    %6 = arith.addf %3, %5 : vector<8x32xf32>
    %c0_6 = arith.constant 0 : index
    %c0_7 = arith.constant 0 : index
    %7 = vector.load %arg4[%c0_6, %c0_7] : memref<8x32xf32, #tpu.memory_space<vmem>>, vector<8x32xf32>
    %8 = arith.addf %6, %7 : vector<8x32xf32>
    %c0_8 = arith.constant 0 : index
    %c0_9 = arith.constant 0 : index
    %c0_10 = arith.constant 0 : index
    %9 = vector.load %arg5[%c0_8, %c0_9, %c0_10] : memref<1x8x32xf32, #tpu.memory_space<vmem>>, vector<1x8x32xf32>
    %10 = vector.shape_cast %9 : vector<1x8x32xf32> to vector<8x32xf32>
    %11 = vector.shape_cast %8 : vector<8x32xf32> to vector<1x8x32xf32>
    tpu.vector_store %arg5[%c0_8, %c0_9, %c0_10], %11 {strides = array<i32>} : memref<1x8x32xf32, #tpu.memory_space<vmem>>, vector<1x8x32xf32>,
    return
  }
  func.func @transform_0(%arg0: i32) -> (i32, i32, i32) {
    %c0_i32 = arith.constant 0 : i32
    %c0_i32_0 = arith.constant 0 : i32
    %c0_i32_1 = arith.constant 0 : i32
    return %arg0, %c0_i32, %c0_i32_0 : i32, i32, i32
  }
  func.func @transform_1(%arg0: i32) -> (i32, i32) {
    %c0_i32 = arith.constant 0 : i32
    %c0_i32_0 = arith.constant 0 : i32
    %c0_i32_1 = arith.constant 0 : i32
    return %c0_i32, %c0_i32_0 : i32, i32
  }
  func.func @transform_2(%arg0: i32) -> (i32, i32) {
    %c0_i32 = arith.constant 0 : i32
    %c0_i32_0 = arith.constant 0 : i32
    %c0_i32_1 = arith.constant 0 : i32
    return %c0_i32, %c0_i32_0 : i32, i32
  }
  func.func @transform_3(%arg0: i32) -> (i32, i32) {
    %c0_i32 = arith.constant 0 : i32
    %c0_i32_0 = arith.constant 0 : i32
    %c0_i32_1 = arith.constant 0 : i32
    return %c0_i32, %c0_i32_0 : i32, i32
  }
  func.func @transform_4(%arg0: i32) -> (i32, i32, i32) {
    %c0_i32 = arith.constant 0 : i32
    %c0_i32_0 = arith.constant 0 : i32
    %c0_i32_1 = arith.constant 0 : i32
    return %arg0, %c0_i32, %c0_i32_0 : i32, i32, i32
  }
}

module attributes {stable_mosaic.version = 11 : i64} {
  func.func @_mha_ln_kernel(%arg0: i32, %arg1: memref<1x8x32xf32, #tpu.memory_space<vmem>>, %arg2: memref<32x96xf32, #tpu.memory_space<vmem>>, %arg3: memref<1x96xf32, #tpu.memory_space<vmem>>, %arg4: memref<32x32xf32, #tpu.memory_space<vmem>>, %arg5: memref<1x32xf32, #tpu.memory_space<vmem>>, %arg6: memref<1x32xf32, #tpu.memory_space<vmem>>, %arg7: memref<1x32xf32, #tpu.memory_space<vmem>>, %arg8: memref<1x8x32xf32, #tpu.memory_space<vmem>>) attributes {dimension_semantics = [#tpu.dimension_semantics<parallel>], iteration_bounds = array<i64: 2>, scalar_prefetch = 0 : i64, scratch_operands = 0 : i64, tpu.core_type = #tpu.core_type<tc>, window_params = [{transform_indices = @transform_0, window_bounds = array<i64: 1, 8, 32>}, {pipeline_mode = #tpu.pipeline_mode<synchronous>, transform_indices = @transform_1, window_bounds = array<i64: 32, 96>}, {pipeline_mode = #tpu.pipeline_mode<synchronous>, transform_indices = @transform_2, window_bounds = array<i64: 1, 96>}, {pipeline_mode = #tpu.pipeline_mode<synchronous>, transform_indices = @transform_3, window_bounds = array<i64: 32, 32>}, {pipeline_mode = #tpu.pipeline_mode<synchronous>, transform_indices = @transform_4, window_bounds = array<i64: 1, 32>}, {pipeline_mode = #tpu.pipeline_mode<synchronous>, transform_indices = @transform_5, window_bounds = array<i64: 1, 32>}, {pipeline_mode = #tpu.pipeline_mode<synchronous>, transform_indices = @transform_6, window_bounds = array<i64: 1, 32>}, {transform_indices = @transform_7, window_bounds = array<i64: 1, 8, 32>}]} {
    %c0 = arith.constant 0 : index
    %c0_0 = arith.constant 0 : index
    %c0_1 = arith.constant 0 : index
    %0 = vector.load %arg1[%c0, %c0_0, %c0_1] : memref<1x8x32xf32, #tpu.memory_space<vmem>>, vector<1x8x32xf32>
    %1 = vector.shape_cast %0 : vector<1x8x32xf32> to vector<8x32xf32>
    %c0_2 = arith.constant 0 : index
    %c0_3 = arith.constant 0 : index
    %2 = vector.load %arg2[%c0_2, %c0_3] : memref<32x96xf32, #tpu.memory_space<vmem>>, vector<32x96xf32>
    %c0_4 = arith.constant 0 : index
    %c0_5 = arith.constant 0 : index
    %3 = vector.load %arg3[%c0_4, %c0_5] : memref<1x96xf32, #tpu.memory_space<vmem>>, vector<1x96xf32>
    %cst = arith.constant dense<0.000000e+00> : vector<8x96xf32>
    %4 = tpu.matmul %1, %2, %cst {dimension_numbers = #tpu.dot_dimension_numbers<[1], [0], [0], [1], [0, 0, 1, 1], [], []>} : vector<8x32xf32>, vector<32x96xf32>, vector<8x96xf32> -> vector<8x96xf32>
    %5 = vector.broadcast %3 : vector<1x96xf32> to vector<8x96xf32>
    %6 = arith.addf %4, %5 : vector<8x96xf32>
    %7 = vector.extract_strided_slice %6 {offsets = [0, 0], sizes = [8, 32], strides = [1, 1]} : vector<8x96xf32> to vector<8x32xf32>
    %8 = vector.extract_strided_slice %6 {offsets = [0, 32], sizes = [8, 32], strides = [1, 1]} : vector<8x96xf32> to vector<8x32xf32>
    %9 = vector.extract_strided_slice %6 {offsets = [0, 64], sizes = [8, 32], strides = [1, 1]} : vector<8x96xf32> to vector<8x32xf32>
    %c0_6 = arith.constant 0 : index
    %c0_7 = arith.constant 0 : index
    %10 = vector.load %arg4[%c0_6, %c0_7] : memref<32x32xf32, #tpu.memory_space<vmem>>, vector<32x32xf32>
    %cst_8 = arith.constant 0.000000e+00 : f32
    %11 = vector.broadcast %cst_8 : f32 to vector<8x32xf32>
    %12 = vector.extract_strided_slice %7 {offsets = [0, 0], sizes = [8, 8], strides = [1, 1]} : vector<8x32xf32> to vector<8x8xf32>
    %13 = vector.extract_strided_slice %8 {offsets = [0, 0], sizes = [8, 8], strides = [1, 1]} : vector<8x32xf32> to vector<8x8xf32>
    %cst_9 = arith.constant dense<0.000000e+00> : vector<8x8xf32>
    %14 = tpu.matmul %12, %13, %cst_9 {dimension_numbers = #tpu.dot_dimension_numbers<[1], [1], [0], [0], [0, 0, 1, 0], [], []>} : vector<8x8xf32>, vector<8x8xf32>, vector<8x8xf32> -> vector<8x8xf32>
    %cst_10 = arith.constant 0.353553385 : f32
    %15 = vector.broadcast %cst_10 : f32 to vector<8x8xf32>
    %16 = arith.mulf %14, %15 : vector<8x8xf32>
    %cst_11 = arith.constant dense<0xFF800000> : vector<8xf32>
    %17 = vector.multi_reduction <maximumf>, %16, %cst_11 [1] : vector<8x8xf32> to vector<8xf32>
    %18 = vector.shape_cast %17 : vector<8xf32> to vector<8x1xf32>
    %19 = vector.broadcast %18 : vector<8x1xf32> to vector<8x8xf32>
    %20 = arith.subf %16, %19 : vector<8x8xf32>
    %21 = math.exp %20 : vector<8x8xf32>
    %cst_12 = arith.constant dense<0.000000e+00> : vector<8xf32>
    %22 = vector.multi_reduction <add>, %21, %cst_12 [1] : vector<8x8xf32> to vector<8xf32>
    %23 = vector.shape_cast %22 : vector<8xf32> to vector<8x1xf32>
    %24 = tpu.reciprocal %23 {approx = true} : vector<8x1xf32> -> vector<8x1xf32>
    %25 = vector.broadcast %24 : vector<8x1xf32> to vector<8x8xf32>
    %26 = arith.mulf %21, %25 : vector<8x8xf32>
    %27 = vector.extract_strided_slice %9 {offsets = [0, 0], sizes = [8, 8], strides = [1, 1]} : vector<8x32xf32> to vector<8x8xf32>
    %cst_13 = arith.constant dense<0.000000e+00> : vector<8x8xf32>
    %28 = tpu.matmul %26, %27, %cst_13 {dimension_numbers = #tpu.dot_dimension_numbers<[1], [0], [0], [1], [0, 0, 1, 1], [], []>} : vector<8x8xf32>, vector<8x8xf32>, vector<8x8xf32> -> vector<8x8xf32>
    %29 = vector.extract_strided_slice %10 {offsets = [0, 0], sizes = [8, 32], strides = [1, 1]} : vector<32x32xf32> to vector<8x32xf32>
    %cst_14 = arith.constant dense<0.000000e+00> : vector<8x32xf32>
    %30 = tpu.matmul %28, %29, %cst_14 {dimension_numbers = #tpu.dot_dimension_numbers<[1], [0], [0], [1], [0, 0, 1, 1], [], []>} : vector<8x8xf32>, vector<8x32xf32>, vector<8x32xf32> -> vector<8x32xf32>
    %31 = arith.addf %11, %30 : vector<8x32xf32>
    %32 = vector.extract_strided_slice %7 {offsets = [0, 8], sizes = [8, 8], strides = [1, 1]} : vector<8x32xf32> to vector<8x8xf32>
    %33 = vector.extract_strided_slice %8 {offsets = [0, 8], sizes = [8, 8], strides = [1, 1]} : vector<8x32xf32> to vector<8x8xf32>
    %cst_15 = arith.constant dense<0.000000e+00> : vector<8x8xf32>
    %34 = tpu.matmul %32, %33, %cst_15 {dimension_numbers = #tpu.dot_dimension_numbers<[1], [1], [0], [0], [0, 0, 1, 0], [], []>} : vector<8x8xf32>, vector<8x8xf32>, vector<8x8xf32> -> vector<8x8xf32>
    %cst_16 = arith.constant 0.353553385 : f32
    %35 = vector.broadcast %cst_16 : f32 to vector<8x8xf32>
    %36 = arith.mulf %34, %35 : vector<8x8xf32>
    %cst_17 = arith.constant dense<0xFF800000> : vector<8xf32>
    %37 = vector.multi_reduction <maximumf>, %36, %cst_17 [1] : vector<8x8xf32> to vector<8xf32>
    %38 = vector.shape_cast %37 : vector<8xf32> to vector<8x1xf32>
    %39 = vector.broadcast %38 : vector<8x1xf32> to vector<8x8xf32>
    %40 = arith.subf %36, %39 : vector<8x8xf32>
    %41 = math.exp %40 : vector<8x8xf32>
    %cst_18 = arith.constant dense<0.000000e+00> : vector<8xf32>
    %42 = vector.multi_reduction <add>, %41, %cst_18 [1] : vector<8x8xf32> to vector<8xf32>
    %43 = vector.shape_cast %42 : vector<8xf32> to vector<8x1xf32>
    %44 = tpu.reciprocal %43 {approx = true} : vector<8x1xf32> -> vector<8x1xf32>
    %45 = vector.broadcast %44 : vector<8x1xf32> to vector<8x8xf32>
    %46 = arith.mulf %41, %45 : vector<8x8xf32>
    %47 = vector.extract_strided_slice %9 {offsets = [0, 8], sizes = [8, 8], strides = [1, 1]} : vector<8x32xf32> to vector<8x8xf32>
    %cst_19 = arith.constant dense<0.000000e+00> : vector<8x8xf32>
    %48 = tpu.matmul %46, %47, %cst_19 {dimension_numbers = #tpu.dot_dimension_numbers<[1], [0], [0], [1], [0, 0, 1, 1], [], []>} : vector<8x8xf32>, vector<8x8xf32>, vector<8x8xf32> -> vector<8x8xf32>
    %49 = vector.extract_strided_slice %10 {offsets = [8, 0], sizes = [8, 32], strides = [1, 1]} : vector<32x32xf32> to vector<8x32xf32>
    %cst_20 = arith.constant dense<0.000000e+00> : vector<8x32xf32>
    %50 = tpu.matmul %48, %49, %cst_20 {dimension_numbers = #tpu.dot_dimension_numbers<[1], [0], [0], [1], [0, 0, 1, 1], [], []>} : vector<8x8xf32>, vector<8x32xf32>, vector<8x32xf32> -> vector<8x32xf32>
    %51 = arith.addf %31, %50 : vector<8x32xf32>
    %52 = vector.extract_strided_slice %7 {offsets = [0, 16], sizes = [8, 8], strides = [1, 1]} : vector<8x32xf32> to vector<8x8xf32>
    %53 = vector.extract_strided_slice %8 {offsets = [0, 16], sizes = [8, 8], strides = [1, 1]} : vector<8x32xf32> to vector<8x8xf32>
    %cst_21 = arith.constant dense<0.000000e+00> : vector<8x8xf32>
    %54 = tpu.matmul %52, %53, %cst_21 {dimension_numbers = #tpu.dot_dimension_numbers<[1], [1], [0], [0], [0, 0, 1, 0], [], []>} : vector<8x8xf32>, vector<8x8xf32>, vector<8x8xf32> -> vector<8x8xf32>
    %cst_22 = arith.constant 0.353553385 : f32
    %55 = vector.broadcast %cst_22 : f32 to vector<8x8xf32>
    %56 = arith.mulf %54, %55 : vector<8x8xf32>
    %cst_23 = arith.constant dense<0xFF800000> : vector<8xf32>
    %57 = vector.multi_reduction <maximumf>, %56, %cst_23 [1] : vector<8x8xf32> to vector<8xf32>
    %58 = vector.shape_cast %57 : vector<8xf32> to vector<8x1xf32>
    %59 = vector.broadcast %58 : vector<8x1xf32> to vector<8x8xf32>
    %60 = arith.subf %56, %59 : vector<8x8xf32>
    %61 = math.exp %60 : vector<8x8xf32>
    %cst_24 = arith.constant dense<0.000000e+00> : vector<8xf32>
    %62 = vector.multi_reduction <add>, %61, %cst_24 [1] : vector<8x8xf32> to vector<8xf32>
    %63 = vector.shape_cast %62 : vector<8xf32> to vector<8x1xf32>
    %64 = tpu.reciprocal %63 {approx = true} : vector<8x1xf32> -> vector<8x1xf32>
    %65 = vector.broadcast %64 : vector<8x1xf32> to vector<8x8xf32>
    %66 = arith.mulf %61, %65 : vector<8x8xf32>
    %67 = vector.extract_strided_slice %9 {offsets = [0, 16], sizes = [8, 8], strides = [1, 1]} : vector<8x32xf32> to vector<8x8xf32>
    %cst_25 = arith.constant dense<0.000000e+00> : vector<8x8xf32>
    %68 = tpu.matmul %66, %67, %cst_25 {dimension_numbers = #tpu.dot_dimension_numbers<[1], [0], [0], [1], [0, 0, 1, 1], [], []>} : vector<8x8xf32>, vector<8x8xf32>, vector<8x8xf32> -> vector<8x8xf32>
    %69 = vector.extract_strided_slice %10 {offsets = [16, 0], sizes = [8, 32], strides = [1, 1]} : vector<32x32xf32> to vector<8x32xf32>
    %cst_26 = arith.constant dense<0.000000e+00> : vector<8x32xf32>
    %70 = tpu.matmul %68, %69, %cst_26 {dimension_numbers = #tpu.dot_dimension_numbers<[1], [0], [0], [1], [0, 0, 1, 1], [], []>} : vector<8x8xf32>, vector<8x32xf32>, vector<8x32xf32> -> vector<8x32xf32>
    %71 = arith.addf %51, %70 : vector<8x32xf32>
    %72 = vector.extract_strided_slice %7 {offsets = [0, 24], sizes = [8, 8], strides = [1, 1]} : vector<8x32xf32> to vector<8x8xf32>
    %73 = vector.extract_strided_slice %8 {offsets = [0, 24], sizes = [8, 8], strides = [1, 1]} : vector<8x32xf32> to vector<8x8xf32>
    %cst_27 = arith.constant dense<0.000000e+00> : vector<8x8xf32>
    %74 = tpu.matmul %72, %73, %cst_27 {dimension_numbers = #tpu.dot_dimension_numbers<[1], [1], [0], [0], [0, 0, 1, 0], [], []>} : vector<8x8xf32>, vector<8x8xf32>, vector<8x8xf32> -> vector<8x8xf32>
    %cst_28 = arith.constant 0.353553385 : f32
    %75 = vector.broadcast %cst_28 : f32 to vector<8x8xf32>
    %76 = arith.mulf %74, %75 : vector<8x8xf32>
    %cst_29 = arith.constant dense<0xFF800000> : vector<8xf32>
    %77 = vector.multi_reduction <maximumf>, %76, %cst_29 [1] : vector<8x8xf32> to vector<8xf32>
    %78 = vector.shape_cast %77 : vector<8xf32> to vector<8x1xf32>
    %79 = vector.broadcast %78 : vector<8x1xf32> to vector<8x8xf32>
    %80 = arith.subf %76, %79 : vector<8x8xf32>
    %81 = math.exp %80 : vector<8x8xf32>
    %cst_30 = arith.constant dense<0.000000e+00> : vector<8xf32>
    %82 = vector.multi_reduction <add>, %81, %cst_30 [1] : vector<8x8xf32> to vector<8xf32>
    %83 = vector.shape_cast %82 : vector<8xf32> to vector<8x1xf32>
    %84 = tpu.reciprocal %83 {approx = true} : vector<8x1xf32> -> vector<8x1xf32>
    %85 = vector.broadcast %84 : vector<8x1xf32> to vector<8x8xf32>
    %86 = arith.mulf %81, %85 : vector<8x8xf32>
    %87 = vector.extract_strided_slice %9 {offsets = [0, 24], sizes = [8, 8], strides = [1, 1]} : vector<8x32xf32> to vector<8x8xf32>
    %cst_31 = arith.constant dense<0.000000e+00> : vector<8x8xf32>
    %88 = tpu.matmul %86, %87, %cst_31 {dimension_numbers = #tpu.dot_dimension_numbers<[1], [0], [0], [1], [0, 0, 1, 1], [], []>} : vector<8x8xf32>, vector<8x8xf32>, vector<8x8xf32> -> vector<8x8xf32>
    %89 = vector.extract_strided_slice %10 {offsets = [24, 0], sizes = [8, 32], strides = [1, 1]} : vector<32x32xf32> to vector<8x32xf32>
    %cst_32 = arith.constant dense<0.000000e+00> : vector<8x32xf32>
    %90 = tpu.matmul %88, %89, %cst_32 {dimension_numbers = #tpu.dot_dimension_numbers<[1], [0], [0], [1], [0, 0, 1, 1], [], []>} : vector<8x8xf32>, vector<8x32xf32>, vector<8x32xf32> -> vector<8x32xf32>
    %91 = arith.addf %71, %90 : vector<8x32xf32>
    %92 = arith.addf %1, %91 : vector<8x32xf32>
    %c0_33 = arith.constant 0 : index
    %c0_34 = arith.constant 0 : index
    %93 = vector.load %arg5[%c0_33, %c0_34] : memref<1x32xf32, #tpu.memory_space<vmem>>, vector<1x32xf32>
    %94 = vector.broadcast %93 : vector<1x32xf32> to vector<8x32xf32>
    %95 = arith.addf %92, %94 : vector<8x32xf32>
    %cst_35 = arith.constant dense<0.000000e+00> : vector<8xf32>
    %96 = vector.multi_reduction <add>, %95, %cst_35 [1] : vector<8x32xf32> to vector<8xf32>
    %97 = vector.shape_cast %96 : vector<8xf32> to vector<8x1xf32>
    %cst_36 = arith.constant 3.200000e+01 : f32
    %98 = vector.broadcast %cst_36 : f32 to vector<8x1xf32>
    %99 = arith.divf %97, %98 : vector<8x1xf32>
    %100 = vector.broadcast %99 : vector<8x1xf32> to vector<8x32xf32>
    %101 = arith.subf %95, %100 : vector<8x32xf32>
    %102 = arith.mulf %101, %101 : vector<8x32xf32>
    %cst_37 = arith.constant dense<0.000000e+00> : vector<8xf32>
    %103 = vector.multi_reduction <add>, %102, %cst_37 [1] : vector<8x32xf32> to vector<8xf32>
    %104 = vector.shape_cast %103 : vector<8xf32> to vector<8x1xf32>
    %cst_38 = arith.constant 3.200000e+01 : f32
    %105 = vector.broadcast %cst_38 : f32 to vector<8x1xf32>
    %106 = arith.divf %104, %105 : vector<8x1xf32>
    %cst_39 = arith.constant 9.99999974E-6 : f32
    %107 = vector.broadcast %cst_39 : f32 to vector<8x1xf32>
    %108 = arith.addf %106, %107 : vector<8x1xf32>
    %109 = math.rsqrt %108 : vector<8x1xf32>
    %110 = vector.broadcast %109 : vector<8x1xf32> to vector<8x32xf32>
    %111 = arith.mulf %101, %110 : vector<8x32xf32>
    %c0_40 = arith.constant 0 : index
    %c0_41 = arith.constant 0 : index
    %112 = vector.load %arg6[%c0_40, %c0_41] : memref<1x32xf32, #tpu.memory_space<vmem>>, vector<1x32xf32>
    %113 = vector.broadcast %112 : vector<1x32xf32> to vector<8x32xf32>
    %114 = arith.mulf %111, %113 : vector<8x32xf32>
    %c0_42 = arith.constant 0 : index
    %c0_43 = arith.constant 0 : index
    %115 = vector.load %arg7[%c0_42, %c0_43] : memref<1x32xf32, #tpu.memory_space<vmem>>, vector<1x32xf32>
    %116 = vector.broadcast %115 : vector<1x32xf32> to vector<8x32xf32>
    %117 = arith.addf %114, %116 : vector<8x32xf32>
    %c0_44 = arith.constant 0 : index
    %c0_45 = arith.constant 0 : index
    %c0_46 = arith.constant 0 : index
    %118 = vector.load %arg8[%c0_44, %c0_45, %c0_46] : memref<1x8x32xf32, #tpu.memory_space<vmem>>, vector<1x8x32xf32>
    %119 = vector.shape_cast %118 : vector<1x8x32xf32> to vector<8x32xf32>
    %120 = vector.shape_cast %117 : vector<8x32xf32> to vector<1x8x32xf32>
    tpu.vector_store %arg8[%c0_44, %c0_45, %c0_46], %120 {strides = array<i32>} : memref<1x8x32xf32, #tpu.memory_space<vmem>>, vector<1x8x32xf32>,
    return
  }
  func.func @transform_0(%arg0: i32) -> (i32, i32, i32) {
    %c0_i32 = arith.constant 0 : i32
    %c0_i32_0 = arith.constant 0 : i32
    %c0_i32_1 = arith.constant 0 : i32
    return %arg0, %c0_i32, %c0_i32_0 : i32, i32, i32
  }
  func.func @transform_1(%arg0: i32) -> (i32, i32) {
    %c0_i32 = arith.constant 0 : i32
    %c0_i32_0 = arith.constant 0 : i32
    %c0_i32_1 = arith.constant 0 : i32
    return %c0_i32, %c0_i32_0 : i32, i32
  }
  func.func @transform_2(%arg0: i32) -> (i32, i32) {
    %c0_i32 = arith.constant 0 : i32
    %c0_i32_0 = arith.constant 0 : i32
    %c0_i32_1 = arith.constant 0 : i32
    return %c0_i32, %c0_i32_0 : i32, i32
  }
  func.func @transform_3(%arg0: i32) -> (i32, i32) {
    %c0_i32 = arith.constant 0 : i32
    %c0_i32_0 = arith.constant 0 : i32
    %c0_i32_1 = arith.constant 0 : i32
    return %c0_i32, %c0_i32_0 : i32, i32
  }
  func.func @transform_4(%arg0: i32) -> (i32, i32) {
    %c0_i32 = arith.constant 0 : i32
    %c0_i32_0 = arith.constant 0 : i32
    %c0_i32_1 = arith.constant 0 : i32
    return %c0_i32, %c0_i32_0 : i32, i32
  }
  func.func @transform_5(%arg0: i32) -> (i32, i32) {
    %c0_i32 = arith.constant 0 : i32
    %c0_i32_0 = arith.constant 0 : i32
    %c0_i32_1 = arith.constant 0 : i32
    return %c0_i32, %c0_i32_0 : i32, i32
  }
  func.func @transform_6(%arg0: i32) -> (i32, i32) {
    %c0_i32 = arith.constant 0 : i32
    %c0_i32_0 = arith.constant 0 : i32
    %c0_i32_1 = arith.constant 0 : i32
    return %c0_i32, %c0_i32_0 : i32, i32
  }
  func.func @transform_7(%arg0: i32) -> (i32, i32, i32) {
    %c0_i32 = arith.constant 0 : i32
    %c0_i32_0 = arith.constant 0 : i32
    %c0_i32_1 = arith.constant 0 : i32
    return %arg0, %c0_i32, %c0_i32_0 : i32, i32, i32
  }
}

module attributes {stable_mosaic.version = 11 : i64} {
  func.func @_ffn_ln_kernel(%arg0: i32, %arg1: memref<8x32xf32, #tpu.memory_space<vmem>>, %arg2: memref<32x64xf32, #tpu.memory_space<vmem>>, %arg3: memref<1x64xf32, #tpu.memory_space<vmem>>, %arg4: memref<64x32xf32, #tpu.memory_space<vmem>>, %arg5: memref<1x32xf32, #tpu.memory_space<vmem>>, %arg6: memref<1x32xf32, #tpu.memory_space<vmem>>, %arg7: memref<1x32xf32, #tpu.memory_space<vmem>>, %arg8: memref<8x32xf32, #tpu.memory_space<vmem>>) attributes {dimension_semantics = [#tpu.dimension_semantics<parallel>], iteration_bounds = array<i64: 2>, scalar_prefetch = 0 : i64, scratch_operands = 0 : i64, tpu.core_type = #tpu.core_type<tc>, window_params = [{transform_indices = @transform_0, window_bounds = array<i64: 8, 32>}, {pipeline_mode = #tpu.pipeline_mode<synchronous>, transform_indices = @transform_1, window_bounds = array<i64: 32, 64>}, {pipeline_mode = #tpu.pipeline_mode<synchronous>, transform_indices = @transform_2, window_bounds = array<i64: 1, 64>}, {pipeline_mode = #tpu.pipeline_mode<synchronous>, transform_indices = @transform_3, window_bounds = array<i64: 64, 32>}, {pipeline_mode = #tpu.pipeline_mode<synchronous>, transform_indices = @transform_4, window_bounds = array<i64: 1, 32>}, {pipeline_mode = #tpu.pipeline_mode<synchronous>, transform_indices = @transform_5, window_bounds = array<i64: 1, 32>}, {pipeline_mode = #tpu.pipeline_mode<synchronous>, transform_indices = @transform_6, window_bounds = array<i64: 1, 32>}, {transform_indices = @transform_7, window_bounds = array<i64: 8, 32>}]} {
    %c0 = arith.constant 0 : index
    %c0_0 = arith.constant 0 : index
    %0 = vector.load %arg1[%c0, %c0_0] : memref<8x32xf32, #tpu.memory_space<vmem>>, vector<8x32xf32>
    %c0_1 = arith.constant 0 : index
    %c0_2 = arith.constant 0 : index
    %1 = vector.load %arg2[%c0_1, %c0_2] : memref<32x64xf32, #tpu.memory_space<vmem>>, vector<32x64xf32>
    %cst = arith.constant dense<0.000000e+00> : vector<8x64xf32>
    %2 = tpu.matmul %0, %1, %cst {dimension_numbers = #tpu.dot_dimension_numbers<[1], [0], [0], [1], [0, 0, 1, 1], [], []>} : vector<8x32xf32>, vector<32x64xf32>, vector<8x64xf32> -> vector<8x64xf32>
    %c0_3 = arith.constant 0 : index
    %c0_4 = arith.constant 0 : index
    %3 = vector.load %arg3[%c0_3, %c0_4] : memref<1x64xf32, #tpu.memory_space<vmem>>, vector<1x64xf32>
    %4 = vector.broadcast %3 : vector<1x64xf32> to vector<8x64xf32>
    %5 = arith.addf %2, %4 : vector<8x64xf32>
    %cst_5 = arith.constant 0.000000e+00 : f32
    %6 = vector.broadcast %cst_5 : f32 to vector<8x64xf32>
    %7 = arith.maximumf %5, %6 : vector<8x64xf32>
    %c0_6 = arith.constant 0 : index
    %c0_7 = arith.constant 0 : index
    %8 = vector.load %arg4[%c0_6, %c0_7] : memref<64x32xf32, #tpu.memory_space<vmem>>, vector<64x32xf32>
    %cst_8 = arith.constant dense<0.000000e+00> : vector<8x32xf32>
    %9 = tpu.matmul %7, %8, %cst_8 {dimension_numbers = #tpu.dot_dimension_numbers<[1], [0], [0], [1], [0, 0, 1, 1], [], []>} : vector<8x64xf32>, vector<64x32xf32>, vector<8x32xf32> -> vector<8x32xf32>
    %c0_9 = arith.constant 0 : index
    %c0_10 = arith.constant 0 : index
    %10 = vector.load %arg5[%c0_9, %c0_10] : memref<1x32xf32, #tpu.memory_space<vmem>>, vector<1x32xf32>
    %11 = vector.broadcast %10 : vector<1x32xf32> to vector<8x32xf32>
    %12 = arith.addf %9, %11 : vector<8x32xf32>
    %13 = arith.addf %0, %12 : vector<8x32xf32>
    %cst_11 = arith.constant dense<0.000000e+00> : vector<8xf32>
    %14 = vector.multi_reduction <add>, %13, %cst_11 [1] : vector<8x32xf32> to vector<8xf32>
    %15 = vector.shape_cast %14 : vector<8xf32> to vector<8x1xf32>
    %cst_12 = arith.constant 3.200000e+01 : f32
    %16 = vector.broadcast %cst_12 : f32 to vector<8x1xf32>
    %17 = arith.divf %15, %16 : vector<8x1xf32>
    %18 = vector.broadcast %17 : vector<8x1xf32> to vector<8x32xf32>
    %19 = arith.subf %13, %18 : vector<8x32xf32>
    %20 = arith.mulf %19, %19 : vector<8x32xf32>
    %cst_13 = arith.constant dense<0.000000e+00> : vector<8xf32>
    %21 = vector.multi_reduction <add>, %20, %cst_13 [1] : vector<8x32xf32> to vector<8xf32>
    %22 = vector.shape_cast %21 : vector<8xf32> to vector<8x1xf32>
    %cst_14 = arith.constant 3.200000e+01 : f32
    %23 = vector.broadcast %cst_14 : f32 to vector<8x1xf32>
    %24 = arith.divf %22, %23 : vector<8x1xf32>
    %cst_15 = arith.constant 9.99999974E-6 : f32
    %25 = vector.broadcast %cst_15 : f32 to vector<8x1xf32>
    %26 = arith.addf %24, %25 : vector<8x1xf32>
    %27 = math.rsqrt %26 : vector<8x1xf32>
    %28 = vector.broadcast %27 : vector<8x1xf32> to vector<8x32xf32>
    %29 = arith.mulf %19, %28 : vector<8x32xf32>
    %c0_16 = arith.constant 0 : index
    %c0_17 = arith.constant 0 : index
    %30 = vector.load %arg6[%c0_16, %c0_17] : memref<1x32xf32, #tpu.memory_space<vmem>>, vector<1x32xf32>
    %31 = vector.broadcast %30 : vector<1x32xf32> to vector<8x32xf32>
    %32 = arith.mulf %29, %31 : vector<8x32xf32>
    %c0_18 = arith.constant 0 : index
    %c0_19 = arith.constant 0 : index
    %33 = vector.load %arg7[%c0_18, %c0_19] : memref<1x32xf32, #tpu.memory_space<vmem>>, vector<1x32xf32>
    %34 = vector.broadcast %33 : vector<1x32xf32> to vector<8x32xf32>
    %35 = arith.addf %32, %34 : vector<8x32xf32>
    %c0_20 = arith.constant 0 : index
    %c0_21 = arith.constant 0 : index
    %36 = vector.load %arg8[%c0_20, %c0_21] : memref<8x32xf32, #tpu.memory_space<vmem>>, vector<8x32xf32>
    tpu.vector_store %arg8[%c0_20, %c0_21], %35 {strides = array<i32>} : memref<8x32xf32, #tpu.memory_space<vmem>>, vector<8x32xf32>,
    return
  }
  func.func @transform_0(%arg0: i32) -> (i32, i32) {
    %c0_i32 = arith.constant 0 : i32
    %c0_i32_0 = arith.constant 0 : i32
    return %arg0, %c0_i32 : i32, i32
  }
  func.func @transform_1(%arg0: i32) -> (i32, i32) {
    %c0_i32 = arith.constant 0 : i32
    %c0_i32_0 = arith.constant 0 : i32
    %c0_i32_1 = arith.constant 0 : i32
    return %c0_i32, %c0_i32_0 : i32, i32
  }
  func.func @transform_2(%arg0: i32) -> (i32, i32) {
    %c0_i32 = arith.constant 0 : i32
    %c0_i32_0 = arith.constant 0 : i32
    %c0_i32_1 = arith.constant 0 : i32
    return %c0_i32, %c0_i32_0 : i32, i32
  }
  func.func @transform_3(%arg0: i32) -> (i32, i32) {
    %c0_i32 = arith.constant 0 : i32
    %c0_i32_0 = arith.constant 0 : i32
    %c0_i32_1 = arith.constant 0 : i32
    return %c0_i32, %c0_i32_0 : i32, i32
  }
  func.func @transform_4(%arg0: i32) -> (i32, i32) {
    %c0_i32 = arith.constant 0 : i32
    %c0_i32_0 = arith.constant 0 : i32
    %c0_i32_1 = arith.constant 0 : i32
    return %c0_i32, %c0_i32_0 : i32, i32
  }
  func.func @transform_5(%arg0: i32) -> (i32, i32) {
    %c0_i32 = arith.constant 0 : i32
    %c0_i32_0 = arith.constant 0 : i32
    %c0_i32_1 = arith.constant 0 : i32
    return %c0_i32, %c0_i32_0 : i32, i32
  }
  func.func @transform_6(%arg0: i32) -> (i32, i32) {
    %c0_i32 = arith.constant 0 : i32
    %c0_i32_0 = arith.constant 0 : i32
    %c0_i32_1 = arith.constant 0 : i32
    return %c0_i32, %c0_i32_0 : i32, i32
  }
  func.func @transform_7(%arg0: i32) -> (i32, i32) {
    %c0_i32 = arith.constant 0 : i32
    %c0_i32_0 = arith.constant 0 : i32
    return %arg0, %c0_i32 : i32, i32
  }
}

module attributes {stable_mosaic.version = 11 : i64} {
  func.func @_linear_kernel(%arg0: i32, %arg1: memref<8x8xf32, #tpu.memory_space<vmem>>, %arg2: memref<8x32xf32, #tpu.memory_space<vmem>>, %arg3: memref<1x32xf32, #tpu.memory_space<vmem>>, %arg4: memref<8x32xf32, #tpu.memory_space<vmem>>) attributes {dimension_semantics = [#tpu.dimension_semantics<parallel>], iteration_bounds = array<i64: 2>, scalar_prefetch = 0 : i64, scratch_operands = 0 : i64, tpu.core_type = #tpu.core_type<tc>, window_params = [{transform_indices = @transform_0, window_bounds = array<i64: 8, 8>}, {pipeline_mode = #tpu.pipeline_mode<synchronous>, transform_indices = @transform_1, window_bounds = array<i64: 8, 32>}, {pipeline_mode = #tpu.pipeline_mode<synchronous>, transform_indices = @transform_2, window_bounds = array<i64: 1, 32>}, {transform_indices = @transform_3, window_bounds = array<i64: 8, 32>}]} {
    %c0 = arith.constant 0 : index
    %c0_0 = arith.constant 0 : index
    %0 = vector.load %arg1[%c0, %c0_0] : memref<8x8xf32, #tpu.memory_space<vmem>>, vector<8x8xf32>
    %c0_1 = arith.constant 0 : index
    %c0_2 = arith.constant 0 : index
    %1 = vector.load %arg2[%c0_1, %c0_2] : memref<8x32xf32, #tpu.memory_space<vmem>>, vector<8x32xf32>
    %cst = arith.constant dense<0.000000e+00> : vector<8x32xf32>
    %2 = tpu.matmul %0, %1, %cst {dimension_numbers = #tpu.dot_dimension_numbers<[1], [0], [0], [1], [0, 0, 1, 1], [], []>} : vector<8x8xf32>, vector<8x32xf32>, vector<8x32xf32> -> vector<8x32xf32>
    %c0_3 = arith.constant 0 : index
    %c0_4 = arith.constant 0 : index
    %3 = vector.load %arg3[%c0_3, %c0_4] : memref<1x32xf32, #tpu.memory_space<vmem>>, vector<1x32xf32>
    %4 = vector.broadcast %3 : vector<1x32xf32> to vector<8x32xf32>
    %5 = arith.addf %2, %4 : vector<8x32xf32>
    %c0_5 = arith.constant 0 : index
    %c0_6 = arith.constant 0 : index
    %6 = vector.load %arg4[%c0_5, %c0_6] : memref<8x32xf32, #tpu.memory_space<vmem>>, vector<8x32xf32>
    tpu.vector_store %arg4[%c0_5, %c0_6], %5 {strides = array<i32>} : memref<8x32xf32, #tpu.memory_space<vmem>>, vector<8x32xf32>,
    return
  }
  func.func @transform_0(%arg0: i32) -> (i32, i32) {
    %c0_i32 = arith.constant 0 : i32
    %c0_i32_0 = arith.constant 0 : i32
    return %arg0, %c0_i32 : i32, i32
  }
  func.func @transform_1(%arg0: i32) -> (i32, i32) {
    %c0_i32 = arith.constant 0 : i32
    %c0_i32_0 = arith.constant 0 : i32
    %c0_i32_1 = arith.constant 0 : i32
    return %c0_i32, %c0_i32_0 : i32, i32
  }
  func.func @transform_2(%arg0: i32) -> (i32, i32) {
    %c0_i32 = arith.constant 0 : i32
    %c0_i32_0 = arith.constant 0 : i32
    %c0_i32_1 = arith.constant 0 : i32
    return %c0_i32, %c0_i32_0 : i32, i32
  }
  func.func @transform_3(%arg0: i32) -> (i32, i32) {
    %c0_i32 = arith.constant 0 : i32
    %c0_i32_0 = arith.constant 0 : i32
    return %arg0, %c0_i32 : i32, i32
  }
}

module attributes {stable_mosaic.version = 11 : i64} {
  func.func @_mha_ln_kernel(%arg0: i32, %arg1: memref<1x8x32xf32, #tpu.memory_space<vmem>>, %arg2: memref<32x96xf32, #tpu.memory_space<vmem>>, %arg3: memref<1x96xf32, #tpu.memory_space<vmem>>, %arg4: memref<32x32xf32, #tpu.memory_space<vmem>>, %arg5: memref<1x32xf32, #tpu.memory_space<vmem>>, %arg6: memref<8x8xf32, #tpu.memory_space<vmem>>, %arg7: memref<1x32xf32, #tpu.memory_space<vmem>>, %arg8: memref<1x32xf32, #tpu.memory_space<vmem>>, %arg9: memref<1x8x32xf32, #tpu.memory_space<vmem>>) attributes {dimension_semantics = [#tpu.dimension_semantics<parallel>], iteration_bounds = array<i64: 2>, scalar_prefetch = 0 : i64, scratch_operands = 0 : i64, tpu.core_type = #tpu.core_type<tc>, window_params = [{transform_indices = @transform_0, window_bounds = array<i64: 1, 8, 32>}, {pipeline_mode = #tpu.pipeline_mode<synchronous>, transform_indices = @transform_1, window_bounds = array<i64: 32, 96>}, {pipeline_mode = #tpu.pipeline_mode<synchronous>, transform_indices = @transform_2, window_bounds = array<i64: 1, 96>}, {pipeline_mode = #tpu.pipeline_mode<synchronous>, transform_indices = @transform_3, window_bounds = array<i64: 32, 32>}, {pipeline_mode = #tpu.pipeline_mode<synchronous>, transform_indices = @transform_4, window_bounds = array<i64: 1, 32>}, {pipeline_mode = #tpu.pipeline_mode<synchronous>, transform_indices = @transform_5, window_bounds = array<i64: 8, 8>}, {pipeline_mode = #tpu.pipeline_mode<synchronous>, transform_indices = @transform_6, window_bounds = array<i64: 1, 32>}, {pipeline_mode = #tpu.pipeline_mode<synchronous>, transform_indices = @transform_7, window_bounds = array<i64: 1, 32>}, {transform_indices = @transform_8, window_bounds = array<i64: 1, 8, 32>}]} {
    %c0 = arith.constant 0 : index
    %c0_0 = arith.constant 0 : index
    %c0_1 = arith.constant 0 : index
    %0 = vector.load %arg1[%c0, %c0_0, %c0_1] : memref<1x8x32xf32, #tpu.memory_space<vmem>>, vector<1x8x32xf32>
    %1 = vector.shape_cast %0 : vector<1x8x32xf32> to vector<8x32xf32>
    %c0_2 = arith.constant 0 : index
    %c0_3 = arith.constant 0 : index
    %2 = vector.load %arg2[%c0_2, %c0_3] : memref<32x96xf32, #tpu.memory_space<vmem>>, vector<32x96xf32>
    %c0_4 = arith.constant 0 : index
    %c0_5 = arith.constant 0 : index
    %3 = vector.load %arg3[%c0_4, %c0_5] : memref<1x96xf32, #tpu.memory_space<vmem>>, vector<1x96xf32>
    %cst = arith.constant dense<0.000000e+00> : vector<8x96xf32>
    %4 = tpu.matmul %1, %2, %cst {dimension_numbers = #tpu.dot_dimension_numbers<[1], [0], [0], [1], [0, 0, 1, 1], [], []>} : vector<8x32xf32>, vector<32x96xf32>, vector<8x96xf32> -> vector<8x96xf32>
    %5 = vector.broadcast %3 : vector<1x96xf32> to vector<8x96xf32>
    %6 = arith.addf %4, %5 : vector<8x96xf32>
    %7 = vector.extract_strided_slice %6 {offsets = [0, 0], sizes = [8, 32], strides = [1, 1]} : vector<8x96xf32> to vector<8x32xf32>
    %8 = vector.extract_strided_slice %6 {offsets = [0, 32], sizes = [8, 32], strides = [1, 1]} : vector<8x96xf32> to vector<8x32xf32>
    %9 = vector.extract_strided_slice %6 {offsets = [0, 64], sizes = [8, 32], strides = [1, 1]} : vector<8x96xf32> to vector<8x32xf32>
    %c0_6 = arith.constant 0 : index
    %c0_7 = arith.constant 0 : index
    %10 = vector.load %arg4[%c0_6, %c0_7] : memref<32x32xf32, #tpu.memory_space<vmem>>, vector<32x32xf32>
    %c0_8 = arith.constant 0 : index
    %c0_9 = arith.constant 0 : index
    %11 = vector.load %arg6[%c0_8, %c0_9] : memref<8x8xf32, #tpu.memory_space<vmem>>, vector<8x8xf32>
    %cst_10 = arith.constant 0.000000e+00 : f32
    %12 = vector.broadcast %cst_10 : f32 to vector<8x32xf32>
    %13 = vector.extract_strided_slice %7 {offsets = [0, 0], sizes = [8, 8], strides = [1, 1]} : vector<8x32xf32> to vector<8x8xf32>
    %14 = vector.extract_strided_slice %8 {offsets = [0, 0], sizes = [8, 8], strides = [1, 1]} : vector<8x32xf32> to vector<8x8xf32>
    %cst_11 = arith.constant dense<0.000000e+00> : vector<8x8xf32>
    %15 = tpu.matmul %13, %14, %cst_11 {dimension_numbers = #tpu.dot_dimension_numbers<[1], [1], [0], [0], [0, 0, 1, 0], [], []>} : vector<8x8xf32>, vector<8x8xf32>, vector<8x8xf32> -> vector<8x8xf32>
    %cst_12 = arith.constant 0.353553385 : f32
    %16 = vector.broadcast %cst_12 : f32 to vector<8x8xf32>
    %17 = arith.mulf %15, %16 : vector<8x8xf32>
    %18 = arith.addf %17, %11 : vector<8x8xf32>
    %cst_13 = arith.constant dense<0xFF800000> : vector<8xf32>
    %19 = vector.multi_reduction <maximumf>, %18, %cst_13 [1] : vector<8x8xf32> to vector<8xf32>
    %20 = vector.shape_cast %19 : vector<8xf32> to vector<8x1xf32>
    %21 = vector.broadcast %20 : vector<8x1xf32> to vector<8x8xf32>
    %22 = arith.subf %18, %21 : vector<8x8xf32>
    %23 = math.exp %22 : vector<8x8xf32>
    %cst_14 = arith.constant dense<0.000000e+00> : vector<8xf32>
    %24 = vector.multi_reduction <add>, %23, %cst_14 [1] : vector<8x8xf32> to vector<8xf32>
    %25 = vector.shape_cast %24 : vector<8xf32> to vector<8x1xf32>
    %26 = tpu.reciprocal %25 {approx = true} : vector<8x1xf32> -> vector<8x1xf32>
    %27 = vector.broadcast %26 : vector<8x1xf32> to vector<8x8xf32>
    %28 = arith.mulf %23, %27 : vector<8x8xf32>
    %29 = vector.extract_strided_slice %9 {offsets = [0, 0], sizes = [8, 8], strides = [1, 1]} : vector<8x32xf32> to vector<8x8xf32>
    %cst_15 = arith.constant dense<0.000000e+00> : vector<8x8xf32>
    %30 = tpu.matmul %28, %29, %cst_15 {dimension_numbers = #tpu.dot_dimension_numbers<[1], [0], [0], [1], [0, 0, 1, 1], [], []>} : vector<8x8xf32>, vector<8x8xf32>, vector<8x8xf32> -> vector<8x8xf32>
    %31 = vector.extract_strided_slice %10 {offsets = [0, 0], sizes = [8, 32], strides = [1, 1]} : vector<32x32xf32> to vector<8x32xf32>
    %cst_16 = arith.constant dense<0.000000e+00> : vector<8x32xf32>
    %32 = tpu.matmul %30, %31, %cst_16 {dimension_numbers = #tpu.dot_dimension_numbers<[1], [0], [0], [1], [0, 0, 1, 1], [], []>} : vector<8x8xf32>, vector<8x32xf32>, vector<8x32xf32> -> vector<8x32xf32>
    %33 = arith.addf %12, %32 : vector<8x32xf32>
    %34 = vector.extract_strided_slice %7 {offsets = [0, 8], sizes = [8, 8], strides = [1, 1]} : vector<8x32xf32> to vector<8x8xf32>
    %35 = vector.extract_strided_slice %8 {offsets = [0, 8], sizes = [8, 8], strides = [1, 1]} : vector<8x32xf32> to vector<8x8xf32>
    %cst_17 = arith.constant dense<0.000000e+00> : vector<8x8xf32>
    %36 = tpu.matmul %34, %35, %cst_17 {dimension_numbers = #tpu.dot_dimension_numbers<[1], [1], [0], [0], [0, 0, 1, 0], [], []>} : vector<8x8xf32>, vector<8x8xf32>, vector<8x8xf32> -> vector<8x8xf32>
    %cst_18 = arith.constant 0.353553385 : f32
    %37 = vector.broadcast %cst_18 : f32 to vector<8x8xf32>
    %38 = arith.mulf %36, %37 : vector<8x8xf32>
    %39 = arith.addf %38, %11 : vector<8x8xf32>
    %cst_19 = arith.constant dense<0xFF800000> : vector<8xf32>
    %40 = vector.multi_reduction <maximumf>, %39, %cst_19 [1] : vector<8x8xf32> to vector<8xf32>
    %41 = vector.shape_cast %40 : vector<8xf32> to vector<8x1xf32>
    %42 = vector.broadcast %41 : vector<8x1xf32> to vector<8x8xf32>
    %43 = arith.subf %39, %42 : vector<8x8xf32>
    %44 = math.exp %43 : vector<8x8xf32>
    %cst_20 = arith.constant dense<0.000000e+00> : vector<8xf32>
    %45 = vector.multi_reduction <add>, %44, %cst_20 [1] : vector<8x8xf32> to vector<8xf32>
    %46 = vector.shape_cast %45 : vector<8xf32> to vector<8x1xf32>
    %47 = tpu.reciprocal %46 {approx = true} : vector<8x1xf32> -> vector<8x1xf32>
    %48 = vector.broadcast %47 : vector<8x1xf32> to vector<8x8xf32>
    %49 = arith.mulf %44, %48 : vector<8x8xf32>
    %50 = vector.extract_strided_slice %9 {offsets = [0, 8], sizes = [8, 8], strides = [1, 1]} : vector<8x32xf32> to vector<8x8xf32>
    %cst_21 = arith.constant dense<0.000000e+00> : vector<8x8xf32>
    %51 = tpu.matmul %49, %50, %cst_21 {dimension_numbers = #tpu.dot_dimension_numbers<[1], [0], [0], [1], [0, 0, 1, 1], [], []>} : vector<8x8xf32>, vector<8x8xf32>, vector<8x8xf32> -> vector<8x8xf32>
    %52 = vector.extract_strided_slice %10 {offsets = [8, 0], sizes = [8, 32], strides = [1, 1]} : vector<32x32xf32> to vector<8x32xf32>
    %cst_22 = arith.constant dense<0.000000e+00> : vector<8x32xf32>
    %53 = tpu.matmul %51, %52, %cst_22 {dimension_numbers = #tpu.dot_dimension_numbers<[1], [0], [0], [1], [0, 0, 1, 1], [], []>} : vector<8x8xf32>, vector<8x32xf32>, vector<8x32xf32> -> vector<8x32xf32>
    %54 = arith.addf %33, %53 : vector<8x32xf32>
    %55 = vector.extract_strided_slice %7 {offsets = [0, 16], sizes = [8, 8], strides = [1, 1]} : vector<8x32xf32> to vector<8x8xf32>
    %56 = vector.extract_strided_slice %8 {offsets = [0, 16], sizes = [8, 8], strides = [1, 1]} : vector<8x32xf32> to vector<8x8xf32>
    %cst_23 = arith.constant dense<0.000000e+00> : vector<8x8xf32>
    %57 = tpu.matmul %55, %56, %cst_23 {dimension_numbers = #tpu.dot_dimension_numbers<[1], [1], [0], [0], [0, 0, 1, 0], [], []>} : vector<8x8xf32>, vector<8x8xf32>, vector<8x8xf32> -> vector<8x8xf32>
    %cst_24 = arith.constant 0.353553385 : f32
    %58 = vector.broadcast %cst_24 : f32 to vector<8x8xf32>
    %59 = arith.mulf %57, %58 : vector<8x8xf32>
    %60 = arith.addf %59, %11 : vector<8x8xf32>
    %cst_25 = arith.constant dense<0xFF800000> : vector<8xf32>
    %61 = vector.multi_reduction <maximumf>, %60, %cst_25 [1] : vector<8x8xf32> to vector<8xf32>
    %62 = vector.shape_cast %61 : vector<8xf32> to vector<8x1xf32>
    %63 = vector.broadcast %62 : vector<8x1xf32> to vector<8x8xf32>
    %64 = arith.subf %60, %63 : vector<8x8xf32>
    %65 = math.exp %64 : vector<8x8xf32>
    %cst_26 = arith.constant dense<0.000000e+00> : vector<8xf32>
    %66 = vector.multi_reduction <add>, %65, %cst_26 [1] : vector<8x8xf32> to vector<8xf32>
    %67 = vector.shape_cast %66 : vector<8xf32> to vector<8x1xf32>
    %68 = tpu.reciprocal %67 {approx = true} : vector<8x1xf32> -> vector<8x1xf32>
    %69 = vector.broadcast %68 : vector<8x1xf32> to vector<8x8xf32>
    %70 = arith.mulf %65, %69 : vector<8x8xf32>
    %71 = vector.extract_strided_slice %9 {offsets = [0, 16], sizes = [8, 8], strides = [1, 1]} : vector<8x32xf32> to vector<8x8xf32>
    %cst_27 = arith.constant dense<0.000000e+00> : vector<8x8xf32>
    %72 = tpu.matmul %70, %71, %cst_27 {dimension_numbers = #tpu.dot_dimension_numbers<[1], [0], [0], [1], [0, 0, 1, 1], [], []>} : vector<8x8xf32>, vector<8x8xf32>, vector<8x8xf32> -> vector<8x8xf32>
    %73 = vector.extract_strided_slice %10 {offsets = [16, 0], sizes = [8, 32], strides = [1, 1]} : vector<32x32xf32> to vector<8x32xf32>
    %cst_28 = arith.constant dense<0.000000e+00> : vector<8x32xf32>
    %74 = tpu.matmul %72, %73, %cst_28 {dimension_numbers = #tpu.dot_dimension_numbers<[1], [0], [0], [1], [0, 0, 1, 1], [], []>} : vector<8x8xf32>, vector<8x32xf32>, vector<8x32xf32> -> vector<8x32xf32>
    %75 = arith.addf %54, %74 : vector<8x32xf32>
    %76 = vector.extract_strided_slice %7 {offsets = [0, 24], sizes = [8, 8], strides = [1, 1]} : vector<8x32xf32> to vector<8x8xf32>
    %77 = vector.extract_strided_slice %8 {offsets = [0, 24], sizes = [8, 8], strides = [1, 1]} : vector<8x32xf32> to vector<8x8xf32>
    %cst_29 = arith.constant dense<0.000000e+00> : vector<8x8xf32>
    %78 = tpu.matmul %76, %77, %cst_29 {dimension_numbers = #tpu.dot_dimension_numbers<[1], [1], [0], [0], [0, 0, 1, 0], [], []>} : vector<8x8xf32>, vector<8x8xf32>, vector<8x8xf32> -> vector<8x8xf32>
    %cst_30 = arith.constant 0.353553385 : f32
    %79 = vector.broadcast %cst_30 : f32 to vector<8x8xf32>
    %80 = arith.mulf %78, %79 : vector<8x8xf32>
    %81 = arith.addf %80, %11 : vector<8x8xf32>
    %cst_31 = arith.constant dense<0xFF800000> : vector<8xf32>
    %82 = vector.multi_reduction <maximumf>, %81, %cst_31 [1] : vector<8x8xf32> to vector<8xf32>
    %83 = vector.shape_cast %82 : vector<8xf32> to vector<8x1xf32>
    %84 = vector.broadcast %83 : vector<8x1xf32> to vector<8x8xf32>
    %85 = arith.subf %81, %84 : vector<8x8xf32>
    %86 = math.exp %85 : vector<8x8xf32>
    %cst_32 = arith.constant dense<0.000000e+00> : vector<8xf32>
    %87 = vector.multi_reduction <add>, %86, %cst_32 [1] : vector<8x8xf32> to vector<8xf32>
    %88 = vector.shape_cast %87 : vector<8xf32> to vector<8x1xf32>
    %89 = tpu.reciprocal %88 {approx = true} : vector<8x1xf32> -> vector<8x1xf32>
    %90 = vector.broadcast %89 : vector<8x1xf32> to vector<8x8xf32>
    %91 = arith.mulf %86, %90 : vector<8x8xf32>
    %92 = vector.extract_strided_slice %9 {offsets = [0, 24], sizes = [8, 8], strides = [1, 1]} : vector<8x32xf32> to vector<8x8xf32>
    %cst_33 = arith.constant dense<0.000000e+00> : vector<8x8xf32>
    %93 = tpu.matmul %91, %92, %cst_33 {dimension_numbers = #tpu.dot_dimension_numbers<[1], [0], [0], [1], [0, 0, 1, 1], [], []>} : vector<8x8xf32>, vector<8x8xf32>, vector<8x8xf32> -> vector<8x8xf32>
    %94 = vector.extract_strided_slice %10 {offsets = [24, 0], sizes = [8, 32], strides = [1, 1]} : vector<32x32xf32> to vector<8x32xf32>
    %cst_34 = arith.constant dense<0.000000e+00> : vector<8x32xf32>
    %95 = tpu.matmul %93, %94, %cst_34 {dimension_numbers = #tpu.dot_dimension_numbers<[1], [0], [0], [1], [0, 0, 1, 1], [], []>} : vector<8x8xf32>, vector<8x32xf32>, vector<8x32xf32> -> vector<8x32xf32>
    %96 = arith.addf %75, %95 : vector<8x32xf32>
    %97 = arith.addf %1, %96 : vector<8x32xf32>
    %c0_35 = arith.constant 0 : index
    %c0_36 = arith.constant 0 : index
    %98 = vector.load %arg5[%c0_35, %c0_36] : memref<1x32xf32, #tpu.memory_space<vmem>>, vector<1x32xf32>
    %99 = vector.broadcast %98 : vector<1x32xf32> to vector<8x32xf32>
    %100 = arith.addf %97, %99 : vector<8x32xf32>
    %cst_37 = arith.constant dense<0.000000e+00> : vector<8xf32>
    %101 = vector.multi_reduction <add>, %100, %cst_37 [1] : vector<8x32xf32> to vector<8xf32>
    %102 = vector.shape_cast %101 : vector<8xf32> to vector<8x1xf32>
    %cst_38 = arith.constant 3.200000e+01 : f32
    %103 = vector.broadcast %cst_38 : f32 to vector<8x1xf32>
    %104 = arith.divf %102, %103 : vector<8x1xf32>
    %105 = vector.broadcast %104 : vector<8x1xf32> to vector<8x32xf32>
    %106 = arith.subf %100, %105 : vector<8x32xf32>
    %107 = arith.mulf %106, %106 : vector<8x32xf32>
    %cst_39 = arith.constant dense<0.000000e+00> : vector<8xf32>
    %108 = vector.multi_reduction <add>, %107, %cst_39 [1] : vector<8x32xf32> to vector<8xf32>
    %109 = vector.shape_cast %108 : vector<8xf32> to vector<8x1xf32>
    %cst_40 = arith.constant 3.200000e+01 : f32
    %110 = vector.broadcast %cst_40 : f32 to vector<8x1xf32>
    %111 = arith.divf %109, %110 : vector<8x1xf32>
    %cst_41 = arith.constant 9.99999974E-6 : f32
    %112 = vector.broadcast %cst_41 : f32 to vector<8x1xf32>
    %113 = arith.addf %111, %112 : vector<8x1xf32>
    %114 = math.rsqrt %113 : vector<8x1xf32>
    %115 = vector.broadcast %114 : vector<8x1xf32> to vector<8x32xf32>
    %116 = arith.mulf %106, %115 : vector<8x32xf32>
    %c0_42 = arith.constant 0 : index
    %c0_43 = arith.constant 0 : index
    %117 = vector.load %arg7[%c0_42, %c0_43] : memref<1x32xf32, #tpu.memory_space<vmem>>, vector<1x32xf32>
    %118 = vector.broadcast %117 : vector<1x32xf32> to vector<8x32xf32>
    %119 = arith.mulf %116, %118 : vector<8x32xf32>
    %c0_44 = arith.constant 0 : index
    %c0_45 = arith.constant 0 : index
    %120 = vector.load %arg8[%c0_44, %c0_45] : memref<1x32xf32, #tpu.memory_space<vmem>>, vector<1x32xf32>
    %121 = vector.broadcast %120 : vector<1x32xf32> to vector<8x32xf32>
    %122 = arith.addf %119, %121 : vector<8x32xf32>
    %c0_46 = arith.constant 0 : index
    %c0_47 = arith.constant 0 : index
    %c0_48 = arith.constant 0 : index
    %123 = vector.load %arg9[%c0_46, %c0_47, %c0_48] : memref<1x8x32xf32, #tpu.memory_space<vmem>>, vector<1x8x32xf32>
    %124 = vector.shape_cast %123 : vector<1x8x32xf32> to vector<8x32xf32>
    %125 = vector.shape_cast %122 : vector<8x32xf32> to vector<1x8x32xf32>
    tpu.vector_store %arg9[%c0_46, %c0_47, %c0_48], %125 {strides = array<i32>} : memref<1x8x32xf32, #tpu.memory_space<vmem>>, vector<1x8x32xf32>,
    return
  }
  func.func @transform_0(%arg0: i32) -> (i32, i32, i32) {
    %c0_i32 = arith.constant 0 : i32
    %c0_i32_0 = arith.constant 0 : i32
    %c0_i32_1 = arith.constant 0 : i32
    return %arg0, %c0_i32, %c0_i32_0 : i32, i32, i32
  }
  func.func @transform_1(%arg0: i32) -> (i32, i32) {
    %c0_i32 = arith.constant 0 : i32
    %c0_i32_0 = arith.constant 0 : i32
    %c0_i32_1 = arith.constant 0 : i32
    return %c0_i32, %c0_i32_0 : i32, i32
  }
  func.func @transform_2(%arg0: i32) -> (i32, i32) {
    %c0_i32 = arith.constant 0 : i32
    %c0_i32_0 = arith.constant 0 : i32
    %c0_i32_1 = arith.constant 0 : i32
    return %c0_i32, %c0_i32_0 : i32, i32
  }
  func.func @transform_3(%arg0: i32) -> (i32, i32) {
    %c0_i32 = arith.constant 0 : i32
    %c0_i32_0 = arith.constant 0 : i32
    %c0_i32_1 = arith.constant 0 : i32
    return %c0_i32, %c0_i32_0 : i32, i32
  }
  func.func @transform_4(%arg0: i32) -> (i32, i32) {
    %c0_i32 = arith.constant 0 : i32
    %c0_i32_0 = arith.constant 0 : i32
    %c0_i32_1 = arith.constant 0 : i32
    return %c0_i32, %c0_i32_0 : i32, i32
  }
  func.func @transform_5(%arg0: i32) -> (i32, i32) {
    %c0_i32 = arith.constant 0 : i32
    %c0_i32_0 = arith.constant 0 : i32
    %c0_i32_1 = arith.constant 0 : i32
    return %c0_i32, %c0_i32_0 : i32, i32
  }
  func.func @transform_6(%arg0: i32) -> (i32, i32) {
    %c0_i32 = arith.constant 0 : i32
    %c0_i32_0 = arith.constant 0 : i32
    %c0_i32_1 = arith.constant 0 : i32
    return %c0_i32, %c0_i32_0 : i32, i32
  }
  func.func @transform_7(%arg0: i32) -> (i32, i32) {
    %c0_i32 = arith.constant 0 : i32
    %c0_i32_0 = arith.constant 0 : i32
    %c0_i32_1 = arith.constant 0 : i32
    return %c0_i32, %c0_i32_0 : i32, i32
  }
  func.func @transform_8(%arg0: i32) -> (i32, i32, i32) {
    %c0_i32 = arith.constant 0 : i32
    %c0_i32_0 = arith.constant 0 : i32
    %c0_i32_1 = arith.constant 0 : i32
    return %arg0, %c0_i32, %c0_i32_0 : i32, i32, i32
  }
}

module attributes {stable_mosaic.version = 11 : i64} {
  func.func @_mha_ln_kernel(%arg0: i32, %arg1: memref<1x8x32xf32, #tpu.memory_space<vmem>>, %arg2: memref<1x8x32xf32, #tpu.memory_space<vmem>>, %arg3: memref<32x96xf32, #tpu.memory_space<vmem>>, %arg4: memref<1x96xf32, #tpu.memory_space<vmem>>, %arg5: memref<32x32xf32, #tpu.memory_space<vmem>>, %arg6: memref<1x32xf32, #tpu.memory_space<vmem>>, %arg7: memref<1x32xf32, #tpu.memory_space<vmem>>, %arg8: memref<1x32xf32, #tpu.memory_space<vmem>>, %arg9: memref<1x8x32xf32, #tpu.memory_space<vmem>>) attributes {dimension_semantics = [#tpu.dimension_semantics<parallel>], iteration_bounds = array<i64: 2>, scalar_prefetch = 0 : i64, scratch_operands = 0 : i64, tpu.core_type = #tpu.core_type<tc>, window_params = [{transform_indices = @transform_0, window_bounds = array<i64: 1, 8, 32>}, {transform_indices = @transform_1, window_bounds = array<i64: 1, 8, 32>}, {pipeline_mode = #tpu.pipeline_mode<synchronous>, transform_indices = @transform_2, window_bounds = array<i64: 32, 96>}, {pipeline_mode = #tpu.pipeline_mode<synchronous>, transform_indices = @transform_3, window_bounds = array<i64: 1, 96>}, {pipeline_mode = #tpu.pipeline_mode<synchronous>, transform_indices = @transform_4, window_bounds = array<i64: 32, 32>}, {pipeline_mode = #tpu.pipeline_mode<synchronous>, transform_indices = @transform_5, window_bounds = array<i64: 1, 32>}, {pipeline_mode = #tpu.pipeline_mode<synchronous>, transform_indices = @transform_6, window_bounds = array<i64: 1, 32>}, {pipeline_mode = #tpu.pipeline_mode<synchronous>, transform_indices = @transform_7, window_bounds = array<i64: 1, 32>}, {transform_indices = @transform_8, window_bounds = array<i64: 1, 8, 32>}]} {
    %c0 = arith.constant 0 : index
    %c0_0 = arith.constant 0 : index
    %c0_1 = arith.constant 0 : index
    %0 = vector.load %arg1[%c0, %c0_0, %c0_1] : memref<1x8x32xf32, #tpu.memory_space<vmem>>, vector<1x8x32xf32>
    %1 = vector.shape_cast %0 : vector<1x8x32xf32> to vector<8x32xf32>
    %c0_2 = arith.constant 0 : index
    %c0_3 = arith.constant 0 : index
    %2 = vector.load %arg3[%c0_2, %c0_3] : memref<32x96xf32, #tpu.memory_space<vmem>>, vector<32x96xf32>
    %c0_4 = arith.constant 0 : index
    %c0_5 = arith.constant 0 : index
    %3 = vector.load %arg4[%c0_4, %c0_5] : memref<1x96xf32, #tpu.memory_space<vmem>>, vector<1x96xf32>
    %c0_6 = arith.constant 0 : index
    %c0_7 = arith.constant 0 : index
    %c0_8 = arith.constant 0 : index
    %4 = vector.load %arg2[%c0_6, %c0_7, %c0_8] : memref<1x8x32xf32, #tpu.memory_space<vmem>>, vector<1x8x32xf32>
    %5 = vector.shape_cast %4 : vector<1x8x32xf32> to vector<8x32xf32>
    %6 = vector.extract_strided_slice %2 {offsets = [0, 0], sizes = [32, 32], strides = [1, 1]} : vector<32x96xf32> to vector<32x32xf32>
    %cst = arith.constant dense<0.000000e+00> : vector<8x32xf32>
    %7 = tpu.matmul %1, %6, %cst {dimension_numbers = #tpu.dot_dimension_numbers<[1], [0], [0], [1], [0, 0, 1, 1], [], []>} : vector<8x32xf32>, vector<32x32xf32>, vector<8x32xf32> -> vector<8x32xf32>
    %8 = vector.extract_strided_slice %3 {offsets = [0, 0], sizes = [1, 32], strides = [1, 1]} : vector<1x96xf32> to vector<1x32xf32>
    %9 = vector.broadcast %8 : vector<1x32xf32> to vector<8x32xf32>
    %10 = arith.addf %7, %9 : vector<8x32xf32>
    %11 = vector.extract_strided_slice %2 {offsets = [0, 32], sizes = [32, 64], strides = [1, 1]} : vector<32x96xf32> to vector<32x64xf32>
    %cst_9 = arith.constant dense<0.000000e+00> : vector<8x64xf32>
    %12 = tpu.matmul %5, %11, %cst_9 {dimension_numbers = #tpu.dot_dimension_numbers<[1], [0], [0], [1], [0, 0, 1, 1], [], []>} : vector<8x32xf32>, vector<32x64xf32>, vector<8x64xf32> -> vector<8x64xf32>
    %13 = vector.extract_strided_slice %3 {offsets = [0, 32], sizes = [1, 64], strides = [1, 1]} : vector<1x96xf32> to vector<1x64xf32>
    %14 = vector.broadcast %13 : vector<1x64xf32> to vector<8x64xf32>
    %15 = arith.addf %12, %14 : vector<8x64xf32>
    %16 = vector.extract_strided_slice %15 {offsets = [0, 0], sizes = [8, 32], strides = [1, 1]} : vector<8x64xf32> to vector<8x32xf32>
    %17 = vector.extract_strided_slice %15 {offsets = [0, 32], sizes = [8, 32], strides = [1, 1]} : vector<8x64xf32> to vector<8x32xf32>
    %c0_10 = arith.constant 0 : index
    %c0_11 = arith.constant 0 : index
    %18 = vector.load %arg5[%c0_10, %c0_11] : memref<32x32xf32, #tpu.memory_space<vmem>>, vector<32x32xf32>
    %cst_12 = arith.constant 0.000000e+00 : f32
    %19 = vector.broadcast %cst_12 : f32 to vector<8x32xf32>
    %20 = vector.extract_strided_slice %10 {offsets = [0, 0], sizes = [8, 8], strides = [1, 1]} : vector<8x32xf32> to vector<8x8xf32>
    %21 = vector.extract_strided_slice %16 {offsets = [0, 0], sizes = [8, 8], strides = [1, 1]} : vector<8x32xf32> to vector<8x8xf32>
    %cst_13 = arith.constant dense<0.000000e+00> : vector<8x8xf32>
    %22 = tpu.matmul %20, %21, %cst_13 {dimension_numbers = #tpu.dot_dimension_numbers<[1], [1], [0], [0], [0, 0, 1, 0], [], []>} : vector<8x8xf32>, vector<8x8xf32>, vector<8x8xf32> -> vector<8x8xf32>
    %cst_14 = arith.constant 0.353553385 : f32
    %23 = vector.broadcast %cst_14 : f32 to vector<8x8xf32>
    %24 = arith.mulf %22, %23 : vector<8x8xf32>
    %cst_15 = arith.constant dense<0xFF800000> : vector<8xf32>
    %25 = vector.multi_reduction <maximumf>, %24, %cst_15 [1] : vector<8x8xf32> to vector<8xf32>
    %26 = vector.shape_cast %25 : vector<8xf32> to vector<8x1xf32>
    %27 = vector.broadcast %26 : vector<8x1xf32> to vector<8x8xf32>
    %28 = arith.subf %24, %27 : vector<8x8xf32>
    %29 = math.exp %28 : vector<8x8xf32>
    %cst_16 = arith.constant dense<0.000000e+00> : vector<8xf32>
    %30 = vector.multi_reduction <add>, %29, %cst_16 [1] : vector<8x8xf32> to vector<8xf32>
    %31 = vector.shape_cast %30 : vector<8xf32> to vector<8x1xf32>
    %32 = tpu.reciprocal %31 {approx = true} : vector<8x1xf32> -> vector<8x1xf32>
    %33 = vector.broadcast %32 : vector<8x1xf32> to vector<8x8xf32>
    %34 = arith.mulf %29, %33 : vector<8x8xf32>
    %35 = vector.extract_strided_slice %17 {offsets = [0, 0], sizes = [8, 8], strides = [1, 1]} : vector<8x32xf32> to vector<8x8xf32>
    %cst_17 = arith.constant dense<0.000000e+00> : vector<8x8xf32>
    %36 = tpu.matmul %34, %35, %cst_17 {dimension_numbers = #tpu.dot_dimension_numbers<[1], [0], [0], [1], [0, 0, 1, 1], [], []>} : vector<8x8xf32>, vector<8x8xf32>, vector<8x8xf32> -> vector<8x8xf32>
    %37 = vector.extract_strided_slice %18 {offsets = [0, 0], sizes = [8, 32], strides = [1, 1]} : vector<32x32xf32> to vector<8x32xf32>
    %cst_18 = arith.constant dense<0.000000e+00> : vector<8x32xf32>
    %38 = tpu.matmul %36, %37, %cst_18 {dimension_numbers = #tpu.dot_dimension_numbers<[1], [0], [0], [1], [0, 0, 1, 1], [], []>} : vector<8x8xf32>, vector<8x32xf32>, vector<8x32xf32> -> vector<8x32xf32>
    %39 = arith.addf %19, %38 : vector<8x32xf32>
    %40 = vector.extract_strided_slice %10 {offsets = [0, 8], sizes = [8, 8], strides = [1, 1]} : vector<8x32xf32> to vector<8x8xf32>
    %41 = vector.extract_strided_slice %16 {offsets = [0, 8], sizes = [8, 8], strides = [1, 1]} : vector<8x32xf32> to vector<8x8xf32>
    %cst_19 = arith.constant dense<0.000000e+00> : vector<8x8xf32>
    %42 = tpu.matmul %40, %41, %cst_19 {dimension_numbers = #tpu.dot_dimension_numbers<[1], [1], [0], [0], [0, 0, 1, 0], [], []>} : vector<8x8xf32>, vector<8x8xf32>, vector<8x8xf32> -> vector<8x8xf32>
    %cst_20 = arith.constant 0.353553385 : f32
    %43 = vector.broadcast %cst_20 : f32 to vector<8x8xf32>
    %44 = arith.mulf %42, %43 : vector<8x8xf32>
    %cst_21 = arith.constant dense<0xFF800000> : vector<8xf32>
    %45 = vector.multi_reduction <maximumf>, %44, %cst_21 [1] : vector<8x8xf32> to vector<8xf32>
    %46 = vector.shape_cast %45 : vector<8xf32> to vector<8x1xf32>
    %47 = vector.broadcast %46 : vector<8x1xf32> to vector<8x8xf32>
    %48 = arith.subf %44, %47 : vector<8x8xf32>
    %49 = math.exp %48 : vector<8x8xf32>
    %cst_22 = arith.constant dense<0.000000e+00> : vector<8xf32>
    %50 = vector.multi_reduction <add>, %49, %cst_22 [1] : vector<8x8xf32> to vector<8xf32>
    %51 = vector.shape_cast %50 : vector<8xf32> to vector<8x1xf32>
    %52 = tpu.reciprocal %51 {approx = true} : vector<8x1xf32> -> vector<8x1xf32>
    %53 = vector.broadcast %52 : vector<8x1xf32> to vector<8x8xf32>
    %54 = arith.mulf %49, %53 : vector<8x8xf32>
    %55 = vector.extract_strided_slice %17 {offsets = [0, 8], sizes = [8, 8], strides = [1, 1]} : vector<8x32xf32> to vector<8x8xf32>
    %cst_23 = arith.constant dense<0.000000e+00> : vector<8x8xf32>
    %56 = tpu.matmul %54, %55, %cst_23 {dimension_numbers = #tpu.dot_dimension_numbers<[1], [0], [0], [1], [0, 0, 1, 1], [], []>} : vector<8x8xf32>, vector<8x8xf32>, vector<8x8xf32> -> vector<8x8xf32>
    %57 = vector.extract_strided_slice %18 {offsets = [8, 0], sizes = [8, 32], strides = [1, 1]} : vector<32x32xf32> to vector<8x32xf32>
    %cst_24 = arith.constant dense<0.000000e+00> : vector<8x32xf32>
    %58 = tpu.matmul %56, %57, %cst_24 {dimension_numbers = #tpu.dot_dimension_numbers<[1], [0], [0], [1], [0, 0, 1, 1], [], []>} : vector<8x8xf32>, vector<8x32xf32>, vector<8x32xf32> -> vector<8x32xf32>
    %59 = arith.addf %39, %58 : vector<8x32xf32>
    %60 = vector.extract_strided_slice %10 {offsets = [0, 16], sizes = [8, 8], strides = [1, 1]} : vector<8x32xf32> to vector<8x8xf32>
    %61 = vector.extract_strided_slice %16 {offsets = [0, 16], sizes = [8, 8], strides = [1, 1]} : vector<8x32xf32> to vector<8x8xf32>
    %cst_25 = arith.constant dense<0.000000e+00> : vector<8x8xf32>
    %62 = tpu.matmul %60, %61, %cst_25 {dimension_numbers = #tpu.dot_dimension_numbers<[1], [1], [0], [0], [0, 0, 1, 0], [], []>} : vector<8x8xf32>, vector<8x8xf32>, vector<8x8xf32> -> vector<8x8xf32>
    %cst_26 = arith.constant 0.353553385 : f32
    %63 = vector.broadcast %cst_26 : f32 to vector<8x8xf32>
    %64 = arith.mulf %62, %63 : vector<8x8xf32>
    %cst_27 = arith.constant dense<0xFF800000> : vector<8xf32>
    %65 = vector.multi_reduction <maximumf>, %64, %cst_27 [1] : vector<8x8xf32> to vector<8xf32>
    %66 = vector.shape_cast %65 : vector<8xf32> to vector<8x1xf32>
    %67 = vector.broadcast %66 : vector<8x1xf32> to vector<8x8xf32>
    %68 = arith.subf %64, %67 : vector<8x8xf32>
    %69 = math.exp %68 : vector<8x8xf32>
    %cst_28 = arith.constant dense<0.000000e+00> : vector<8xf32>
    %70 = vector.multi_reduction <add>, %69, %cst_28 [1] : vector<8x8xf32> to vector<8xf32>
    %71 = vector.shape_cast %70 : vector<8xf32> to vector<8x1xf32>
    %72 = tpu.reciprocal %71 {approx = true} : vector<8x1xf32> -> vector<8x1xf32>
    %73 = vector.broadcast %72 : vector<8x1xf32> to vector<8x8xf32>
    %74 = arith.mulf %69, %73 : vector<8x8xf32>
    %75 = vector.extract_strided_slice %17 {offsets = [0, 16], sizes = [8, 8], strides = [1, 1]} : vector<8x32xf32> to vector<8x8xf32>
    %cst_29 = arith.constant dense<0.000000e+00> : vector<8x8xf32>
    %76 = tpu.matmul %74, %75, %cst_29 {dimension_numbers = #tpu.dot_dimension_numbers<[1], [0], [0], [1], [0, 0, 1, 1], [], []>} : vector<8x8xf32>, vector<8x8xf32>, vector<8x8xf32> -> vector<8x8xf32>
    %77 = vector.extract_strided_slice %18 {offsets = [16, 0], sizes = [8, 32], strides = [1, 1]} : vector<32x32xf32> to vector<8x32xf32>
    %cst_30 = arith.constant dense<0.000000e+00> : vector<8x32xf32>
    %78 = tpu.matmul %76, %77, %cst_30 {dimension_numbers = #tpu.dot_dimension_numbers<[1], [0], [0], [1], [0, 0, 1, 1], [], []>} : vector<8x8xf32>, vector<8x32xf32>, vector<8x32xf32> -> vector<8x32xf32>
    %79 = arith.addf %59, %78 : vector<8x32xf32>
    %80 = vector.extract_strided_slice %10 {offsets = [0, 24], sizes = [8, 8], strides = [1, 1]} : vector<8x32xf32> to vector<8x8xf32>
    %81 = vector.extract_strided_slice %16 {offsets = [0, 24], sizes = [8, 8], strides = [1, 1]} : vector<8x32xf32> to vector<8x8xf32>
    %cst_31 = arith.constant dense<0.000000e+00> : vector<8x8xf32>
    %82 = tpu.matmul %80, %81, %cst_31 {dimension_numbers = #tpu.dot_dimension_numbers<[1], [1], [0], [0], [0, 0, 1, 0], [], []>} : vector<8x8xf32>, vector<8x8xf32>, vector<8x8xf32> -> vector<8x8xf32>
    %cst_32 = arith.constant 0.353553385 : f32
    %83 = vector.broadcast %cst_32 : f32 to vector<8x8xf32>
    %84 = arith.mulf %82, %83 : vector<8x8xf32>
    %cst_33 = arith.constant dense<0xFF800000> : vector<8xf32>
    %85 = vector.multi_reduction <maximumf>, %84, %cst_33 [1] : vector<8x8xf32> to vector<8xf32>
    %86 = vector.shape_cast %85 : vector<8xf32> to vector<8x1xf32>
    %87 = vector.broadcast %86 : vector<8x1xf32> to vector<8x8xf32>
    %88 = arith.subf %84, %87 : vector<8x8xf32>
    %89 = math.exp %88 : vector<8x8xf32>
    %cst_34 = arith.constant dense<0.000000e+00> : vector<8xf32>
    %90 = vector.multi_reduction <add>, %89, %cst_34 [1] : vector<8x8xf32> to vector<8xf32>
    %91 = vector.shape_cast %90 : vector<8xf32> to vector<8x1xf32>
    %92 = tpu.reciprocal %91 {approx = true} : vector<8x1xf32> -> vector<8x1xf32>
    %93 = vector.broadcast %92 : vector<8x1xf32> to vector<8x8xf32>
    %94 = arith.mulf %89, %93 : vector<8x8xf32>
    %95 = vector.extract_strided_slice %17 {offsets = [0, 24], sizes = [8, 8], strides = [1, 1]} : vector<8x32xf32> to vector<8x8xf32>
    %cst_35 = arith.constant dense<0.000000e+00> : vector<8x8xf32>
    %96 = tpu.matmul %94, %95, %cst_35 {dimension_numbers = #tpu.dot_dimension_numbers<[1], [0], [0], [1], [0, 0, 1, 1], [], []>} : vector<8x8xf32>, vector<8x8xf32>, vector<8x8xf32> -> vector<8x8xf32>
    %97 = vector.extract_strided_slice %18 {offsets = [24, 0], sizes = [8, 32], strides = [1, 1]} : vector<32x32xf32> to vector<8x32xf32>
    %cst_36 = arith.constant dense<0.000000e+00> : vector<8x32xf32>
    %98 = tpu.matmul %96, %97, %cst_36 {dimension_numbers = #tpu.dot_dimension_numbers<[1], [0], [0], [1], [0, 0, 1, 1], [], []>} : vector<8x8xf32>, vector<8x32xf32>, vector<8x32xf32> -> vector<8x32xf32>
    %99 = arith.addf %79, %98 : vector<8x32xf32>
    %100 = arith.addf %1, %99 : vector<8x32xf32>
    %c0_37 = arith.constant 0 : index
    %c0_38 = arith.constant 0 : index
    %101 = vector.load %arg6[%c0_37, %c0_38] : memref<1x32xf32, #tpu.memory_space<vmem>>, vector<1x32xf32>
    %102 = vector.broadcast %101 : vector<1x32xf32> to vector<8x32xf32>
    %103 = arith.addf %100, %102 : vector<8x32xf32>
    %cst_39 = arith.constant dense<0.000000e+00> : vector<8xf32>
    %104 = vector.multi_reduction <add>, %103, %cst_39 [1] : vector<8x32xf32> to vector<8xf32>
    %105 = vector.shape_cast %104 : vector<8xf32> to vector<8x1xf32>
    %cst_40 = arith.constant 3.200000e+01 : f32
    %106 = vector.broadcast %cst_40 : f32 to vector<8x1xf32>
    %107 = arith.divf %105, %106 : vector<8x1xf32>
    %108 = vector.broadcast %107 : vector<8x1xf32> to vector<8x32xf32>
    %109 = arith.subf %103, %108 : vector<8x32xf32>
    %110 = arith.mulf %109, %109 : vector<8x32xf32>
    %cst_41 = arith.constant dense<0.000000e+00> : vector<8xf32>
    %111 = vector.multi_reduction <add>, %110, %cst_41 [1] : vector<8x32xf32> to vector<8xf32>
    %112 = vector.shape_cast %111 : vector<8xf32> to vector<8x1xf32>
    %cst_42 = arith.constant 3.200000e+01 : f32
    %113 = vector.broadcast %cst_42 : f32 to vector<8x1xf32>
    %114 = arith.divf %112, %113 : vector<8x1xf32>
    %cst_43 = arith.constant 9.99999974E-6 : f32
    %115 = vector.broadcast %cst_43 : f32 to vector<8x1xf32>
    %116 = arith.addf %114, %115 : vector<8x1xf32>
    %117 = math.rsqrt %116 : vector<8x1xf32>
    %118 = vector.broadcast %117 : vector<8x1xf32> to vector<8x32xf32>
    %119 = arith.mulf %109, %118 : vector<8x32xf32>
    %c0_44 = arith.constant 0 : index
    %c0_45 = arith.constant 0 : index
    %120 = vector.load %arg7[%c0_44, %c0_45] : memref<1x32xf32, #tpu.memory_space<vmem>>, vector<1x32xf32>
    %121 = vector.broadcast %120 : vector<1x32xf32> to vector<8x32xf32>
    %122 = arith.mulf %119, %121 : vector<8x32xf32>
    %c0_46 = arith.constant 0 : index
    %c0_47 = arith.constant 0 : index
    %123 = vector.load %arg8[%c0_46, %c0_47] : memref<1x32xf32, #tpu.memory_space<vmem>>, vector<1x32xf32>
    %124 = vector.broadcast %123 : vector<1x32xf32> to vector<8x32xf32>
    %125 = arith.addf %122, %124 : vector<8x32xf32>
    %c0_48 = arith.constant 0 : index
    %c0_49 = arith.constant 0 : index
    %c0_50 = arith.constant 0 : index
    %126 = vector.load %arg9[%c0_48, %c0_49, %c0_50] : memref<1x8x32xf32, #tpu.memory_space<vmem>>, vector<1x8x32xf32>
    %127 = vector.shape_cast %126 : vector<1x8x32xf32> to vector<8x32xf32>
    %128 = vector.shape_cast %125 : vector<8x32xf32> to vector<1x8x32xf32>
    tpu.vector_store %arg9[%c0_48, %c0_49, %c0_50], %128 {strides = array<i32>} : memref<1x8x32xf32, #tpu.memory_space<vmem>>, vector<1x8x32xf32>,
    return
  }
  func.func @transform_0(%arg0: i32) -> (i32, i32, i32) {
    %c0_i32 = arith.constant 0 : i32
    %c0_i32_0 = arith.constant 0 : i32
    %c0_i32_1 = arith.constant 0 : i32
    return %arg0, %c0_i32, %c0_i32_0 : i32, i32, i32
  }
  func.func @transform_1(%arg0: i32) -> (i32, i32, i32) {
    %c0_i32 = arith.constant 0 : i32
    %c0_i32_0 = arith.constant 0 : i32
    %c0_i32_1 = arith.constant 0 : i32
    return %arg0, %c0_i32, %c0_i32_0 : i32, i32, i32
  }
  func.func @transform_2(%arg0: i32) -> (i32, i32) {
    %c0_i32 = arith.constant 0 : i32
    %c0_i32_0 = arith.constant 0 : i32
    %c0_i32_1 = arith.constant 0 : i32
    return %c0_i32, %c0_i32_0 : i32, i32
  }
  func.func @transform_3(%arg0: i32) -> (i32, i32) {
    %c0_i32 = arith.constant 0 : i32
    %c0_i32_0 = arith.constant 0 : i32
    %c0_i32_1 = arith.constant 0 : i32
    return %c0_i32, %c0_i32_0 : i32, i32
  }
  func.func @transform_4(%arg0: i32) -> (i32, i32) {
    %c0_i32 = arith.constant 0 : i32
    %c0_i32_0 = arith.constant 0 : i32
    %c0_i32_1 = arith.constant 0 : i32
    return %c0_i32, %c0_i32_0 : i32, i32
  }
  func.func @transform_5(%arg0: i32) -> (i32, i32) {
    %c0_i32 = arith.constant 0 : i32
    %c0_i32_0 = arith.constant 0 : i32
    %c0_i32_1 = arith.constant 0 : i32
    return %c0_i32, %c0_i32_0 : i32, i32
  }
  func.func @transform_6(%arg0: i32) -> (i32, i32) {
    %c0_i32 = arith.constant 0 : i32
    %c0_i32_0 = arith.constant 0 : i32
    %c0_i32_1 = arith.constant 0 : i32
    return %c0_i32, %c0_i32_0 : i32, i32
  }
  func.func @transform_7(%arg0: i32) -> (i32, i32) {
    %c0_i32 = arith.constant 0 : i32
    %c0_i32_0 = arith.constant 0 : i32
    %c0_i32_1 = arith.constant 0 : i32
    return %c0_i32, %c0_i32_0 : i32, i32
  }
  func.func @transform_8(%arg0: i32) -> (i32, i32, i32) {
    %c0_i32 = arith.constant 0 : i32
    %c0_i32_0 = arith.constant 0 : i32
    %c0_i32_1 = arith.constant 0 : i32
    return %arg0, %c0_i32, %c0_i32_0 : i32, i32, i32
  }
}

module attributes {stable_mosaic.version = 11 : i64} {
  func.func @_linear_kernel(%arg0: i32, %arg1: memref<8x32xf32, #tpu.memory_space<vmem>>, %arg2: memref<32x1xf32, #tpu.memory_space<vmem>>, %arg3: memref<1x1xf32, #tpu.memory_space<vmem>>, %arg4: memref<8x1xf32, #tpu.memory_space<vmem>>) attributes {dimension_semantics = [#tpu.dimension_semantics<parallel>], iteration_bounds = array<i64: 2>, scalar_prefetch = 0 : i64, scratch_operands = 0 : i64, tpu.core_type = #tpu.core_type<tc>, window_params = [{transform_indices = @transform_0, window_bounds = array<i64: 8, 32>}, {pipeline_mode = #tpu.pipeline_mode<synchronous>, transform_indices = @transform_1, window_bounds = array<i64: 32, 1>}, {pipeline_mode = #tpu.pipeline_mode<synchronous>, transform_indices = @transform_2, window_bounds = array<i64: 1, 1>}, {transform_indices = @transform_3, window_bounds = array<i64: 8, 1>}]} {
    %c0 = arith.constant 0 : index
    %c0_0 = arith.constant 0 : index
    %0 = vector.load %arg1[%c0, %c0_0] : memref<8x32xf32, #tpu.memory_space<vmem>>, vector<8x32xf32>
    %c0_1 = arith.constant 0 : index
    %c0_2 = arith.constant 0 : index
    %1 = vector.load %arg2[%c0_1, %c0_2] : memref<32x1xf32, #tpu.memory_space<vmem>>, vector<32x1xf32>
    %cst = arith.constant dense<0.000000e+00> : vector<8x1xf32>
    %2 = tpu.matmul %0, %1, %cst {dimension_numbers = #tpu.dot_dimension_numbers<[1], [0], [0], [1], [0, 0, 1, 1], [], []>} : vector<8x32xf32>, vector<32x1xf32>, vector<8x1xf32> -> vector<8x1xf32>
    %c0_3 = arith.constant 0 : index
    %c0_4 = arith.constant 0 : index
    %3 = vector.load %arg3[%c0_3, %c0_4] : memref<1x1xf32, #tpu.memory_space<vmem>>, vector<1x1xf32>
    %4 = vector.broadcast %3 : vector<1x1xf32> to vector<8x1xf32>
    %5 = arith.addf %2, %4 : vector<8x1xf32>
    %c0_5 = arith.constant 0 : index
    %c0_6 = arith.constant 0 : index
    %6 = vector.load %arg4[%c0_5, %c0_6] : memref<8x1xf32, #tpu.memory_space<vmem>>, vector<8x1xf32>
    tpu.vector_store %arg4[%c0_5, %c0_6], %5 {strides = array<i32>} : memref<8x1xf32, #tpu.memory_space<vmem>>, vector<8x1xf32>,
    return
  }
  func.func @transform_0(%arg0: i32) -> (i32, i32) {
    %c0_i32 = arith.constant 0 : i32
    %c0_i32_0 = arith.constant 0 : i32
    return %arg0, %c0_i32 : i32, i32
  }
  func.func @transform_1(%arg0: i32) -> (i32, i32) {
    %c0_i32 = arith.constant 0 : i32
    %c0_i32_0 = arith.constant 0 : i32
    %c0_i32_1 = arith.constant 0 : i32
    return %c0_i32, %c0_i32_0 : i32, i32
  }
  func.func @transform_2(%arg0: i32) -> (i32, i32) {
    %c0_i32 = arith.constant 0 : i32
    %c0_i32_0 = arith.constant 0 : i32
    %c0_i32_1 = arith.constant 0 : i32
    return %c0_i32, %c0_i32_0 : i32, i32
  }
  func.func @transform_3(%arg0: i32) -> (i32, i32) {
    %c0_i32 = arith.constant 0 : i32
    %c0_i32_0 = arith.constant 0 : i32
    return %arg0, %c0_i32 : i32, i32
  }
}

</mosaic_0001>

<llo_original>
// kernel: time_series_transformer.13
$region0: #{time_series_transformer.13}
  #allocation0 [shape = 'u32[]', space=smem, size = 0x4, offset = 0x4, fixed_abs, tag = 'smem constant byte address 0x4 - core index']
  #allocation1 [shape = 'u32[144,128]{1,0:T(1,128)}', space=vmem, size = 0x12000, scoped, tag = 'internal scratch']
  %s0 = inlined_call_operand.vmem [shape: f32[2,8,8], index: 0, kind: input, shape index: {}]
  %s1 = inlined_call_operand.vmem [shape: f32[8,32], index: 1, kind: input, shape index: {}]
  %s2 = inlined_call_operand.vmem [shape: f32[1,32], index: 2, kind: input, shape index: {}]
  %s3 = inlined_call_operand.vmem [shape: f32[8,32], index: 3, kind: input, shape index: {}]
  %s4 = inlined_call_operand.vmem [shape: f32[2,8,32], index: 4, kind: output, shape index: {}]
  %s5 = sld [smem:[#allocation0]]
  $region49: #{time_series_transformer.13} parent=0
    _
  %s7 = ssub.s32 1, %s5
  %s8 = scalar_select 0, %s7, %s5
  loop: start=0, step=1, limit=4
  $region2: #{time_series_transformer.13} parent=0 // loop_pre_header
    _
  $region3: #{time_series_transformer.13} parent=0 // loop_header
    %s10 = sphi 0, %s14
    %p11 = scmp.ge.s32.totalorder %s10, 4
    %s20 = sphi 0, %s22
    %s23 = sphi 0, %s20
    %s24 = sphi 0, %s23
    %s40 = sphi 0, %s24
    %s44 = sphi 0, %s44
    %s46 = sphi 0, %s44
    %s47 = sphi 0, %s46
    %s61 = sphi 0, %s47
    %s65 = sphi 0, %s65
    %s67 = sphi 0, %s65
    %s68 = sphi 0, %s67
    %s82 = sphi 0, %s68
    %s86 = sphi 0, %s86
    %s88 = sphi 0, %s86
    %s89 = sphi 0, %s88
    %s103 = sphi 0, %s89
    %s109 = sphi 0, %s111
    %s112 = sphi 0, %s109
    %s113 = sphi 0, %s112
    %s129 = sphi 0, %s113
  $region4: #{time_series_transformer.13} parent=0 // loop_header_branch
    %13 = sbr.rel (%p11) target = $region8
  $region5: #{time_series_transformer.13} parent=0 // loop_body
    %s15 = ssub.s32 %s10, 1
    %s16 = ssub.s32 %s10, 2
    %s17 = sadd.s32 %s10, 1
    %s18 = ssub.s32 %s10, %s17
    %p19 = scmp.eq.s32.totalorder %s18, 0
    %s21 = sadd.s32 %s20, 1
    %s22 = scalar_select %p19, %s20, %s21
    %p25 = pneg %p19
    %p26 = scmp.eq.s32.totalorder %s10, 1
    %p27 = por %p25, %p26
    %p28 = scmp.ne.s32.totalorder %s20, %s23
    %p29 = scmp.eq.s32.totalorder %s10, 0
    %p30 = por %p28, %p29
    %p31 = scmp.ne.s32.totalorder %s20, %s23
    %p32 = scmp.eq.s32.totalorder %s15, 1
    %p33 = por %p31, %p32
    %p34 = scmp.ne.s32.totalorder %s23, %s24
    %p35 = scmp.eq.s32.totalorder %s15, 0
    %p36 = por %p34, %p35
    %p37 = scmp.ne.s32.totalorder %s23, %s24
    %p38 = scmp.eq.s32.totalorder %s16, 1
    %p39 = por %p37, %p38
    %p41 = scmp.ne.s32.totalorder %s24, %s40
    %p42 = scmp.eq.s32.totalorder %s16, 0
    %p43 = por %p41, %p42
    %s45 = sadd.s32 %s44, 1
    %p48 = scmp.eq.s32.totalorder %s10, 1
    %p49 = scmp.ne.s32.totalorder %s44, %s46
    %p50 = scmp.eq.s32.totalorder %s10, 0
    %p51 = por %p49, %p50
    %p52 = scmp.ne.s32.totalorder %s44, %s46
    %p53 = scmp.eq.s32.totalorder %s15, 1
    %p54 = por %p52, %p53
    %p55 = scmp.ne.s32.totalorder %s46, %s47
    %p56 = scmp.eq.s32.totalorder %s15, 0
    %p57 = por %p55, %p56
    %p58 = scmp.ne.s32.totalorder %s46, %s47
    %p59 = scmp.eq.s32.totalorder %s16, 1
    %p60 = por %p58, %p59
    %p62 = scmp.ne.s32.totalorder %s47, %s61
    %p63 = scmp.eq.s32.totalorder %s16, 0
    %p64 = por %p62, %p63
    %s66 = sadd.s32 %s65, 1
    %p69 = scmp.eq.s32.totalorder %s10, 1
    %p70 = scmp.ne.s32.totalorder %s65, %s67
    %p71 = scmp.eq.s32.totalorder %s10, 0
    %p72 = por %p70, %p71
    %p73 = scmp.ne.s32.totalorder %s65, %s67
    %p74 = scmp.eq.s32.totalorder %s15, 1
    %p75 = por %p73, %p74
    %p76 = scmp.ne.s32.totalorder %s67, %s68
    %p77 = scmp.eq.s32.totalorder %s15, 0
    %p78 = por %p76, %p77
    %p79 = scmp.ne.s32.totalorder %s67, %s68
    %p80 = scmp.eq.s32.totalorder %s16, 1
    %p81 = por %p79, %p80
    %p83 = scmp.ne.s32.totalorder %s68, %s82
    %p84 = scmp.eq.s32.totalorder %s16, 0
    %p85 = por %p83, %p84
    %s87 = sadd.s32 %s86, 1
    %p90 = scmp.eq.s32.totalorder %s10, 1
    %p91 = scmp.ne.s32.totalorder %s86, %s88
    %p92 = scmp.eq.s32.totalorder %s10, 0
    %p93 = por %p91, %p92
    %p94 = scmp.ne.s32.totalorder %s86, %s88
    %p95 = scmp.eq.s32.totalorder %s15, 1
    %p96 = por %p94, %p95
    %p97 = scmp.ne.s32.totalorder %s88, %s89
    %p98 = scmp.eq.s32.totalorder %s15, 0
    %p99 = por %p97, %p98
    %p100 = scmp.ne.s32.totalorder %s88, %s89
    %p101 = scmp.eq.s32.totalorder %s16, 1
    %p102 = por %p100, %p101
    %p104 = scmp.ne.s32.totalorder %s89, %s103
    %p105 = scmp.eq.s32.totalorder %s16, 0
    %p106 = por %p104, %p105
    %s107 = ssub.s32 %s10, %s17
    %p108 = scmp.eq.s32.totalorder %s107, 0
    %s110 = sadd.s32 %s109, 1
    %s111 = scalar_select %p108, %s109, %s110
    %p114 = pneg %p108
    %p115 = scmp.eq.s32.totalorder %s10, 1
    %p116 = por %p114, %p115
    %p117 = scmp.ne.s32.totalorder %s109, %s112
    %p118 = scmp.eq.s32.totalorder %s10, 0
    %p119 = por %p117, %p118
    %p120 = scmp.ne.s32.totalorder %s109, %s112
    %p121 = scmp.eq.s32.totalorder %s15, 1
    %p122 = por %p120, %p121
    %p123 = scmp.ne.s32.totalorder %s112, %s113
    %p124 = scmp.eq.s32.totalorder %s15, 0
    %p125 = por %p123, %p124
    %p126 = scmp.ne.s32.totalorder %s112, %s113
    %p127 = scmp.eq.s32.totalorder %s16, 1
    %p128 = por %p126, %p127
    %p130 = scmp.ne.s32.totalorder %s113, %s129
    %p131 = scmp.eq.s32.totalorder %s16, 0
    %p132 = por %p130, %p131
    %p133 = scmp.le.s32.totalorder 1, %s10
    %p134 = scmp.lt.s32.totalorder %s10, 3
    %p135 = pnand %p133, %p134
    %p136 = pneg %p135
    // Predicated region
    $region9: #{time_series_transformer.13} parent=5 // pred_check
      _
    $region10: #{time_series_transformer.13} parent=5 // pred_check_branch
      %138 = sbr.rel (%p135) target = $region12
    $region11: #{time_series_transformer.13} parent=5 // pred_region
      %s139 = ssub.s32 %s10, 1
      // Predicated region
      $region13: #{time_series_transformer.13} parent=11 // pred_check
        %p140 = pneg %p57
      $region14: #{time_series_transformer.13} parent=11 // pred_check_branch
        %142 = sbr.rel (%p140) target = $region16
      $region15: #{time_series_transformer.13} parent=11 // pred_region
        _
      $region16: #{time_series_transformer.13} parent=11 // pred_fallthru
        _
      // Predicated region
      $region17: #{time_series_transformer.13} parent=11 // pred_check
        %p143 = pneg %p78
      $region18: #{time_series_transformer.13} parent=11 // pred_check_branch
        %145 = sbr.rel (%p143) target = $region20
      $region19: #{time_series_transformer.13} parent=11 // pred_region
        _
      $region20: #{time_series_transformer.13} parent=11 // pred_fallthru
        _
      // Predicated region
      $region21: #{time_series_transformer.13} parent=11 // pred_check
        %p146 = pneg %p99
      $region22: #{time_series_transformer.13} parent=11 // pred_check_branch
        %148 = sbr.rel (%p146) target = $region24
      $region23: #{time_series_transformer.13} parent=11 // pred_region
        _
      $region24: #{time_series_transformer.13} parent=11 // pred_fallthru
        _
    $region12: #{time_series_transformer.13} parent=5 // pred_fallthru
      _
    %p149 = scmp.lt.s32.totalorder %s10, 2
    // Predicated region
    $region25: #{time_series_transformer.13} parent=5 // pred_check
      %p150 = pneg %p149
    $region26: #{time_series_transformer.13} parent=5 // pred_check_branch
      %152 = sbr.rel (%p150) target = $region28
    $region27: #{time_series_transformer.13} parent=5 // pred_region
      // Predicated region
      $region29: #{time_series_transformer.13} parent=27 // pred_check
        %p153 = pneg %p30
      $region30: #{time_series_transformer.13} parent=27 // pred_check_branch
        %155 = sbr.rel (%p153) target = $region32
      $region31: #{time_series_transformer.13} parent=27 // pred_region
        %p156 = scmp.lt.s32.totalorder %s10, 1
        %s157 = scalar_select %p156, %s10, 1
        %s158 = smul.addr %s157, 8
        %s159 = scalar_lea.vmem %s0, %s158
      $region32: #{time_series_transformer.13} parent=27 // pred_fallthru
        _
    $region28: #{time_series_transformer.13} parent=5 // pred_fallthru
      _
    %p160 = scmp.le.s32.totalorder 1, %s10
    %p161 = scmp.lt.s32.totalorder %s10, 3
    %p162 = pnand %p160, %p161
    %p163 = pneg %p162
    // Predicated region
    $region33: #{time_series_transformer.13} parent=5 // pred_check
      _
    $region34: #{time_series_transformer.13} parent=5 // pred_check_branch
      %165 = sbr.rel (%p162) target = $region36
    $region35: #{time_series_transformer.13} parent=5 // pred_region
      %s166 = ssub.s32 %s10, 1
      %p167 = scmp.lt.s32.totalorder %s15, 1
      %s168 = scalar_select %p167, %s15, 1
      %s169 = smul.addr %s168, 8
      %s170 = scalar_lea.vmem %s0, %s169
      %p171 = pneg %p36
      %p172 = pneg %p33
      %p173 = pneg %p57
      %p174 = pneg %p54
      %p175 = pneg %p78
      %p176 = pneg %p75
      %p177 = pneg %p99
      %p178 = pneg %p96
      %p179 = pneg %p125
      %p180 = pneg %p122
      %p181 = scmp.lt.s32.totalorder %s15, 1
      %s182 = scalar_select %p181, %s15, 1
      %s183 = smul.addr %s182, 8
      %s184 = scalar_lea.vmem %s4, %s183
      %p185 = scmp.lt.s32.totalorder %s15, 1
      %s186 = scalar_select %p185, %s15, 1
      %s187 = smul.addr %s186, 8
      %s188 = scalar_lea.vmem %s0, %s187
      %p189 = scmp.lt.s32.totalorder %s15, 1
      %s190 = scalar_select %p189, %s15, 1
      %s191 = smul.addr %s190, 8
      %s192 = scalar_lea.vmem %s4, %s191
      %v193 = vld [vmem:[%s188] sm:$0xff]
      %v194 = vld [vmem:[%s1] sm:$0xff]
      %v195 = vld [vmem:[%s2] sm:$0x1]
      %v197 = vlaneseq
      %v198 = vshrl.u32 %v197, 7
      %v199 = vsub.s32 0, %v198
      %v200 = vrot.slane %v195, %v199
      %vm202 = vcmask 64512
      %v204 = vsel %vm202, %v193, 0
      %206 = vmatprep.subr.mxu0 0.0
      %207 = vmatpush1.msra.mxu0 %v194
      %208 = vmatprep.subr.mxu0 0.0
      %209 = vmatpush1.msra.mxu0 0.0
      %210 = vmatprep.subr.mxu0 0.0
      %211 = vmatpush1.msra.mxu0 0.0
      %212 = vmatprep.subr.mxu0 0.0
      %213 = vmatpush1.msra.mxu0 0.0
      %214 = vmatprep.subr.mxu0 0.0
      %215 = vmatpush1.msra.mxu0 0.0
      %216 = vmatprep.subr.mxu0 0.0
      %217 = vmatpush1.msra.mxu0 0.0
      %218 = vmatprep.subr.mxu0 0.0
      %219 = vmatpush1.msra.mxu0 0.0
      %220 = vmatprep.subr.mxu0 0.0
      %221 = vmatpush1.msra.mxu0 0.0
      %222 = vmatprep.subr.mxu0 0.0
      %223 = vmatpush1.msra.mxu0 0.0
      %224 = vmatprep.subr.mxu0 0.0
      %225 = vmatpush1.msra.mxu0 0.0
      %226 = vmatprep.subr.mxu0 0.0
      %227 = vmatpush1.msra.mxu0 0.0
      %228 = vmatprep.subr.mxu0 0.0
      %229 = vmatpush1.msra.mxu0 0.0
      %230 = vmatprep.subr.mxu0 0.0
      %231 = vmatpush1.msra.mxu0 0.0
      %232 = vmatprep.subr.mxu0 0.0
      %233 = vmatpush1.msra.mxu0 0.0
      %234 = vmatprep.subr.mxu0 0.0
      %235 = vmatpush1.msra.mxu0 0.0
      %236 = vmatprep.subr.mxu0 0.0
      %237 = vmatpush1.msra.mxu0 0.0
      %238 = vmatprep.subr.mxu0 0.0
      %239 = vmatpush1.msra.mxu0 0.0
      %240 = vmatprep.subr.mxu0 0.0
      %241 = vmatpush1.msra.mxu0 0.0
      %242 = vmatprep.subr.mxu0 0.0
      %243 = vmatpush1.msra.mxu0 0.0
      %244 = vmatprep.subr.mxu0 0.0
      %245 = vmatpush1.msra.mxu0 0.0
      %246 = vmatprep.subr.mxu0 0.0
      %247 = vmatpush1.msra.mxu0 0.0
      %248 = vmatprep.subr.mxu0 0.0
      %249 = vmatpush1.msra.mxu0 0.0
      %250 = vmatprep.subr.mxu0 0.0
      %251 = vmatpush1.msra.mxu0 0.0
      %252 = vmatprep.subr.mxu0 0.0
      %253 = vmatpush1.msra.mxu0 0.0
      %254 = vmatprep.subr.mxu0 0.0
      %255 = vmatpush1.msra.mxu0 0.0
      %256 = vmatprep.subr.mxu0 0.0
      %257 = vmatpush1.msra.mxu0 0.0
      %258 = vmatprep.subr.mxu0 0.0
      %259 = vmatpush1.msra.mxu0 0.0
      %260 = vmatprep.subr.mxu0 0.0
      %261 = vmatpush1.msra.mxu0 0.0
      %262 = vmatprep.subr.mxu0 0.0
      %263 = vmatpush1.msra.mxu0 0.0
      %264 = vmatprep.subr.mxu0 0.0
      %265 = vmatpush1.msra.mxu0 0.0
      %266 = vmatprep.subr.mxu0 0.0
      %267 = vmatpush1.msra.mxu0 0.0
      %268 = vmatprep.subr.mxu0 0.0
      %269 = vmatpush1.msra.mxu0 0.0
      %270 = vmatprep.mubr.f32.mxu0 0.0
      %271 = vmatmul.mubr.f32.gmra.mrb[0].mxu0 %v204
      %v272 = vpop.f32.mrb[0].mxu0
      %v273 = vadd.f32 %v200, %v272
      %v274 = vpop.f32.mrb[0].mxu0
      %275 = vdwg.mxu0
      %v276 = vld [vmem:[%s3] sm:$0xff]
      %v277 = vadd.f32 %v273, %v276
      %vm278 = vcmask 261120
      %279 = vst.msk [vmem:[%s192] sm:$0xff] %vm278, %v277
      %p280 = scmp.lt.s32.totalorder %s15, 1
      %s281 = scalar_select %p280, %s15, 1
      %s282 = smul.addr %s281, 8
      %s283 = scalar_lea.vmem %s4, %s282
      // Predicated region
      $region37: #{time_series_transformer.13} parent=35 // pred_check
        %p284 = pneg %p122
      $region38: #{time_series_transformer.13} parent=35 // pred_check_branch
        %286 = sbr.rel (%p284) target = $region40
      $region39: #{time_series_transformer.13} parent=35 // pred_region
        _
      $region40: #{time_series_transformer.13} parent=35 // pred_fallthru
        _
    $region36: #{time_series_transformer.13} parent=5 // pred_fallthru
      _
    %p287 = scmp.le.s32.totalorder 2, %s10
    // Predicated region
    $region41: #{time_series_transformer.13} parent=5 // pred_check
      %p288 = pneg %p287
    $region42: #{time_series_transformer.13} parent=5 // pred_check_branch
      %290 = sbr.rel (%p288) target = $region44
    $region43: #{time_series_transformer.13} parent=5 // pred_region
      %s291 = ssub.s32 %s10, 2
      // Predicated region
      $region45: #{time_series_transformer.13} parent=43 // pred_check
        %p292 = pneg %p128
      $region46: #{time_series_transformer.13} parent=43 // pred_check_branch
        %294 = sbr.rel (%p292) target = $region48
      $region47: #{time_series_transformer.13} parent=43 // pred_region
        %p295 = scmp.lt.s32.totalorder %s16, 1
        %s296 = scalar_select %p295, %s16, 1
        %s297 = smul.addr %s296, 8
        %s298 = scalar_lea.vmem %s4, %s297
      $region48: #{time_series_transformer.13} parent=43 // pred_fallthru
        _
    $region44: #{time_series_transformer.13} parent=5 // pred_fallthru
      _
  $region6: #{time_series_transformer.13} parent=0 // loop_footer
    %s14 = sadd.s32 1, %s10
  $region7: #{time_series_transformer.13} parent=0 // loop_footer_branch
    %9 = sbr.rel target = $region3
  $region8: #{time_series_transformer.13} parent=0 // loop_exit
    _

// kernel: time_series_transformer.15
$region0: #{time_series_transformer.15}
  #allocation0 [shape = 'u32[]', space=smem, size = 0x4, offset = 0x4, fixed_abs, tag = 'smem constant byte address 0x4 - core index']
  #allocation1 [shape = 'u32[144,128]{1,0:T(1,128)}', space=vmem, size = 0x12000, scoped, tag = 'internal scratch']
  %s0 = inlined_call_operand.vmem [shape: f32[16,32], index: 0, kind: input, shape index: {}]
  %s1 = inlined_call_operand.vmem [shape: f32[32,64], index: 1, kind: input, shape index: {}]
  %s2 = inlined_call_operand.vmem [shape: f32[1,64], index: 2, kind: input, shape index: {}]
  %s3 = inlined_call_operand.vmem [shape: f32[64,32], index: 3, kind: input, shape index: {}]
  %s4 = inlined_call_operand.vmem [shape: f32[1,32], index: 4, kind: input, shape index: {}]
  %s5 = inlined_call_operand.vmem [shape: f32[1,32], index: 5, kind: input, shape index: {}]
  %s6 = inlined_call_operand.vmem [shape: f32[1,32], index: 6, kind: input, shape index: {}]
  %s7 = inlined_call_operand.vmem [shape: f32[16,32], index: 7, kind: output, shape index: {}]
  %s8 = sld [smem:[#allocation0]]
  $region61: #{time_series_transformer.15} parent=0
    _
  %s10 = ssub.s32 1, %s8
  %s11 = scalar_select 0, %s10, %s8
  loop: start=0, step=1, limit=4
  $region2: #{time_series_transformer.15} parent=0 // loop_pre_header
    _
  $region3: #{time_series_transformer.15} parent=0 // loop_header
    %s13 = sphi 0, %s17
    %p14 = scmp.ge.s32.totalorder %s13, 4
    %s23 = sphi 0, %s25
    %s26 = sphi 0, %s23
    %s27 = sphi 0, %s26
    %s43 = sphi 0, %s27
    %s47 = sphi 0, %s47
    %s49 = sphi 0, %s47
    %s50 = sphi 0, %s49
    %s64 = sphi 0, %s50
    %s68 = sphi 0, %s68
    %s70 = sphi 0, %s68
    %s71 = sphi 0, %s70
    %s85 = sphi 0, %s71
    %s89 = sphi 0, %s89
    %s91 = sphi 0, %s89
    %s92 = sphi 0, %s91
    %s106 = sphi 0, %s92
    %s110 = sphi 0, %s110
    %s112 = sphi 0, %s110
    %s113 = sphi 0, %s112
    %s127 = sphi 0, %s113
    %s131 = sphi 0, %s131
    %s133 = sphi 0, %s131
    %s134 = sphi 0, %s133
    %s148 = sphi 0, %s134
    %s152 = sphi 0, %s152
    %s154 = sphi 0, %s152
    %s155 = sphi 0, %s154
    %s169 = sphi 0, %s155
    %s175 = sphi 0, %s177
    %s178 = sphi 0, %s175
    %s179 = sphi 0, %s178
    %s195 = sphi 0, %s179
  $region4: #{time_series_transformer.15} parent=0 // loop_header_branch
    %16 = sbr.rel (%p14) target = $region8
  $region5: #{time_series_transformer.15} parent=0 // loop_body
    %s18 = ssub.s32 %s13, 1
    %s19 = ssub.s32 %s13, 2
    %s20 = sadd.s32 %s13, 1
    %s21 = ssub.s32 %s13, %s20
    %p22 = scmp.eq.s32.totalorder %s21, 0
    %s24 = sadd.s32 %s23, 1
    %s25 = scalar_select %p22, %s23, %s24
    %p28 = pneg %p22
    %p29 = scmp.eq.s32.totalorder %s13, 1
    %p30 = por %p28, %p29
    %p31 = scmp.ne.s32.totalorder %s23, %s26
    %p32 = scmp.eq.s32.totalorder %s13, 0
    %p33 = por %p31, %p32
    %p34 = scmp.ne.s32.totalorder %s23, %s26
    %p35 = scmp.eq.s32.totalorder %s18, 1
    %p36 = por %p34, %p35
    %p37 = scmp.ne.s32.totalorder %s26, %s27
    %p38 = scmp.eq.s32.totalorder %s18, 0
    %p39 = por %p37, %p38
    %p40 = scmp.ne.s32.totalorder %s26, %s27
    %p41 = scmp.eq.s32.totalorder %s19, 1
    %p42 = por %p40, %p41
    %p44 = scmp.ne.s32.totalorder %s27, %s43
    %p45 = scmp.eq.s32.totalorder %s19, 0
    %p46 = por %p44, %p45
    %s48 = sadd.s32 %s47, 1
    %p51 = scmp.eq.s32.totalorder %s13, 1
    %p52 = scmp.ne.s32.totalorder %s47, %s49
    %p53 = scmp.eq.s32.totalorder %s13, 0
    %p54 = por %p52, %p53
    %p55 = scmp.ne.s32.totalorder %s47, %s49
    %p56 = scmp.eq.s32.totalorder %s18, 1
    %p57 = por %p55, %p56
    %p58 = scmp.ne.s32.totalorder %s49, %s50
    %p59 = scmp.eq.s32.totalorder %s18, 0
    %p60 = por %p58, %p59
    %p61 = scmp.ne.s32.totalorder %s49, %s50
    %p62 = scmp.eq.s32.totalorder %s19, 1
    %p63 = por %p61, %p62
    %p65 = scmp.ne.s32.totalorder %s50, %s64
    %p66 = scmp.eq.s32.totalorder %s19, 0
    %p67 = por %p65, %p66
    %s69 = sadd.s32 %s68, 1
    %p72 = scmp.eq.s32.totalorder %s13, 1
    %p73 = scmp.ne.s32.totalorder %s68, %s70
    %p74 = scmp.eq.s32.totalorder %s13, 0
    %p75 = por %p73, %p74
    %p76 = scmp.ne.s32.totalorder %s68, %s70
    %p77 = scmp.eq.s32.totalorder %s18, 1
    %p78 = por %p76, %p77
    %p79 = scmp.ne.s32.totalorder %s70, %s71
    %p80 = scmp.eq.s32.totalorder %s18, 0
    %p81 = por %p79, %p80
    %p82 = scmp.ne.s32.totalorder %s70, %s71
    %p83 = scmp.eq.s32.totalorder %s19, 1
    %p84 = por %p82, %p83
    %p86 = scmp.ne.s32.totalorder %s71, %s85
    %p87 = scmp.eq.s32.totalorder %s19, 0
    %p88 = por %p86, %p87
    %s90 = sadd.s32 %s89, 1
    %p93 = scmp.eq.s32.totalorder %s13, 1
    %p94 = scmp.ne.s32.totalorder %s89, %s91
    %p95 = scmp.eq.s32.totalorder %s13, 0
    %p96 = por %p94, %p95
    %p97 = scmp.ne.s32.totalorder %s89, %s91
    %p98 = scmp.eq.s32.totalorder %s18, 1
    %p99 = por %p97, %p98
    %p100 = scmp.ne.s32.totalorder %s91, %s92
    %p101 = scmp.eq.s32.totalorder %s18, 0
    %p102 = por %p100, %p101
    %p103 = scmp.ne.s32.totalorder %s91, %s92
    %p104 = scmp.eq.s32.totalorder %s19, 1
    %p105 = por %p103, %p104
    %p107 = scmp.ne.s32.totalorder %s92, %s106
    %p108 = scmp.eq.s32.totalorder %s19, 0
    %p109 = por %p107, %p108
    %s111 = sadd.s32 %s110, 1
    %p114 = scmp.eq.s32.totalorder %s13, 1
    %p115 = scmp.ne.s32.totalorder %s110, %s112
    %p116 = scmp.eq.s32.totalorder %s13, 0
    %p117 = por %p115, %p116
    %p118 = scmp.ne.s32.totalorder %s110, %s112
    %p119 = scmp.eq.s32.totalorder %s18, 1
    %p120 = por %p118, %p119
    %p121 = scmp.ne.s32.totalorder %s112, %s113
    %p122 = scmp.eq.s32.totalorder %s18, 0
    %p123 = por %p121, %p122
    %p124 = scmp.ne.s32.totalorder %s112, %s113
    %p125 = scmp.eq.s32.totalorder %s19, 1
    %p126 = por %p124, %p125
    %p128 = scmp.ne.s32.totalorder %s113, %s127
    %p129 = scmp.eq.s32.totalorder %s19, 0
    %p130 = por %p128, %p129
    %s132 = sadd.s32 %s131, 1
    %p135 = scmp.eq.s32.totalorder %s13, 1
    %p136 = scmp.ne.s32.totalorder %s131, %s133
    %p137 = scmp.eq.s32.totalorder %s13, 0
    %p138 = por %p136, %p137
    %p139 = scmp.ne.s32.totalorder %s131, %s133
    %p140 = scmp.eq.s32.totalorder %s18, 1
    %p141 = por %p139, %p140
    %p142 = scmp.ne.s32.totalorder %s133, %s134
    %p143 = scmp.eq.s32.totalorder %s18, 0
    %p144 = por %p142, %p143
    %p145 = scmp.ne.s32.totalorder %s133, %s134
    %p146 = scmp.eq.s32.totalorder %s19, 1
    %p147 = por %p145, %p146
    %p149 = scmp.ne.s32.totalorder %s134, %s148
    %p150 = scmp.eq.s32.totalorder %s19, 0
    %p151 = por %p149, %p150
    %s153 = sadd.s32 %s152, 1
    %p156 = scmp.eq.s32.totalorder %s13, 1
    %p157 = scmp.ne.s32.totalorder %s152, %s154
    %p158 = scmp.eq.s32.totalorder %s13, 0
    %p159 = por %p157, %p158
    %p160 = scmp.ne.s32.totalorder %s152, %s154
    %p161 = scmp.eq.s32.totalorder %s18, 1
    %p162 = por %p160, %p161
    %p163 = scmp.ne.s32.totalorder %s154, %s155
    %p164 = scmp.eq.s32.totalorder %s18, 0
    %p165 = por %p163, %p164
    %p166 = scmp.ne.s32.totalorder %s154, %s155
    %p167 = scmp.eq.s32.totalorder %s19, 1
    %p168 = por %p166, %p167
    %p170 = scmp.ne.s32.totalorder %s155, %s169
    %p171 = scmp.eq.s32.totalorder %s19, 0
    %p172 = por %p170, %p171
    %s173 = ssub.s32 %s13, %s20
    %p174 = scmp.eq.s32.totalorder %s173, 0
    %s176 = sadd.s32 %s175, 1
    %s177 = scalar_select %p174, %s175, %s176
    %p180 = pneg %p174
    %p181 = scmp.eq.s32.totalorder %s13, 1
    %p182 = por %p180, %p181
    %p183 = scmp.ne.s32.totalorder %s175, %s178
    %p184 = scmp.eq.s32.totalorder %s13, 0
    %p185 = por %p183, %p184
    %p186 = scmp.ne.s32.totalorder %s175, %s178
    %p187 = scmp.eq.s32.totalorder %s18, 1
    %p188 = por %p186, %p187
    %p189 = scmp.ne.s32.totalorder %s178, %s179
    %p190 = scmp.eq.s32.totalorder %s18, 0
    %p191 = por %p189, %p190
    %p192 = scmp.ne.s32.totalorder %s178, %s179
    %p193 = scmp.eq.s32.totalorder %s19, 1
    %p194 = por %p192, %p193
    %p196 = scmp.ne.s32.totalorder %s179, %s195
    %p197 = scmp.eq.s32.totalorder %s19, 0
    %p198 = por %p196, %p197
    %p199 = scmp.le.s32.totalorder 1, %s13
    %p200 = scmp.lt.s32.totalorder %s13, 3
    %p201 = pnand %p199, %p200
    %p202 = pneg %p201
    // Predicated region
    $region9: #{time_series_transformer.15} parent=5 // pred_check
      _
    $region10: #{time_series_transformer.15} parent=5 // pred_check_branch
      %204 = sbr.rel (%p201) target = $region12
    $region11: #{time_series_transformer.15} parent=5 // pred_region
      %s205 = ssub.s32 %s13, 1
      // Predicated region
      $region13: #{time_series_transformer.15} parent=11 // pred_check
        %p206 = pneg %p60
      $region14: #{time_series_transformer.15} parent=11 // pred_check_branch
        %208 = sbr.rel (%p206) target = $region16
      $region15: #{time_series_transformer.15} parent=11 // pred_region
        _
      $region16: #{time_series_transformer.15} parent=11 // pred_fallthru
        _
      // Predicated region
      $region17: #{time_series_transformer.15} parent=11 // pred_check
        %p209 = pneg %p81
      $region18: #{time_series_transformer.15} parent=11 // pred_check_branch
        %211 = sbr.rel (%p209) target = $region20
      $region19: #{time_series_transformer.15} parent=11 // pred_region
        _
      $region20: #{time_series_transformer.15} parent=11 // pred_fallthru
        _
      // Predicated region
      $region21: #{time_series_transformer.15} parent=11 // pred_check
        %p212 = pneg %p102
      $region22: #{time_series_transformer.15} parent=11 // pred_check_branch
        %214 = sbr.rel (%p212) target = $region24
      $region23: #{time_series_transformer.15} parent=11 // pred_region
        _
      $region24: #{time_series_transformer.15} parent=11 // pred_fallthru
        _
      // Predicated region
      $region25: #{time_series_transformer.15} parent=11 // pred_check
        %p215 = pneg %p123
      $region26: #{time_series_transformer.15} parent=11 // pred_check_branch
        %217 = sbr.rel (%p215) target = $region28
      $region27: #{time_series_transformer.15} parent=11 // pred_region
        _
      $region28: #{time_series_transformer.15} parent=11 // pred_fallthru
        _
      // Predicated region
      $region29: #{time_series_transformer.15} parent=11 // pred_check
        %p218 = pneg %p144
      $region30: #{time_series_transformer.15} parent=11 // pred_check_branch
        %220 = sbr.rel (%p218) target = $region32
      $region31: #{time_series_transformer.15} parent=11 // pred_region
        _
      $region32: #{time_series_transformer.15} parent=11 // pred_fallthru
        _
      // Predicated region
      $region33: #{time_series_transformer.15} parent=11 // pred_check
        %p221 = pneg %p165
      $region34: #{time_series_transformer.15} parent=11 // pred_check_branch
        %223 = sbr.rel (%p221) target = $region36
      $region35: #{time_series_transformer.15} parent=11 // pred_region
        _
      $region36: #{time_series_transformer.15} parent=11 // pred_fallthru
        _
    $region12: #{time_series_transformer.15} parent=5 // pred_fallthru
      _
    %p224 = scmp.lt.s32.totalorder %s13, 2
    // Predicated region
    $region37: #{time_series_transformer.15} parent=5 // pred_check
      %p225 = pneg %p224
    $region38: #{time_series_transformer.15} parent=5 // pred_check_branch
      %227 = sbr.rel (%p225) target = $region40
    $region39: #{time_series_transformer.15} parent=5 // pred_region
      // Predicated region
      $region41: #{time_series_transformer.15} parent=39 // pred_check
        %p228 = pneg %p33
      $region42: #{time_series_transformer.15} parent=39 // pred_check_branch
        %230 = sbr.rel (%p228) target = $region44
      $region43: #{time_series_transformer.15} parent=39 // pred_region
        %p231 = scmp.lt.s32.totalorder %s13, 1
        %s232 = scalar_select %p231, %s13, 1
        %s233 = smul.addr %s232, 8
        %s234 = scalar_lea.vmem %s0, %s233
      $region44: #{time_series_transformer.15} parent=39 // pred_fallthru
        _
    $region40: #{time_series_transformer.15} parent=5 // pred_fallthru
      _
    %p235 = scmp.le.s32.totalorder 1, %s13
    %p236 = scmp.lt.s32.totalorder %s13, 3
    %p237 = pnand %p235, %p236
    %p238 = pneg %p237
    // Predicated region
    $region45: #{time_series_transformer.15} parent=5 // pred_check
      _
    $region46: #{time_series_transformer.15} parent=5 // pred_check_branch
      %240 = sbr.rel (%p237) target = $region48
    $region47: #{time_series_transformer.15} parent=5 // pred_region
      %s241 = ssub.s32 %s13, 1
      %p242 = scmp.lt.s32.totalorder %s18, 1
      %s243 = scalar_select %p242, %s18, 1
      %s244 = smul.addr %s243, 8
      %s245 = scalar_lea.vmem %s0, %s244
      %p246 = pneg %p39
      %p247 = pneg %p36
      %p248 = pneg %p60
      %p249 = pneg %p57
      %p250 = pneg %p81
      %p251 = pneg %p78
      %p252 = pneg %p102
      %p253 = pneg %p99
      %p254 = pneg %p123
      %p255 = pneg %p120
      %p256 = pneg %p144
      %p257 = pneg %p141
      %p258 = pneg %p165
      %p259 = pneg %p162
      %p260 = pneg %p191
      %p261 = pneg %p188
      %p262 = scmp.lt.s32.totalorder %s18, 1
      %s263 = scalar_select %p262, %s18, 1
      %s264 = smul.addr %s263, 8
      %s265 = scalar_lea.vmem %s7, %s264
      %p266 = scmp.lt.s32.totalorder %s18, 1
      %s267 = scalar_select %p266, %s18, 1
      %s268 = smul.addr %s267, 8
      %s269 = scalar_lea.vmem %s0, %s268
      %p270 = scmp.lt.s32.totalorder %s18, 1
      %s271 = scalar_select %p270, %s18, 1
      %s272 = smul.addr %s271, 8
      %s273 = scalar_lea.vmem %s7, %s272
      %v274 = vld [vmem:[%s269] sm:$0xff]
      %v275 = vld [vmem:[%s1] sm:$0xff]
      %v276 = vld [vmem:[%s1 + $0x8] sm:$0xff]
      %v277 = vld [vmem:[%s1 + $0x10] sm:$0xff]
      %v278 = vld [vmem:[%s1 + $0x18] sm:$0xff]
      %v279 = vld [vmem:[%s2] sm:$0x1]
      %v281 = vlaneseq
      %v282 = vshrl.u32 %v281, 7
      %v283 = vsub.s32 0, %v282
      %v284 = vrot.slane %v279, %v283
      %vm286 = vcmask 261120
      %v288 = vsel %vm286, %v274, 0
      %290 = vmatprep.subr.mxu0 0.0
      %291 = vmatpush1.msra.mxu0 %v275
      %292 = vmatprep.subr.mxu0 0.0
      %293 = vmatpush1.msra.mxu0 %v276
      %294 = vmatprep.subr.mxu0 0.0
      %295 = vmatpush1.msra.mxu0 %v277
      %296 = vmatprep.subr.mxu0 0.0
      %297 = vmatpush1.msra.mxu0 %v278
      %298 = vmatprep.subr.mxu0 0.0
      %299 = vmatpush1.msra.mxu0 0.0
      %300 = vmatprep.subr.mxu0 0.0
      %301 = vmatpush1.msra.mxu0 0.0
      %302 = vmatprep.subr.mxu0 0.0
      %303 = vmatpush1.msra.mxu0 0.0
      %304 = vmatprep.subr.mxu0 0.0
      %305 = vmatpush1.msra.mxu0 0.0
      %306 = vmatprep.subr.mxu0 0.0
      %307 = vmatpush1.msra.mxu0 0.0
      %308 = vmatprep.subr.mxu0 0.0
      %309 = vmatpush1.msra.mxu0 0.0
      %310 = vmatprep.subr.mxu0 0.0
      %311 = vmatpush1.msra.mxu0 0.0
      %312 = vmatprep.subr.mxu0 0.0
      %313 = vmatpush1.msra.mxu0 0.0
      %314 = vmatprep.subr.mxu0 0.0
      %315 = vmatpush1.msra.mxu0 0.0
      %316 = vmatprep.subr.mxu0 0.0
      %317 = vmatpush1.msra.mxu0 0.0
      %318 = vmatprep.subr.mxu0 0.0
      %319 = vmatpush1.msra.mxu0 0.0
      %320 = vmatprep.subr.mxu0 0.0
      %321 = vmatpush1.msra.mxu0 0.0
      %322 = vmatprep.subr.mxu0 0.0
      %323 = vmatpush1.msra.mxu0 0.0
      %324 = vmatprep.subr.mxu0 0.0
      %325 = vmatpush1.msra.mxu0 0.0
      %326 = vmatprep.subr.mxu0 0.0
      %327 = vmatpush1.msra.mxu0 0.0
      %328 = vmatprep.subr.mxu0 0.0
      %329 = vmatpush1.msra.mxu0 0.0
      %330 = vmatprep.subr.mxu0 0.0
      %331 = vmatpush1.msra.mxu0 0.0
      %332 = vmatprep.subr.mxu0 0.0
      %333 = vmatpush1.msra.mxu0 0.0
      %334 = vmatprep.subr.mxu0 0.0
      %335 = vmatpush1.msra.mxu0 0.0
      %336 = vmatprep.subr.mxu0 0.0
      %337 = vmatpush1.msra.mxu0 0.0
      %338 = vmatprep.subr.mxu0 0.0
      %339 = vmatpush1.msra.mxu0 0.0
      %340 = vmatprep.subr.mxu0 0.0
      %341 = vmatpush1.msra.mxu0 0.0
      %342 = vmatprep.subr.mxu0 0.0
      %343 = vmatpush1.msra.mxu0 0.0
      %344 = vmatprep.subr.mxu0 0.0
      %345 = vmatpush1.msra.mxu0 0.0
      %346 = vmatprep.subr.mxu0 0.0
      %347 = vmatpush1.msra.mxu0 0.0
      %348 = vmatprep.subr.mxu0 0.0
      %349 = vmatpush1.msra.mxu0 0.0
      %350 = vmatprep.subr.mxu0 0.0
      %351 = vmatpush1.msra.mxu0 0.0
      %352 = vmatprep.subr.mxu0 0.0
      %353 = vmatpush1.msra.mxu0 0.0
      %354 = vmatprep.mubr.f32.mxu0 0.0
      %355 = vmatmul.mubr.f32.gmra.mrb[0].mxu0 %v288
      %v356 = vpop.f32.mrb[0].mxu0
      %v357 = vadd.f32 %v284, %v356
      %v358 = vpop.f32.mrb[0].mxu0
      %359 = vdwg.mxu0
      %v360 = vmax.f32 %v357, 0.0
      %v361 = vld [vmem:[%s3] sm:$0xff]
      %v362 = vld [vmem:[%s3 + $0x8] sm:$0xff]
      %v363 = vld [vmem:[%s3 + $0x10] sm:$0xff]
      %v364 = vld [vmem:[%s3 + $0x18] sm:$0xff]
      %v365 = vld [vmem:[%s3 + $0x20] sm:$0xff]
      %v366 = vld [vmem:[%s3 + $0x28] sm:$0xff]
      %v367 = vld [vmem:[%s3 + $0x30] sm:$0xff]
      %v368 = vld [vmem:[%s3 + $0x38] sm:$0xff]
      %v369 = vld [vmem:[%s4] sm:$0x1]
      %v371 = vlaneseq
      %v372 = vshrl.u32 %v371, 7
      %v373 = vsub.s32 0, %v372
      %v374 = vrot.slane %v369, %v373
      %vm376 = vcmask 523264
      %v378 = vsel %vm376, %v360, 0
      %380 = vmatprep.subr.mxu0 0.0
      %381 = vmatpush1.msra.mxu0 %v361
      %382 = vmatprep.subr.mxu0 0.0
      %383 = vmatpush1.msra.mxu0 %v362
      %384 = vmatprep.subr.mxu0 0.0
      %385 = vmatpush1.msra.mxu0 %v363
      %386 = vmatprep.subr.mxu0 0.0
      %387 = vmatpush1.msra.mxu0 %v364
      %388 = vmatprep.subr.mxu0 0.0
      %389 = vmatpush1.msra.mxu0 %v365
      %390 = vmatprep.subr.mxu0 0.0
      %391 = vmatpush1.msra.mxu0 %v366
      %392 = vmatprep.subr.mxu0 0.0
      %393 = vmatpush1.msra.mxu0 %v367
      %394 = vmatprep.subr.mxu0 0.0
      %395 = vmatpush1.msra.mxu0 %v368
      %396 = vmatprep.subr.mxu0 0.0
      %397 = vmatpush1.msra.mxu0 0.0
      %398 = vmatprep.subr.mxu0 0.0
      %399 = vmatpush1.msra.mxu0 0.0
      %400 = vmatprep.subr.mxu0 0.0
      %401 = vmatpush1.msra.mxu0 0.0
      %402 = vmatprep.subr.mxu0 0.0
      %403 = vmatpush1.msra.mxu0 0.0
      %404 = vmatprep.subr.mxu0 0.0
      %405 = vmatpush1.msra.mxu0 0.0
      %406 = vmatprep.subr.mxu0 0.0
      %407 = vmatpush1.msra.mxu0 0.0
      %408 = vmatprep.subr.mxu0 0.0
      %409 = vmatpush1.msra.mxu0 0.0
      %410 = vmatprep.subr.mxu0 0.0
      %411 = vmatpush1.msra.mxu0 0.0
      %412 = vmatprep.subr.mxu0 0.0
      %413 = vmatpush1.msra.mxu0 0.0
      %414 = vmatprep.subr.mxu0 0.0
      %415 = vmatpush1.msra.mxu0 0.0
      %416 = vmatprep.subr.mxu0 0.0
      %417 = vmatpush1.msra.mxu0 0.0
      %418 = vmatprep.subr.mxu0 0.0
      %419 = vmatpush1.msra.mxu0 0.0
      %420 = vmatprep.subr.mxu0 0.0
      %421 = vmatpush1.msra.mxu0 0.0
      %422 = vmatprep.subr.mxu0 0.0
      %423 = vmatpush1.msra.mxu0 0.0
      %424 = vmatprep.subr.mxu0 0.0
      %425 = vmatpush1.msra.mxu0 0.0
      %426 = vmatprep.subr.mxu0 0.0
      %427 = vmatpush1.msra.mxu0 0.0
      %428 = vmatprep.subr.mxu0 0.0
      %429 = vmatpush1.msra.mxu0 0.0
      %430 = vmatprep.subr.mxu0 0.0
      %431 = vmatpush1.msra.mxu0 0.0
      %432 = vmatprep.subr.mxu0 0.0
      %433 = vmatpush1.msra.mxu0 0.0
      %434 = vmatprep.subr.mxu0 0.0
      %435 = vmatpush1.msra.mxu0 0.0
      %436 = vmatprep.subr.mxu0 0.0
      %437 = vmatpush1.msra.mxu0 0.0
      %438 = vmatprep.subr.mxu0 0.0
      %439 = vmatpush1.msra.mxu0 0.0
      %440 = vmatprep.subr.mxu0 0.0
      %441 = vmatpush1.msra.mxu0 0.0
      %442 = vmatprep.subr.mxu0 0.0
      %443 = vmatpush1.msra.mxu0 0.0
      %444 = vmatprep.mubr.f32.mxu0 0.0
      %445 = vmatmul.mubr.f32.gmra.mrb[0].mxu0 %v378
      %v446 = vpop.f32.mrb[0].mxu0
      %v447 = vadd.f32 %v374, %v446
      %v448 = vpop.f32.mrb[0].mxu0
      %449 = vdwg.mxu0
      %v450 = vadd.f32 %v274, %v447
      %v451 = vsel %vm286, %v450, 0.0
      %452 = vadd.xlane.f32.xlu0 %v451
      %v453 = vpop.xlane.xlu0 %452
      %v454 = vrcp.pop 32.0
      %v455 = vmul.f32 %v453, %v454
      %v456 = vsub.f32 %v450, %v455
      %v457 = vmul.f32 %v456, %v456
      %v458 = vsel %vm286, %v457, 0.0
      %459 = vadd.xlane.f32.xlu0 %v458
      %v460 = vpop.xlane.xlu0 %459
      %v461 = vmul.f32 %v460, %v454
      %v462 = vadd.f32 %v461, 1e-05
      %v463 = vrsqrt.pop %v462
      %v464 = vmul.f32 %v456, %v463
      %v465 = vld [vmem:[%s5] sm:$0x1]
      %v467 = vlaneseq
      %v468 = vshrl.u32 %v467, 7
      %v469 = vsub.s32 0, %v468
      %v470 = vrot.slane %v465, %v469
      %v472 = vmul.f32 %v464, %v470
      %v473 = vld [vmem:[%s6] sm:$0x1]
      %v475 = vlaneseq
      %v476 = vshrl.u32 %v475, 7
      %v477 = vsub.s32 0, %v476
      %v478 = vrot.slane %v473, %v477
      %v480 = vadd.f32 %v472, %v478
      %481 = vst.msk [vmem:[%s273] sm:$0xff] %vm286, %v480
      %p482 = scmp.lt.s32.totalorder %s18, 1
      %s483 = scalar_select %p482, %s18, 1
      %s484 = smul.addr %s483, 8
      %s485 = scalar_lea.vmem %s7, %s484
      // Predicated region
      $region49: #{time_series_transformer.15} parent=47 // pred_check
        %p486 = pneg %p188
      $region50: #{time_series_transformer.15} parent=47 // pred_check_branch
        %488 = sbr.rel (%p486) target = $region52
      $region51: #{time_series_transformer.15} parent=47 // pred_region
        _
      $region52: #{time_series_transformer.15} parent=47 // pred_fallthru
        _
    $region48: #{time_series_transformer.15} parent=5 // pred_fallthru
      _
    %p489 = scmp.le.s32.totalorder 2, %s13
    // Predicated region
    $region53: #{time_series_transformer.15} parent=5 // pred_check
      %p490 = pneg %p489
    $region54: #{time_series_transformer.15} parent=5 // pred_check_branch
      %492 = sbr.rel (%p490) target = $region56
    $region55: #{time_series_transformer.15} parent=5 // pred_region
      %s493 = ssub.s32 %s13, 2
      // Predicated region
      $region57: #{time_series_transformer.15} parent=55 // pred_check
        %p494 = pneg %p194
      $region58: #{time_series_transformer.15} parent=55 // pred_check_branch
        %496 = sbr.rel (%p494) target = $region60
      $region59: #{time_series_transformer.15} parent=55 // pred_region
        %p497 = scmp.lt.s32.totalorder %s19, 1
        %s498 = scalar_select %p497, %s19, 1
        %s499 = smul.addr %s498, 8
        %s500 = scalar_lea.vmem %s7, %s499
      $region60: #{time_series_transformer.15} parent=55 // pred_fallthru
        _
    $region56: #{time_series_transformer.15} parent=5 // pred_fallthru
      _
  $region6: #{time_series_transformer.15} parent=0 // loop_footer
    %s17 = sadd.s32 1, %s13
  $region7: #{time_series_transformer.15} parent=0 // loop_footer_branch
    %12 = sbr.rel target = $region3
  $region8: #{time_series_transformer.15} parent=0 // loop_exit
    _

// kernel: time_series_transformer.14
$region0: #{time_series_transformer.14}
  #allocation0 [shape = 'u32[]', space=smem, size = 0x4, offset = 0x4, fixed_abs, tag = 'smem constant byte address 0x4 - core index']
  #allocation1 [shape = 'u32[144,128]{1,0:T(1,128)}', space=vmem, size = 0x12000, scoped, tag = 'internal scratch']
  %s0 = inlined_call_operand.vmem [shape: f32[2,8,32], index: 0, kind: input, shape index: {}]
  %s1 = inlined_call_operand.vmem [shape: f32[32,96], index: 1, kind: input, shape index: {}]
  %s2 = inlined_call_operand.vmem [shape: f32[1,96], index: 2, kind: input, shape index: {}]
  %s3 = inlined_call_operand.vmem [shape: f32[32,32], index: 3, kind: input, shape index: {}]
  %s4 = inlined_call_operand.vmem [shape: f32[1,32], index: 4, kind: input, shape index: {}]
  %s5 = inlined_call_operand.vmem [shape: f32[1,32], index: 5, kind: input, shape index: {}]
  %s6 = inlined_call_operand.vmem [shape: f32[1,32], index: 6, kind: input, shape index: {}]
  %s7 = inlined_call_operand.vmem [shape: f32[2,8,32], index: 7, kind: output, shape index: {}]
  %s8 = sld [smem:[#allocation0]]
  $region61: #{time_series_transformer.14} parent=0
    _
  %s10 = ssub.s32 1, %s8
  %s11 = scalar_select 0, %s10, %s8
  loop: start=0, step=1, limit=4
  $region2: #{time_series_transformer.14} parent=0 // loop_pre_header
    _
  $region3: #{time_series_transformer.14} parent=0 // loop_header
    %s13 = sphi 0, %s17
    %p14 = scmp.ge.s32.totalorder %s13, 4
    %s23 = sphi 0, %s25
    %s26 = sphi 0, %s23
    %s27 = sphi 0, %s26
    %s43 = sphi 0, %s27
    %s47 = sphi 0, %s47
    %s49 = sphi 0, %s47
    %s50 = sphi 0, %s49
    %s64 = sphi 0, %s50
    %s68 = sphi 0, %s68
    %s70 = sphi 0, %s68
    %s71 = sphi 0, %s70
    %s85 = sphi 0, %s71
    %s89 = sphi 0, %s89
    %s91 = sphi 0, %s89
    %s92 = sphi 0, %s91
    %s106 = sphi 0, %s92
    %s110 = sphi 0, %s110
    %s112 = sphi 0, %s110
    %s113 = sphi 0, %s112
    %s127 = sphi 0, %s113
    %s131 = sphi 0, %s131
    %s133 = sphi 0, %s131
    %s134 = sphi 0, %s133
    %s148 = sphi 0, %s134
    %s152 = sphi 0, %s152
    %s154 = sphi 0, %s152
    %s155 = sphi 0, %s154
    %s169 = sphi 0, %s155
    %s175 = sphi 0, %s177
    %s178 = sphi 0, %s175
    %s179 = sphi 0, %s178
    %s195 = sphi 0, %s179
  $region4: #{time_series_transformer.14} parent=0 // loop_header_branch
    %16 = sbr.rel (%p14) target = $region8
  $region5: #{time_series_transformer.14} parent=0 // loop_body
    %s18 = ssub.s32 %s13, 1
    %s19 = ssub.s32 %s13, 2
    %s20 = sadd.s32 %s13, 1
    %s21 = ssub.s32 %s13, %s20
    %p22 = scmp.eq.s32.totalorder %s21, 0
    %s24 = sadd.s32 %s23, 1
    %s25 = scalar_select %p22, %s23, %s24
    %p28 = pneg %p22
    %p29 = scmp.eq.s32.totalorder %s13, 1
    %p30 = por %p28, %p29
    %p31 = scmp.ne.s32.totalorder %s23, %s26
    %p32 = scmp.eq.s32.totalorder %s13, 0
    %p33 = por %p31, %p32
    %p34 = scmp.ne.s32.totalorder %s23, %s26
    %p35 = scmp.eq.s32.totalorder %s18, 1
    %p36 = por %p34, %p35
    %p37 = scmp.ne.s32.totalorder %s26, %s27
    %p38 = scmp.eq.s32.totalorder %s18, 0
    %p39 = por %p37, %p38
    %p40 = scmp.ne.s32.totalorder %s26, %s27
    %p41 = scmp.eq.s32.totalorder %s19, 1
    %p42 = por %p40, %p41
    %p44 = scmp.ne.s32.totalorder %s27, %s43
    %p45 = scmp.eq.s32.totalorder %s19, 0
    %p46 = por %p44, %p45
    %s48 = sadd.s32 %s47, 1
    %p51 = scmp.eq.s32.totalorder %s13, 1
    %p52 = scmp.ne.s32.totalorder %s47, %s49
    %p53 = scmp.eq.s32.totalorder %s13, 0
    %p54 = por %p52, %p53
    %p55 = scmp.ne.s32.totalorder %s47, %s49
    %p56 = scmp.eq.s32.totalorder %s18, 1
    %p57 = por %p55, %p56
    %p58 = scmp.ne.s32.totalorder %s49, %s50
    %p59 = scmp.eq.s32.totalorder %s18, 0
    %p60 = por %p58, %p59
    %p61 = scmp.ne.s32.totalorder %s49, %s50
    %p62 = scmp.eq.s32.totalorder %s19, 1
    %p63 = por %p61, %p62
    %p65 = scmp.ne.s32.totalorder %s50, %s64
    %p66 = scmp.eq.s32.totalorder %s19, 0
    %p67 = por %p65, %p66
    %s69 = sadd.s32 %s68, 1
    %p72 = scmp.eq.s32.totalorder %s13, 1
    %p73 = scmp.ne.s32.totalorder %s68, %s70
    %p74 = scmp.eq.s32.totalorder %s13, 0
    %p75 = por %p73, %p74
    %p76 = scmp.ne.s32.totalorder %s68, %s70
    %p77 = scmp.eq.s32.totalorder %s18, 1
    %p78 = por %p76, %p77
    %p79 = scmp.ne.s32.totalorder %s70, %s71
    %p80 = scmp.eq.s32.totalorder %s18, 0
    %p81 = por %p79, %p80
    %p82 = scmp.ne.s32.totalorder %s70, %s71
    %p83 = scmp.eq.s32.totalorder %s19, 1
    %p84 = por %p82, %p83
    %p86 = scmp.ne.s32.totalorder %s71, %s85
    %p87 = scmp.eq.s32.totalorder %s19, 0
    %p88 = por %p86, %p87
    %s90 = sadd.s32 %s89, 1
    %p93 = scmp.eq.s32.totalorder %s13, 1
    %p94 = scmp.ne.s32.totalorder %s89, %s91
    %p95 = scmp.eq.s32.totalorder %s13, 0
    %p96 = por %p94, %p95
    %p97 = scmp.ne.s32.totalorder %s89, %s91
    %p98 = scmp.eq.s32.totalorder %s18, 1
    %p99 = por %p97, %p98
    %p100 = scmp.ne.s32.totalorder %s91, %s92
    %p101 = scmp.eq.s32.totalorder %s18, 0
    %p102 = por %p100, %p101
    %p103 = scmp.ne.s32.totalorder %s91, %s92
    %p104 = scmp.eq.s32.totalorder %s19, 1
    %p105 = por %p103, %p104
    %p107 = scmp.ne.s32.totalorder %s92, %s106
    %p108 = scmp.eq.s32.totalorder %s19, 0
    %p109 = por %p107, %p108
    %s111 = sadd.s32 %s110, 1
    %p114 = scmp.eq.s32.totalorder %s13, 1
    %p115 = scmp.ne.s32.totalorder %s110, %s112
    %p116 = scmp.eq.s32.totalorder %s13, 0
    %p117 = por %p115, %p116
    %p118 = scmp.ne.s32.totalorder %s110, %s112
    %p119 = scmp.eq.s32.totalorder %s18, 1
    %p120 = por %p118, %p119
    %p121 = scmp.ne.s32.totalorder %s112, %s113
    %p122 = scmp.eq.s32.totalorder %s18, 0
    %p123 = por %p121, %p122
    %p124 = scmp.ne.s32.totalorder %s112, %s113
    %p125 = scmp.eq.s32.totalorder %s19, 1
    %p126 = por %p124, %p125
    %p128 = scmp.ne.s32.totalorder %s113, %s127
    %p129 = scmp.eq.s32.totalorder %s19, 0
    %p130 = por %p128, %p129
    %s132 = sadd.s32 %s131, 1
    %p135 = scmp.eq.s32.totalorder %s13, 1
    %p136 = scmp.ne.s32.totalorder %s131, %s133
    %p137 = scmp.eq.s32.totalorder %s13, 0
    %p138 = por %p136, %p137
    %p139 = scmp.ne.s32.totalorder %s131, %s133
    %p140 = scmp.eq.s32.totalorder %s18, 1
    %p141 = por %p139, %p140
    %p142 = scmp.ne.s32.totalorder %s133, %s134
    %p143 = scmp.eq.s32.totalorder %s18, 0
    %p144 = por %p142, %p143
    %p145 = scmp.ne.s32.totalorder %s133, %s134
    %p146 = scmp.eq.s32.totalorder %s19, 1
    %p147 = por %p145, %p146
    %p149 = scmp.ne.s32.totalorder %s134, %s148
    %p150 = scmp.eq.s32.totalorder %s19, 0
    %p151 = por %p149, %p150
    %s153 = sadd.s32 %s152, 1
    %p156 = scmp.eq.s32.totalorder %s13, 1
    %p157 = scmp.ne.s32.totalorder %s152, %s154
    %p158 = scmp.eq.s32.totalorder %s13, 0
    %p159 = por %p157, %p158
    %p160 = scmp.ne.s32.totalorder %s152, %s154
    %p161 = scmp.eq.s32.totalorder %s18, 1
    %p162 = por %p160, %p161
    %p163 = scmp.ne.s32.totalorder %s154, %s155
    %p164 = scmp.eq.s32.totalorder %s18, 0
    %p165 = por %p163, %p164
    %p166 = scmp.ne.s32.totalorder %s154, %s155
    %p167 = scmp.eq.s32.totalorder %s19, 1
    %p168 = por %p166, %p167
    %p170 = scmp.ne.s32.totalorder %s155, %s169
    %p171 = scmp.eq.s32.totalorder %s19, 0
    %p172 = por %p170, %p171
    %s173 = ssub.s32 %s13, %s20
    %p174 = scmp.eq.s32.totalorder %s173, 0
    %s176 = sadd.s32 %s175, 1
    %s177 = scalar_select %p174, %s175, %s176
    %p180 = pneg %p174
    %p181 = scmp.eq.s32.totalorder %s13, 1
    %p182 = por %p180, %p181
    %p183 = scmp.ne.s32.totalorder %s175, %s178
    %p184 = scmp.eq.s32.totalorder %s13, 0
    %p185 = por %p183, %p184
    %p186 = scmp.ne.s32.totalorder %s175, %s178
    %p187 = scmp.eq.s32.totalorder %s18, 1
    %p188 = por %p186, %p187
    %p189 = scmp.ne.s32.totalorder %s178, %s179
    %p190 = scmp.eq.s32.totalorder %s18, 0
    %p191 = por %p189, %p190
    %p192 = scmp.ne.s32.totalorder %s178, %s179
    %p193 = scmp.eq.s32.totalorder %s19, 1
    %p194 = por %p192, %p193
    %p196 = scmp.ne.s32.totalorder %s179, %s195
    %p197 = scmp.eq.s32.totalorder %s19, 0
    %p198 = por %p196, %p197
    %p199 = scmp.le.s32.totalorder 1, %s13
    %p200 = scmp.lt.s32.totalorder %s13, 3
    %p201 = pnand %p199, %p200
    %p202 = pneg %p201
    // Predicated region
    $region9: #{time_series_transformer.14} parent=5 // pred_check
      _
    $region10: #{time_series_transformer.14} parent=5 // pred_check_branch
      %204 = sbr.rel (%p201) target = $region12
    $region11: #{time_series_transformer.14} parent=5 // pred_region
      %s205 = ssub.s32 %s13, 1
      // Predicated region
      $region13: #{time_series_transformer.14} parent=11 // pred_check
        %p206 = pneg %p60
      $region14: #{time_series_transformer.14} parent=11 // pred_check_branch
        %208 = sbr.rel (%p206) target = $region16
      $region15: #{time_series_transformer.14} parent=11 // pred_region
        _
      $region16: #{time_series_transformer.14} parent=11 // pred_fallthru
        _
      // Predicated region
      $region17: #{time_series_transformer.14} parent=11 // pred_check
        %p209 = pneg %p81
      $region18: #{time_series_transformer.14} parent=11 // pred_check_branch
        %211 = sbr.rel (%p209) target = $region20
      $region19: #{time_series_transformer.14} parent=11 // pred_region
        _
      $region20: #{time_series_transformer.14} parent=11 // pred_fallthru
        _
      // Predicated region
      $region21: #{time_series_transformer.14} parent=11 // pred_check
        %p212 = pneg %p102
      $region22: #{time_series_transformer.14} parent=11 // pred_check_branch
        %214 = sbr.rel (%p212) target = $region24
      $region23: #{time_series_transformer.14} parent=11 // pred_region
        _
      $region24: #{time_series_transformer.14} parent=11 // pred_fallthru
        _
      // Predicated region
      $region25: #{time_series_transformer.14} parent=11 // pred_check
        %p215 = pneg %p123
      $region26: #{time_series_transformer.14} parent=11 // pred_check_branch
        %217 = sbr.rel (%p215) target = $region28
      $region27: #{time_series_transformer.14} parent=11 // pred_region
        _
      $region28: #{time_series_transformer.14} parent=11 // pred_fallthru
        _
      // Predicated region
      $region29: #{time_series_transformer.14} parent=11 // pred_check
        %p218 = pneg %p144
      $region30: #{time_series_transformer.14} parent=11 // pred_check_branch
        %220 = sbr.rel (%p218) target = $region32
      $region31: #{time_series_transformer.14} parent=11 // pred_region
        _
      $region32: #{time_series_transformer.14} parent=11 // pred_fallthru
        _
      // Predicated region
      $region33: #{time_series_transformer.14} parent=11 // pred_check
        %p221 = pneg %p165
      $region34: #{time_series_transformer.14} parent=11 // pred_check_branch
        %223 = sbr.rel (%p221) target = $region36
      $region35: #{time_series_transformer.14} parent=11 // pred_region
        _
      $region36: #{time_series_transformer.14} parent=11 // pred_fallthru
        _
    $region12: #{time_series_transformer.14} parent=5 // pred_fallthru
      _
    %p224 = scmp.lt.s32.totalorder %s13, 2
    // Predicated region
    $region37: #{time_series_transformer.14} parent=5 // pred_check
      %p225 = pneg %p224
    $region38: #{time_series_transformer.14} parent=5 // pred_check_branch
      %227 = sbr.rel (%p225) target = $region40
    $region39: #{time_series_transformer.14} parent=5 // pred_region
      // Predicated region
      $region41: #{time_series_transformer.14} parent=39 // pred_check
        %p228 = pneg %p33
      $region42: #{time_series_transformer.14} parent=39 // pred_check_branch
        %230 = sbr.rel (%p228) target = $region44
      $region43: #{time_series_transformer.14} parent=39 // pred_region
        %p231 = scmp.lt.s32.totalorder %s13, 1
        %s232 = scalar_select %p231, %s13, 1
        %s233 = smul.addr %s232, 8
        %s234 = scalar_lea.vmem %s0, %s233
      $region44: #{time_series_transformer.14} parent=39 // pred_fallthru
        _
    $region40: #{time_series_transformer.14} parent=5 // pred_fallthru
      _
    %p235 = scmp.le.s32.totalorder 1, %s13
    %p236 = scmp.lt.s32.totalorder %s13, 3
    %p237 = pnand %p235, %p236
    %p238 = pneg %p237
    // Predicated region
    $region45: #{time_series_transformer.14} parent=5 // pred_check
      _
    $region46: #{time_series_transformer.14} parent=5 // pred_check_branch
      %240 = sbr.rel (%p237) target = $region48
    $region47: #{time_series_transformer.14} parent=5 // pred_region
      %s241 = ssub.s32 %s13, 1
      %p242 = scmp.lt.s32.totalorder %s18, 1
      %s243 = scalar_select %p242, %s18, 1
      %s244 = smul.addr %s243, 8
      %s245 = scalar_lea.vmem %s0, %s244
      %p246 = pneg %p39
      %p247 = pneg %p36
      %p248 = pneg %p60
      %p249 = pneg %p57
      %p250 = pneg %p81
      %p251 = pneg %p78
      %p252 = pneg %p102
      %p253 = pneg %p99
      %p254 = pneg %p123
      %p255 = pneg %p120
      %p256 = pneg %p144
      %p257 = pneg %p141
      %p258 = pneg %p165
      %p259 = pneg %p162
      %p260 = pneg %p191
      %p261 = pneg %p188
      %p262 = scmp.lt.s32.totalorder %s18, 1
      %s263 = scalar_select %p262, %s18, 1
      %s264 = smul.addr %s263, 8
      %s265 = scalar_lea.vmem %s7, %s264
      %p266 = scmp.lt.s32.totalorder %s18, 1
      %s267 = scalar_select %p266, %s18, 1
      %s268 = smul.addr %s267, 8
      %s269 = scalar_lea.vmem %s0, %s268
      %p270 = scmp.lt.s32.totalorder %s18, 1
      %s271 = scalar_select %p270, %s18, 1
      %s272 = smul.addr %s271, 8
      %s273 = scalar_lea.vmem %s7, %s272
      %v274 = vld [vmem:[%s269] sm:$0xff]
      %v275 = vld [vmem:[%s1] sm:$0xff]
      %v276 = vld [vmem:[%s1 + $0x8] sm:$0xff]
      %v277 = vld [vmem:[%s1 + $0x10] sm:$0xff]
      %v278 = vld [vmem:[%s1 + $0x18] sm:$0xff]
      %v279 = vld [vmem:[%s2] sm:$0x1]
      %v281 = vlaneseq
      %v282 = vshrl.u32 %v281, 7
      %v283 = vsub.s32 0, %v282
      %v284 = vrot.slane %v279, %v283
      %vm286 = vcmask 261120
      %v288 = vsel %vm286, %v274, 0
      %290 = vmatprep.subr.mxu0 0.0
      %291 = vmatpush1.msra.mxu0 %v275
      %292 = vmatprep.subr.mxu0 0.0
      %293 = vmatpush1.msra.mxu0 %v276
      %294 = vmatprep.subr.mxu0 0.0
      %295 = vmatpush1.msra.mxu0 %v277
      %296 = vmatprep.subr.mxu0 0.0
      %297 = vmatpush1.msra.mxu0 %v278
      %298 = vmatprep.subr.mxu0 0.0
      %299 = vmatpush1.msra.mxu0 0.0
      %300 = vmatprep.subr.mxu0 0.0
      %301 = vmatpush1.msra.mxu0 0.0
      %302 = vmatprep.subr.mxu0 0.0
      %303 = vmatpush1.msra.mxu0 0.0
      %304 = vmatprep.subr.mxu0 0.0
      %305 = vmatpush1.msra.mxu0 0.0
      %306 = vmatprep.subr.mxu0 0.0
      %307 = vmatpush1.msra.mxu0 0.0
      %308 = vmatprep.subr.mxu0 0.0
      %309 = vmatpush1.msra.mxu0 0.0
      %310 = vmatprep.subr.mxu0 0.0
      %311 = vmatpush1.msra.mxu0 0.0
      %312 = vmatprep.subr.mxu0 0.0
      %313 = vmatpush1.msra.mxu0 0.0
      %314 = vmatprep.subr.mxu0 0.0
      %315 = vmatpush1.msra.mxu0 0.0
      %316 = vmatprep.subr.mxu0 0.0
      %317 = vmatpush1.msra.mxu0 0.0
      %318 = vmatprep.subr.mxu0 0.0
      %319 = vmatpush1.msra.mxu0 0.0
      %320 = vmatprep.subr.mxu0 0.0
      %321 = vmatpush1.msra.mxu0 0.0
      %322 = vmatprep.subr.mxu0 0.0
      %323 = vmatpush1.msra.mxu0 0.0
      %324 = vmatprep.subr.mxu0 0.0
      %325 = vmatpush1.msra.mxu0 0.0
      %326 = vmatprep.subr.mxu0 0.0
      %327 = vmatpush1.msra.mxu0 0.0
      %328 = vmatprep.subr.mxu0 0.0
      %329 = vmatpush1.msra.mxu0 0.0
      %330 = vmatprep.subr.mxu0 0.0
      %331 = vmatpush1.msra.mxu0 0.0
      %332 = vmatprep.subr.mxu0 0.0
      %333 = vmatpush1.msra.mxu0 0.0
      %334 = vmatprep.subr.mxu0 0.0
      %335 = vmatpush1.msra.mxu0 0.0
      %336 = vmatprep.subr.mxu0 0.0
      %337 = vmatpush1.msra.mxu0 0.0
      %338 = vmatprep.subr.mxu0 0.0
      %339 = vmatpush1.msra.mxu0 0.0
      %340 = vmatprep.subr.mxu0 0.0
      %341 = vmatpush1.msra.mxu0 0.0
      %342 = vmatprep.subr.mxu0 0.0
      %343 = vmatpush1.msra.mxu0 0.0
      %344 = vmatprep.subr.mxu0 0.0
      %345 = vmatpush1.msra.mxu0 0.0
      %346 = vmatprep.subr.mxu0 0.0
      %347 = vmatpush1.msra.mxu0 0.0
      %348 = vmatprep.subr.mxu0 0.0
      %349 = vmatpush1.msra.mxu0 0.0
      %350 = vmatprep.subr.mxu0 0.0
      %351 = vmatpush1.msra.mxu0 0.0
      %352 = vmatprep.subr.mxu0 0.0
      %353 = vmatpush1.msra.mxu0 0.0
      %354 = vmatprep.mubr.f32.mxu0 0.0
      %355 = vmatmul.mubr.f32.gmra.mrb[0].mxu0 %v288
      %v356 = vpop.f32.mrb[0].mxu0
      %v357 = vadd.f32 %v284, %v356
      %v358 = vpop.f32.mrb[0].mxu0
      %359 = vdwg.mxu0
      %v360 = vld [vmem:[%s3] sm:$0xff]
      %v361 = vld [vmem:[%s3 + $0x8] sm:$0xff]
      %v362 = vld [vmem:[%s3 + $0x10] sm:$0xff]
      %v363 = vld [vmem:[%s3 + $0x18] sm:$0xff]
      %365 = vrot.lane.b32.xlu0 %v357, 96
      %v366 = vpop.permute.xlu0 %365
      %vm367 = vcmask 64512
      %v368 = vsel %vm367, %v357, 0
      %v370 = vsel %vm367, %v366, 0
      %372 = vmatprep.subr.mxu0 0.0
      %373 = vmatpush1.xpose.msra.mxu0 %v370
      %374 = vmatprep.subr.mxu0 0.0
      %375 = vmatpush1.xpose.msra.mxu0 0.0
      %376 = vmatprep.subr.mxu0 0.0
      %377 = vmatpush1.xpose.msra.mxu0 0.0
      %378 = vmatprep.subr.mxu0 0.0
      %379 = vmatpush1.xpose.msra.mxu0 0.0
      %380 = vmatprep.subr.mxu0 0.0
      %381 = vmatpush1.xpose.msra.mxu0 0.0
      %382 = vmatprep.subr.mxu0 0.0
      %383 = vmatpush1.xpose.msra.mxu0 0.0
      %384 = vmatprep.subr.mxu0 0.0
      %385 = vmatpush1.xpose.msra.mxu0 0.0
      %386 = vmatprep.subr.mxu0 0.0
      %387 = vmatpush1.xpose.msra.mxu0 0.0
      %388 = vmatprep.subr.mxu0 0.0
      %389 = vmatpush1.xpose.msra.mxu0 0.0
      %390 = vmatprep.subr.mxu0 0.0
      %391 = vmatpush1.xpose.msra.mxu0 0.0
      %392 = vmatprep.subr.mxu0 0.0
      %393 = vmatpush1.xpose.msra.mxu0 0.0
      %394 = vmatprep.subr.mxu0 0.0
      %395 = vmatpush1.xpose.msra.mxu0 0.0
      %396 = vmatprep.subr.mxu0 0.0
      %397 = vmatpush1.xpose.msra.mxu0 0.0
      %398 = vmatprep.subr.mxu0 0.0
      %399 = vmatpush1.xpose.msra.mxu0 0.0
      %400 = vmatprep.subr.mxu0 0.0
      %401 = vmatpush1.xpose.msra.mxu0 0.0
      %402 = vmatprep.subr.mxu0 0.0
      %403 = vmatpush1.xpose.msra.mxu0 0.0
      %404 = vmatprep.subr.mxu0 0.0
      %405 = vmatpush1.xpose.msra.mxu0 0.0
      %406 = vmatprep.subr.mxu0 0.0
      %407 = vmatpush1.xpose.msra.mxu0 0.0
      %408 = vmatprep.subr.mxu0 0.0
      %409 = vmatpush1.xpose.msra.mxu0 0.0
      %410 = vmatprep.subr.mxu0 0.0
      %411 = vmatpush1.xpose.msra.mxu0 0.0
      %412 = vmatprep.subr.mxu0 0.0
      %413 = vmatpush1.xpose.msra.mxu0 0.0
      %414 = vmatprep.subr.mxu0 0.0
      %415 = vmatpush1.xpose.msra.mxu0 0.0
      %416 = vmatprep.subr.mxu0 0.0
      %417 = vmatpush1.xpose.msra.mxu0 0.0
      %418 = vmatprep.subr.mxu0 0.0
      %419 = vmatpush1.xpose.msra.mxu0 0.0
      %420 = vmatprep.subr.mxu0 0.0
      %421 = vmatpush1.xpose.msra.mxu0 0.0
      %422 = vmatprep.subr.mxu0 0.0
      %423 = vmatpush1.xpose.msra.mxu0 0.0
      %424 = vmatprep.subr.mxu0 0.0
      %425 = vmatpush1.xpose.msra.mxu0 0.0
      %426 = vmatprep.subr.mxu0 0.0
      %427 = vmatpush1.xpose.msra.mxu0 0.0
      %428 = vmatprep.subr.mxu0 0.0
      %429 = vmatpush1.xpose.msra.mxu0 0.0
      %430 = vmatprep.subr.mxu0 0.0
      %431 = vmatpush1.xpose.msra.mxu0 0.0
      %432 = vmatprep.subr.mxu0 0.0
      %433 = vmatpush1.xpose.msra.mxu0 0.0
      %434 = vmatprep.subr.mxu0 0.0
      %435 = vmatpush1.xpose.msra.mxu0 0.0
      %436 = vmatprep.mubr.f32.mxu0 0.0
      %437 = vmatmul.mubr.f32.gmra.mrb[0].mxu0 %v368
      %v438 = vpop.f32.mrb[0].mxu0
      %v439 = vadd.f32 0.0, %v438
      %v440 = vpop.f32.mrb[0].mxu0
      %441 = vdwg.mxu0
      %v442 = vmul.f32 %v439, 0.35355338
      %v443 = vsel %vm367, %v442, -inf
      %444 = vmax.xlane.f32.xlu0 %v443
      %v445 = vpop.xlane.xlu0 %444
      %v446 = vsub.f32 %v442, %v445
      %v447 = vmul.f32 %v446, 1.442695
      %v448 = vpow.pop %v447
      %v449 = vsel %vm367, %v448, 0.0
      %450 = vadd.xlane.f32.xlu0 %v449
      %v451 = vpop.xlane.xlu0 %450
      %v452 = vrcp.pop %v451
      %v453 = vmul.f32 %v448, %v452
      %454 = vrot.lane.b32.xlu0 %v357, 64
      %v455 = vpop.permute.xlu0 %454
      %v458 = vsel %vm367, %v453, 0
      %460 = vmatprep.subr.mxu0 0.0
      %461 = vmatpush1.msra.mxu0 %v455
      %462 = vmatprep.subr.mxu0 0.0
      %463 = vmatpush1.msra.mxu0 0.0
      %464 = vmatprep.subr.mxu0 0.0
      %465 = vmatpush1.msra.mxu0 0.0
      %466 = vmatprep.subr.mxu0 0.0
      %467 = vmatpush1.msra.mxu0 0.0
      %468 = vmatprep.subr.mxu0 0.0
      %469 = vmatpush1.msra.mxu0 0.0
      %470 = vmatprep.subr.mxu0 0.0
      %471 = vmatpush1.msra.mxu0 0.0
      %472 = vmatprep.subr.mxu0 0.0
      %473 = vmatpush1.msra.mxu0 0.0
      %474 = vmatprep.subr.mxu0 0.0
      %475 = vmatpush1.msra.mxu0 0.0
      %476 = vmatprep.subr.mxu0 0.0
      %477 = vmatpush1.msra.mxu0 0.0
      %478 = vmatprep.subr.mxu0 0.0
      %479 = vmatpush1.msra.mxu0 0.0
      %480 = vmatprep.subr.mxu0 0.0
      %481 = vmatpush1.msra.mxu0 0.0
      %482 = vmatprep.subr.mxu0 0.0
      %483 = vmatpush1.msra.mxu0 0.0
      %484 = vmatprep.subr.mxu0 0.0
      %485 = vmatpush1.msra.mxu0 0.0
      %486 = vmatprep.subr.mxu0 0.0
      %487 = vmatpush1.msra.mxu0 0.0
      %488 = vmatprep.subr.mxu0 0.0
      %489 = vmatpush1.msra.mxu0 0.0
      %490 = vmatprep.subr.mxu0 0.0
      %491 = vmatpush1.msra.mxu0 0.0
      %492 = vmatprep.subr.mxu0 0.0
      %493 = vmatpush1.msra.mxu0 0.0
      %494 = vmatprep.subr.mxu0 0.0
      %495 = vmatpush1.msra.mxu0 0.0
      %496 = vmatprep.subr.mxu0 0.0
      %497 = vmatpush1.msra.mxu0 0.0
      %498 = vmatprep.subr.mxu0 0.0
      %499 = vmatpush1.msra.mxu0 0.0
      %500 = vmatprep.subr.mxu0 0.0
      %501 = vmatpush1.msra.mxu0 0.0
      %502 = vmatprep.subr.mxu0 0.0
      %503 = vmatpush1.msra.mxu0 0.0
      %504 = vmatprep.subr.mxu0 0.0
      %505 = vmatpush1.msra.mxu0 0.0
      %506 = vmatprep.subr.mxu0 0.0
      %507 = vmatpush1.msra.mxu0 0.0
      %508 = vmatprep.subr.mxu0 0.0
      %509 = vmatpush1.msra.mxu0 0.0
      %510 = vmatprep.subr.mxu0 0.0
      %511 = vmatpush1.msra.mxu0 0.0
      %512 = vmatprep.subr.mxu0 0.0
      %513 = vmatpush1.msra.mxu0 0.0
      %514 = vmatprep.subr.mxu0 0.0
      %515 = vmatpush1.msra.mxu0 0.0
      %516 = vmatprep.subr.mxu0 0.0
      %517 = vmatpush1.msra.mxu0 0.0
      %518 = vmatprep.subr.mxu0 0.0
      %519 = vmatpush1.msra.mxu0 0.0
      %520 = vmatprep.subr.mxu0 0.0
      %521 = vmatpush1.msra.mxu0 0.0
      %522 = vmatprep.subr.mxu0 0.0
      %523 = vmatpush1.msra.mxu0 0.0
      %524 = vmatprep.mubr.f32.mxu0 0.0
      %525 = vmatmul.mubr.f32.gmra.mrb[0].mxu0 %v458
      %v526 = vpop.f32.mrb[0].mxu0
      %v527 = vadd.f32 0.0, %v526
      %v528 = vpop.f32.mrb[0].mxu0
      %529 = vdwg.mxu0
      %530 = vrot.lane.b32.xlu0 %v357, 120
      %v531 = vpop.permute.xlu0 %530
      %532 = vrot.lane.b32.xlu0 %v357, 88
      %v533 = vpop.permute.xlu0 %532
      %v534 = vsel %vm367, %v531, 0
      %v536 = vsel %vm367, %v533, 0
      %538 = vmatprep.subr.mxu0 0.0
      %539 = vmatpush1.xpose.msra.mxu0 %v536
      %540 = vmatprep.subr.mxu0 0.0
      %541 = vmatpush1.xpose.msra.mxu0 0.0
      %542 = vmatprep.subr.mxu0 0.0
      %543 = vmatpush1.xpose.msra.mxu0 0.0
      %544 = vmatprep.subr.mxu0 0.0
      %545 = vmatpush1.xpose.msra.mxu0 0.0
      %546 = vmatprep.subr.mxu0 0.0
      %547 = vmatpush1.xpose.msra.mxu0 0.0
      %548 = vmatprep.subr.mxu0 0.0
      %549 = vmatpush1.xpose.msra.mxu0 0.0
      %550 = vmatprep.subr.mxu0 0.0
      %551 = vmatpush1.xpose.msra.mxu0 0.0
      %552 = vmatprep.subr.mxu0 0.0
      %553 = vmatpush1.xpose.msra.mxu0 0.0
      %554 = vmatprep.subr.mxu0 0.0
      %555 = vmatpush1.xpose.msra.mxu0 0.0
      %556 = vmatprep.subr.mxu0 0.0
      %557 = vmatpush1.xpose.msra.mxu0 0.0
      %558 = vmatprep.subr.mxu0 0.0
      %559 = vmatpush1.xpose.msra.mxu0 0.0
      %560 = vmatprep.subr.mxu0 0.0
      %561 = vmatpush1.xpose.msra.mxu0 0.0
      %562 = vmatprep.subr.mxu0 0.0
      %563 = vmatpush1.xpose.msra.mxu0 0.0
      %564 = vmatprep.subr.mxu0 0.0
      %565 = vmatpush1.xpose.msra.mxu0 0.0
      %566 = vmatprep.subr.mxu0 0.0
      %567 = vmatpush1.xpose.msra.mxu0 0.0
      %568 = vmatprep.subr.mxu0 0.0
      %569 = vmatpush1.xpose.msra.mxu0 0.0
      %570 = vmatprep.subr.mxu0 0.0
      %571 = vmatpush1.xpose.msra.mxu0 0.0
      %572 = vmatprep.subr.mxu0 0.0
      %573 = vmatpush1.xpose.msra.mxu0 0.0
      %574 = vmatprep.subr.mxu0 0.0
      %575 = vmatpush1.xpose.msra.mxu0 0.0
      %576 = vmatprep.subr.mxu0 0.0
      %577 = vmatpush1.xpose.msra.mxu0 0.0
      %578 = vmatprep.subr.mxu0 0.0
      %579 = vmatpush1.xpose.msra.mxu0 0.0
      %580 = vmatprep.subr.mxu0 0.0
      %581 = vmatpush1.xpose.msra.mxu0 0.0
      %582 = vmatprep.subr.mxu0 0.0
      %583 = vmatpush1.xpose.msra.mxu0 0.0
      %584 = vmatprep.subr.mxu0 0.0
      %585 = vmatpush1.xpose.msra.mxu0 0.0
      %586 = vmatprep.subr.mxu0 0.0
      %587 = vmatpush1.xpose.msra.mxu0 0.0
      %588 = vmatprep.subr.mxu0 0.0
      %589 = vmatpush1.xpose.msra.mxu0 0.0
      %590 = vmatprep.subr.mxu0 0.0
      %591 = vmatpush1.xpose.msra.mxu0 0.0
      %592 = vmatprep.subr.mxu0 0.0
      %593 = vmatpush1.xpose.msra.mxu0 0.0
      %594 = vmatprep.subr.mxu0 0.0
      %595 = vmatpush1.xpose.msra.mxu0 0.0
      %596 = vmatprep.subr.mxu0 0.0
      %597 = vmatpush1.xpose.msra.mxu0 0.0
      %598 = vmatprep.subr.mxu0 0.0
      %599 = vmatpush1.xpose.msra.mxu0 0.0
      %600 = vmatprep.subr.mxu0 0.0
      %601 = vmatpush1.xpose.msra.mxu0 0.0
      %602 = vmatprep.mubr.f32.mxu0 0.0
      %603 = vmatmul.mubr.f32.gmra.mrb[0].mxu0 %v534
      %v604 = vpop.f32.mrb[0].mxu0
      %v605 = vadd.f32 0.0, %v604
      %v606 = vpop.f32.mrb[0].mxu0
      %607 = vdwg.mxu0
      %v608 = vmul.f32 %v605, 0.35355338
      %v609 = vsel %vm367, %v608, -inf
      %610 = vmax.xlane.f32.xlu0 %v609
      %v611 = vpop.xlane.xlu0 %610
      %v612 = vsub.f32 %v608, %v611
      %v613 = vmul.f32 %v612, 1.442695
      %v614 = vpow.pop %v613
      %v615 = vsel %vm367, %v614, 0.0
      %616 = vadd.xlane.f32.xlu0 %v615
      %v617 = vpop.xlane.xlu0 %616
      %v618 = vrcp.pop %v617
      %v619 = vmul.f32 %v614, %v618
      %620 = vrot.lane.b32.xlu0 %v357, 56
      %v621 = vpop.permute.xlu0 %620
      %v624 = vsel %vm367, %v619, 0
      %626 = vmatprep.subr.mxu0 0.0
      %627 = vmatpush1.msra.mxu0 %v621
      %628 = vmatprep.subr.mxu0 0.0
      %629 = vmatpush1.msra.mxu0 0.0
      %630 = vmatprep.subr.mxu0 0.0
      %631 = vmatpush1.msra.mxu0 0.0
      %632 = vmatprep.subr.mxu0 0.0
      %633 = vmatpush1.msra.mxu0 0.0
      %634 = vmatprep.subr.mxu0 0.0
      %635 = vmatpush1.msra.mxu0 0.0
      %636 = vmatprep.subr.mxu0 0.0
      %637 = vmatpush1.msra.mxu0 0.0
      %638 = vmatprep.subr.mxu0 0.0
      %639 = vmatpush1.msra.mxu0 0.0
      %640 = vmatprep.subr.mxu0 0.0
      %641 = vmatpush1.msra.mxu0 0.0
      %642 = vmatprep.subr.mxu0 0.0
      %643 = vmatpush1.msra.mxu0 0.0
      %644 = vmatprep.subr.mxu0 0.0
      %645 = vmatpush1.msra.mxu0 0.0
      %646 = vmatprep.subr.mxu0 0.0
      %647 = vmatpush1.msra.mxu0 0.0
      %648 = vmatprep.subr.mxu0 0.0
      %649 = vmatpush1.msra.mxu0 0.0
      %650 = vmatprep.subr.mxu0 0.0
      %651 = vmatpush1.msra.mxu0 0.0
      %652 = vmatprep.subr.mxu0 0.0
      %653 = vmatpush1.msra.mxu0 0.0
      %654 = vmatprep.subr.mxu0 0.0
      %655 = vmatpush1.msra.mxu0 0.0
      %656 = vmatprep.subr.mxu0 0.0
      %657 = vmatpush1.msra.mxu0 0.0
      %658 = vmatprep.subr.mxu0 0.0
      %659 = vmatpush1.msra.mxu0 0.0
      %660 = vmatprep.subr.mxu0 0.0
      %661 = vmatpush1.msra.mxu0 0.0
      %662 = vmatprep.subr.mxu0 0.0
      %663 = vmatpush1.msra.mxu0 0.0
      %664 = vmatprep.subr.mxu0 0.0
      %665 = vmatpush1.msra.mxu0 0.0
      %666 = vmatprep.subr.mxu0 0.0
      %667 = vmatpush1.msra.mxu0 0.0
      %668 = vmatprep.subr.mxu0 0.0
      %669 = vmatpush1.msra.mxu0 0.0
      %670 = vmatprep.subr.mxu0 0.0
      %671 = vmatpush1.msra.mxu0 0.0
      %672 = vmatprep.subr.mxu0 0.0
      %673 = vmatpush1.msra.mxu0 0.0
      %674 = vmatprep.subr.mxu0 0.0
      %675 = vmatpush1.msra.mxu0 0.0
      %676 = vmatprep.subr.mxu0 0.0
      %677 = vmatpush1.msra.mxu0 0.0
      %678 = vmatprep.subr.mxu0 0.0
      %679 = vmatpush1.msra.mxu0 0.0
      %680 = vmatprep.subr.mxu0 0.0
      %681 = vmatpush1.msra.mxu0 0.0
      %682 = vmatprep.subr.mxu0 0.0
      %683 = vmatpush1.msra.mxu0 0.0
      %684 = vmatprep.subr.mxu0 0.0
      %685 = vmatpush1.msra.mxu0 0.0
      %686 = vmatprep.subr.mxu0 0.0
      %687 = vmatpush1.msra.mxu0 0.0
      %688 = vmatprep.subr.mxu0 0.0
      %689 = vmatpush1.msra.mxu0 0.0
      %690 = vmatprep.mubr.f32.mxu0 0.0
      %691 = vmatmul.mubr.f32.gmra.mrb[0].mxu0 %v624
      %v692 = vpop.f32.mrb[0].mxu0
      %v693 = vadd.f32 0.0, %v692
      %v694 = vpop.f32.mrb[0].mxu0
      %695 = vdwg.mxu0
      %v697 = vsel %vm367, %v693, 0
      %699 = vmatprep.subr.mxu0 0.0
      %700 = vmatpush1.msra.mxu0 %v361
      %701 = vmatprep.subr.mxu0 0.0
      %702 = vmatpush1.msra.mxu0 0.0
      %703 = vmatprep.subr.mxu0 0.0
      %704 = vmatpush1.msra.mxu0 0.0
      %705 = vmatprep.subr.mxu0 0.0
      %706 = vmatpush1.msra.mxu0 0.0
      %707 = vmatprep.subr.mxu0 0.0
      %708 = vmatpush1.msra.mxu0 0.0
      %709 = vmatprep.subr.mxu0 0.0
      %710 = vmatpush1.msra.mxu0 0.0
      %711 = vmatprep.subr.mxu0 0.0
      %712 = vmatpush1.msra.mxu0 0.0
      %713 = vmatprep.subr.mxu0 0.0
      %714 = vmatpush1.msra.mxu0 0.0
      %715 = vmatprep.subr.mxu0 0.0
      %716 = vmatpush1.msra.mxu0 0.0
      %717 = vmatprep.subr.mxu0 0.0
      %718 = vmatpush1.msra.mxu0 0.0
      %719 = vmatprep.subr.mxu0 0.0
      %720 = vmatpush1.msra.mxu0 0.0
      %721 = vmatprep.subr.mxu0 0.0
      %722 = vmatpush1.msra.mxu0 0.0
      %723 = vmatprep.subr.mxu0 0.0
      %724 = vmatpush1.msra.mxu0 0.0
      %725 = vmatprep.subr.mxu0 0.0
      %726 = vmatpush1.msra.mxu0 0.0
      %727 = vmatprep.subr.mxu0 0.0
      %728 = vmatpush1.msra.mxu0 0.0
      %729 = vmatprep.subr.mxu0 0.0
      %730 = vmatpush1.msra.mxu0 0.0
      %731 = vmatprep.subr.mxu0 0.0
      %732 = vmatpush1.msra.mxu0 0.0
      %733 = vmatprep.subr.mxu0 0.0
      %734 = vmatpush1.msra.mxu0 0.0
      %735 = vmatprep.subr.mxu0 0.0
      %736 = vmatpush1.msra.mxu0 0.0
      %737 = vmatprep.subr.mxu0 0.0
      %738 = vmatpush1.msra.mxu0 0.0
      %739 = vmatprep.subr.mxu0 0.0
      %740 = vmatpush1.msra.mxu0 0.0
      %741 = vmatprep.subr.mxu0 0.0
      %742 = vmatpush1.msra.mxu0 0.0
      %743 = vmatprep.subr.mxu0 0.0
      %744 = vmatpush1.msra.mxu0 0.0
      %745 = vmatprep.subr.mxu0 0.0
      %746 = vmatpush1.msra.mxu0 0.0
      %747 = vmatprep.subr.mxu0 0.0
      %748 = vmatpush1.msra.mxu0 0.0
      %749 = vmatprep.subr.mxu0 0.0
      %750 = vmatpush1.msra.mxu0 0.0
      %751 = vmatprep.subr.mxu0 0.0
      %752 = vmatpush1.msra.mxu0 0.0
      %753 = vmatprep.subr.mxu0 0.0
      %754 = vmatpush1.msra.mxu0 0.0
      %755 = vmatprep.subr.mxu0 0.0
      %756 = vmatpush1.msra.mxu0 0.0
      %757 = vmatprep.subr.mxu0 0.0
      %758 = vmatpush1.msra.mxu0 0.0
      %759 = vmatprep.subr.mxu0 0.0
      %760 = vmatpush1.msra.mxu0 0.0
      %761 = vmatprep.subr.mxu0 0.0
      %762 = vmatpush1.msra.mxu0 0.0
      %763 = vmatprep.mubr.f32.mxu0 0.0
      %764 = vmatmul.mubr.f32.gmra.mrb[0].mxu0 %v697
      %v765 = vpop.f32.mrb[0].mxu0
      %v766 = vadd.f32 0.0, %v765
      %v767 = vpop.f32.mrb[0].mxu0
      %768 = vdwg.mxu0
      %v770 = vsel %vm367, %v527, 0
      %772 = vmatprep.subr.mxu0 0.0
      %773 = vmatpush1.msra.mxu0 %v360
      %774 = vmatprep.subr.mxu0 0.0
      %775 = vmatpush1.msra.mxu0 0.0
      %776 = vmatprep.subr.mxu0 0.0
      %777 = vmatpush1.msra.mxu0 0.0
      %778 = vmatprep.subr.mxu0 0.0
      %779 = vmatpush1.msra.mxu0 0.0
      %780 = vmatprep.subr.mxu0 0.0
      %781 = vmatpush1.msra.mxu0 0.0
      %782 = vmatprep.subr.mxu0 0.0
      %783 = vmatpush1.msra.mxu0 0.0
      %784 = vmatprep.subr.mxu0 0.0
      %785 = vmatpush1.msra.mxu0 0.0
      %786 = vmatprep.subr.mxu0 0.0
      %787 = vmatpush1.msra.mxu0 0.0
      %788 = vmatprep.subr.mxu0 0.0
      %789 = vmatpush1.msra.mxu0 0.0
      %790 = vmatprep.subr.mxu0 0.0
      %791 = vmatpush1.msra.mxu0 0.0
      %792 = vmatprep.subr.mxu0 0.0
      %793 = vmatpush1.msra.mxu0 0.0
      %794 = vmatprep.subr.mxu0 0.0
      %795 = vmatpush1.msra.mxu0 0.0
      %796 = vmatprep.subr.mxu0 0.0
      %797 = vmatpush1.msra.mxu0 0.0
      %798 = vmatprep.subr.mxu0 0.0
      %799 = vmatpush1.msra.mxu0 0.0
      %800 = vmatprep.subr.mxu0 0.0
      %801 = vmatpush1.msra.mxu0 0.0
      %802 = vmatprep.subr.mxu0 0.0
      %803 = vmatpush1.msra.mxu0 0.0
      %804 = vmatprep.subr.mxu0 0.0
      %805 = vmatpush1.msra.mxu0 0.0
      %806 = vmatprep.subr.mxu0 0.0
      %807 = vmatpush1.msra.mxu0 0.0
      %808 = vmatprep.subr.mxu0 0.0
      %809 = vmatpush1.msra.mxu0 0.0
      %810 = vmatprep.subr.mxu0 0.0
      %811 = vmatpush1.msra.mxu0 0.0
      %812 = vmatprep.subr.mxu0 0.0
      %813 = vmatpush1.msra.mxu0 0.0
      %814 = vmatprep.subr.mxu0 0.0
      %815 = vmatpush1.msra.mxu0 0.0
      %816 = vmatprep.subr.mxu0 0.0
      %817 = vmatpush1.msra.mxu0 0.0
      %818 = vmatprep.subr.mxu0 0.0
      %819 = vmatpush1.msra.mxu0 0.0
      %820 = vmatprep.subr.mxu0 0.0
      %821 = vmatpush1.msra.mxu0 0.0
      %822 = vmatprep.subr.mxu0 0.0
      %823 = vmatpush1.msra.mxu0 0.0
      %824 = vmatprep.subr.mxu0 0.0
      %825 = vmatpush1.msra.mxu0 0.0
      %826 = vmatprep.subr.mxu0 0.0
      %827 = vmatpush1.msra.mxu0 0.0
      %828 = vmatprep.subr.mxu0 0.0
      %829 = vmatpush1.msra.mxu0 0.0
      %830 = vmatprep.subr.mxu0 0.0
      %831 = vmatpush1.msra.mxu0 0.0
      %832 = vmatprep.subr.mxu0 0.0
      %833 = vmatpush1.msra.mxu0 0.0
      %834 = vmatprep.subr.mxu0 0.0
      %835 = vmatpush1.msra.mxu0 0.0
      %836 = vmatprep.mubr.f32.mxu0 0.0
      %837 = vmatmul.mubr.f32.gmra.mrb[0].mxu0 %v770
      %v838 = vpop.f32.mrb[0].mxu0
      %v839 = vadd.f32 %v766, %v838
      %v840 = vpop.f32.mrb[0].mxu0
      %841 = vdwg.mxu0
      %842 = vrot.lane.b32.xlu0 %v357, 112
      %v843 = vpop.permute.xlu0 %842
      %844 = vrot.lane.b32.xlu0 %v357, 80
      %v845 = vpop.permute.xlu0 %844
      %v846 = vsel %vm367, %v843, 0
      %v848 = vsel %vm367, %v845, 0
      %850 = vmatprep.subr.mxu0 0.0
      %851 = vmatpush1.xpose.msra.mxu0 %v848
      %852 = vmatprep.subr.mxu0 0.0
      %853 = vmatpush1.xpose.msra.mxu0 0.0
      %854 = vmatprep.subr.mxu0 0.0
      %855 = vmatpush1.xpose.msra.mxu0 0.0
      %856 = vmatprep.subr.mxu0 0.0
      %857 = vmatpush1.xpose.msra.mxu0 0.0
      %858 = vmatprep.subr.mxu0 0.0
      %859 = vmatpush1.xpose.msra.mxu0 0.0
      %860 = vmatprep.subr.mxu0 0.0
      %861 = vmatpush1.xpose.msra.mxu0 0.0
      %862 = vmatprep.subr.mxu0 0.0
      %863 = vmatpush1.xpose.msra.mxu0 0.0
      %864 = vmatprep.subr.mxu0 0.0
      %865 = vmatpush1.xpose.msra.mxu0 0.0
      %866 = vmatprep.subr.mxu0 0.0
      %867 = vmatpush1.xpose.msra.mxu0 0.0
      %868 = vmatprep.subr.mxu0 0.0
      %869 = vmatpush1.xpose.msra.mxu0 0.0
      %870 = vmatprep.subr.mxu0 0.0
      %871 = vmatpush1.xpose.msra.mxu0 0.0
      %872 = vmatprep.subr.mxu0 0.0
      %873 = vmatpush1.xpose.msra.mxu0 0.0
      %874 = vmatprep.subr.mxu0 0.0
      %875 = vmatpush1.xpose.msra.mxu0 0.0
      %876 = vmatprep.subr.mxu0 0.0
      %877 = vmatpush1.xpose.msra.mxu0 0.0
      %878 = vmatprep.subr.mxu0 0.0
      %879 = vmatpush1.xpose.msra.mxu0 0.0
      %880 = vmatprep.subr.mxu0 0.0
      %881 = vmatpush1.xpose.msra.mxu0 0.0
      %882 = vmatprep.subr.mxu0 0.0
      %883 = vmatpush1.xpose.msra.mxu0 0.0
      %884 = vmatprep.subr.mxu0 0.0
      %885 = vmatpush1.xpose.msra.mxu0 0.0
      %886 = vmatprep.subr.mxu0 0.0
      %887 = vmatpush1.xpose.msra.mxu0 0.0
      %888 = vmatprep.subr.mxu0 0.0
      %889 = vmatpush1.xpose.msra.mxu0 0.0
      %890 = vmatprep.subr.mxu0 0.0
      %891 = vmatpush1.xpose.msra.mxu0 0.0
      %892 = vmatprep.subr.mxu0 0.0
      %893 = vmatpush1.xpose.msra.mxu0 0.0
      %894 = vmatprep.subr.mxu0 0.0
      %895 = vmatpush1.xpose.msra.mxu0 0.0
      %896 = vmatprep.subr.mxu0 0.0
      %897 = vmatpush1.xpose.msra.mxu0 0.0
      %898 = vmatprep.subr.mxu0 0.0
      %899 = vmatpush1.xpose.msra.mxu0 0.0
      %900 = vmatprep.subr.mxu0 0.0
      %901 = vmatpush1.xpose.msra.mxu0 0.0
      %902 = vmatprep.subr.mxu0 0.0
      %903 = vmatpush1.xpose.msra.mxu0 0.0
      %904 = vmatprep.subr.mxu0 0.0
      %905 = vmatpush1.xpose.msra.mxu0 0.0
      %906 = vmatprep.subr.mxu0 0.0
      %907 = vmatpush1.xpose.msra.mxu0 0.0
      %908 = vmatprep.subr.mxu0 0.0
      %909 = vmatpush1.xpose.msra.mxu0 0.0
      %910 = vmatprep.subr.mxu0 0.0
      %911 = vmatpush1.xpose.msra.mxu0 0.0
      %912 = vmatprep.subr.mxu0 0.0
      %913 = vmatpush1.xpose.msra.mxu0 0.0
      %914 = vmatprep.mubr.f32.mxu0 0.0
      %915 = vmatmul.mubr.f32.gmra.mrb[0].mxu0 %v846
      %v916 = vpop.f32.mrb[0].mxu0
      %v917 = vadd.f32 0.0, %v916
      %v918 = vpop.f32.mrb[0].mxu0
      %919 = vdwg.mxu0
      %v920 = vmul.f32 %v917, 0.35355338
      %v921 = vsel %vm367, %v920, -inf
      %922 = vmax.xlane.f32.xlu0 %v921
      %v923 = vpop.xlane.xlu0 %922
      %v924 = vsub.f32 %v920, %v923
      %v925 = vmul.f32 %v924, 1.442695
      %v926 = vpow.pop %v925
      %v927 = vsel %vm367, %v926, 0.0
      %928 = vadd.xlane.f32.xlu0 %v927
      %v929 = vpop.xlane.xlu0 %928
      %v930 = vrcp.pop %v929
      %v931 = vmul.f32 %v926, %v930
      %932 = vrot.lane.b32.xlu0 %v357, 48
      %v933 = vpop.permute.xlu0 %932
      %v936 = vsel %vm367, %v931, 0
      %938 = vmatprep.subr.mxu0 0.0
      %939 = vmatpush1.msra.mxu0 %v933
      %940 = vmatprep.subr.mxu0 0.0
      %941 = vmatpush1.msra.mxu0 0.0
      %942 = vmatprep.subr.mxu0 0.0
      %943 = vmatpush1.msra.mxu0 0.0
      %944 = vmatprep.subr.mxu0 0.0
      %945 = vmatpush1.msra.mxu0 0.0
      %946 = vmatprep.subr.mxu0 0.0
      %947 = vmatpush1.msra.mxu0 0.0
      %948 = vmatprep.subr.mxu0 0.0
      %949 = vmatpush1.msra.mxu0 0.0
      %950 = vmatprep.subr.mxu0 0.0
      %951 = vmatpush1.msra.mxu0 0.0
      %952 = vmatprep.subr.mxu0 0.0
      %953 = vmatpush1.msra.mxu0 0.0
      %954 = vmatprep.subr.mxu0 0.0
      %955 = vmatpush1.msra.mxu0 0.0
      %956 = vmatprep.subr.mxu0 0.0
      %957 = vmatpush1.msra.mxu0 0.0
      %958 = vmatprep.subr.mxu0 0.0
      %959 = vmatpush1.msra.mxu0 0.0
      %960 = vmatprep.subr.mxu0 0.0
      %961 = vmatpush1.msra.mxu0 0.0
      %962 = vmatprep.subr.mxu0 0.0
      %963 = vmatpush1.msra.mxu0 0.0
      %964 = vmatprep.subr.mxu0 0.0
      %965 = vmatpush1.msra.mxu0 0.0
      %966 = vmatprep.subr.mxu0 0.0
      %967 = vmatpush1.msra.mxu0 0.0
      %968 = vmatprep.subr.mxu0 0.0
      %969 = vmatpush1.msra.mxu0 0.0
      %970 = vmatprep.subr.mxu0 0.0
      %971 = vmatpush1.msra.mxu0 0.0
      %972 = vmatprep.subr.mxu0 0.0
      %973 = vmatpush1.msra.mxu0 0.0
      %974 = vmatprep.subr.mxu0 0.0
      %975 = vmatpush1.msra.mxu0 0.0
      %976 = vmatprep.subr.mxu0 0.0
      %977 = vmatpush1.msra.mxu0 0.0
      %978 = vmatprep.subr.mxu0 0.0
      %979 = vmatpush1.msra.mxu0 0.0
      %980 = vmatprep.subr.mxu0 0.0
      %981 = vmatpush1.msra.mxu0 0.0
      %982 = vmatprep.subr.mxu0 0.0
      %983 = vmatpush1.msra.mxu0 0.0
      %984 = vmatprep.subr.mxu0 0.0
      %985 = vmatpush1.msra.mxu0 0.0
      %986 = vmatprep.subr.mxu0 0.0
      %987 = vmatpush1.msra.mxu0 0.0
      %988 = vmatprep.subr.mxu0 0.0
      %989 = vmatpush1.msra.mxu0 0.0
      %990 = vmatprep.subr.mxu0 0.0
      %991 = vmatpush1.msra.mxu0 0.0
      %992 = vmatprep.subr.mxu0 0.0
      %993 = vmatpush1.msra.mxu0 0.0
      %994 = vmatprep.subr.mxu0 0.0
      %995 = vmatpush1.msra.mxu0 0.0
      %996 = vmatprep.subr.mxu0 0.0
      %997 = vmatpush1.msra.mxu0 0.0
      %998 = vmatprep.subr.mxu0 0.0
      %999 = vmatpush1.msra.mxu0 0.0
      %1000 = vmatprep.subr.mxu0 0.0
      %1001 = vmatpush1.msra.mxu0 0.0
      %1002 = vmatprep.mubr.f32.mxu0 0.0
      %1003 = vmatmul.mubr.f32.gmra.mrb[0].mxu0 %v936
      %v1004 = vpop.f32.mrb[0].mxu0
      %v1005 = vadd.f32 0.0, %v1004
      %v1006 = vpop.f32.mrb[0].mxu0
      %1007 = vdwg.mxu0
      %v1009 = vsel %vm367, %v1005, 0
      %1011 = vmatprep.subr.mxu0 0.0
      %1012 = vmatpush1.msra.mxu0 %v362
      %1013 = vmatprep.subr.mxu0 0.0
      %1014 = vmatpush1.msra.mxu0 0.0
      %1015 = vmatprep.subr.mxu0 0.0
      %1016 = vmatpush1.msra.mxu0 0.0
      %1017 = vmatprep.subr.mxu0 0.0
      %1018 = vmatpush1.msra.mxu0 0.0
      %1019 = vmatprep.subr.mxu0 0.0
      %1020 = vmatpush1.msra.mxu0 0.0
      %1021 = vmatprep.subr.mxu0 0.0
      %1022 = vmatpush1.msra.mxu0 0.0
      %1023 = vmatprep.subr.mxu0 0.0
      %1024 = vmatpush1.msra.mxu0 0.0
      %1025 = vmatprep.subr.mxu0 0.0
      %1026 = vmatpush1.msra.mxu0 0.0
      %1027 = vmatprep.subr.mxu0 0.0
      %1028 = vmatpush1.msra.mxu0 0.0
      %1029 = vmatprep.subr.mxu0 0.0
      %1030 = vmatpush1.msra.mxu0 0.0
      %1031 = vmatprep.subr.mxu0 0.0
      %1032 = vmatpush1.msra.mxu0 0.0
      %1033 = vmatprep.subr.mxu0 0.0
      %1034 = vmatpush1.msra.mxu0 0.0
      %1035 = vmatprep.subr.mxu0 0.0
      %1036 = vmatpush1.msra.mxu0 0.0
      %1037 = vmatprep.subr.mxu0 0.0
      %1038 = vmatpush1.msra.mxu0 0.0
      %1039 = vmatprep.subr.mxu0 0.0
      %1040 = vmatpush1.msra.mxu0 0.0
      %1041 = vmatprep.subr.mxu0 0.0
      %1042 = vmatpush1.msra.mxu0 0.0
      %1043 = vmatprep.subr.mxu0 0.0
      %1044 = vmatpush1.msra.mxu0 0.0
      %1045 = vmatprep.subr.mxu0 0.0
      %1046 = vmatpush1.msra.mxu0 0.0
      %1047 = vmatprep.subr.mxu0 0.0
      %1048 = vmatpush1.msra.mxu0 0.0
      %1049 = vmatprep.subr.mxu0 0.0
      %1050 = vmatpush1.msra.mxu0 0.0
      %1051 = vmatprep.subr.mxu0 0.0
      %1052 = vmatpush1.msra.mxu0 0.0
      %1053 = vmatprep.subr.mxu0 0.0
      %1054 = vmatpush1.msra.mxu0 0.0
      %1055 = vmatprep.subr.mxu0 0.0
      %1056 = vmatpush1.msra.mxu0 0.0
      %1057 = vmatprep.subr.mxu0 0.0
      %1058 = vmatpush1.msra.mxu0 0.0
      %1059 = vmatprep.subr.mxu0 0.0
      %1060 = vmatpush1.msra.mxu0 0.0
      %1061 = vmatprep.subr.mxu0 0.0
      %1062 = vmatpush1.msra.mxu0 0.0
      %1063 = vmatprep.subr.mxu0 0.0
      %1064 = vmatpush1.msra.mxu0 0.0
      %1065 = vmatprep.subr.mxu0 0.0
      %1066 = vmatpush1.msra.mxu0 0.0
      %1067 = vmatprep.subr.mxu0 0.0
      %1068 = vmatpush1.msra.mxu0 0.0
      %1069 = vmatprep.subr.mxu0 0.0
      %1070 = vmatpush1.msra.mxu0 0.0
      %1071 = vmatprep.subr.mxu0 0.0
      %1072 = vmatpush1.msra.mxu0 0.0
      %1073 = vmatprep.subr.mxu0 0.0
      %1074 = vmatpush1.msra.mxu0 0.0
      %1075 = vmatprep.mubr.f32.mxu0 0.0
      %1076 = vmatmul.mubr.f32.gmra.mrb[0].mxu0 %v1009
      %v1077 = vpop.f32.mrb[0].mxu0
      %v1078 = vadd.f32 0.0, %v1077
      %v1079 = vpop.f32.mrb[0].mxu0
      %1080 = vdwg.mxu0
      %v1081 = vadd.f32 %v839, %v1078
      %1082 = vrot.lane.b32.xlu0 %v357, 104
      %v1083 = vpop.permute.xlu0 %1082
      %1084 = vrot.lane.b32.xlu0 %v357, 72
      %v1085 = vpop.permute.xlu0 %1084
      %v1086 = vsel %vm367, %v1083, 0
      %v1088 = vsel %vm367, %v1085, 0
      %1090 = vmatprep.subr.mxu0 0.0
      %1091 = vmatpush1.xpose.msra.mxu0 %v1088
      %1092 = vmatprep.subr.mxu0 0.0
      %1093 = vmatpush1.xpose.msra.mxu0 0.0
      %1094 = vmatprep.subr.mxu0 0.0
      %1095 = vmatpush1.xpose.msra.mxu0 0.0
      %1096 = vmatprep.subr.mxu0 0.0
      %1097 = vmatpush1.xpose.msra.mxu0 0.0
      %1098 = vmatprep.subr.mxu0 0.0
      %1099 = vmatpush1.xpose.msra.mxu0 0.0
      %1100 = vmatprep.subr.mxu0 0.0
      %1101 = vmatpush1.xpose.msra.mxu0 0.0
      %1102 = vmatprep.subr.mxu0 0.0
      %1103 = vmatpush1.xpose.msra.mxu0 0.0
      %1104 = vmatprep.subr.mxu0 0.0
      %1105 = vmatpush1.xpose.msra.mxu0 0.0
      %1106 = vmatprep.subr.mxu0 0.0
      %1107 = vmatpush1.xpose.msra.mxu0 0.0
      %1108 = vmatprep.subr.mxu0 0.0
      %1109 = vmatpush1.xpose.msra.mxu0 0.0
      %1110 = vmatprep.subr.mxu0 0.0
      %1111 = vmatpush1.xpose.msra.mxu0 0.0
      %1112 = vmatprep.subr.mxu0 0.0
      %1113 = vmatpush1.xpose.msra.mxu0 0.0
      %1114 = vmatprep.subr.mxu0 0.0
      %1115 = vmatpush1.xpose.msra.mxu0 0.0
      %1116 = vmatprep.subr.mxu0 0.0
      %1117 = vmatpush1.xpose.msra.mxu0 0.0
      %1118 = vmatprep.subr.mxu0 0.0
      %1119 = vmatpush1.xpose.msra.mxu0 0.0
      %1120 = vmatprep.subr.mxu0 0.0
      %1121 = vmatpush1.xpose.msra.mxu0 0.0
      %1122 = vmatprep.subr.mxu0 0.0
      %1123 = vmatpush1.xpose.msra.mxu0 0.0
      %1124 = vmatprep.subr.mxu0 0.0
      %1125 = vmatpush1.xpose.msra.mxu0 0.0
      %1126 = vmatprep.subr.mxu0 0.0
      %1127 = vmatpush1.xpose.msra.mxu0 0.0
      %1128 = vmatprep.subr.mxu0 0.0
      %1129 = vmatpush1.xpose.msra.mxu0 0.0
      %1130 = vmatprep.subr.mxu0 0.0
      %1131 = vmatpush1.xpose.msra.mxu0 0.0
      %1132 = vmatprep.subr.mxu0 0.0
      %1133 = vmatpush1.xpose.msra.mxu0 0.0
      %1134 = vmatprep.subr.mxu0 0.0
      %1135 = vmatpush1.xpose.msra.mxu0 0.0
      %1136 = vmatprep.subr.mxu0 0.0
      %1137 = vmatpush1.xpose.msra.mxu0 0.0
      %1138 = vmatprep.subr.mxu0 0.0
      %1139 = vmatpush1.xpose.msra.mxu0 0.0
      %1140 = vmatprep.subr.mxu0 0.0
      %1141 = vmatpush1.xpose.msra.mxu0 0.0
      %1142 = vmatprep.subr.mxu0 0.0
      %1143 = vmatpush1.xpose.msra.mxu0 0.0
      %1144 = vmatprep.subr.mxu0 0.0
      %1145 = vmatpush1.xpose.msra.mxu0 0.0
      %1146 = vmatprep.subr.mxu0 0.0
      %1147 = vmatpush1.xpose.msra.mxu0 0.0
      %1148 = vmatprep.subr.mxu0 0.0
      %1149 = vmatpush1.xpose.msra.mxu0 0.0
      %1150 = vmatprep.subr.mxu0 0.0
      %1151 = vmatpush1.xpose.msra.mxu0 0.0
      %1152 = vmatprep.subr.mxu0 0.0
      %1153 = vmatpush1.xpose.msra.mxu0 0.0
      %1154 = vmatprep.mubr.f32.mxu0 0.0
      %1155 = vmatmul.mubr.f32.gmra.mrb[0].mxu0 %v1086
      %v1156 = vpop.f32.mrb[0].mxu0
      %v1157 = vadd.f32 0.0, %v1156
      %v1158 = vpop.f32.mrb[0].mxu0
      %1159 = vdwg.mxu0
      %v1160 = vmul.f32 %v1157, 0.35355338
      %v1161 = vsel %vm367, %v1160, -inf
      %1162 = vmax.xlane.f32.xlu0 %v1161
      %v1163 = vpop.xlane.xlu0 %1162
      %v1164 = vsub.f32 %v1160, %v1163
      %v1165 = vmul.f32 %v1164, 1.442695
      %v1166 = vpow.pop %v1165
      %v1167 = vsel %vm367, %v1166, 0.0
      %1168 = vadd.xlane.f32.xlu0 %v1167
      %v1169 = vpop.xlane.xlu0 %1168
      %v1170 = vrcp.pop %v1169
      %v1171 = vmul.f32 %v1166, %v1170
      %1172 = vrot.lane.b32.xlu0 %v357, 40
      %v1173 = vpop.permute.xlu0 %1172
      %v1176 = vsel %vm367, %v1171, 0
      %1178 = vmatprep.subr.mxu0 0.0
      %1179 = vmatpush1.msra.mxu0 %v1173
      %1180 = vmatprep.subr.mxu0 0.0
      %1181 = vmatpush1.msra.mxu0 0.0
      %1182 = vmatprep.subr.mxu0 0.0
      %1183 = vmatpush1.msra.mxu0 0.0
      %1184 = vmatprep.subr.mxu0 0.0
      %1185 = vmatpush1.msra.mxu0 0.0
      %1186 = vmatprep.subr.mxu0 0.0
      %1187 = vmatpush1.msra.mxu0 0.0
      %1188 = vmatprep.subr.mxu0 0.0
      %1189 = vmatpush1.msra.mxu0 0.0
      %1190 = vmatprep.subr.mxu0 0.0
      %1191 = vmatpush1.msra.mxu0 0.0
      %1192 = vmatprep.subr.mxu0 0.0
      %1193 = vmatpush1.msra.mxu0 0.0
      %1194 = vmatprep.subr.mxu0 0.0
      %1195 = vmatpush1.msra.mxu0 0.0
      %1196 = vmatprep.subr.mxu0 0.0
      %1197 = vmatpush1.msra.mxu0 0.0
      %1198 = vmatprep.subr.mxu0 0.0
      %1199 = vmatpush1.msra.mxu0 0.0
      %1200 = vmatprep.subr.mxu0 0.0
      %1201 = vmatpush1.msra.mxu0 0.0
      %1202 = vmatprep.subr.mxu0 0.0
      %1203 = vmatpush1.msra.mxu0 0.0
      %1204 = vmatprep.subr.mxu0 0.0
      %1205 = vmatpush1.msra.mxu0 0.0
      %1206 = vmatprep.subr.mxu0 0.0
      %1207 = vmatpush1.msra.mxu0 0.0
      %1208 = vmatprep.subr.mxu0 0.0
      %1209 = vmatpush1.msra.mxu0 0.0
      %1210 = vmatprep.subr.mxu0 0.0
      %1211 = vmatpush1.msra.mxu0 0.0
      %1212 = vmatprep.subr.mxu0 0.0
      %1213 = vmatpush1.msra.mxu0 0.0
      %1214 = vmatprep.subr.mxu0 0.0
      %1215 = vmatpush1.msra.mxu0 0.0
      %1216 = vmatprep.subr.mxu0 0.0
      %1217 = vmatpush1.msra.mxu0 0.0
      %1218 = vmatprep.subr.mxu0 0.0
      %1219 = vmatpush1.msra.mxu0 0.0
      %1220 = vmatprep.subr.mxu0 0.0
      %1221 = vmatpush1.msra.mxu0 0.0
      %1222 = vmatprep.subr.mxu0 0.0
      %1223 = vmatpush1.msra.mxu0 0.0
      %1224 = vmatprep.subr.mxu0 0.0
      %1225 = vmatpush1.msra.mxu0 0.0
      %1226 = vmatprep.subr.mxu0 0.0
      %1227 = vmatpush1.msra.mxu0 0.0
      %1228 = vmatprep.subr.mxu0 0.0
      %1229 = vmatpush1.msra.mxu0 0.0
      %1230 = vmatprep.subr.mxu0 0.0
      %1231 = vmatpush1.msra.mxu0 0.0
      %1232 = vmatprep.subr.mxu0 0.0
      %1233 = vmatpush1.msra.mxu0 0.0
      %1234 = vmatprep.subr.mxu0 0.0
      %1235 = vmatpush1.msra.mxu0 0.0
      %1236 = vmatprep.subr.mxu0 0.0
      %1237 = vmatpush1.msra.mxu0 0.0
      %1238 = vmatprep.subr.mxu0 0.0
      %1239 = vmatpush1.msra.mxu0 0.0
      %1240 = vmatprep.subr.mxu0 0.0
      %1241 = vmatpush1.msra.mxu0 0.0
      %1242 = vmatprep.mubr.f32.mxu0 0.0
      %1243 = vmatmul.mubr.f32.gmra.mrb[0].mxu0 %v1176
      %v1244 = vpop.f32.mrb[0].mxu0
      %v1245 = vadd.f32 0.0, %v1244
      %v1246 = vpop.f32.mrb[0].mxu0
      %1247 = vdwg.mxu0
      %v1249 = vsel %vm367, %v1245, 0
      %1251 = vmatprep.subr.mxu0 0.0
      %1252 = vmatpush1.msra.mxu0 %v363
      %1253 = vmatprep.subr.mxu0 0.0
      %1254 = vmatpush1.msra.mxu0 0.0
      %1255 = vmatprep.subr.mxu0 0.0
      %1256 = vmatpush1.msra.mxu0 0.0
      %1257 = vmatprep.subr.mxu0 0.0
      %1258 = vmatpush1.msra.mxu0 0.0
      %1259 = vmatprep.subr.mxu0 0.0
      %1260 = vmatpush1.msra.mxu0 0.0
      %1261 = vmatprep.subr.mxu0 0.0
      %1262 = vmatpush1.msra.mxu0 0.0
      %1263 = vmatprep.subr.mxu0 0.0
      %1264 = vmatpush1.msra.mxu0 0.0
      %1265 = vmatprep.subr.mxu0 0.0
      %1266 = vmatpush1.msra.mxu0 0.0
      %1267 = vmatprep.subr.mxu0 0.0
      %1268 = vmatpush1.msra.mxu0 0.0
      %1269 = vmatprep.subr.mxu0 0.0
      %1270 = vmatpush1.msra.mxu0 0.0
      %1271 = vmatprep.subr.mxu0 0.0
      %1272 = vmatpush1.msra.mxu0 0.0
      %1273 = vmatprep.subr.mxu0 0.0
      %1274 = vmatpush1.msra.mxu0 0.0
      %1275 = vmatprep.subr.mxu0 0.0
      %1276 = vmatpush1.msra.mxu0 0.0
      %1277 = vmatprep.subr.mxu0 0.0
      %1278 = vmatpush1.msra.mxu0 0.0
      %1279 = vmatprep.subr.mxu0 0.0
      %1280 = vmatpush1.msra.mxu0 0.0
      %1281 = vmatprep.subr.mxu0 0.0
      %1282 = vmatpush1.msra.mxu0 0.0
      %1283 = vmatprep.subr.mxu0 0.0
      %1284 = vmatpush1.msra.mxu0 0.0
      %1285 = vmatprep.subr.mxu0 0.0
      %1286 = vmatpush1.msra.mxu0 0.0
      %1287 = vmatprep.subr.mxu0 0.0
      %1288 = vmatpush1.msra.mxu0 0.0
      %1289 = vmatprep.subr.mxu0 0.0
      %1290 = vmatpush1.msra.mxu0 0.0
      %1291 = vmatprep.subr.mxu0 0.0
      %1292 = vmatpush1.msra.mxu0 0.0
      %1293 = vmatprep.subr.mxu0 0.0
      %1294 = vmatpush1.msra.mxu0 0.0
      %1295 = vmatprep.subr.mxu0 0.0
      %1296 = vmatpush1.msra.mxu0 0.0
      %1297 = vmatprep.subr.mxu0 0.0
      %1298 = vmatpush1.msra.mxu0 0.0
      %1299 = vmatprep.subr.mxu0 0.0
      %1300 = vmatpush1.msra.mxu0 0.0
      %1301 = vmatprep.subr.mxu0 0.0
      %1302 = vmatpush1.msra.mxu0 0.0
      %1303 = vmatprep.subr.mxu0 0.0
      %1304 = vmatpush1.msra.mxu0 0.0
      %1305 = vmatprep.subr.mxu0 0.0
      %1306 = vmatpush1.msra.mxu0 0.0
      %1307 = vmatprep.subr.mxu0 0.0
      %1308 = vmatpush1.msra.mxu0 0.0
      %1309 = vmatprep.subr.mxu0 0.0
      %1310 = vmatpush1.msra.mxu0 0.0
      %1311 = vmatprep.subr.mxu0 0.0
      %1312 = vmatpush1.msra.mxu0 0.0
      %1313 = vmatprep.subr.mxu0 0.0
      %1314 = vmatpush1.msra.mxu0 0.0
      %1315 = vmatprep.mubr.f32.mxu0 0.0
      %1316 = vmatmul.mubr.f32.gmra.mrb[0].mxu0 %v1249
      %v1317 = vpop.f32.mrb[0].mxu0
      %v1318 = vadd.f32 0.0, %v1317
      %v1319 = vpop.f32.mrb[0].mxu0
      %1320 = vdwg.mxu0
      %v1321 = vadd.f32 %v1081, %v1318
      %v1322 = vadd.f32 %v274, %v1321
      %v1323 = vld [vmem:[%s4] sm:$0x1]
      %v1325 = vlaneseq
      %v1326 = vshrl.u32 %v1325, 7
      %v1327 = vsub.s32 0, %v1326
      %v1328 = vrot.slane %v1323, %v1327
      %v1330 = vadd.f32 %v1322, %v1328
      %v1331 = vsel %vm286, %v1330, 0.0
      %1332 = vadd.xlane.f32.xlu0 %v1331
      %v1333 = vpop.xlane.xlu0 %1332
      %v1334 = vrcp.pop 32.0
      %v1335 = vmul.f32 %v1333, %v1334
      %v1336 = vsub.f32 %v1330, %v1335
      %v1337 = vmul.f32 %v1336, %v1336
      %v1338 = vsel %vm286, %v1337, 0.0
      %1339 = vadd.xlane.f32.xlu0 %v1338
      %v1340 = vpop.xlane.xlu0 %1339
      %v1341 = vmul.f32 %v1340, %v1334
      %v1342 = vadd.f32 %v1341, 1e-05
      %v1343 = vrsqrt.pop %v1342
      %v1344 = vmul.f32 %v1336, %v1343
      %v1345 = vld [vmem:[%s5] sm:$0x1]
      %v1347 = vlaneseq
      %v1348 = vshrl.u32 %v1347, 7
      %v1349 = vsub.s32 0, %v1348
      %v1350 = vrot.slane %v1345, %v1349
      %v1352 = vmul.f32 %v1344, %v1350
      %v1353 = vld [vmem:[%s6] sm:$0x1]
      %v1355 = vlaneseq
      %v1356 = vshrl.u32 %v1355, 7
      %v1357 = vsub.s32 0, %v1356
      %v1358 = vrot.slane %v1353, %v1357
      %v1360 = vadd.f32 %v1352, %v1358
      %1361 = vst.msk [vmem:[%s273] sm:$0xff] %vm286, %v1360
      %p1362 = scmp.lt.s32.totalorder %s18, 1
      %s1363 = scalar_select %p1362, %s18, 1
      %s1364 = smul.addr %s1363, 8
      %s1365 = scalar_lea.vmem %s7, %s1364
      // Predicated region
      $region49: #{time_series_transformer.14} parent=47 // pred_check
        %p1366 = pneg %p188
      $region50: #{time_series_transformer.14} parent=47 // pred_check_branch
        %1368 = sbr.rel (%p1366) target = $region52
      $region51: #{time_series_transformer.14} parent=47 // pred_region
        _
      $region52: #{time_series_transformer.14} parent=47 // pred_fallthru
        _
    $region48: #{time_series_transformer.14} parent=5 // pred_fallthru
      _
    %p1369 = scmp.le.s32.totalorder 2, %s13
    // Predicated region
    $region53: #{time_series_transformer.14} parent=5 // pred_check
      %p1370 = pneg %p1369
    $region54: #{time_series_transformer.14} parent=5 // pred_check_branch
      %1372 = sbr.rel (%p1370) target = $region56
    $region55: #{time_series_transformer.14} parent=5 // pred_region
      %s1373 = ssub.s32 %s13, 2
      // Predicated region
      $region57: #{time_series_transformer.14} parent=55 // pred_check
        %p1374 = pneg %p194
      $region58: #{time_series_transformer.14} parent=55 // pred_check_branch
        %1376 = sbr.rel (%p1374) target = $region60
      $region59: #{time_series_transformer.14} parent=55 // pred_region
        %p1377 = scmp.lt.s32.totalorder %s19, 1
        %s1378 = scalar_select %p1377, %s19, 1
        %s1379 = smul.addr %s1378, 8
        %s1380 = scalar_lea.vmem %s7, %s1379
      $region60: #{time_series_transformer.14} parent=55 // pred_fallthru
        _
    $region56: #{time_series_transformer.14} parent=5 // pred_fallthru
      _
  $region6: #{time_series_transformer.14} parent=0 // loop_footer
    %s17 = sadd.s32 1, %s13
  $region7: #{time_series_transformer.14} parent=0 // loop_footer_branch
    %12 = sbr.rel target = $region3
  $region8: #{time_series_transformer.14} parent=0 // loop_exit
    _

// kernel: time_series_transformer.18
$region0: #{time_series_transformer.18}
  #allocation0 [shape = 'u32[]', space=smem, size = 0x4, offset = 0x4, fixed_abs, tag = 'smem constant byte address 0x4 - core index']
  #allocation1 [shape = 'u32[144,128]{1,0:T(1,128)}', space=vmem, size = 0x12000, scoped, tag = 'internal scratch']
  %s0 = inlined_call_operand.vmem [shape: f32[16,8], index: 0, kind: input, shape index: {}]
  %s1 = inlined_call_operand.vmem [shape: f32[8,32], index: 1, kind: input, shape index: {}]
  %s2 = inlined_call_operand.vmem [shape: f32[1,32], index: 2, kind: input, shape index: {}]
  %s3 = inlined_call_operand.vmem [shape: f32[16,32], index: 3, kind: output, shape index: {}]
  %s4 = sld [smem:[#allocation0]]
  $region45: #{time_series_transformer.18} parent=0
    _
  %s6 = ssub.s32 1, %s4
  %s7 = scalar_select 0, %s6, %s4
  loop: start=0, step=1, limit=4
  $region2: #{time_series_transformer.18} parent=0 // loop_pre_header
    _
  $region3: #{time_series_transformer.18} parent=0 // loop_header
    %s9 = sphi 0, %s13
    %p10 = scmp.ge.s32.totalorder %s9, 4
    %s19 = sphi 0, %s21
    %s22 = sphi 0, %s19
    %s23 = sphi 0, %s22
    %s39 = sphi 0, %s23
    %s43 = sphi 0, %s43
    %s45 = sphi 0, %s43
    %s46 = sphi 0, %s45
    %s60 = sphi 0, %s46
    %s64 = sphi 0, %s64
    %s66 = sphi 0, %s64
    %s67 = sphi 0, %s66
    %s81 = sphi 0, %s67
    %s87 = sphi 0, %s89
    %s90 = sphi 0, %s87
    %s91 = sphi 0, %s90
    %s107 = sphi 0, %s91
  $region4: #{time_series_transformer.18} parent=0 // loop_header_branch
    %12 = sbr.rel (%p10) target = $region8
  $region5: #{time_series_transformer.18} parent=0 // loop_body
    %s14 = ssub.s32 %s9, 1
    %s15 = ssub.s32 %s9, 2
    %s16 = sadd.s32 %s9, 1
    %s17 = ssub.s32 %s9, %s16
    %p18 = scmp.eq.s32.totalorder %s17, 0
    %s20 = sadd.s32 %s19, 1
    %s21 = scalar_select %p18, %s19, %s20
    %p24 = pneg %p18
    %p25 = scmp.eq.s32.totalorder %s9, 1
    %p26 = por %p24, %p25
    %p27 = scmp.ne.s32.totalorder %s19, %s22
    %p28 = scmp.eq.s32.totalorder %s9, 0
    %p29 = por %p27, %p28
    %p30 = scmp.ne.s32.totalorder %s19, %s22
    %p31 = scmp.eq.s32.totalorder %s14, 1
    %p32 = por %p30, %p31
    %p33 = scmp.ne.s32.totalorder %s22, %s23
    %p34 = scmp.eq.s32.totalorder %s14, 0
    %p35 = por %p33, %p34
    %p36 = scmp.ne.s32.totalorder %s22, %s23
    %p37 = scmp.eq.s32.totalorder %s15, 1
    %p38 = por %p36, %p37
    %p40 = scmp.ne.s32.totalorder %s23, %s39
    %p41 = scmp.eq.s32.totalorder %s15, 0
    %p42 = por %p40, %p41
    %s44 = sadd.s32 %s43, 1
    %p47 = scmp.eq.s32.totalorder %s9, 1
    %p48 = scmp.ne.s32.totalorder %s43, %s45
    %p49 = scmp.eq.s32.totalorder %s9, 0
    %p50 = por %p48, %p49
    %p51 = scmp.ne.s32.totalorder %s43, %s45
    %p52 = scmp.eq.s32.totalorder %s14, 1
    %p53 = por %p51, %p52
    %p54 = scmp.ne.s32.totalorder %s45, %s46
    %p55 = scmp.eq.s32.totalorder %s14, 0
    %p56 = por %p54, %p55
    %p57 = scmp.ne.s32.totalorder %s45, %s46
    %p58 = scmp.eq.s32.totalorder %s15, 1
    %p59 = por %p57, %p58
    %p61 = scmp.ne.s32.totalorder %s46, %s60
    %p62 = scmp.eq.s32.totalorder %s15, 0
    %p63 = por %p61, %p62
    %s65 = sadd.s32 %s64, 1
    %p68 = scmp.eq.s32.totalorder %s9, 1
    %p69 = scmp.ne.s32.totalorder %s64, %s66
    %p70 = scmp.eq.s32.totalorder %s9, 0
    %p71 = por %p69, %p70
    %p72 = scmp.ne.s32.totalorder %s64, %s66
    %p73 = scmp.eq.s32.totalorder %s14, 1
    %p74 = por %p72, %p73
    %p75 = scmp.ne.s32.totalorder %s66, %s67
    %p76 = scmp.eq.s32.totalorder %s14, 0
    %p77 = por %p75, %p76
    %p78 = scmp.ne.s32.totalorder %s66, %s67
    %p79 = scmp.eq.s32.totalorder %s15, 1
    %p80 = por %p78, %p79
    %p82 = scmp.ne.s32.totalorder %s67, %s81
    %p83 = scmp.eq.s32.totalorder %s15, 0
    %p84 = por %p82, %p83
    %s85 = ssub.s32 %s9, %s16
    %p86 = scmp.eq.s32.totalorder %s85, 0
    %s88 = sadd.s32 %s87, 1
    %s89 = scalar_select %p86, %s87, %s88
    %p92 = pneg %p86
    %p93 = scmp.eq.s32.totalorder %s9, 1
    %p94 = por %p92, %p93
    %p95 = scmp.ne.s32.totalorder %s87, %s90
    %p96 = scmp.eq.s32.totalorder %s9, 0
    %p97 = por %p95, %p96
    %p98 = scmp.ne.s32.totalorder %s87, %s90
    %p99 = scmp.eq.s32.totalorder %s14, 1
    %p100 = por %p98, %p99
    %p101 = scmp.ne.s32.totalorder %s90, %s91
    %p102 = scmp.eq.s32.totalorder %s14, 0
    %p103 = por %p101, %p102
    %p104 = scmp.ne.s32.totalorder %s90, %s91
    %p105 = scmp.eq.s32.totalorder %s15, 1
    %p106 = por %p104, %p105
    %p108 = scmp.ne.s32.totalorder %s91, %s107
    %p109 = scmp.eq.s32.totalorder %s15, 0
    %p110 = por %p108, %p109
    %p111 = scmp.le.s32.totalorder 1, %s9
    %p112 = scmp.lt.s32.totalorder %s9, 3
    %p113 = pnand %p111, %p112
    %p114 = pneg %p113
    // Predicated region
    $region9: #{time_series_transformer.18} parent=5 // pred_check
      _
    $region10: #{time_series_transformer.18} parent=5 // pred_check_branch
      %116 = sbr.rel (%p113) target = $region12
    $region11: #{time_series_transformer.18} parent=5 // pred_region
      %s117 = ssub.s32 %s9, 1
      // Predicated region
      $region13: #{time_series_transformer.18} parent=11 // pred_check
        %p118 = pneg %p56
      $region14: #{time_series_transformer.18} parent=11 // pred_check_branch
        %120 = sbr.rel (%p118) target = $region16
      $region15: #{time_series_transformer.18} parent=11 // pred_region
        _
      $region16: #{time_series_transformer.18} parent=11 // pred_fallthru
        _
      // Predicated region
      $region17: #{time_series_transformer.18} parent=11 // pred_check
        %p121 = pneg %p77
      $region18: #{time_series_transformer.18} parent=11 // pred_check_branch
        %123 = sbr.rel (%p121) target = $region20
      $region19: #{time_series_transformer.18} parent=11 // pred_region
        _
      $region20: #{time_series_transformer.18} parent=11 // pred_fallthru
        _
    $region12: #{time_series_transformer.18} parent=5 // pred_fallthru
      _
    %p124 = scmp.lt.s32.totalorder %s9, 2
    // Predicated region
    $region21: #{time_series_transformer.18} parent=5 // pred_check
      %p125 = pneg %p124
    $region22: #{time_series_transformer.18} parent=5 // pred_check_branch
      %127 = sbr.rel (%p125) target = $region24
    $region23: #{time_series_transformer.18} parent=5 // pred_region
      // Predicated region
      $region25: #{time_series_transformer.18} parent=23 // pred_check
        %p128 = pneg %p29
      $region26: #{time_series_transformer.18} parent=23 // pred_check_branch
        %130 = sbr.rel (%p128) target = $region28
      $region27: #{time_series_transformer.18} parent=23 // pred_region
        %p131 = scmp.lt.s32.totalorder %s9, 1
        %s132 = scalar_select %p131, %s9, 1
        %s133 = smul.addr %s132, 8
        %s134 = scalar_lea.vmem %s0, %s133
      $region28: #{time_series_transformer.18} parent=23 // pred_fallthru
        _
    $region24: #{time_series_transformer.18} parent=5 // pred_fallthru
      _
    %p135 = scmp.le.s32.totalorder 1, %s9
    %p136 = scmp.lt.s32.totalorder %s9, 3
    %p137 = pnand %p135, %p136
    %p138 = pneg %p137
    // Predicated region
    $region29: #{time_series_transformer.18} parent=5 // pred_check
      _
    $region30: #{time_series_transformer.18} parent=5 // pred_check_branch
      %140 = sbr.rel (%p137) target = $region32
    $region31: #{time_series_transformer.18} parent=5 // pred_region
      %s141 = ssub.s32 %s9, 1
      %p142 = scmp.lt.s32.totalorder %s14, 1
      %s143 = scalar_select %p142, %s14, 1
      %s144 = smul.addr %s143, 8
      %s145 = scalar_lea.vmem %s0, %s144
      %p146 = pneg %p35
      %p147 = pneg %p32
      %p148 = pneg %p56
      %p149 = pneg %p53
      %p150 = pneg %p77
      %p151 = pneg %p74
      %p152 = pneg %p103
      %p153 = pneg %p100
      %p154 = scmp.lt.s32.totalorder %s14, 1
      %s155 = scalar_select %p154, %s14, 1
      %s156 = smul.addr %s155, 8
      %s157 = scalar_lea.vmem %s3, %s156
      %p158 = scmp.lt.s32.totalorder %s14, 1
      %s159 = scalar_select %p158, %s14, 1
      %s160 = smul.addr %s159, 8
      %s161 = scalar_lea.vmem %s0, %s160
      %p162 = scmp.lt.s32.totalorder %s14, 1
      %s163 = scalar_select %p162, %s14, 1
      %s164 = smul.addr %s163, 8
      %s165 = scalar_lea.vmem %s3, %s164
      %v166 = vld [vmem:[%s161] sm:$0xff]
      %v167 = vld [vmem:[%s1] sm:$0xff]
      %v168 = vld [vmem:[%s2] sm:$0x1]
      %v170 = vlaneseq
      %v171 = vshrl.u32 %v170, 7
      %v172 = vsub.s32 0, %v171
      %v173 = vrot.slane %v168, %v172
      %vm175 = vcmask 64512
      %v177 = vsel %vm175, %v166, 0
      %179 = vmatprep.subr.mxu0 0.0
      %180 = vmatpush1.msra.mxu0 %v167
      %181 = vmatprep.subr.mxu0 0.0
      %182 = vmatpush1.msra.mxu0 0.0
      %183 = vmatprep.subr.mxu0 0.0
      %184 = vmatpush1.msra.mxu0 0.0
      %185 = vmatprep.subr.mxu0 0.0
      %186 = vmatpush1.msra.mxu0 0.0
      %187 = vmatprep.subr.mxu0 0.0
      %188 = vmatpush1.msra.mxu0 0.0
      %189 = vmatprep.subr.mxu0 0.0
      %190 = vmatpush1.msra.mxu0 0.0
      %191 = vmatprep.subr.mxu0 0.0
      %192 = vmatpush1.msra.mxu0 0.0
      %193 = vmatprep.subr.mxu0 0.0
      %194 = vmatpush1.msra.mxu0 0.0
      %195 = vmatprep.subr.mxu0 0.0
      %196 = vmatpush1.msra.mxu0 0.0
      %197 = vmatprep.subr.mxu0 0.0
      %198 = vmatpush1.msra.mxu0 0.0
      %199 = vmatprep.subr.mxu0 0.0
      %200 = vmatpush1.msra.mxu0 0.0
      %201 = vmatprep.subr.mxu0 0.0
      %202 = vmatpush1.msra.mxu0 0.0
      %203 = vmatprep.subr.mxu0 0.0
      %204 = vmatpush1.msra.mxu0 0.0
      %205 = vmatprep.subr.mxu0 0.0
      %206 = vmatpush1.msra.mxu0 0.0
      %207 = vmatprep.subr.mxu0 0.0
      %208 = vmatpush1.msra.mxu0 0.0
      %209 = vmatprep.subr.mxu0 0.0
      %210 = vmatpush1.msra.mxu0 0.0
      %211 = vmatprep.subr.mxu0 0.0
      %212 = vmatpush1.msra.mxu0 0.0
      %213 = vmatprep.subr.mxu0 0.0
      %214 = vmatpush1.msra.mxu0 0.0
      %215 = vmatprep.subr.mxu0 0.0
      %216 = vmatpush1.msra.mxu0 0.0
      %217 = vmatprep.subr.mxu0 0.0
      %218 = vmatpush1.msra.mxu0 0.0
      %219 = vmatprep.subr.mxu0 0.0
      %220 = vmatpush1.msra.mxu0 0.0
      %221 = vmatprep.subr.mxu0 0.0
      %222 = vmatpush1.msra.mxu0 0.0
      %223 = vmatprep.subr.mxu0 0.0
      %224 = vmatpush1.msra.mxu0 0.0
      %225 = vmatprep.subr.mxu0 0.0
      %226 = vmatpush1.msra.mxu0 0.0
      %227 = vmatprep.subr.mxu0 0.0
      %228 = vmatpush1.msra.mxu0 0.0
      %229 = vmatprep.subr.mxu0 0.0
      %230 = vmatpush1.msra.mxu0 0.0
      %231 = vmatprep.subr.mxu0 0.0
      %232 = vmatpush1.msra.mxu0 0.0
      %233 = vmatprep.subr.mxu0 0.0
      %234 = vmatpush1.msra.mxu0 0.0
      %235 = vmatprep.subr.mxu0 0.0
      %236 = vmatpush1.msra.mxu0 0.0
      %237 = vmatprep.subr.mxu0 0.0
      %238 = vmatpush1.msra.mxu0 0.0
      %239 = vmatprep.subr.mxu0 0.0
      %240 = vmatpush1.msra.mxu0 0.0
      %241 = vmatprep.subr.mxu0 0.0
      %242 = vmatpush1.msra.mxu0 0.0
      %243 = vmatprep.mubr.f32.mxu0 0.0
      %244 = vmatmul.mubr.f32.gmra.mrb[0].mxu0 %v177
      %v245 = vpop.f32.mrb[0].mxu0
      %v246 = vadd.f32 %v173, %v245
      %v247 = vpop.f32.mrb[0].mxu0
      %248 = vdwg.mxu0
      %vm249 = vcmask 261120
      %250 = vst.msk [vmem:[%s165] sm:$0xff] %vm249, %v246
      %p251 = scmp.lt.s32.totalorder %s14, 1
      %s252 = scalar_select %p251, %s14, 1
      %s253 = smul.addr %s252, 8
      %s254 = scalar_lea.vmem %s3, %s253
      // Predicated region
      $region33: #{time_series_transformer.18} parent=31 // pred_check
        %p255 = pneg %p100
      $region34: #{time_series_transformer.18} parent=31 // pred_check_branch
        %257 = sbr.rel (%p255) target = $region36
      $region35: #{time_series_transformer.18} parent=31 // pred_region
        _
      $region36: #{time_series_transformer.18} parent=31 // pred_fallthru
        _
    $region32: #{time_series_transformer.18} parent=5 // pred_fallthru
      _
    %p258 = scmp.le.s32.totalorder 2, %s9
    // Predicated region
    $region37: #{time_series_transformer.18} parent=5 // pred_check
      %p259 = pneg %p258
    $region38: #{time_series_transformer.18} parent=5 // pred_check_branch
      %261 = sbr.rel (%p259) target = $region40
    $region39: #{time_series_transformer.18} parent=5 // pred_region
      %s262 = ssub.s32 %s9, 2
      // Predicated region
      $region41: #{time_series_transformer.18} parent=39 // pred_check
        %p263 = pneg %p106
      $region42: #{time_series_transformer.18} parent=39 // pred_check_branch
        %265 = sbr.rel (%p263) target = $region44
      $region43: #{time_series_transformer.18} parent=39 // pred_region
        %p266 = scmp.lt.s32.totalorder %s15, 1
        %s267 = scalar_select %p266, %s15, 1
        %s268 = smul.addr %s267, 8
        %s269 = scalar_lea.vmem %s3, %s268
      $region44: #{time_series_transformer.18} parent=39 // pred_fallthru
        _
    $region40: #{time_series_transformer.18} parent=5 // pred_fallthru
      _
  $region6: #{time_series_transformer.18} parent=0 // loop_footer
    %s13 = sadd.s32 1, %s9
  $region7: #{time_series_transformer.18} parent=0 // loop_footer_branch
    %8 = sbr.rel target = $region3
  $region8: #{time_series_transformer.18} parent=0 // loop_exit
    _

// kernel: time_series_transformer.25
$region0: #{time_series_transformer.25}
  #allocation0 [shape = 'u32[]', space=smem, size = 0x4, offset = 0x4, fixed_abs, tag = 'smem constant byte address 0x4 - core index']
  #allocation1 [shape = 'u32[144,128]{1,0:T(1,128)}', space=vmem, size = 0x12000, scoped, tag = 'internal scratch']
  #allocation2 [shape = 'f32[1,1]{1,0:T(1,128)S(1)}', space=vmem, size = 0x200, scoped, tag = 'scoped memory for time_series_transformer.25']
  %s0 = inlined_call_operand.vmem [shape: f32[16,32], index: 0, kind: input, shape index: {}]
  %s1 = inlined_call_operand.vmem [shape: f32[32,1], index: 1, kind: input, shape index: {}]
  %s2 = inlined_call_operand.<no memory space> [shape: f32[1,1], index: 2, kind: input, shape index: {}]
  %s3 = inlined_call_operand.vmem [shape: f32[16,1], index: 3, kind: output, shape index: {}]
  %s4 = sld [smem:[#allocation0]]
  $region45: #{time_series_transformer.25} parent=0
    _
  %s6 = ssub.s32 1, %s4
  %s7 = scalar_select 0, %s6, %s4
  %v8 = vstv %s2
  %9 = vst [vmem:[#allocation2] sm:$0x1] %v8
  loop: start=0, step=1, limit=4
  $region2: #{time_series_transformer.25} parent=0 // loop_pre_header
    _
  $region3: #{time_series_transformer.25} parent=0 // loop_header
    %s11 = sphi 0, %s15
    %p12 = scmp.ge.s32.totalorder %s11, 4
    %s21 = sphi 0, %s23
    %s24 = sphi 0, %s21
    %s25 = sphi 0, %s24
    %s41 = sphi 0, %s25
    %s45 = sphi 0, %s45
    %s47 = sphi 0, %s45
    %s48 = sphi 0, %s47
    %s62 = sphi 0, %s48
    %s66 = sphi 0, %s66
    %s68 = sphi 0, %s66
    %s69 = sphi 0, %s68
    %s83 = sphi 0, %s69
    %s89 = sphi 0, %s91
    %s92 = sphi 0, %s89
    %s93 = sphi 0, %s92
    %s109 = sphi 0, %s93
  $region4: #{time_series_transformer.25} parent=0 // loop_header_branch
    %14 = sbr.rel (%p12) target = $region8
  $region5: #{time_series_transformer.25} parent=0 // loop_body
    %s16 = ssub.s32 %s11, 1
    %s17 = ssub.s32 %s11, 2
    %s18 = sadd.s32 %s11, 1
    %s19 = ssub.s32 %s11, %s18
    %p20 = scmp.eq.s32.totalorder %s19, 0
    %s22 = sadd.s32 %s21, 1
    %s23 = scalar_select %p20, %s21, %s22
    %p26 = pneg %p20
    %p27 = scmp.eq.s32.totalorder %s11, 1
    %p28 = por %p26, %p27
    %p29 = scmp.ne.s32.totalorder %s21, %s24
    %p30 = scmp.eq.s32.totalorder %s11, 0
    %p31 = por %p29, %p30
    %p32 = scmp.ne.s32.totalorder %s21, %s24
    %p33 = scmp.eq.s32.totalorder %s16, 1
    %p34 = por %p32, %p33
    %p35 = scmp.ne.s32.totalorder %s24, %s25
    %p36 = scmp.eq.s32.totalorder %s16, 0
    %p37 = por %p35, %p36
    %p38 = scmp.ne.s32.totalorder %s24, %s25
    %p39 = scmp.eq.s32.totalorder %s17, 1
    %p40 = por %p38, %p39
    %p42 = scmp.ne.s32.totalorder %s25, %s41
    %p43 = scmp.eq.s32.totalorder %s17, 0
    %p44 = por %p42, %p43
    %s46 = sadd.s32 %s45, 1
    %p49 = scmp.eq.s32.totalorder %s11, 1
    %p50 = scmp.ne.s32.totalorder %s45, %s47
    %p51 = scmp.eq.s32.totalorder %s11, 0
    %p52 = por %p50, %p51
    %p53 = scmp.ne.s32.totalorder %s45, %s47
    %p54 = scmp.eq.s32.totalorder %s16, 1
    %p55 = por %p53, %p54
    %p56 = scmp.ne.s32.totalorder %s47, %s48
    %p57 = scmp.eq.s32.totalorder %s16, 0
    %p58 = por %p56, %p57
    %p59 = scmp.ne.s32.totalorder %s47, %s48
    %p60 = scmp.eq.s32.totalorder %s17, 1
    %p61 = por %p59, %p60
    %p63 = scmp.ne.s32.totalorder %s48, %s62
    %p64 = scmp.eq.s32.totalorder %s17, 0
    %p65 = por %p63, %p64
    %s67 = sadd.s32 %s66, 1
    %p70 = scmp.eq.s32.totalorder %s11, 1
    %p71 = scmp.ne.s32.totalorder %s66, %s68
    %p72 = scmp.eq.s32.totalorder %s11, 0
    %p73 = por %p71, %p72
    %p74 = scmp.ne.s32.totalorder %s66, %s68
    %p75 = scmp.eq.s32.totalorder %s16, 1
    %p76 = por %p74, %p75
    %p77 = scmp.ne.s32.totalorder %s68, %s69
    %p78 = scmp.eq.s32.totalorder %s16, 0
    %p79 = por %p77, %p78
    %p80 = scmp.ne.s32.totalorder %s68, %s69
    %p81 = scmp.eq.s32.totalorder %s17, 1
    %p82 = por %p80, %p81
    %p84 = scmp.ne.s32.totalorder %s69, %s83
    %p85 = scmp.eq.s32.totalorder %s17, 0
    %p86 = por %p84, %p85
    %s87 = ssub.s32 %s11, %s18
    %p88 = scmp.eq.s32.totalorder %s87, 0
    %s90 = sadd.s32 %s89, 1
    %s91 = scalar_select %p88, %s89, %s90
    %p94 = pneg %p88
    %p95 = scmp.eq.s32.totalorder %s11, 1
    %p96 = por %p94, %p95
    %p97 = scmp.ne.s32.totalorder %s89, %s92
    %p98 = scmp.eq.s32.totalorder %s11, 0
    %p99 = por %p97, %p98
    %p100 = scmp.ne.s32.totalorder %s89, %s92
    %p101 = scmp.eq.s32.totalorder %s16, 1
    %p102 = por %p100, %p101
    %p103 = scmp.ne.s32.totalorder %s92, %s93
    %p104 = scmp.eq.s32.totalorder %s16, 0
    %p105 = por %p103, %p104
    %p106 = scmp.ne.s32.totalorder %s92, %s93
    %p107 = scmp.eq.s32.totalorder %s17, 1
    %p108 = por %p106, %p107
    %p110 = scmp.ne.s32.totalorder %s93, %s109
    %p111 = scmp.eq.s32.totalorder %s17, 0
    %p112 = por %p110, %p111
    %p113 = scmp.le.s32.totalorder 1, %s11
    %p114 = scmp.lt.s32.totalorder %s11, 3
    %p115 = pnand %p113, %p114
    %p116 = pneg %p115
    // Predicated region
    $region9: #{time_series_transformer.25} parent=5 // pred_check
      _
    $region10: #{time_series_transformer.25} parent=5 // pred_check_branch
      %118 = sbr.rel (%p115) target = $region12
    $region11: #{time_series_transformer.25} parent=5 // pred_region
      %s119 = ssub.s32 %s11, 1
      // Predicated region
      $region13: #{time_series_transformer.25} parent=11 // pred_check
        %p120 = pneg %p58
      $region14: #{time_series_transformer.25} parent=11 // pred_check_branch
        %122 = sbr.rel (%p120) target = $region16
      $region15: #{time_series_transformer.25} parent=11 // pred_region
        _
      $region16: #{time_series_transformer.25} parent=11 // pred_fallthru
        _
      // Predicated region
      $region17: #{time_series_transformer.25} parent=11 // pred_check
        %p123 = pneg %p79
      $region18: #{time_series_transformer.25} parent=11 // pred_check_branch
        %125 = sbr.rel (%p123) target = $region20
      $region19: #{time_series_transformer.25} parent=11 // pred_region
        _
      $region20: #{time_series_transformer.25} parent=11 // pred_fallthru
        _
    $region12: #{time_series_transformer.25} parent=5 // pred_fallthru
      _
    %p126 = scmp.lt.s32.totalorder %s11, 2
    // Predicated region
    $region21: #{time_series_transformer.25} parent=5 // pred_check
      %p127 = pneg %p126
    $region22: #{time_series_transformer.25} parent=5 // pred_check_branch
      %129 = sbr.rel (%p127) target = $region24
    $region23: #{time_series_transformer.25} parent=5 // pred_region
      // Predicated region
      $region25: #{time_series_transformer.25} parent=23 // pred_check
        %p130 = pneg %p31
      $region26: #{time_series_transformer.25} parent=23 // pred_check_branch
        %132 = sbr.rel (%p130) target = $region28
      $region27: #{time_series_transformer.25} parent=23 // pred_region
        %p133 = scmp.lt.s32.totalorder %s11, 1
        %s134 = scalar_select %p133, %s11, 1
        %s135 = smul.addr %s134, 8
        %s136 = scalar_lea.vmem %s0, %s135
      $region28: #{time_series_transformer.25} parent=23 // pred_fallthru
        _
    $region24: #{time_series_transformer.25} parent=5 // pred_fallthru
      _
    %p137 = scmp.le.s32.totalorder 1, %s11
    %p138 = scmp.lt.s32.totalorder %s11, 3
    %p139 = pnand %p137, %p138
    %p140 = pneg %p139
    // Predicated region
    $region29: #{time_series_transformer.25} parent=5 // pred_check
      _
    $region30: #{time_series_transformer.25} parent=5 // pred_check_branch
      %142 = sbr.rel (%p139) target = $region32
    $region31: #{time_series_transformer.25} parent=5 // pred_region
      %s143 = ssub.s32 %s11, 1
      %p144 = scmp.lt.s32.totalorder %s16, 1
      %s145 = scalar_select %p144, %s16, 1
      %s146 = smul.addr %s145, 8
      %s147 = scalar_lea.vmem %s0, %s146
      %p148 = pneg %p37
      %p149 = pneg %p34
      %p150 = pneg %p58
      %p151 = pneg %p55
      %p152 = pneg %p79
      %p153 = pneg %p76
      %p154 = pneg %p105
      %p155 = pneg %p102
      %p156 = scmp.lt.s32.totalorder %s16, 1
      %s157 = scalar_select %p156, %s16, 1
      %s158 = smul.addr %s157, 8
      %s159 = scalar_lea.vmem %s3, %s158
      %p160 = scmp.lt.s32.totalorder %s16, 1
      %s161 = scalar_select %p160, %s16, 1
      %s162 = smul.addr %s161, 8
      %s163 = scalar_lea.vmem %s0, %s162
      %p164 = scmp.lt.s32.totalorder %s16, 1
      %s165 = scalar_select %p164, %s16, 1
      %s166 = smul.addr %s165, 8
      %s167 = scalar_lea.vmem %s3, %s166
      %v168 = vld [vmem:[%s163] sm:$0xff]
      %v169 = vld [vmem:[%s1] sm:$0xff]
      %v170 = vld [vmem:[%s1 + $0x8] sm:$0xff]
      %v171 = vld [vmem:[%s1 + $0x10] sm:$0xff]
      %v172 = vld [vmem:[%s1 + $0x18] sm:$0xff]
      %v173 = vld [vmem:[#allocation2] sm:$0x1]
      %v175 = vlaneseq
      %v176 = vshrl.u32 %v175, 7
      %v177 = vsub.s32 0, %v176
      %v178 = vrot.slane %v173, %v177
      %vm180 = vcmask 261120
      %v182 = vsel %vm180, %v168, 0
      %184 = vmatprep.subr.mxu0 0.0
      %185 = vmatpush1.msra.mxu0 %v169
      %186 = vmatprep.subr.mxu0 0.0
      %187 = vmatpush1.msra.mxu0 %v170
      %188 = vmatprep.subr.mxu0 0.0
      %189 = vmatpush1.msra.mxu0 %v171
      %190 = vmatprep.subr.mxu0 0.0
      %191 = vmatpush1.msra.mxu0 %v172
      %192 = vmatprep.subr.mxu0 0.0
      %193 = vmatpush1.msra.mxu0 0.0
      %194 = vmatprep.subr.mxu0 0.0
      %195 = vmatpush1.msra.mxu0 0.0
      %196 = vmatprep.subr.mxu0 0.0
      %197 = vmatpush1.msra.mxu0 0.0
      %198 = vmatprep.subr.mxu0 0.0
      %199 = vmatpush1.msra.mxu0 0.0
      %200 = vmatprep.subr.mxu0 0.0
      %201 = vmatpush1.msra.mxu0 0.0
      %202 = vmatprep.subr.mxu0 0.0
      %203 = vmatpush1.msra.mxu0 0.0
      %204 = vmatprep.subr.mxu0 0.0
      %205 = vmatpush1.msra.mxu0 0.0
      %206 = vmatprep.subr.mxu0 0.0
      %207 = vmatpush1.msra.mxu0 0.0
      %208 = vmatprep.subr.mxu0 0.0
      %209 = vmatpush1.msra.mxu0 0.0
      %210 = vmatprep.subr.mxu0 0.0
      %211 = vmatpush1.msra.mxu0 0.0
      %212 = vmatprep.subr.mxu0 0.0
      %213 = vmatpush1.msra.mxu0 0.0
      %214 = vmatprep.subr.mxu0 0.0
      %215 = vmatpush1.msra.mxu0 0.0
      %216 = vmatprep.subr.mxu0 0.0
      %217 = vmatpush1.msra.mxu0 0.0
      %218 = vmatprep.subr.mxu0 0.0
      %219 = vmatpush1.msra.mxu0 0.0
      %220 = vmatprep.subr.mxu0 0.0
      %221 = vmatpush1.msra.mxu0 0.0
      %222 = vmatprep.subr.mxu0 0.0
      %223 = vmatpush1.msra.mxu0 0.0
      %224 = vmatprep.subr.mxu0 0.0
      %225 = vmatpush1.msra.mxu0 0.0
      %226 = vmatprep.subr.mxu0 0.0
      %227 = vmatpush1.msra.mxu0 0.0
      %228 = vmatprep.subr.mxu0 0.0
      %229 = vmatpush1.msra.mxu0 0.0
      %230 = vmatprep.subr.mxu0 0.0
      %231 = vmatpush1.msra.mxu0 0.0
      %232 = vmatprep.subr.mxu0 0.0
      %233 = vmatpush1.msra.mxu0 0.0
      %234 = vmatprep.subr.mxu0 0.0
      %235 = vmatpush1.msra.mxu0 0.0
      %236 = vmatprep.subr.mxu0 0.0
      %237 = vmatpush1.msra.mxu0 0.0
      %238 = vmatprep.subr.mxu0 0.0
      %239 = vmatpush1.msra.mxu0 0.0
      %240 = vmatprep.subr.mxu0 0.0
      %241 = vmatpush1.msra.mxu0 0.0
      %242 = vmatprep.subr.mxu0 0.0
      %243 = vmatpush1.msra.mxu0 0.0
      %244 = vmatprep.subr.mxu0 0.0
      %245 = vmatpush1.msra.mxu0 0.0
      %246 = vmatprep.subr.mxu0 0.0
      %247 = vmatpush1.msra.mxu0 0.0
      %248 = vmatprep.mubr.f32.mxu0 0.0
      %249 = vmatmul.mubr.f32.gmra.mrb[0].mxu0 %v182
      %v250 = vpop.f32.mrb[0].mxu0
      %v251 = vadd.f32 %v178, %v250
      %v252 = vpop.f32.mrb[0].mxu0
      %253 = vdwg.mxu0
      %vm254 = vcmask 7168
      %255 = vst.msk [vmem:[%s167] sm:$0xff] %vm254, %v251
      %p256 = scmp.lt.s32.totalorder %s16, 1
      %s257 = scalar_select %p256, %s16, 1
      %s258 = smul.addr %s257, 8
      %s259 = scalar_lea.vmem %s3, %s258
      // Predicated region
      $region33: #{time_series_transformer.25} parent=31 // pred_check
        %p260 = pneg %p102
      $region34: #{time_series_transformer.25} parent=31 // pred_check_branch
        %262 = sbr.rel (%p260) target = $region36
      $region35: #{time_series_transformer.25} parent=31 // pred_region
        _
      $region36: #{time_series_transformer.25} parent=31 // pred_fallthru
        _
    $region32: #{time_series_transformer.25} parent=5 // pred_fallthru
      _
    %p263 = scmp.le.s32.totalorder 2, %s11
    // Predicated region
    $region37: #{time_series_transformer.25} parent=5 // pred_check
      %p264 = pneg %p263
    $region38: #{time_series_transformer.25} parent=5 // pred_check_branch
      %266 = sbr.rel (%p264) target = $region40
    $region39: #{time_series_transformer.25} parent=5 // pred_region
      %s267 = ssub.s32 %s11, 2
      // Predicated region
      $region41: #{time_series_transformer.25} parent=39 // pred_check
        %p268 = pneg %p108
      $region42: #{time_series_transformer.25} parent=39 // pred_check_branch
        %270 = sbr.rel (%p268) target = $region44
      $region43: #{time_series_transformer.25} parent=39 // pred_region
        %p271 = scmp.lt.s32.totalorder %s17, 1
        %s272 = scalar_select %p271, %s17, 1
        %s273 = smul.addr %s272, 8
        %s274 = scalar_lea.vmem %s3, %s273
      $region44: #{time_series_transformer.25} parent=39 // pred_fallthru
        _
    $region40: #{time_series_transformer.25} parent=5 // pred_fallthru
      _
  $region6: #{time_series_transformer.25} parent=0 // loop_footer
    %s15 = sadd.s32 1, %s11
  $region7: #{time_series_transformer.25} parent=0 // loop_footer_branch
    %10 = sbr.rel target = $region3
  $region8: #{time_series_transformer.25} parent=0 // loop_exit
    _

// kernel: time_series_transformer.19
$region0: #{time_series_transformer.19}
  #allocation0 [shape = 'u32[]', space=smem, size = 0x4, offset = 0x4, fixed_abs, tag = 'smem constant byte address 0x4 - core index']
  #allocation1 [shape = 'u32[144,128]{1,0:T(1,128)}', space=vmem, size = 0x12000, scoped, tag = 'internal scratch']
  %s0 = inlined_call_operand.vmem [shape: f32[2,8,32], index: 0, kind: input, shape index: {}]
  %s1 = inlined_call_operand.vmem [shape: f32[32,96], index: 1, kind: input, shape index: {}]
  %s2 = inlined_call_operand.vmem [shape: f32[1,96], index: 2, kind: input, shape index: {}]
  %s3 = inlined_call_operand.vmem [shape: f32[32,32], index: 3, kind: input, shape index: {}]
  %s4 = inlined_call_operand.vmem [shape: f32[1,32], index: 4, kind: input, shape index: {}]
  %s5 = inlined_call_operand.vmem [shape: f32[8,8], index: 5, kind: input, shape index: {}]
  %s6 = inlined_call_operand.vmem [shape: f32[1,32], index: 6, kind: input, shape index: {}]
  %s7 = inlined_call_operand.vmem [shape: f32[1,32], index: 7, kind: input, shape index: {}]
  %s8 = inlined_call_operand.vmem [shape: f32[2,8,32], index: 8, kind: output, shape index: {}]
  %s9 = sld [smem:[#allocation0]]
  $region65: #{time_series_transformer.19} parent=0
    _
  %s11 = ssub.s32 1, %s9
  %s12 = scalar_select 0, %s11, %s9
  loop: start=0, step=1, limit=4
  $region2: #{time_series_transformer.19} parent=0 // loop_pre_header
    _
  $region3: #{time_series_transformer.19} parent=0 // loop_header
    %s14 = sphi 0, %s18
    %p15 = scmp.ge.s32.totalorder %s14, 4
    %s24 = sphi 0, %s26
    %s27 = sphi 0, %s24
    %s28 = sphi 0, %s27
    %s44 = sphi 0, %s28
    %s48 = sphi 0, %s48
    %s50 = sphi 0, %s48
    %s51 = sphi 0, %s50
    %s65 = sphi 0, %s51
    %s69 = sphi 0, %s69
    %s71 = sphi 0, %s69
    %s72 = sphi 0, %s71
    %s86 = sphi 0, %s72
    %s90 = sphi 0, %s90
    %s92 = sphi 0, %s90
    %s93 = sphi 0, %s92
    %s107 = sphi 0, %s93
    %s111 = sphi 0, %s111
    %s113 = sphi 0, %s111
    %s114 = sphi 0, %s113
    %s128 = sphi 0, %s114
    %s132 = sphi 0, %s132
    %s134 = sphi 0, %s132
    %s135 = sphi 0, %s134
    %s149 = sphi 0, %s135
    %s153 = sphi 0, %s153
    %s155 = sphi 0, %s153
    %s156 = sphi 0, %s155
    %s170 = sphi 0, %s156
    %s174 = sphi 0, %s174
    %s176 = sphi 0, %s174
    %s177 = sphi 0, %s176
    %s191 = sphi 0, %s177
    %s197 = sphi 0, %s199
    %s200 = sphi 0, %s197
    %s201 = sphi 0, %s200
    %s217 = sphi 0, %s201
  $region4: #{time_series_transformer.19} parent=0 // loop_header_branch
    %17 = sbr.rel (%p15) target = $region8
  $region5: #{time_series_transformer.19} parent=0 // loop_body
    %s19 = ssub.s32 %s14, 1
    %s20 = ssub.s32 %s14, 2
    %s21 = sadd.s32 %s14, 1
    %s22 = ssub.s32 %s14, %s21
    %p23 = scmp.eq.s32.totalorder %s22, 0
    %s25 = sadd.s32 %s24, 1
    %s26 = scalar_select %p23, %s24, %s25
    %p29 = pneg %p23
    %p30 = scmp.eq.s32.totalorder %s14, 1
    %p31 = por %p29, %p30
    %p32 = scmp.ne.s32.totalorder %s24, %s27
    %p33 = scmp.eq.s32.totalorder %s14, 0
    %p34 = por %p32, %p33
    %p35 = scmp.ne.s32.totalorder %s24, %s27
    %p36 = scmp.eq.s32.totalorder %s19, 1
    %p37 = por %p35, %p36
    %p38 = scmp.ne.s32.totalorder %s27, %s28
    %p39 = scmp.eq.s32.totalorder %s19, 0
    %p40 = por %p38, %p39
    %p41 = scmp.ne.s32.totalorder %s27, %s28
    %p42 = scmp.eq.s32.totalorder %s20, 1
    %p43 = por %p41, %p42
    %p45 = scmp.ne.s32.totalorder %s28, %s44
    %p46 = scmp.eq.s32.totalorder %s20, 0
    %p47 = por %p45, %p46
    %s49 = sadd.s32 %s48, 1
    %p52 = scmp.eq.s32.totalorder %s14, 1
    %p53 = scmp.ne.s32.totalorder %s48, %s50
    %p54 = scmp.eq.s32.totalorder %s14, 0
    %p55 = por %p53, %p54
    %p56 = scmp.ne.s32.totalorder %s48, %s50
    %p57 = scmp.eq.s32.totalorder %s19, 1
    %p58 = por %p56, %p57
    %p59 = scmp.ne.s32.totalorder %s50, %s51
    %p60 = scmp.eq.s32.totalorder %s19, 0
    %p61 = por %p59, %p60
    %p62 = scmp.ne.s32.totalorder %s50, %s51
    %p63 = scmp.eq.s32.totalorder %s20, 1
    %p64 = por %p62, %p63
    %p66 = scmp.ne.s32.totalorder %s51, %s65
    %p67 = scmp.eq.s32.totalorder %s20, 0
    %p68 = por %p66, %p67
    %s70 = sadd.s32 %s69, 1
    %p73 = scmp.eq.s32.totalorder %s14, 1
    %p74 = scmp.ne.s32.totalorder %s69, %s71
    %p75 = scmp.eq.s32.totalorder %s14, 0
    %p76 = por %p74, %p75
    %p77 = scmp.ne.s32.totalorder %s69, %s71
    %p78 = scmp.eq.s32.totalorder %s19, 1
    %p79 = por %p77, %p78
    %p80 = scmp.ne.s32.totalorder %s71, %s72
    %p81 = scmp.eq.s32.totalorder %s19, 0
    %p82 = por %p80, %p81
    %p83 = scmp.ne.s32.totalorder %s71, %s72
    %p84 = scmp.eq.s32.totalorder %s20, 1
    %p85 = por %p83, %p84
    %p87 = scmp.ne.s32.totalorder %s72, %s86
    %p88 = scmp.eq.s32.totalorder %s20, 0
    %p89 = por %p87, %p88
    %s91 = sadd.s32 %s90, 1
    %p94 = scmp.eq.s32.totalorder %s14, 1
    %p95 = scmp.ne.s32.totalorder %s90, %s92
    %p96 = scmp.eq.s32.totalorder %s14, 0
    %p97 = por %p95, %p96
    %p98 = scmp.ne.s32.totalorder %s90, %s92
    %p99 = scmp.eq.s32.totalorder %s19, 1
    %p100 = por %p98, %p99
    %p101 = scmp.ne.s32.totalorder %s92, %s93
    %p102 = scmp.eq.s32.totalorder %s19, 0
    %p103 = por %p101, %p102
    %p104 = scmp.ne.s32.totalorder %s92, %s93
    %p105 = scmp.eq.s32.totalorder %s20, 1
    %p106 = por %p104, %p105
    %p108 = scmp.ne.s32.totalorder %s93, %s107
    %p109 = scmp.eq.s32.totalorder %s20, 0
    %p110 = por %p108, %p109
    %s112 = sadd.s32 %s111, 1
    %p115 = scmp.eq.s32.totalorder %s14, 1
    %p116 = scmp.ne.s32.totalorder %s111, %s113
    %p117 = scmp.eq.s32.totalorder %s14, 0
    %p118 = por %p116, %p117
    %p119 = scmp.ne.s32.totalorder %s111, %s113
    %p120 = scmp.eq.s32.totalorder %s19, 1
    %p121 = por %p119, %p120
    %p122 = scmp.ne.s32.totalorder %s113, %s114
    %p123 = scmp.eq.s32.totalorder %s19, 0
    %p124 = por %p122, %p123
    %p125 = scmp.ne.s32.totalorder %s113, %s114
    %p126 = scmp.eq.s32.totalorder %s20, 1
    %p127 = por %p125, %p126
    %p129 = scmp.ne.s32.totalorder %s114, %s128
    %p130 = scmp.eq.s32.totalorder %s20, 0
    %p131 = por %p129, %p130
    %s133 = sadd.s32 %s132, 1
    %p136 = scmp.eq.s32.totalorder %s14, 1
    %p137 = scmp.ne.s32.totalorder %s132, %s134
    %p138 = scmp.eq.s32.totalorder %s14, 0
    %p139 = por %p137, %p138
    %p140 = scmp.ne.s32.totalorder %s132, %s134
    %p141 = scmp.eq.s32.totalorder %s19, 1
    %p142 = por %p140, %p141
    %p143 = scmp.ne.s32.totalorder %s134, %s135
    %p144 = scmp.eq.s32.totalorder %s19, 0
    %p145 = por %p143, %p144
    %p146 = scmp.ne.s32.totalorder %s134, %s135
    %p147 = scmp.eq.s32.totalorder %s20, 1
    %p148 = por %p146, %p147
    %p150 = scmp.ne.s32.totalorder %s135, %s149
    %p151 = scmp.eq.s32.totalorder %s20, 0
    %p152 = por %p150, %p151
    %s154 = sadd.s32 %s153, 1
    %p157 = scmp.eq.s32.totalorder %s14, 1
    %p158 = scmp.ne.s32.totalorder %s153, %s155
    %p159 = scmp.eq.s32.totalorder %s14, 0
    %p160 = por %p158, %p159
    %p161 = scmp.ne.s32.totalorder %s153, %s155
    %p162 = scmp.eq.s32.totalorder %s19, 1
    %p163 = por %p161, %p162
    %p164 = scmp.ne.s32.totalorder %s155, %s156
    %p165 = scmp.eq.s32.totalorder %s19, 0
    %p166 = por %p164, %p165
    %p167 = scmp.ne.s32.totalorder %s155, %s156
    %p168 = scmp.eq.s32.totalorder %s20, 1
    %p169 = por %p167, %p168
    %p171 = scmp.ne.s32.totalorder %s156, %s170
    %p172 = scmp.eq.s32.totalorder %s20, 0
    %p173 = por %p171, %p172
    %s175 = sadd.s32 %s174, 1
    %p178 = scmp.eq.s32.totalorder %s14, 1
    %p179 = scmp.ne.s32.totalorder %s174, %s176
    %p180 = scmp.eq.s32.totalorder %s14, 0
    %p181 = por %p179, %p180
    %p182 = scmp.ne.s32.totalorder %s174, %s176
    %p183 = scmp.eq.s32.totalorder %s19, 1
    %p184 = por %p182, %p183
    %p185 = scmp.ne.s32.totalorder %s176, %s177
    %p186 = scmp.eq.s32.totalorder %s19, 0
    %p187 = por %p185, %p186
    %p188 = scmp.ne.s32.totalorder %s176, %s177
    %p189 = scmp.eq.s32.totalorder %s20, 1
    %p190 = por %p188, %p189
    %p192 = scmp.ne.s32.totalorder %s177, %s191
    %p193 = scmp.eq.s32.totalorder %s20, 0
    %p194 = por %p192, %p193
    %s195 = ssub.s32 %s14, %s21
    %p196 = scmp.eq.s32.totalorder %s195, 0
    %s198 = sadd.s32 %s197, 1
    %s199 = scalar_select %p196, %s197, %s198
    %p202 = pneg %p196
    %p203 = scmp.eq.s32.totalorder %s14, 1
    %p204 = por %p202, %p203
    %p205 = scmp.ne.s32.totalorder %s197, %s200
    %p206 = scmp.eq.s32.totalorder %s14, 0
    %p207 = por %p205, %p206
    %p208 = scmp.ne.s32.totalorder %s197, %s200
    %p209 = scmp.eq.s32.totalorder %s19, 1
    %p210 = por %p208, %p209
    %p211 = scmp.ne.s32.totalorder %s200, %s201
    %p212 = scmp.eq.s32.totalorder %s19, 0
    %p213 = por %p211, %p212
    %p214 = scmp.ne.s32.totalorder %s200, %s201
    %p215 = scmp.eq.s32.totalorder %s20, 1
    %p216 = por %p214, %p215
    %p218 = scmp.ne.s32.totalorder %s201, %s217
    %p219 = scmp.eq.s32.totalorder %s20, 0
    %p220 = por %p218, %p219
    %p221 = scmp.le.s32.totalorder 1, %s14
    %p222 = scmp.lt.s32.totalorder %s14, 3
    %p223 = pnand %p221, %p222
    %p224 = pneg %p223
    // Predicated region
    $region9: #{time_series_transformer.19} parent=5 // pred_check
      _
    $region10: #{time_series_transformer.19} parent=5 // pred_check_branch
      %226 = sbr.rel (%p223) target = $region12
    $region11: #{time_series_transformer.19} parent=5 // pred_region
      %s227 = ssub.s32 %s14, 1
      // Predicated region
      $region13: #{time_series_transformer.19} parent=11 // pred_check
        %p228 = pneg %p61
      $region14: #{time_series_transformer.19} parent=11 // pred_check_branch
        %230 = sbr.rel (%p228) target = $region16
      $region15: #{time_series_transformer.19} parent=11 // pred_region
        _
      $region16: #{time_series_transformer.19} parent=11 // pred_fallthru
        _
      // Predicated region
      $region17: #{time_series_transformer.19} parent=11 // pred_check
        %p231 = pneg %p82
      $region18: #{time_series_transformer.19} parent=11 // pred_check_branch
        %233 = sbr.rel (%p231) target = $region20
      $region19: #{time_series_transformer.19} parent=11 // pred_region
        _
      $region20: #{time_series_transformer.19} parent=11 // pred_fallthru
        _
      // Predicated region
      $region21: #{time_series_transformer.19} parent=11 // pred_check
        %p234 = pneg %p103
      $region22: #{time_series_transformer.19} parent=11 // pred_check_branch
        %236 = sbr.rel (%p234) target = $region24
      $region23: #{time_series_transformer.19} parent=11 // pred_region
        _
      $region24: #{time_series_transformer.19} parent=11 // pred_fallthru
        _
      // Predicated region
      $region25: #{time_series_transformer.19} parent=11 // pred_check
        %p237 = pneg %p124
      $region26: #{time_series_transformer.19} parent=11 // pred_check_branch
        %239 = sbr.rel (%p237) target = $region28
      $region27: #{time_series_transformer.19} parent=11 // pred_region
        _
      $region28: #{time_series_transformer.19} parent=11 // pred_fallthru
        _
      // Predicated region
      $region29: #{time_series_transformer.19} parent=11 // pred_check
        %p240 = pneg %p145
      $region30: #{time_series_transformer.19} parent=11 // pred_check_branch
        %242 = sbr.rel (%p240) target = $region32
      $region31: #{time_series_transformer.19} parent=11 // pred_region
        _
      $region32: #{time_series_transformer.19} parent=11 // pred_fallthru
        _
      // Predicated region
      $region33: #{time_series_transformer.19} parent=11 // pred_check
        %p243 = pneg %p166
      $region34: #{time_series_transformer.19} parent=11 // pred_check_branch
        %245 = sbr.rel (%p243) target = $region36
      $region35: #{time_series_transformer.19} parent=11 // pred_region
        _
      $region36: #{time_series_transformer.19} parent=11 // pred_fallthru
        _
      // Predicated region
      $region37: #{time_series_transformer.19} parent=11 // pred_check
        %p246 = pneg %p187
      $region38: #{time_series_transformer.19} parent=11 // pred_check_branch
        %248 = sbr.rel (%p246) target = $region40
      $region39: #{time_series_transformer.19} parent=11 // pred_region
        _
      $region40: #{time_series_transformer.19} parent=11 // pred_fallthru
        _
    $region12: #{time_series_transformer.19} parent=5 // pred_fallthru
      _
    %p249 = scmp.lt.s32.totalorder %s14, 2
    // Predicated region
    $region41: #{time_series_transformer.19} parent=5 // pred_check
      %p250 = pneg %p249
    $region42: #{time_series_transformer.19} parent=5 // pred_check_branch
      %252 = sbr.rel (%p250) target = $region44
    $region43: #{time_series_transformer.19} parent=5 // pred_region
      // Predicated region
      $region45: #{time_series_transformer.19} parent=43 // pred_check
        %p253 = pneg %p34
      $region46: #{time_series_transformer.19} parent=43 // pred_check_branch
        %255 = sbr.rel (%p253) target = $region48
      $region47: #{time_series_transformer.19} parent=43 // pred_region
        %p256 = scmp.lt.s32.totalorder %s14, 1
        %s257 = scalar_select %p256, %s14, 1
        %s258 = smul.addr %s257, 8
        %s259 = scalar_lea.vmem %s0, %s258
      $region48: #{time_series_transformer.19} parent=43 // pred_fallthru
        _
    $region44: #{time_series_transformer.19} parent=5 // pred_fallthru
      _
    %p260 = scmp.le.s32.totalorder 1, %s14
    %p261 = scmp.lt.s32.totalorder %s14, 3
    %p262 = pnand %p260, %p261
    %p263 = pneg %p262
    // Predicated region
    $region49: #{time_series_transformer.19} parent=5 // pred_check
      _
    $region50: #{time_series_transformer.19} parent=5 // pred_check_branch
      %265 = sbr.rel (%p262) target = $region52
    $region51: #{time_series_transformer.19} parent=5 // pred_region
      %s266 = ssub.s32 %s14, 1
      %p267 = scmp.lt.s32.totalorder %s19, 1
      %s268 = scalar_select %p267, %s19, 1
      %s269 = smul.addr %s268, 8
      %s270 = scalar_lea.vmem %s0, %s269
      %p271 = pneg %p40
      %p272 = pneg %p37
      %p273 = pneg %p61
      %p274 = pneg %p58
      %p275 = pneg %p82
      %p276 = pneg %p79
      %p277 = pneg %p103
      %p278 = pneg %p100
      %p279 = pneg %p124
      %p280 = pneg %p121
      %p281 = pneg %p145
      %p282 = pneg %p142
      %p283 = pneg %p166
      %p284 = pneg %p163
      %p285 = pneg %p187
      %p286 = pneg %p184
      %p287 = pneg %p213
      %p288 = pneg %p210
      %p289 = scmp.lt.s32.totalorder %s19, 1
      %s290 = scalar_select %p289, %s19, 1
      %s291 = smul.addr %s290, 8
      %s292 = scalar_lea.vmem %s8, %s291
      %p293 = scmp.lt.s32.totalorder %s19, 1
      %s294 = scalar_select %p293, %s19, 1
      %s295 = smul.addr %s294, 8
      %s296 = scalar_lea.vmem %s0, %s295
      %p297 = scmp.lt.s32.totalorder %s19, 1
      %s298 = scalar_select %p297, %s19, 1
      %s299 = smul.addr %s298, 8
      %s300 = scalar_lea.vmem %s8, %s299
      %v301 = vld [vmem:[%s296] sm:$0xff]
      %v302 = vld [vmem:[%s1] sm:$0xff]
      %v303 = vld [vmem:[%s1 + $0x8] sm:$0xff]
      %v304 = vld [vmem:[%s1 + $0x10] sm:$0xff]
      %v305 = vld [vmem:[%s1 + $0x18] sm:$0xff]
      %v306 = vld [vmem:[%s2] sm:$0x1]
      %v308 = vlaneseq
      %v309 = vshrl.u32 %v308, 7
      %v310 = vsub.s32 0, %v309
      %v311 = vrot.slane %v306, %v310
      %vm313 = vcmask 261120
      %v315 = vsel %vm313, %v301, 0
      %317 = vmatprep.subr.mxu0 0.0
      %318 = vmatpush1.msra.mxu0 %v302
      %319 = vmatprep.subr.mxu0 0.0
      %320 = vmatpush1.msra.mxu0 %v303
      %321 = vmatprep.subr.mxu0 0.0
      %322 = vmatpush1.msra.mxu0 %v304
      %323 = vmatprep.subr.mxu0 0.0
      %324 = vmatpush1.msra.mxu0 %v305
      %325 = vmatprep.subr.mxu0 0.0
      %326 = vmatpush1.msra.mxu0 0.0
      %327 = vmatprep.subr.mxu0 0.0
      %328 = vmatpush1.msra.mxu0 0.0
      %329 = vmatprep.subr.mxu0 0.0
      %330 = vmatpush1.msra.mxu0 0.0
      %331 = vmatprep.subr.mxu0 0.0
      %332 = vmatpush1.msra.mxu0 0.0
      %333 = vmatprep.subr.mxu0 0.0
      %334 = vmatpush1.msra.mxu0 0.0
      %335 = vmatprep.subr.mxu0 0.0
      %336 = vmatpush1.msra.mxu0 0.0
      %337 = vmatprep.subr.mxu0 0.0
      %338 = vmatpush1.msra.mxu0 0.0
      %339 = vmatprep.subr.mxu0 0.0
      %340 = vmatpush1.msra.mxu0 0.0
      %341 = vmatprep.subr.mxu0 0.0
      %342 = vmatpush1.msra.mxu0 0.0
      %343 = vmatprep.subr.mxu0 0.0
      %344 = vmatpush1.msra.mxu0 0.0
      %345 = vmatprep.subr.mxu0 0.0
      %346 = vmatpush1.msra.mxu0 0.0
      %347 = vmatprep.subr.mxu0 0.0
      %348 = vmatpush1.msra.mxu0 0.0
      %349 = vmatprep.subr.mxu0 0.0
      %350 = vmatpush1.msra.mxu0 0.0
      %351 = vmatprep.subr.mxu0 0.0
      %352 = vmatpush1.msra.mxu0 0.0
      %353 = vmatprep.subr.mxu0 0.0
      %354 = vmatpush1.msra.mxu0 0.0
      %355 = vmatprep.subr.mxu0 0.0
      %356 = vmatpush1.msra.mxu0 0.0
      %357 = vmatprep.subr.mxu0 0.0
      %358 = vmatpush1.msra.mxu0 0.0
      %359 = vmatprep.subr.mxu0 0.0
      %360 = vmatpush1.msra.mxu0 0.0
      %361 = vmatprep.subr.mxu0 0.0
      %362 = vmatpush1.msra.mxu0 0.0
      %363 = vmatprep.subr.mxu0 0.0
      %364 = vmatpush1.msra.mxu0 0.0
      %365 = vmatprep.subr.mxu0 0.0
      %366 = vmatpush1.msra.mxu0 0.0
      %367 = vmatprep.subr.mxu0 0.0
      %368 = vmatpush1.msra.mxu0 0.0
      %369 = vmatprep.subr.mxu0 0.0
      %370 = vmatpush1.msra.mxu0 0.0
      %371 = vmatprep.subr.mxu0 0.0
      %372 = vmatpush1.msra.mxu0 0.0
      %373 = vmatprep.subr.mxu0 0.0
      %374 = vmatpush1.msra.mxu0 0.0
      %375 = vmatprep.subr.mxu0 0.0
      %376 = vmatpush1.msra.mxu0 0.0
      %377 = vmatprep.subr.mxu0 0.0
      %378 = vmatpush1.msra.mxu0 0.0
      %379 = vmatprep.subr.mxu0 0.0
      %380 = vmatpush1.msra.mxu0 0.0
      %381 = vmatprep.mubr.f32.mxu0 0.0
      %382 = vmatmul.mubr.f32.gmra.mrb[0].mxu0 %v315
      %v383 = vpop.f32.mrb[0].mxu0
      %v384 = vadd.f32 %v311, %v383
      %v385 = vpop.f32.mrb[0].mxu0
      %386 = vdwg.mxu0
      %v387 = vld [vmem:[%s3] sm:$0xff]
      %v388 = vld [vmem:[%s3 + $0x8] sm:$0xff]
      %v389 = vld [vmem:[%s3 + $0x10] sm:$0xff]
      %v390 = vld [vmem:[%s3 + $0x18] sm:$0xff]
      %v391 = vld [vmem:[%s5] sm:$0xff]
      %393 = vrot.lane.b32.xlu0 %v384, 96
      %v394 = vpop.permute.xlu0 %393
      %vm395 = vcmask 64512
      %v396 = vsel %vm395, %v384, 0
      %v398 = vsel %vm395, %v394, 0
      %400 = vmatprep.subr.mxu0 0.0
      %401 = vmatpush1.xpose.msra.mxu0 %v398
      %402 = vmatprep.subr.mxu0 0.0
      %403 = vmatpush1.xpose.msra.mxu0 0.0
      %404 = vmatprep.subr.mxu0 0.0
      %405 = vmatpush1.xpose.msra.mxu0 0.0
      %406 = vmatprep.subr.mxu0 0.0
      %407 = vmatpush1.xpose.msra.mxu0 0.0
      %408 = vmatprep.subr.mxu0 0.0
      %409 = vmatpush1.xpose.msra.mxu0 0.0
      %410 = vmatprep.subr.mxu0 0.0
      %411 = vmatpush1.xpose.msra.mxu0 0.0
      %412 = vmatprep.subr.mxu0 0.0
      %413 = vmatpush1.xpose.msra.mxu0 0.0
      %414 = vmatprep.subr.mxu0 0.0
      %415 = vmatpush1.xpose.msra.mxu0 0.0
      %416 = vmatprep.subr.mxu0 0.0
      %417 = vmatpush1.xpose.msra.mxu0 0.0
      %418 = vmatprep.subr.mxu0 0.0
      %419 = vmatpush1.xpose.msra.mxu0 0.0
      %420 = vmatprep.subr.mxu0 0.0
      %421 = vmatpush1.xpose.msra.mxu0 0.0
      %422 = vmatprep.subr.mxu0 0.0
      %423 = vmatpush1.xpose.msra.mxu0 0.0
      %424 = vmatprep.subr.mxu0 0.0
      %425 = vmatpush1.xpose.msra.mxu0 0.0
      %426 = vmatprep.subr.mxu0 0.0
      %427 = vmatpush1.xpose.msra.mxu0 0.0
      %428 = vmatprep.subr.mxu0 0.0
      %429 = vmatpush1.xpose.msra.mxu0 0.0
      %430 = vmatprep.subr.mxu0 0.0
      %431 = vmatpush1.xpose.msra.mxu0 0.0
      %432 = vmatprep.subr.mxu0 0.0
      %433 = vmatpush1.xpose.msra.mxu0 0.0
      %434 = vmatprep.subr.mxu0 0.0
      %435 = vmatpush1.xpose.msra.mxu0 0.0
      %436 = vmatprep.subr.mxu0 0.0
      %437 = vmatpush1.xpose.msra.mxu0 0.0
      %438 = vmatprep.subr.mxu0 0.0
      %439 = vmatpush1.xpose.msra.mxu0 0.0
      %440 = vmatprep.subr.mxu0 0.0
      %441 = vmatpush1.xpose.msra.mxu0 0.0
      %442 = vmatprep.subr.mxu0 0.0
      %443 = vmatpush1.xpose.msra.mxu0 0.0
      %444 = vmatprep.subr.mxu0 0.0
      %445 = vmatpush1.xpose.msra.mxu0 0.0
      %446 = vmatprep.subr.mxu0 0.0
      %447 = vmatpush1.xpose.msra.mxu0 0.0
      %448 = vmatprep.subr.mxu0 0.0
      %449 = vmatpush1.xpose.msra.mxu0 0.0
      %450 = vmatprep.subr.mxu0 0.0
      %451 = vmatpush1.xpose.msra.mxu0 0.0
      %452 = vmatprep.subr.mxu0 0.0
      %453 = vmatpush1.xpose.msra.mxu0 0.0
      %454 = vmatprep.subr.mxu0 0.0
      %455 = vmatpush1.xpose.msra.mxu0 0.0
      %456 = vmatprep.subr.mxu0 0.0
      %457 = vmatpush1.xpose.msra.mxu0 0.0
      %458 = vmatprep.subr.mxu0 0.0
      %459 = vmatpush1.xpose.msra.mxu0 0.0
      %460 = vmatprep.subr.mxu0 0.0
      %461 = vmatpush1.xpose.msra.mxu0 0.0
      %462 = vmatprep.subr.mxu0 0.0
      %463 = vmatpush1.xpose.msra.mxu0 0.0
      %464 = vmatprep.mubr.f32.mxu0 0.0
      %465 = vmatmul.mubr.f32.gmra.mrb[0].mxu0 %v396
      %v466 = vpop.f32.mrb[0].mxu0
      %v467 = vadd.f32 0.0, %v466
      %v468 = vpop.f32.mrb[0].mxu0
      %469 = vdwg.mxu0
      %v470 = vmul.f32 %v467, 0.35355338
      %v471 = vadd.f32 %v470, %v391
      %v472 = vsel %vm395, %v471, -inf
      %473 = vmax.xlane.f32.xlu0 %v472
      %v474 = vpop.xlane.xlu0 %473
      %v475 = vsub.f32 %v471, %v474
      %v476 = vmul.f32 %v475, 1.442695
      %v477 = vpow.pop %v476
      %v478 = vsel %vm395, %v477, 0.0
      %479 = vadd.xlane.f32.xlu0 %v478
      %v480 = vpop.xlane.xlu0 %479
      %v481 = vrcp.pop %v480
      %v482 = vmul.f32 %v477, %v481
      %483 = vrot.lane.b32.xlu0 %v384, 64
      %v484 = vpop.permute.xlu0 %483
      %v487 = vsel %vm395, %v482, 0
      %489 = vmatprep.subr.mxu0 0.0
      %490 = vmatpush1.msra.mxu0 %v484
      %491 = vmatprep.subr.mxu0 0.0
      %492 = vmatpush1.msra.mxu0 0.0
      %493 = vmatprep.subr.mxu0 0.0
      %494 = vmatpush1.msra.mxu0 0.0
      %495 = vmatprep.subr.mxu0 0.0
      %496 = vmatpush1.msra.mxu0 0.0
      %497 = vmatprep.subr.mxu0 0.0
      %498 = vmatpush1.msra.mxu0 0.0
      %499 = vmatprep.subr.mxu0 0.0
      %500 = vmatpush1.msra.mxu0 0.0
      %501 = vmatprep.subr.mxu0 0.0
      %502 = vmatpush1.msra.mxu0 0.0
      %503 = vmatprep.subr.mxu0 0.0
      %504 = vmatpush1.msra.mxu0 0.0
      %505 = vmatprep.subr.mxu0 0.0
      %506 = vmatpush1.msra.mxu0 0.0
      %507 = vmatprep.subr.mxu0 0.0
      %508 = vmatpush1.msra.mxu0 0.0
      %509 = vmatprep.subr.mxu0 0.0
      %510 = vmatpush1.msra.mxu0 0.0
      %511 = vmatprep.subr.mxu0 0.0
      %512 = vmatpush1.msra.mxu0 0.0
      %513 = vmatprep.subr.mxu0 0.0
      %514 = vmatpush1.msra.mxu0 0.0
      %515 = vmatprep.subr.mxu0 0.0
      %516 = vmatpush1.msra.mxu0 0.0
      %517 = vmatprep.subr.mxu0 0.0
      %518 = vmatpush1.msra.mxu0 0.0
      %519 = vmatprep.subr.mxu0 0.0
      %520 = vmatpush1.msra.mxu0 0.0
      %521 = vmatprep.subr.mxu0 0.0
      %522 = vmatpush1.msra.mxu0 0.0
      %523 = vmatprep.subr.mxu0 0.0
      %524 = vmatpush1.msra.mxu0 0.0
      %525 = vmatprep.subr.mxu0 0.0
      %526 = vmatpush1.msra.mxu0 0.0
      %527 = vmatprep.subr.mxu0 0.0
      %528 = vmatpush1.msra.mxu0 0.0
      %529 = vmatprep.subr.mxu0 0.0
      %530 = vmatpush1.msra.mxu0 0.0
      %531 = vmatprep.subr.mxu0 0.0
      %532 = vmatpush1.msra.mxu0 0.0
      %533 = vmatprep.subr.mxu0 0.0
      %534 = vmatpush1.msra.mxu0 0.0
      %535 = vmatprep.subr.mxu0 0.0
      %536 = vmatpush1.msra.mxu0 0.0
      %537 = vmatprep.subr.mxu0 0.0
      %538 = vmatpush1.msra.mxu0 0.0
      %539 = vmatprep.subr.mxu0 0.0
      %540 = vmatpush1.msra.mxu0 0.0
      %541 = vmatprep.subr.mxu0 0.0
      %542 = vmatpush1.msra.mxu0 0.0
      %543 = vmatprep.subr.mxu0 0.0
      %544 = vmatpush1.msra.mxu0 0.0
      %545 = vmatprep.subr.mxu0 0.0
      %546 = vmatpush1.msra.mxu0 0.0
      %547 = vmatprep.subr.mxu0 0.0
      %548 = vmatpush1.msra.mxu0 0.0
      %549 = vmatprep.subr.mxu0 0.0
      %550 = vmatpush1.msra.mxu0 0.0
      %551 = vmatprep.subr.mxu0 0.0
      %552 = vmatpush1.msra.mxu0 0.0
      %553 = vmatprep.mubr.f32.mxu0 0.0
      %554 = vmatmul.mubr.f32.gmra.mrb[0].mxu0 %v487
      %v555 = vpop.f32.mrb[0].mxu0
      %v556 = vadd.f32 0.0, %v555
      %v557 = vpop.f32.mrb[0].mxu0
      %558 = vdwg.mxu0
      %559 = vrot.lane.b32.xlu0 %v384, 120
      %v560 = vpop.permute.xlu0 %559
      %561 = vrot.lane.b32.xlu0 %v384, 88
      %v562 = vpop.permute.xlu0 %561
      %v563 = vsel %vm395, %v560, 0
      %v565 = vsel %vm395, %v562, 0
      %567 = vmatprep.subr.mxu0 0.0
      %568 = vmatpush1.xpose.msra.mxu0 %v565
      %569 = vmatprep.subr.mxu0 0.0
      %570 = vmatpush1.xpose.msra.mxu0 0.0
      %571 = vmatprep.subr.mxu0 0.0
      %572 = vmatpush1.xpose.msra.mxu0 0.0
      %573 = vmatprep.subr.mxu0 0.0
      %574 = vmatpush1.xpose.msra.mxu0 0.0
      %575 = vmatprep.subr.mxu0 0.0
      %576 = vmatpush1.xpose.msra.mxu0 0.0
      %577 = vmatprep.subr.mxu0 0.0
      %578 = vmatpush1.xpose.msra.mxu0 0.0
      %579 = vmatprep.subr.mxu0 0.0
      %580 = vmatpush1.xpose.msra.mxu0 0.0
      %581 = vmatprep.subr.mxu0 0.0
      %582 = vmatpush1.xpose.msra.mxu0 0.0
      %583 = vmatprep.subr.mxu0 0.0
      %584 = vmatpush1.xpose.msra.mxu0 0.0
      %585 = vmatprep.subr.mxu0 0.0
      %586 = vmatpush1.xpose.msra.mxu0 0.0
      %587 = vmatprep.subr.mxu0 0.0
      %588 = vmatpush1.xpose.msra.mxu0 0.0
      %589 = vmatprep.subr.mxu0 0.0
      %590 = vmatpush1.xpose.msra.mxu0 0.0
      %591 = vmatprep.subr.mxu0 0.0
      %592 = vmatpush1.xpose.msra.mxu0 0.0
      %593 = vmatprep.subr.mxu0 0.0
      %594 = vmatpush1.xpose.msra.mxu0 0.0
      %595 = vmatprep.subr.mxu0 0.0
      %596 = vmatpush1.xpose.msra.mxu0 0.0
      %597 = vmatprep.subr.mxu0 0.0
      %598 = vmatpush1.xpose.msra.mxu0 0.0
      %599 = vmatprep.subr.mxu0 0.0
      %600 = vmatpush1.xpose.msra.mxu0 0.0
      %601 = vmatprep.subr.mxu0 0.0
      %602 = vmatpush1.xpose.msra.mxu0 0.0
      %603 = vmatprep.subr.mxu0 0.0
      %604 = vmatpush1.xpose.msra.mxu0 0.0
      %605 = vmatprep.subr.mxu0 0.0
      %606 = vmatpush1.xpose.msra.mxu0 0.0
      %607 = vmatprep.subr.mxu0 0.0
      %608 = vmatpush1.xpose.msra.mxu0 0.0
      %609 = vmatprep.subr.mxu0 0.0
      %610 = vmatpush1.xpose.msra.mxu0 0.0
      %611 = vmatprep.subr.mxu0 0.0
      %612 = vmatpush1.xpose.msra.mxu0 0.0
      %613 = vmatprep.subr.mxu0 0.0
      %614 = vmatpush1.xpose.msra.mxu0 0.0
      %615 = vmatprep.subr.mxu0 0.0
      %616 = vmatpush1.xpose.msra.mxu0 0.0
      %617 = vmatprep.subr.mxu0 0.0
      %618 = vmatpush1.xpose.msra.mxu0 0.0
      %619 = vmatprep.subr.mxu0 0.0
      %620 = vmatpush1.xpose.msra.mxu0 0.0
      %621 = vmatprep.subr.mxu0 0.0
      %622 = vmatpush1.xpose.msra.mxu0 0.0
      %623 = vmatprep.subr.mxu0 0.0
      %624 = vmatpush1.xpose.msra.mxu0 0.0
      %625 = vmatprep.subr.mxu0 0.0
      %626 = vmatpush1.xpose.msra.mxu0 0.0
      %627 = vmatprep.subr.mxu0 0.0
      %628 = vmatpush1.xpose.msra.mxu0 0.0
      %629 = vmatprep.subr.mxu0 0.0
      %630 = vmatpush1.xpose.msra.mxu0 0.0
      %631 = vmatprep.mubr.f32.mxu0 0.0
      %632 = vmatmul.mubr.f32.gmra.mrb[0].mxu0 %v563
      %v633 = vpop.f32.mrb[0].mxu0
      %v634 = vadd.f32 0.0, %v633
      %v635 = vpop.f32.mrb[0].mxu0
      %636 = vdwg.mxu0
      %v637 = vmul.f32 %v634, 0.35355338
      %v638 = vadd.f32 %v637, %v391
      %v639 = vsel %vm395, %v638, -inf
      %640 = vmax.xlane.f32.xlu0 %v639
      %v641 = vpop.xlane.xlu0 %640
      %v642 = vsub.f32 %v638, %v641
      %v643 = vmul.f32 %v642, 1.442695
      %v644 = vpow.pop %v643
      %v645 = vsel %vm395, %v644, 0.0
      %646 = vadd.xlane.f32.xlu0 %v645
      %v647 = vpop.xlane.xlu0 %646
      %v648 = vrcp.pop %v647
      %v649 = vmul.f32 %v644, %v648
      %650 = vrot.lane.b32.xlu0 %v384, 56
      %v651 = vpop.permute.xlu0 %650
      %v654 = vsel %vm395, %v649, 0
      %656 = vmatprep.subr.mxu0 0.0
      %657 = vmatpush1.msra.mxu0 %v651
      %658 = vmatprep.subr.mxu0 0.0
      %659 = vmatpush1.msra.mxu0 0.0
      %660 = vmatprep.subr.mxu0 0.0
      %661 = vmatpush1.msra.mxu0 0.0
      %662 = vmatprep.subr.mxu0 0.0
      %663 = vmatpush1.msra.mxu0 0.0
      %664 = vmatprep.subr.mxu0 0.0
      %665 = vmatpush1.msra.mxu0 0.0
      %666 = vmatprep.subr.mxu0 0.0
      %667 = vmatpush1.msra.mxu0 0.0
      %668 = vmatprep.subr.mxu0 0.0
      %669 = vmatpush1.msra.mxu0 0.0
      %670 = vmatprep.subr.mxu0 0.0
      %671 = vmatpush1.msra.mxu0 0.0
      %672 = vmatprep.subr.mxu0 0.0
      %673 = vmatpush1.msra.mxu0 0.0
      %674 = vmatprep.subr.mxu0 0.0
      %675 = vmatpush1.msra.mxu0 0.0
      %676 = vmatprep.subr.mxu0 0.0
      %677 = vmatpush1.msra.mxu0 0.0
      %678 = vmatprep.subr.mxu0 0.0
      %679 = vmatpush1.msra.mxu0 0.0
      %680 = vmatprep.subr.mxu0 0.0
      %681 = vmatpush1.msra.mxu0 0.0
      %682 = vmatprep.subr.mxu0 0.0
      %683 = vmatpush1.msra.mxu0 0.0
      %684 = vmatprep.subr.mxu0 0.0
      %685 = vmatpush1.msra.mxu0 0.0
      %686 = vmatprep.subr.mxu0 0.0
      %687 = vmatpush1.msra.mxu0 0.0
      %688 = vmatprep.subr.mxu0 0.0
      %689 = vmatpush1.msra.mxu0 0.0
      %690 = vmatprep.subr.mxu0 0.0
      %691 = vmatpush1.msra.mxu0 0.0
      %692 = vmatprep.subr.mxu0 0.0
      %693 = vmatpush1.msra.mxu0 0.0
      %694 = vmatprep.subr.mxu0 0.0
      %695 = vmatpush1.msra.mxu0 0.0
      %696 = vmatprep.subr.mxu0 0.0
      %697 = vmatpush1.msra.mxu0 0.0
      %698 = vmatprep.subr.mxu0 0.0
      %699 = vmatpush1.msra.mxu0 0.0
      %700 = vmatprep.subr.mxu0 0.0
      %701 = vmatpush1.msra.mxu0 0.0
      %702 = vmatprep.subr.mxu0 0.0
      %703 = vmatpush1.msra.mxu0 0.0
      %704 = vmatprep.subr.mxu0 0.0
      %705 = vmatpush1.msra.mxu0 0.0
      %706 = vmatprep.subr.mxu0 0.0
      %707 = vmatpush1.msra.mxu0 0.0
      %708 = vmatprep.subr.mxu0 0.0
      %709 = vmatpush1.msra.mxu0 0.0
      %710 = vmatprep.subr.mxu0 0.0
      %711 = vmatpush1.msra.mxu0 0.0
      %712 = vmatprep.subr.mxu0 0.0
      %713 = vmatpush1.msra.mxu0 0.0
      %714 = vmatprep.subr.mxu0 0.0
      %715 = vmatpush1.msra.mxu0 0.0
      %716 = vmatprep.subr.mxu0 0.0
      %717 = vmatpush1.msra.mxu0 0.0
      %718 = vmatprep.subr.mxu0 0.0
      %719 = vmatpush1.msra.mxu0 0.0
      %720 = vmatprep.mubr.f32.mxu0 0.0
      %721 = vmatmul.mubr.f32.gmra.mrb[0].mxu0 %v654
      %v722 = vpop.f32.mrb[0].mxu0
      %v723 = vadd.f32 0.0, %v722
      %v724 = vpop.f32.mrb[0].mxu0
      %725 = vdwg.mxu0
      %v727 = vsel %vm395, %v723, 0
      %729 = vmatprep.subr.mxu0 0.0
      %730 = vmatpush1.msra.mxu0 %v388
      %731 = vmatprep.subr.mxu0 0.0
      %732 = vmatpush1.msra.mxu0 0.0
      %733 = vmatprep.subr.mxu0 0.0
      %734 = vmatpush1.msra.mxu0 0.0
      %735 = vmatprep.subr.mxu0 0.0
      %736 = vmatpush1.msra.mxu0 0.0
      %737 = vmatprep.subr.mxu0 0.0
      %738 = vmatpush1.msra.mxu0 0.0
      %739 = vmatprep.subr.mxu0 0.0
      %740 = vmatpush1.msra.mxu0 0.0
      %741 = vmatprep.subr.mxu0 0.0
      %742 = vmatpush1.msra.mxu0 0.0
      %743 = vmatprep.subr.mxu0 0.0
      %744 = vmatpush1.msra.mxu0 0.0
      %745 = vmatprep.subr.mxu0 0.0
      %746 = vmatpush1.msra.mxu0 0.0
      %747 = vmatprep.subr.mxu0 0.0
      %748 = vmatpush1.msra.mxu0 0.0
      %749 = vmatprep.subr.mxu0 0.0
      %750 = vmatpush1.msra.mxu0 0.0
      %751 = vmatprep.subr.mxu0 0.0
      %752 = vmatpush1.msra.mxu0 0.0
      %753 = vmatprep.subr.mxu0 0.0
      %754 = vmatpush1.msra.mxu0 0.0
      %755 = vmatprep.subr.mxu0 0.0
      %756 = vmatpush1.msra.mxu0 0.0
      %757 = vmatprep.subr.mxu0 0.0
      %758 = vmatpush1.msra.mxu0 0.0
      %759 = vmatprep.subr.mxu0 0.0
      %760 = vmatpush1.msra.mxu0 0.0
      %761 = vmatprep.subr.mxu0 0.0
      %762 = vmatpush1.msra.mxu0 0.0
      %763 = vmatprep.subr.mxu0 0.0
      %764 = vmatpush1.msra.mxu0 0.0
      %765 = vmatprep.subr.mxu0 0.0
      %766 = vmatpush1.msra.mxu0 0.0
      %767 = vmatprep.subr.mxu0 0.0
      %768 = vmatpush1.msra.mxu0 0.0
      %769 = vmatprep.subr.mxu0 0.0
      %770 = vmatpush1.msra.mxu0 0.0
      %771 = vmatprep.subr.mxu0 0.0
      %772 = vmatpush1.msra.mxu0 0.0
      %773 = vmatprep.subr.mxu0 0.0
      %774 = vmatpush1.msra.mxu0 0.0
      %775 = vmatprep.subr.mxu0 0.0
      %776 = vmatpush1.msra.mxu0 0.0
      %777 = vmatprep.subr.mxu0 0.0
      %778 = vmatpush1.msra.mxu0 0.0
      %779 = vmatprep.subr.mxu0 0.0
      %780 = vmatpush1.msra.mxu0 0.0
      %781 = vmatprep.subr.mxu0 0.0
      %782 = vmatpush1.msra.mxu0 0.0
      %783 = vmatprep.subr.mxu0 0.0
      %784 = vmatpush1.msra.mxu0 0.0
      %785 = vmatprep.subr.mxu0 0.0
      %786 = vmatpush1.msra.mxu0 0.0
      %787 = vmatprep.subr.mxu0 0.0
      %788 = vmatpush1.msra.mxu0 0.0
      %789 = vmatprep.subr.mxu0 0.0
      %790 = vmatpush1.msra.mxu0 0.0
      %791 = vmatprep.subr.mxu0 0.0
      %792 = vmatpush1.msra.mxu0 0.0
      %793 = vmatprep.mubr.f32.mxu0 0.0
      %794 = vmatmul.mubr.f32.gmra.mrb[0].mxu0 %v727
      %v795 = vpop.f32.mrb[0].mxu0
      %v796 = vadd.f32 0.0, %v795
      %v797 = vpop.f32.mrb[0].mxu0
      %798 = vdwg.mxu0
      %v800 = vsel %vm395, %v556, 0
      %802 = vmatprep.subr.mxu0 0.0
      %803 = vmatpush1.msra.mxu0 %v387
      %804 = vmatprep.subr.mxu0 0.0
      %805 = vmatpush1.msra.mxu0 0.0
      %806 = vmatprep.subr.mxu0 0.0
      %807 = vmatpush1.msra.mxu0 0.0
      %808 = vmatprep.subr.mxu0 0.0
      %809 = vmatpush1.msra.mxu0 0.0
      %810 = vmatprep.subr.mxu0 0.0
      %811 = vmatpush1.msra.mxu0 0.0
      %812 = vmatprep.subr.mxu0 0.0
      %813 = vmatpush1.msra.mxu0 0.0
      %814 = vmatprep.subr.mxu0 0.0
      %815 = vmatpush1.msra.mxu0 0.0
      %816 = vmatprep.subr.mxu0 0.0
      %817 = vmatpush1.msra.mxu0 0.0
      %818 = vmatprep.subr.mxu0 0.0
      %819 = vmatpush1.msra.mxu0 0.0
      %820 = vmatprep.subr.mxu0 0.0
      %821 = vmatpush1.msra.mxu0 0.0
      %822 = vmatprep.subr.mxu0 0.0
      %823 = vmatpush1.msra.mxu0 0.0
      %824 = vmatprep.subr.mxu0 0.0
      %825 = vmatpush1.msra.mxu0 0.0
      %826 = vmatprep.subr.mxu0 0.0
      %827 = vmatpush1.msra.mxu0 0.0
      %828 = vmatprep.subr.mxu0 0.0
      %829 = vmatpush1.msra.mxu0 0.0
      %830 = vmatprep.subr.mxu0 0.0
      %831 = vmatpush1.msra.mxu0 0.0
      %832 = vmatprep.subr.mxu0 0.0
      %833 = vmatpush1.msra.mxu0 0.0
      %834 = vmatprep.subr.mxu0 0.0
      %835 = vmatpush1.msra.mxu0 0.0
      %836 = vmatprep.subr.mxu0 0.0
      %837 = vmatpush1.msra.mxu0 0.0
      %838 = vmatprep.subr.mxu0 0.0
      %839 = vmatpush1.msra.mxu0 0.0
      %840 = vmatprep.subr.mxu0 0.0
      %841 = vmatpush1.msra.mxu0 0.0
      %842 = vmatprep.subr.mxu0 0.0
      %843 = vmatpush1.msra.mxu0 0.0
      %844 = vmatprep.subr.mxu0 0.0
      %845 = vmatpush1.msra.mxu0 0.0
      %846 = vmatprep.subr.mxu0 0.0
      %847 = vmatpush1.msra.mxu0 0.0
      %848 = vmatprep.subr.mxu0 0.0
      %849 = vmatpush1.msra.mxu0 0.0
      %850 = vmatprep.subr.mxu0 0.0
      %851 = vmatpush1.msra.mxu0 0.0
      %852 = vmatprep.subr.mxu0 0.0
      %853 = vmatpush1.msra.mxu0 0.0
      %854 = vmatprep.subr.mxu0 0.0
      %855 = vmatpush1.msra.mxu0 0.0
      %856 = vmatprep.subr.mxu0 0.0
      %857 = vmatpush1.msra.mxu0 0.0
      %858 = vmatprep.subr.mxu0 0.0
      %859 = vmatpush1.msra.mxu0 0.0
      %860 = vmatprep.subr.mxu0 0.0
      %861 = vmatpush1.msra.mxu0 0.0
      %862 = vmatprep.subr.mxu0 0.0
      %863 = vmatpush1.msra.mxu0 0.0
      %864 = vmatprep.subr.mxu0 0.0
      %865 = vmatpush1.msra.mxu0 0.0
      %866 = vmatprep.mubr.f32.mxu0 0.0
      %867 = vmatmul.mubr.f32.gmra.mrb[0].mxu0 %v800
      %v868 = vpop.f32.mrb[0].mxu0
      %v869 = vadd.f32 %v796, %v868
      %v870 = vpop.f32.mrb[0].mxu0
      %871 = vdwg.mxu0
      %872 = vrot.lane.b32.xlu0 %v384, 112
      %v873 = vpop.permute.xlu0 %872
      %874 = vrot.lane.b32.xlu0 %v384, 80
      %v875 = vpop.permute.xlu0 %874
      %v876 = vsel %vm395, %v873, 0
      %v878 = vsel %vm395, %v875, 0
      %880 = vmatprep.subr.mxu0 0.0
      %881 = vmatpush1.xpose.msra.mxu0 %v878
      %882 = vmatprep.subr.mxu0 0.0
      %883 = vmatpush1.xpose.msra.mxu0 0.0
      %884 = vmatprep.subr.mxu0 0.0
      %885 = vmatpush1.xpose.msra.mxu0 0.0
      %886 = vmatprep.subr.mxu0 0.0
      %887 = vmatpush1.xpose.msra.mxu0 0.0
      %888 = vmatprep.subr.mxu0 0.0
      %889 = vmatpush1.xpose.msra.mxu0 0.0
      %890 = vmatprep.subr.mxu0 0.0
      %891 = vmatpush1.xpose.msra.mxu0 0.0
      %892 = vmatprep.subr.mxu0 0.0
      %893 = vmatpush1.xpose.msra.mxu0 0.0
      %894 = vmatprep.subr.mxu0 0.0
      %895 = vmatpush1.xpose.msra.mxu0 0.0
      %896 = vmatprep.subr.mxu0 0.0
      %897 = vmatpush1.xpose.msra.mxu0 0.0
      %898 = vmatprep.subr.mxu0 0.0
      %899 = vmatpush1.xpose.msra.mxu0 0.0
      %900 = vmatprep.subr.mxu0 0.0
      %901 = vmatpush1.xpose.msra.mxu0 0.0
      %902 = vmatprep.subr.mxu0 0.0
      %903 = vmatpush1.xpose.msra.mxu0 0.0
      %904 = vmatprep.subr.mxu0 0.0
      %905 = vmatpush1.xpose.msra.mxu0 0.0
      %906 = vmatprep.subr.mxu0 0.0
      %907 = vmatpush1.xpose.msra.mxu0 0.0
      %908 = vmatprep.subr.mxu0 0.0
      %909 = vmatpush1.xpose.msra.mxu0 0.0
      %910 = vmatprep.subr.mxu0 0.0
      %911 = vmatpush1.xpose.msra.mxu0 0.0
      %912 = vmatprep.subr.mxu0 0.0
      %913 = vmatpush1.xpose.msra.mxu0 0.0
      %914 = vmatprep.subr.mxu0 0.0
      %915 = vmatpush1.xpose.msra.mxu0 0.0
      %916 = vmatprep.subr.mxu0 0.0
      %917 = vmatpush1.xpose.msra.mxu0 0.0
      %918 = vmatprep.subr.mxu0 0.0
      %919 = vmatpush1.xpose.msra.mxu0 0.0
      %920 = vmatprep.subr.mxu0 0.0
      %921 = vmatpush1.xpose.msra.mxu0 0.0
      %922 = vmatprep.subr.mxu0 0.0
      %923 = vmatpush1.xpose.msra.mxu0 0.0
      %924 = vmatprep.subr.mxu0 0.0
      %925 = vmatpush1.xpose.msra.mxu0 0.0
      %926 = vmatprep.subr.mxu0 0.0
      %927 = vmatpush1.xpose.msra.mxu0 0.0
      %928 = vmatprep.subr.mxu0 0.0
      %929 = vmatpush1.xpose.msra.mxu0 0.0
      %930 = vmatprep.subr.mxu0 0.0
      %931 = vmatpush1.xpose.msra.mxu0 0.0
      %932 = vmatprep.subr.mxu0 0.0
      %933 = vmatpush1.xpose.msra.mxu0 0.0
      %934 = vmatprep.subr.mxu0 0.0
      %935 = vmatpush1.xpose.msra.mxu0 0.0
      %936 = vmatprep.subr.mxu0 0.0
      %937 = vmatpush1.xpose.msra.mxu0 0.0
      %938 = vmatprep.subr.mxu0 0.0
      %939 = vmatpush1.xpose.msra.mxu0 0.0
      %940 = vmatprep.subr.mxu0 0.0
      %941 = vmatpush1.xpose.msra.mxu0 0.0
      %942 = vmatprep.subr.mxu0 0.0
      %943 = vmatpush1.xpose.msra.mxu0 0.0
      %944 = vmatprep.mubr.f32.mxu0 0.0
      %945 = vmatmul.mubr.f32.gmra.mrb[0].mxu0 %v876
      %v946 = vpop.f32.mrb[0].mxu0
      %v947 = vadd.f32 0.0, %v946
      %v948 = vpop.f32.mrb[0].mxu0
      %949 = vdwg.mxu0
      %v950 = vmul.f32 %v947, 0.35355338
      %v951 = vadd.f32 %v950, %v391
      %v952 = vsel %vm395, %v951, -inf
      %953 = vmax.xlane.f32.xlu0 %v952
      %v954 = vpop.xlane.xlu0 %953
      %v955 = vsub.f32 %v951, %v954
      %v956 = vmul.f32 %v955, 1.442695
      %v957 = vpow.pop %v956
      %v958 = vsel %vm395, %v957, 0.0
      %959 = vadd.xlane.f32.xlu0 %v958
      %v960 = vpop.xlane.xlu0 %959
      %v961 = vrcp.pop %v960
      %v962 = vmul.f32 %v957, %v961
      %963 = vrot.lane.b32.xlu0 %v384, 48
      %v964 = vpop.permute.xlu0 %963
      %v967 = vsel %vm395, %v962, 0
      %969 = vmatprep.subr.mxu0 0.0
      %970 = vmatpush1.msra.mxu0 %v964
      %971 = vmatprep.subr.mxu0 0.0
      %972 = vmatpush1.msra.mxu0 0.0
      %973 = vmatprep.subr.mxu0 0.0
      %974 = vmatpush1.msra.mxu0 0.0
      %975 = vmatprep.subr.mxu0 0.0
      %976 = vmatpush1.msra.mxu0 0.0
      %977 = vmatprep.subr.mxu0 0.0
      %978 = vmatpush1.msra.mxu0 0.0
      %979 = vmatprep.subr.mxu0 0.0
      %980 = vmatpush1.msra.mxu0 0.0
      %981 = vmatprep.subr.mxu0 0.0
      %982 = vmatpush1.msra.mxu0 0.0
      %983 = vmatprep.subr.mxu0 0.0
      %984 = vmatpush1.msra.mxu0 0.0
      %985 = vmatprep.subr.mxu0 0.0
      %986 = vmatpush1.msra.mxu0 0.0
      %987 = vmatprep.subr.mxu0 0.0
      %988 = vmatpush1.msra.mxu0 0.0
      %989 = vmatprep.subr.mxu0 0.0
      %990 = vmatpush1.msra.mxu0 0.0
      %991 = vmatprep.subr.mxu0 0.0
      %992 = vmatpush1.msra.mxu0 0.0
      %993 = vmatprep.subr.mxu0 0.0
      %994 = vmatpush1.msra.mxu0 0.0
      %995 = vmatprep.subr.mxu0 0.0
      %996 = vmatpush1.msra.mxu0 0.0
      %997 = vmatprep.subr.mxu0 0.0
      %998 = vmatpush1.msra.mxu0 0.0
      %999 = vmatprep.subr.mxu0 0.0
      %1000 = vmatpush1.msra.mxu0 0.0
      %1001 = vmatprep.subr.mxu0 0.0
      %1002 = vmatpush1.msra.mxu0 0.0
      %1003 = vmatprep.subr.mxu0 0.0
      %1004 = vmatpush1.msra.mxu0 0.0
      %1005 = vmatprep.subr.mxu0 0.0
      %1006 = vmatpush1.msra.mxu0 0.0
      %1007 = vmatprep.subr.mxu0 0.0
      %1008 = vmatpush1.msra.mxu0 0.0
      %1009 = vmatprep.subr.mxu0 0.0
      %1010 = vmatpush1.msra.mxu0 0.0
      %1011 = vmatprep.subr.mxu0 0.0
      %1012 = vmatpush1.msra.mxu0 0.0
      %1013 = vmatprep.subr.mxu0 0.0
      %1014 = vmatpush1.msra.mxu0 0.0
      %1015 = vmatprep.subr.mxu0 0.0
      %1016 = vmatpush1.msra.mxu0 0.0
      %1017 = vmatprep.subr.mxu0 0.0
      %1018 = vmatpush1.msra.mxu0 0.0
      %1019 = vmatprep.subr.mxu0 0.0
      %1020 = vmatpush1.msra.mxu0 0.0
      %1021 = vmatprep.subr.mxu0 0.0
      %1022 = vmatpush1.msra.mxu0 0.0
      %1023 = vmatprep.subr.mxu0 0.0
      %1024 = vmatpush1.msra.mxu0 0.0
      %1025 = vmatprep.subr.mxu0 0.0
      %1026 = vmatpush1.msra.mxu0 0.0
      %1027 = vmatprep.subr.mxu0 0.0
      %1028 = vmatpush1.msra.mxu0 0.0
      %1029 = vmatprep.subr.mxu0 0.0
      %1030 = vmatpush1.msra.mxu0 0.0
      %1031 = vmatprep.subr.mxu0 0.0
      %1032 = vmatpush1.msra.mxu0 0.0
      %1033 = vmatprep.mubr.f32.mxu0 0.0
      %1034 = vmatmul.mubr.f32.gmra.mrb[0].mxu0 %v967
      %v1035 = vpop.f32.mrb[0].mxu0
      %v1036 = vadd.f32 0.0, %v1035
      %v1037 = vpop.f32.mrb[0].mxu0
      %1038 = vdwg.mxu0
      %v1040 = vsel %vm395, %v1036, 0
      %1042 = vmatprep.subr.mxu0 0.0
      %1043 = vmatpush1.msra.mxu0 %v389
      %1044 = vmatprep.subr.mxu0 0.0
      %1045 = vmatpush1.msra.mxu0 0.0
      %1046 = vmatprep.subr.mxu0 0.0
      %1047 = vmatpush1.msra.mxu0 0.0
      %1048 = vmatprep.subr.mxu0 0.0
      %1049 = vmatpush1.msra.mxu0 0.0
      %1050 = vmatprep.subr.mxu0 0.0
      %1051 = vmatpush1.msra.mxu0 0.0
      %1052 = vmatprep.subr.mxu0 0.0
      %1053 = vmatpush1.msra.mxu0 0.0
      %1054 = vmatprep.subr.mxu0 0.0
      %1055 = vmatpush1.msra.mxu0 0.0
      %1056 = vmatprep.subr.mxu0 0.0
      %1057 = vmatpush1.msra.mxu0 0.0
      %1058 = vmatprep.subr.mxu0 0.0
      %1059 = vmatpush1.msra.mxu0 0.0
      %1060 = vmatprep.subr.mxu0 0.0
      %1061 = vmatpush1.msra.mxu0 0.0
      %1062 = vmatprep.subr.mxu0 0.0
      %1063 = vmatpush1.msra.mxu0 0.0
      %1064 = vmatprep.subr.mxu0 0.0
      %1065 = vmatpush1.msra.mxu0 0.0
      %1066 = vmatprep.subr.mxu0 0.0
      %1067 = vmatpush1.msra.mxu0 0.0
      %1068 = vmatprep.subr.mxu0 0.0
      %1069 = vmatpush1.msra.mxu0 0.0
      %1070 = vmatprep.subr.mxu0 0.0
      %1071 = vmatpush1.msra.mxu0 0.0
      %1072 = vmatprep.subr.mxu0 0.0
      %1073 = vmatpush1.msra.mxu0 0.0
      %1074 = vmatprep.subr.mxu0 0.0
      %1075 = vmatpush1.msra.mxu0 0.0
      %1076 = vmatprep.subr.mxu0 0.0
      %1077 = vmatpush1.msra.mxu0 0.0
      %1078 = vmatprep.subr.mxu0 0.0
      %1079 = vmatpush1.msra.mxu0 0.0
      %1080 = vmatprep.subr.mxu0 0.0
      %1081 = vmatpush1.msra.mxu0 0.0
      %1082 = vmatprep.subr.mxu0 0.0
      %1083 = vmatpush1.msra.mxu0 0.0
      %1084 = vmatprep.subr.mxu0 0.0
      %1085 = vmatpush1.msra.mxu0 0.0
      %1086 = vmatprep.subr.mxu0 0.0
      %1087 = vmatpush1.msra.mxu0 0.0
      %1088 = vmatprep.subr.mxu0 0.0
      %1089 = vmatpush1.msra.mxu0 0.0
      %1090 = vmatprep.subr.mxu0 0.0
      %1091 = vmatpush1.msra.mxu0 0.0
      %1092 = vmatprep.subr.mxu0 0.0
      %1093 = vmatpush1.msra.mxu0 0.0
      %1094 = vmatprep.subr.mxu0 0.0
      %1095 = vmatpush1.msra.mxu0 0.0
      %1096 = vmatprep.subr.mxu0 0.0
      %1097 = vmatpush1.msra.mxu0 0.0
      %1098 = vmatprep.subr.mxu0 0.0
      %1099 = vmatpush1.msra.mxu0 0.0
      %1100 = vmatprep.subr.mxu0 0.0
      %1101 = vmatpush1.msra.mxu0 0.0
      %1102 = vmatprep.subr.mxu0 0.0
      %1103 = vmatpush1.msra.mxu0 0.0
      %1104 = vmatprep.subr.mxu0 0.0
      %1105 = vmatpush1.msra.mxu0 0.0
      %1106 = vmatprep.mubr.f32.mxu0 0.0
      %1107 = vmatmul.mubr.f32.gmra.mrb[0].mxu0 %v1040
      %v1108 = vpop.f32.mrb[0].mxu0
      %v1109 = vadd.f32 0.0, %v1108
      %v1110 = vpop.f32.mrb[0].mxu0
      %1111 = vdwg.mxu0
      %v1112 = vadd.f32 %v869, %v1109
      %1113 = vrot.lane.b32.xlu0 %v384, 104
      %v1114 = vpop.permute.xlu0 %1113
      %1115 = vrot.lane.b32.xlu0 %v384, 72
      %v1116 = vpop.permute.xlu0 %1115
      %v1117 = vsel %vm395, %v1114, 0
      %v1119 = vsel %vm395, %v1116, 0
      %1121 = vmatprep.subr.mxu0 0.0
      %1122 = vmatpush1.xpose.msra.mxu0 %v1119
      %1123 = vmatprep.subr.mxu0 0.0
      %1124 = vmatpush1.xpose.msra.mxu0 0.0
      %1125 = vmatprep.subr.mxu0 0.0
      %1126 = vmatpush1.xpose.msra.mxu0 0.0
      %1127 = vmatprep.subr.mxu0 0.0
      %1128 = vmatpush1.xpose.msra.mxu0 0.0
      %1129 = vmatprep.subr.mxu0 0.0
      %1130 = vmatpush1.xpose.msra.mxu0 0.0
      %1131 = vmatprep.subr.mxu0 0.0
      %1132 = vmatpush1.xpose.msra.mxu0 0.0
      %1133 = vmatprep.subr.mxu0 0.0
      %1134 = vmatpush1.xpose.msra.mxu0 0.0
      %1135 = vmatprep.subr.mxu0 0.0
      %1136 = vmatpush1.xpose.msra.mxu0 0.0
      %1137 = vmatprep.subr.mxu0 0.0
      %1138 = vmatpush1.xpose.msra.mxu0 0.0
      %1139 = vmatprep.subr.mxu0 0.0
      %1140 = vmatpush1.xpose.msra.mxu0 0.0
      %1141 = vmatprep.subr.mxu0 0.0
      %1142 = vmatpush1.xpose.msra.mxu0 0.0
      %1143 = vmatprep.subr.mxu0 0.0
      %1144 = vmatpush1.xpose.msra.mxu0 0.0
      %1145 = vmatprep.subr.mxu0 0.0
      %1146 = vmatpush1.xpose.msra.mxu0 0.0
      %1147 = vmatprep.subr.mxu0 0.0
      %1148 = vmatpush1.xpose.msra.mxu0 0.0
      %1149 = vmatprep.subr.mxu0 0.0
      %1150 = vmatpush1.xpose.msra.mxu0 0.0
      %1151 = vmatprep.subr.mxu0 0.0
      %1152 = vmatpush1.xpose.msra.mxu0 0.0
      %1153 = vmatprep.subr.mxu0 0.0
      %1154 = vmatpush1.xpose.msra.mxu0 0.0
      %1155 = vmatprep.subr.mxu0 0.0
      %1156 = vmatpush1.xpose.msra.mxu0 0.0
      %1157 = vmatprep.subr.mxu0 0.0
      %1158 = vmatpush1.xpose.msra.mxu0 0.0
      %1159 = vmatprep.subr.mxu0 0.0
      %1160 = vmatpush1.xpose.msra.mxu0 0.0
      %1161 = vmatprep.subr.mxu0 0.0
      %1162 = vmatpush1.xpose.msra.mxu0 0.0
      %1163 = vmatprep.subr.mxu0 0.0
      %1164 = vmatpush1.xpose.msra.mxu0 0.0
      %1165 = vmatprep.subr.mxu0 0.0
      %1166 = vmatpush1.xpose.msra.mxu0 0.0
      %1167 = vmatprep.subr.mxu0 0.0
      %1168 = vmatpush1.xpose.msra.mxu0 0.0
      %1169 = vmatprep.subr.mxu0 0.0
      %1170 = vmatpush1.xpose.msra.mxu0 0.0
      %1171 = vmatprep.subr.mxu0 0.0
      %1172 = vmatpush1.xpose.msra.mxu0 0.0
      %1173 = vmatprep.subr.mxu0 0.0
      %1174 = vmatpush1.xpose.msra.mxu0 0.0
      %1175 = vmatprep.subr.mxu0 0.0
      %1176 = vmatpush1.xpose.msra.mxu0 0.0
      %1177 = vmatprep.subr.mxu0 0.0
      %1178 = vmatpush1.xpose.msra.mxu0 0.0
      %1179 = vmatprep.subr.mxu0 0.0
      %1180 = vmatpush1.xpose.msra.mxu0 0.0
      %1181 = vmatprep.subr.mxu0 0.0
      %1182 = vmatpush1.xpose.msra.mxu0 0.0
      %1183 = vmatprep.subr.mxu0 0.0
      %1184 = vmatpush1.xpose.msra.mxu0 0.0
      %1185 = vmatprep.mubr.f32.mxu0 0.0
      %1186 = vmatmul.mubr.f32.gmra.mrb[0].mxu0 %v1117
      %v1187 = vpop.f32.mrb[0].mxu0
      %v1188 = vadd.f32 0.0, %v1187
      %v1189 = vpop.f32.mrb[0].mxu0
      %1190 = vdwg.mxu0
      %v1191 = vmul.f32 %v1188, 0.35355338
      %v1192 = vadd.f32 %v1191, %v391
      %v1193 = vsel %vm395, %v1192, -inf
      %1194 = vmax.xlane.f32.xlu0 %v1193
      %v1195 = vpop.xlane.xlu0 %1194
      %v1196 = vsub.f32 %v1192, %v1195
      %v1197 = vmul.f32 %v1196, 1.442695
      %v1198 = vpow.pop %v1197
      %v1199 = vsel %vm395, %v1198, 0.0
      %1200 = vadd.xlane.f32.xlu0 %v1199
      %v1201 = vpop.xlane.xlu0 %1200
      %v1202 = vrcp.pop %v1201
      %v1203 = vmul.f32 %v1198, %v1202
      %1204 = vrot.lane.b32.xlu0 %v384, 40
      %v1205 = vpop.permute.xlu0 %1204
      %v1208 = vsel %vm395, %v1203, 0
      %1210 = vmatprep.subr.mxu0 0.0
      %1211 = vmatpush1.msra.mxu0 %v1205
      %1212 = vmatprep.subr.mxu0 0.0
      %1213 = vmatpush1.msra.mxu0 0.0
      %1214 = vmatprep.subr.mxu0 0.0
      %1215 = vmatpush1.msra.mxu0 0.0
      %1216 = vmatprep.subr.mxu0 0.0
      %1217 = vmatpush1.msra.mxu0 0.0
      %1218 = vmatprep.subr.mxu0 0.0
      %1219 = vmatpush1.msra.mxu0 0.0
      %1220 = vmatprep.subr.mxu0 0.0
      %1221 = vmatpush1.msra.mxu0 0.0
      %1222 = vmatprep.subr.mxu0 0.0
      %1223 = vmatpush1.msra.mxu0 0.0
      %1224 = vmatprep.subr.mxu0 0.0
      %1225 = vmatpush1.msra.mxu0 0.0
      %1226 = vmatprep.subr.mxu0 0.0
      %1227 = vmatpush1.msra.mxu0 0.0
      %1228 = vmatprep.subr.mxu0 0.0
      %1229 = vmatpush1.msra.mxu0 0.0
      %1230 = vmatprep.subr.mxu0 0.0
      %1231 = vmatpush1.msra.mxu0 0.0
      %1232 = vmatprep.subr.mxu0 0.0
      %1233 = vmatpush1.msra.mxu0 0.0
      %1234 = vmatprep.subr.mxu0 0.0
      %1235 = vmatpush1.msra.mxu0 0.0
      %1236 = vmatprep.subr.mxu0 0.0
      %1237 = vmatpush1.msra.mxu0 0.0
      %1238 = vmatprep.subr.mxu0 0.0
      %1239 = vmatpush1.msra.mxu0 0.0
      %1240 = vmatprep.subr.mxu0 0.0
      %1241 = vmatpush1.msra.mxu0 0.0
      %1242 = vmatprep.subr.mxu0 0.0
      %1243 = vmatpush1.msra.mxu0 0.0
      %1244 = vmatprep.subr.mxu0 0.0
      %1245 = vmatpush1.msra.mxu0 0.0
      %1246 = vmatprep.subr.mxu0 0.0
      %1247 = vmatpush1.msra.mxu0 0.0
      %1248 = vmatprep.subr.mxu0 0.0
      %1249 = vmatpush1.msra.mxu0 0.0
      %1250 = vmatprep.subr.mxu0 0.0
      %1251 = vmatpush1.msra.mxu0 0.0
      %1252 = vmatprep.subr.mxu0 0.0
      %1253 = vmatpush1.msra.mxu0 0.0
      %1254 = vmatprep.subr.mxu0 0.0
      %1255 = vmatpush1.msra.mxu0 0.0
      %1256 = vmatprep.subr.mxu0 0.0
      %1257 = vmatpush1.msra.mxu0 0.0
      %1258 = vmatprep.subr.mxu0 0.0
      %1259 = vmatpush1.msra.mxu0 0.0
      %1260 = vmatprep.subr.mxu0 0.0
      %1261 = vmatpush1.msra.mxu0 0.0
      %1262 = vmatprep.subr.mxu0 0.0
      %1263 = vmatpush1.msra.mxu0 0.0
      %1264 = vmatprep.subr.mxu0 0.0
      %1265 = vmatpush1.msra.mxu0 0.0
      %1266 = vmatprep.subr.mxu0 0.0
      %1267 = vmatpush1.msra.mxu0 0.0
      %1268 = vmatprep.subr.mxu0 0.0
      %1269 = vmatpush1.msra.mxu0 0.0
      %1270 = vmatprep.subr.mxu0 0.0
      %1271 = vmatpush1.msra.mxu0 0.0
      %1272 = vmatprep.subr.mxu0 0.0
      %1273 = vmatpush1.msra.mxu0 0.0
      %1274 = vmatprep.mubr.f32.mxu0 0.0
      %1275 = vmatmul.mubr.f32.gmra.mrb[0].mxu0 %v1208
      %v1276 = vpop.f32.mrb[0].mxu0
      %v1277 = vadd.f32 0.0, %v1276
      %v1278 = vpop.f32.mrb[0].mxu0
      %1279 = vdwg.mxu0
      %v1281 = vsel %vm395, %v1277, 0
      %1283 = vmatprep.subr.mxu0 0.0
      %1284 = vmatpush1.msra.mxu0 %v390
      %1285 = vmatprep.subr.mxu0 0.0
      %1286 = vmatpush1.msra.mxu0 0.0
      %1287 = vmatprep.subr.mxu0 0.0
      %1288 = vmatpush1.msra.mxu0 0.0
      %1289 = vmatprep.subr.mxu0 0.0
      %1290 = vmatpush1.msra.mxu0 0.0
      %1291 = vmatprep.subr.mxu0 0.0
      %1292 = vmatpush1.msra.mxu0 0.0
      %1293 = vmatprep.subr.mxu0 0.0
      %1294 = vmatpush1.msra.mxu0 0.0
      %1295 = vmatprep.subr.mxu0 0.0
      %1296 = vmatpush1.msra.mxu0 0.0
      %1297 = vmatprep.subr.mxu0 0.0
      %1298 = vmatpush1.msra.mxu0 0.0
      %1299 = vmatprep.subr.mxu0 0.0
      %1300 = vmatpush1.msra.mxu0 0.0
      %1301 = vmatprep.subr.mxu0 0.0
      %1302 = vmatpush1.msra.mxu0 0.0
      %1303 = vmatprep.subr.mxu0 0.0
      %1304 = vmatpush1.msra.mxu0 0.0
      %1305 = vmatprep.subr.mxu0 0.0
      %1306 = vmatpush1.msra.mxu0 0.0
      %1307 = vmatprep.subr.mxu0 0.0
      %1308 = vmatpush1.msra.mxu0 0.0
      %1309 = vmatprep.subr.mxu0 0.0
      %1310 = vmatpush1.msra.mxu0 0.0
      %1311 = vmatprep.subr.mxu0 0.0
      %1312 = vmatpush1.msra.mxu0 0.0
      %1313 = vmatprep.subr.mxu0 0.0
      %1314 = vmatpush1.msra.mxu0 0.0
      %1315 = vmatprep.subr.mxu0 0.0
      %1316 = vmatpush1.msra.mxu0 0.0
      %1317 = vmatprep.subr.mxu0 0.0
      %1318 = vmatpush1.msra.mxu0 0.0
      %1319 = vmatprep.subr.mxu0 0.0
      %1320 = vmatpush1.msra.mxu0 0.0
      %1321 = vmatprep.subr.mxu0 0.0
      %1322 = vmatpush1.msra.mxu0 0.0
      %1323 = vmatprep.subr.mxu0 0.0
      %1324 = vmatpush1.msra.mxu0 0.0
      %1325 = vmatprep.subr.mxu0 0.0
      %1326 = vmatpush1.msra.mxu0 0.0
      %1327 = vmatprep.subr.mxu0 0.0
      %1328 = vmatpush1.msra.mxu0 0.0
      %1329 = vmatprep.subr.mxu0 0.0
      %1330 = vmatpush1.msra.mxu0 0.0
      %1331 = vmatprep.subr.mxu0 0.0
      %1332 = vmatpush1.msra.mxu0 0.0
      %1333 = vmatprep.subr.mxu0 0.0
      %1334 = vmatpush1.msra.mxu0 0.0
      %1335 = vmatprep.subr.mxu0 0.0
      %1336 = vmatpush1.msra.mxu0 0.0
      %1337 = vmatprep.subr.mxu0 0.0
      %1338 = vmatpush1.msra.mxu0 0.0
      %1339 = vmatprep.subr.mxu0 0.0
      %1340 = vmatpush1.msra.mxu0 0.0
      %1341 = vmatprep.subr.mxu0 0.0
      %1342 = vmatpush1.msra.mxu0 0.0
      %1343 = vmatprep.subr.mxu0 0.0
      %1344 = vmatpush1.msra.mxu0 0.0
      %1345 = vmatprep.subr.mxu0 0.0
      %1346 = vmatpush1.msra.mxu0 0.0
      %1347 = vmatprep.mubr.f32.mxu0 0.0
      %1348 = vmatmul.mubr.f32.gmra.mrb[0].mxu0 %v1281
      %v1349 = vpop.f32.mrb[0].mxu0
      %v1350 = vadd.f32 0.0, %v1349
      %v1351 = vpop.f32.mrb[0].mxu0
      %1352 = vdwg.mxu0
      %v1353 = vadd.f32 %v1112, %v1350
      %v1354 = vadd.f32 %v301, %v1353
      %v1355 = vld [vmem:[%s4] sm:$0x1]
      %v1357 = vlaneseq
      %v1358 = vshrl.u32 %v1357, 7
      %v1359 = vsub.s32 0, %v1358
      %v1360 = vrot.slane %v1355, %v1359
      %v1362 = vadd.f32 %v1354, %v1360
      %v1363 = vsel %vm313, %v1362, 0.0
      %1364 = vadd.xlane.f32.xlu0 %v1363
      %v1365 = vpop.xlane.xlu0 %1364
      %v1366 = vrcp.pop 32.0
      %v1367 = vmul.f32 %v1365, %v1366
      %v1368 = vsub.f32 %v1362, %v1367
      %v1369 = vmul.f32 %v1368, %v1368
      %v1370 = vsel %vm313, %v1369, 0.0
      %1371 = vadd.xlane.f32.xlu0 %v1370
      %v1372 = vpop.xlane.xlu0 %1371
      %v1373 = vmul.f32 %v1372, %v1366
      %v1374 = vadd.f32 %v1373, 1e-05
      %v1375 = vrsqrt.pop %v1374
      %v1376 = vmul.f32 %v1368, %v1375
      %v1377 = vld [vmem:[%s6] sm:$0x1]
      %v1379 = vlaneseq
      %v1380 = vshrl.u32 %v1379, 7
      %v1381 = vsub.s32 0, %v1380
      %v1382 = vrot.slane %v1377, %v1381
      %v1384 = vmul.f32 %v1376, %v1382
      %v1385 = vld [vmem:[%s7] sm:$0x1]
      %v1387 = vlaneseq
      %v1388 = vshrl.u32 %v1387, 7
      %v1389 = vsub.s32 0, %v1388
      %v1390 = vrot.slane %v1385, %v1389
      %v1392 = vadd.f32 %v1384, %v1390
      %1393 = vst.msk [vmem:[%s300] sm:$0xff] %vm313, %v1392
      %p1394 = scmp.lt.s32.totalorder %s19, 1
      %s1395 = scalar_select %p1394, %s19, 1
      %s1396 = smul.addr %s1395, 8
      %s1397 = scalar_lea.vmem %s8, %s1396
      // Predicated region
      $region53: #{time_series_transformer.19} parent=51 // pred_check
        %p1398 = pneg %p210
      $region54: #{time_series_transformer.19} parent=51 // pred_check_branch
        %1400 = sbr.rel (%p1398) target = $region56
      $region55: #{time_series_transformer.19} parent=51 // pred_region
        _
      $region56: #{time_series_transformer.19} parent=51 // pred_fallthru
        _
    $region52: #{time_series_transformer.19} parent=5 // pred_fallthru
      _
    %p1401 = scmp.le.s32.totalorder 2, %s14
    // Predicated region
    $region57: #{time_series_transformer.19} parent=5 // pred_check
      %p1402 = pneg %p1401
    $region58: #{time_series_transformer.19} parent=5 // pred_check_branch
      %1404 = sbr.rel (%p1402) target = $region60
    $region59: #{time_series_transformer.19} parent=5 // pred_region
      %s1405 = ssub.s32 %s14, 2
      // Predicated region
      $region61: #{time_series_transformer.19} parent=59 // pred_check
        %p1406 = pneg %p216
      $region62: #{time_series_transformer.19} parent=59 // pred_check_branch
        %1408 = sbr.rel (%p1406) target = $region64
      $region63: #{time_series_transformer.19} parent=59 // pred_region
        %p1409 = scmp.lt.s32.totalorder %s20, 1
        %s1410 = scalar_select %p1409, %s20, 1
        %s1411 = smul.addr %s1410, 8
        %s1412 = scalar_lea.vmem %s8, %s1411
      $region64: #{time_series_transformer.19} parent=59 // pred_fallthru
        _
    $region60: #{time_series_transformer.19} parent=5 // pred_fallthru
      _
  $region6: #{time_series_transformer.19} parent=0 // loop_footer
    %s18 = sadd.s32 1, %s14
  $region7: #{time_series_transformer.19} parent=0 // loop_footer_branch
    %13 = sbr.rel target = $region3
  $region8: #{time_series_transformer.19} parent=0 // loop_exit
    _

// kernel: time_series_transformer.20
$region0: #{time_series_transformer.20}
  #allocation0 [shape = 'u32[]', space=smem, size = 0x4, offset = 0x4, fixed_abs, tag = 'smem constant byte address 0x4 - core index']
  #allocation1 [shape = 'u32[144,128]{1,0:T(1,128)}', space=vmem, size = 0x12000, scoped, tag = 'internal scratch']
  %s0 = inlined_call_operand.vmem [shape: f32[2,8,32], index: 0, kind: input, shape index: {}]
  %s1 = inlined_call_operand.vmem [shape: f32[2,8,32], index: 1, kind: input, shape index: {}]
  %s2 = inlined_call_operand.vmem [shape: f32[32,96], index: 2, kind: input, shape index: {}]
  %s3 = inlined_call_operand.vmem [shape: f32[1,96], index: 3, kind: input, shape index: {}]
  %s4 = inlined_call_operand.vmem [shape: f32[32,32], index: 4, kind: input, shape index: {}]
  %s5 = inlined_call_operand.vmem [shape: f32[1,32], index: 5, kind: input, shape index: {}]
  %s6 = inlined_call_operand.vmem [shape: f32[1,32], index: 6, kind: input, shape index: {}]
  %s7 = inlined_call_operand.vmem [shape: f32[1,32], index: 7, kind: input, shape index: {}]
  %s8 = inlined_call_operand.vmem [shape: f32[2,8,32], index: 8, kind: output, shape index: {}]
  %s9 = sld [smem:[#allocation0]]
  $region65: #{time_series_transformer.20} parent=0
    _
  %s11 = ssub.s32 1, %s9
  %s12 = scalar_select 0, %s11, %s9
  loop: start=0, step=1, limit=4
  $region2: #{time_series_transformer.20} parent=0 // loop_pre_header
    _
  $region3: #{time_series_transformer.20} parent=0 // loop_header
    %s14 = sphi 0, %s18
    %p15 = scmp.ge.s32.totalorder %s14, 4
    %s24 = sphi 0, %s26
    %s27 = sphi 0, %s24
    %s28 = sphi 0, %s27
    %s44 = sphi 0, %s28
    %s50 = sphi 0, %s52
    %s53 = sphi 0, %s50
    %s54 = sphi 0, %s53
    %s70 = sphi 0, %s54
    %s74 = sphi 0, %s74
    %s76 = sphi 0, %s74
    %s77 = sphi 0, %s76
    %s91 = sphi 0, %s77
    %s95 = sphi 0, %s95
    %s97 = sphi 0, %s95
    %s98 = sphi 0, %s97
    %s112 = sphi 0, %s98
    %s116 = sphi 0, %s116
    %s118 = sphi 0, %s116
    %s119 = sphi 0, %s118
    %s133 = sphi 0, %s119
    %s137 = sphi 0, %s137
    %s139 = sphi 0, %s137
    %s140 = sphi 0, %s139
    %s154 = sphi 0, %s140
    %s158 = sphi 0, %s158
    %s160 = sphi 0, %s158
    %s161 = sphi 0, %s160
    %s175 = sphi 0, %s161
    %s179 = sphi 0, %s179
    %s181 = sphi 0, %s179
    %s182 = sphi 0, %s181
    %s196 = sphi 0, %s182
    %s202 = sphi 0, %s204
    %s205 = sphi 0, %s202
    %s206 = sphi 0, %s205
    %s222 = sphi 0, %s206
  $region4: #{time_series_transformer.20} parent=0 // loop_header_branch
    %17 = sbr.rel (%p15) target = $region8
  $region5: #{time_series_transformer.20} parent=0 // loop_body
    %s19 = ssub.s32 %s14, 1
    %s20 = ssub.s32 %s14, 2
    %s21 = sadd.s32 %s14, 1
    %s22 = ssub.s32 %s14, %s21
    %p23 = scmp.eq.s32.totalorder %s22, 0
    %s25 = sadd.s32 %s24, 1
    %s26 = scalar_select %p23, %s24, %s25
    %p29 = pneg %p23
    %p30 = scmp.eq.s32.totalorder %s14, 1
    %p31 = por %p29, %p30
    %p32 = scmp.ne.s32.totalorder %s24, %s27
    %p33 = scmp.eq.s32.totalorder %s14, 0
    %p34 = por %p32, %p33
    %p35 = scmp.ne.s32.totalorder %s24, %s27
    %p36 = scmp.eq.s32.totalorder %s19, 1
    %p37 = por %p35, %p36
    %p38 = scmp.ne.s32.totalorder %s27, %s28
    %p39 = scmp.eq.s32.totalorder %s19, 0
    %p40 = por %p38, %p39
    %p41 = scmp.ne.s32.totalorder %s27, %s28
    %p42 = scmp.eq.s32.totalorder %s20, 1
    %p43 = por %p41, %p42
    %p45 = scmp.ne.s32.totalorder %s28, %s44
    %p46 = scmp.eq.s32.totalorder %s20, 0
    %p47 = por %p45, %p46
    %s48 = ssub.s32 %s14, %s21
    %p49 = scmp.eq.s32.totalorder %s48, 0
    %s51 = sadd.s32 %s50, 1
    %s52 = scalar_select %p49, %s50, %s51
    %p55 = pneg %p49
    %p56 = scmp.eq.s32.totalorder %s14, 1
    %p57 = por %p55, %p56
    %p58 = scmp.ne.s32.totalorder %s50, %s53
    %p59 = scmp.eq.s32.totalorder %s14, 0
    %p60 = por %p58, %p59
    %p61 = scmp.ne.s32.totalorder %s50, %s53
    %p62 = scmp.eq.s32.totalorder %s19, 1
    %p63 = por %p61, %p62
    %p64 = scmp.ne.s32.totalorder %s53, %s54
    %p65 = scmp.eq.s32.totalorder %s19, 0
    %p66 = por %p64, %p65
    %p67 = scmp.ne.s32.totalorder %s53, %s54
    %p68 = scmp.eq.s32.totalorder %s20, 1
    %p69 = por %p67, %p68
    %p71 = scmp.ne.s32.totalorder %s54, %s70
    %p72 = scmp.eq.s32.totalorder %s20, 0
    %p73 = por %p71, %p72
    %s75 = sadd.s32 %s74, 1
    %p78 = scmp.eq.s32.totalorder %s14, 1
    %p79 = scmp.ne.s32.totalorder %s74, %s76
    %p80 = scmp.eq.s32.totalorder %s14, 0
    %p81 = por %p79, %p80
    %p82 = scmp.ne.s32.totalorder %s74, %s76
    %p83 = scmp.eq.s32.totalorder %s19, 1
    %p84 = por %p82, %p83
    %p85 = scmp.ne.s32.totalorder %s76, %s77
    %p86 = scmp.eq.s32.totalorder %s19, 0
    %p87 = por %p85, %p86
    %p88 = scmp.ne.s32.totalorder %s76, %s77
    %p89 = scmp.eq.s32.totalorder %s20, 1
    %p90 = por %p88, %p89
    %p92 = scmp.ne.s32.totalorder %s77, %s91
    %p93 = scmp.eq.s32.totalorder %s20, 0
    %p94 = por %p92, %p93
    %s96 = sadd.s32 %s95, 1
    %p99 = scmp.eq.s32.totalorder %s14, 1
    %p100 = scmp.ne.s32.totalorder %s95, %s97
    %p101 = scmp.eq.s32.totalorder %s14, 0
    %p102 = por %p100, %p101
    %p103 = scmp.ne.s32.totalorder %s95, %s97
    %p104 = scmp.eq.s32.totalorder %s19, 1
    %p105 = por %p103, %p104
    %p106 = scmp.ne.s32.totalorder %s97, %s98
    %p107 = scmp.eq.s32.totalorder %s19, 0
    %p108 = por %p106, %p107
    %p109 = scmp.ne.s32.totalorder %s97, %s98
    %p110 = scmp.eq.s32.totalorder %s20, 1
    %p111 = por %p109, %p110
    %p113 = scmp.ne.s32.totalorder %s98, %s112
    %p114 = scmp.eq.s32.totalorder %s20, 0
    %p115 = por %p113, %p114
    %s117 = sadd.s32 %s116, 1
    %p120 = scmp.eq.s32.totalorder %s14, 1
    %p121 = scmp.ne.s32.totalorder %s116, %s118
    %p122 = scmp.eq.s32.totalorder %s14, 0
    %p123 = por %p121, %p122
    %p124 = scmp.ne.s32.totalorder %s116, %s118
    %p125 = scmp.eq.s32.totalorder %s19, 1
    %p126 = por %p124, %p125
    %p127 = scmp.ne.s32.totalorder %s118, %s119
    %p128 = scmp.eq.s32.totalorder %s19, 0
    %p129 = por %p127, %p128
    %p130 = scmp.ne.s32.totalorder %s118, %s119
    %p131 = scmp.eq.s32.totalorder %s20, 1
    %p132 = por %p130, %p131
    %p134 = scmp.ne.s32.totalorder %s119, %s133
    %p135 = scmp.eq.s32.totalorder %s20, 0
    %p136 = por %p134, %p135
    %s138 = sadd.s32 %s137, 1
    %p141 = scmp.eq.s32.totalorder %s14, 1
    %p142 = scmp.ne.s32.totalorder %s137, %s139
    %p143 = scmp.eq.s32.totalorder %s14, 0
    %p144 = por %p142, %p143
    %p145 = scmp.ne.s32.totalorder %s137, %s139
    %p146 = scmp.eq.s32.totalorder %s19, 1
    %p147 = por %p145, %p146
    %p148 = scmp.ne.s32.totalorder %s139, %s140
    %p149 = scmp.eq.s32.totalorder %s19, 0
    %p150 = por %p148, %p149
    %p151 = scmp.ne.s32.totalorder %s139, %s140
    %p152 = scmp.eq.s32.totalorder %s20, 1
    %p153 = por %p151, %p152
    %p155 = scmp.ne.s32.totalorder %s140, %s154
    %p156 = scmp.eq.s32.totalorder %s20, 0
    %p157 = por %p155, %p156
    %s159 = sadd.s32 %s158, 1
    %p162 = scmp.eq.s32.totalorder %s14, 1
    %p163 = scmp.ne.s32.totalorder %s158, %s160
    %p164 = scmp.eq.s32.totalorder %s14, 0
    %p165 = por %p163, %p164
    %p166 = scmp.ne.s32.totalorder %s158, %s160
    %p167 = scmp.eq.s32.totalorder %s19, 1
    %p168 = por %p166, %p167
    %p169 = scmp.ne.s32.totalorder %s160, %s161
    %p170 = scmp.eq.s32.totalorder %s19, 0
    %p171 = por %p169, %p170
    %p172 = scmp.ne.s32.totalorder %s160, %s161
    %p173 = scmp.eq.s32.totalorder %s20, 1
    %p174 = por %p172, %p173
    %p176 = scmp.ne.s32.totalorder %s161, %s175
    %p177 = scmp.eq.s32.totalorder %s20, 0
    %p178 = por %p176, %p177
    %s180 = sadd.s32 %s179, 1
    %p183 = scmp.eq.s32.totalorder %s14, 1
    %p184 = scmp.ne.s32.totalorder %s179, %s181
    %p185 = scmp.eq.s32.totalorder %s14, 0
    %p186 = por %p184, %p185
    %p187 = scmp.ne.s32.totalorder %s179, %s181
    %p188 = scmp.eq.s32.totalorder %s19, 1
    %p189 = por %p187, %p188
    %p190 = scmp.ne.s32.totalorder %s181, %s182
    %p191 = scmp.eq.s32.totalorder %s19, 0
    %p192 = por %p190, %p191
    %p193 = scmp.ne.s32.totalorder %s181, %s182
    %p194 = scmp.eq.s32.totalorder %s20, 1
    %p195 = por %p193, %p194
    %p197 = scmp.ne.s32.totalorder %s182, %s196
    %p198 = scmp.eq.s32.totalorder %s20, 0
    %p199 = por %p197, %p198
    %s200 = ssub.s32 %s14, %s21
    %p201 = scmp.eq.s32.totalorder %s200, 0
    %s203 = sadd.s32 %s202, 1
    %s204 = scalar_select %p201, %s202, %s203
    %p207 = pneg %p201
    %p208 = scmp.eq.s32.totalorder %s14, 1
    %p209 = por %p207, %p208
    %p210 = scmp.ne.s32.totalorder %s202, %s205
    %p211 = scmp.eq.s32.totalorder %s14, 0
    %p212 = por %p210, %p211
    %p213 = scmp.ne.s32.totalorder %s202, %s205
    %p214 = scmp.eq.s32.totalorder %s19, 1
    %p215 = por %p213, %p214
    %p216 = scmp.ne.s32.totalorder %s205, %s206
    %p217 = scmp.eq.s32.totalorder %s19, 0
    %p218 = por %p216, %p217
    %p219 = scmp.ne.s32.totalorder %s205, %s206
    %p220 = scmp.eq.s32.totalorder %s20, 1
    %p221 = por %p219, %p220
    %p223 = scmp.ne.s32.totalorder %s206, %s222
    %p224 = scmp.eq.s32.totalorder %s20, 0
    %p225 = por %p223, %p224
    %p226 = scmp.le.s32.totalorder 1, %s14
    %p227 = scmp.lt.s32.totalorder %s14, 3
    %p228 = pnand %p226, %p227
    %p229 = pneg %p228
    // Predicated region
    $region9: #{time_series_transformer.20} parent=5 // pred_check
      _
    $region10: #{time_series_transformer.20} parent=5 // pred_check_branch
      %231 = sbr.rel (%p228) target = $region12
    $region11: #{time_series_transformer.20} parent=5 // pred_region
      %s232 = ssub.s32 %s14, 1
      // Predicated region
      $region13: #{time_series_transformer.20} parent=11 // pred_check
        %p233 = pneg %p87
      $region14: #{time_series_transformer.20} parent=11 // pred_check_branch
        %235 = sbr.rel (%p233) target = $region16
      $region15: #{time_series_transformer.20} parent=11 // pred_region
        _
      $region16: #{time_series_transformer.20} parent=11 // pred_fallthru
        _
      // Predicated region
      $region17: #{time_series_transformer.20} parent=11 // pred_check
        %p236 = pneg %p108
      $region18: #{time_series_transformer.20} parent=11 // pred_check_branch
        %238 = sbr.rel (%p236) target = $region20
      $region19: #{time_series_transformer.20} parent=11 // pred_region
        _
      $region20: #{time_series_transformer.20} parent=11 // pred_fallthru
        _
      // Predicated region
      $region21: #{time_series_transformer.20} parent=11 // pred_check
        %p239 = pneg %p129
      $region22: #{time_series_transformer.20} parent=11 // pred_check_branch
        %241 = sbr.rel (%p239) target = $region24
      $region23: #{time_series_transformer.20} parent=11 // pred_region
        _
      $region24: #{time_series_transformer.20} parent=11 // pred_fallthru
        _
      // Predicated region
      $region25: #{time_series_transformer.20} parent=11 // pred_check
        %p242 = pneg %p150
      $region26: #{time_series_transformer.20} parent=11 // pred_check_branch
        %244 = sbr.rel (%p242) target = $region28
      $region27: #{time_series_transformer.20} parent=11 // pred_region
        _
      $region28: #{time_series_transformer.20} parent=11 // pred_fallthru
        _
      // Predicated region
      $region29: #{time_series_transformer.20} parent=11 // pred_check
        %p245 = pneg %p171
      $region30: #{time_series_transformer.20} parent=11 // pred_check_branch
        %247 = sbr.rel (%p245) target = $region32
      $region31: #{time_series_transformer.20} parent=11 // pred_region
        _
      $region32: #{time_series_transformer.20} parent=11 // pred_fallthru
        _
      // Predicated region
      $region33: #{time_series_transformer.20} parent=11 // pred_check
        %p248 = pneg %p192
      $region34: #{time_series_transformer.20} parent=11 // pred_check_branch
        %250 = sbr.rel (%p248) target = $region36
      $region35: #{time_series_transformer.20} parent=11 // pred_region
        _
      $region36: #{time_series_transformer.20} parent=11 // pred_fallthru
        _
    $region12: #{time_series_transformer.20} parent=5 // pred_fallthru
      _
    %p251 = scmp.lt.s32.totalorder %s14, 2
    // Predicated region
    $region37: #{time_series_transformer.20} parent=5 // pred_check
      %p252 = pneg %p251
    $region38: #{time_series_transformer.20} parent=5 // pred_check_branch
      %254 = sbr.rel (%p252) target = $region40
    $region39: #{time_series_transformer.20} parent=5 // pred_region
      // Predicated region
      $region41: #{time_series_transformer.20} parent=39 // pred_check
        %p255 = pneg %p34
      $region42: #{time_series_transformer.20} parent=39 // pred_check_branch
        %257 = sbr.rel (%p255) target = $region44
      $region43: #{time_series_transformer.20} parent=39 // pred_region
        %p258 = scmp.lt.s32.totalorder %s14, 1
        %s259 = scalar_select %p258, %s14, 1
        %s260 = smul.addr %s259, 8
        %s261 = scalar_lea.vmem %s0, %s260
      $region44: #{time_series_transformer.20} parent=39 // pred_fallthru
        _
      // Predicated region
      $region45: #{time_series_transformer.20} parent=39 // pred_check
        %p262 = pneg %p60
      $region46: #{time_series_transformer.20} parent=39 // pred_check_branch
        %264 = sbr.rel (%p262) target = $region48
      $region47: #{time_series_transformer.20} parent=39 // pred_region
        %p265 = scmp.lt.s32.totalorder %s14, 1
        %s266 = scalar_select %p265, %s14, 1
        %s267 = smul.addr %s266, 8
        %s268 = scalar_lea.vmem %s1, %s267
      $region48: #{time_series_transformer.20} parent=39 // pred_fallthru
        _
    $region40: #{time_series_transformer.20} parent=5 // pred_fallthru
      _
    %p269 = scmp.le.s32.totalorder 1, %s14
    %p270 = scmp.lt.s32.totalorder %s14, 3
    %p271 = pnand %p269, %p270
    %p272 = pneg %p271
    // Predicated region
    $region49: #{time_series_transformer.20} parent=5 // pred_check
      _
    $region50: #{time_series_transformer.20} parent=5 // pred_check_branch
      %274 = sbr.rel (%p271) target = $region52
    $region51: #{time_series_transformer.20} parent=5 // pred_region
      %s275 = ssub.s32 %s14, 1
      %p276 = scmp.lt.s32.totalorder %s19, 1
      %s277 = scalar_select %p276, %s19, 1
      %s278 = smul.addr %s277, 8
      %s279 = scalar_lea.vmem %s0, %s278
      %p280 = pneg %p40
      %p281 = pneg %p37
      %p282 = scmp.lt.s32.totalorder %s19, 1
      %s283 = scalar_select %p282, %s19, 1
      %s284 = smul.addr %s283, 8
      %s285 = scalar_lea.vmem %s1, %s284
      %p286 = pneg %p66
      %p287 = pneg %p63
      %p288 = pneg %p87
      %p289 = pneg %p84
      %p290 = pneg %p108
      %p291 = pneg %p105
      %p292 = pneg %p129
      %p293 = pneg %p126
      %p294 = pneg %p150
      %p295 = pneg %p147
      %p296 = pneg %p171
      %p297 = pneg %p168
      %p298 = pneg %p192
      %p299 = pneg %p189
      %p300 = pneg %p218
      %p301 = pneg %p215
      %p302 = scmp.lt.s32.totalorder %s19, 1
      %s303 = scalar_select %p302, %s19, 1
      %s304 = smul.addr %s303, 8
      %s305 = scalar_lea.vmem %s8, %s304
      %p306 = scmp.lt.s32.totalorder %s19, 1
      %s307 = scalar_select %p306, %s19, 1
      %s308 = smul.addr %s307, 8
      %s309 = scalar_lea.vmem %s0, %s308
      %p310 = scmp.lt.s32.totalorder %s19, 1
      %s311 = scalar_select %p310, %s19, 1
      %s312 = smul.addr %s311, 8
      %s313 = scalar_lea.vmem %s1, %s312
      %p314 = scmp.lt.s32.totalorder %s19, 1
      %s315 = scalar_select %p314, %s19, 1
      %s316 = smul.addr %s315, 8
      %s317 = scalar_lea.vmem %s8, %s316
      %v318 = vld [vmem:[%s309] sm:$0xff]
      %v319 = vld [vmem:[%s2] sm:$0xff]
      %v320 = vld [vmem:[%s2 + $0x8] sm:$0xff]
      %v321 = vld [vmem:[%s2 + $0x10] sm:$0xff]
      %v322 = vld [vmem:[%s2 + $0x18] sm:$0xff]
      %v323 = vld [vmem:[%s3] sm:$0x1]
      %v324 = vld [vmem:[%s313] sm:$0xff]
      %v326 = vlaneseq
      %v327 = vshrl.u32 %v326, 7
      %v328 = vsub.s32 0, %v327
      %v329 = vrot.slane %v323, %v328
      %vm331 = vcmask 261120
      %v333 = vsel %vm331, %v318, 0
      %335 = vmatprep.subr.mxu0 0.0
      %336 = vmatpush1.msra.mxu0 %v319
      %337 = vmatprep.subr.mxu0 0.0
      %338 = vmatpush1.msra.mxu0 %v320
      %339 = vmatprep.subr.mxu0 0.0
      %340 = vmatpush1.msra.mxu0 %v321
      %341 = vmatprep.subr.mxu0 0.0
      %342 = vmatpush1.msra.mxu0 %v322
      %343 = vmatprep.subr.mxu0 0.0
      %344 = vmatpush1.msra.mxu0 0.0
      %345 = vmatprep.subr.mxu0 0.0
      %346 = vmatpush1.msra.mxu0 0.0
      %347 = vmatprep.subr.mxu0 0.0
      %348 = vmatpush1.msra.mxu0 0.0
      %349 = vmatprep.subr.mxu0 0.0
      %350 = vmatpush1.msra.mxu0 0.0
      %351 = vmatprep.subr.mxu0 0.0
      %352 = vmatpush1.msra.mxu0 0.0
      %353 = vmatprep.subr.mxu0 0.0
      %354 = vmatpush1.msra.mxu0 0.0
      %355 = vmatprep.subr.mxu0 0.0
      %356 = vmatpush1.msra.mxu0 0.0
      %357 = vmatprep.subr.mxu0 0.0
      %358 = vmatpush1.msra.mxu0 0.0
      %359 = vmatprep.subr.mxu0 0.0
      %360 = vmatpush1.msra.mxu0 0.0
      %361 = vmatprep.subr.mxu0 0.0
      %362 = vmatpush1.msra.mxu0 0.0
      %363 = vmatprep.subr.mxu0 0.0
      %364 = vmatpush1.msra.mxu0 0.0
      %365 = vmatprep.subr.mxu0 0.0
      %366 = vmatpush1.msra.mxu0 0.0
      %367 = vmatprep.subr.mxu0 0.0
      %368 = vmatpush1.msra.mxu0 0.0
      %369 = vmatprep.subr.mxu0 0.0
      %370 = vmatpush1.msra.mxu0 0.0
      %371 = vmatprep.subr.mxu0 0.0
      %372 = vmatpush1.msra.mxu0 0.0
      %373 = vmatprep.subr.mxu0 0.0
      %374 = vmatpush1.msra.mxu0 0.0
      %375 = vmatprep.subr.mxu0 0.0
      %376 = vmatpush1.msra.mxu0 0.0
      %377 = vmatprep.subr.mxu0 0.0
      %378 = vmatpush1.msra.mxu0 0.0
      %379 = vmatprep.subr.mxu0 0.0
      %380 = vmatpush1.msra.mxu0 0.0
      %381 = vmatprep.subr.mxu0 0.0
      %382 = vmatpush1.msra.mxu0 0.0
      %383 = vmatprep.subr.mxu0 0.0
      %384 = vmatpush1.msra.mxu0 0.0
      %385 = vmatprep.subr.mxu0 0.0
      %386 = vmatpush1.msra.mxu0 0.0
      %387 = vmatprep.subr.mxu0 0.0
      %388 = vmatpush1.msra.mxu0 0.0
      %389 = vmatprep.subr.mxu0 0.0
      %390 = vmatpush1.msra.mxu0 0.0
      %391 = vmatprep.subr.mxu0 0.0
      %392 = vmatpush1.msra.mxu0 0.0
      %393 = vmatprep.subr.mxu0 0.0
      %394 = vmatpush1.msra.mxu0 0.0
      %395 = vmatprep.subr.mxu0 0.0
      %396 = vmatpush1.msra.mxu0 0.0
      %397 = vmatprep.subr.mxu0 0.0
      %398 = vmatpush1.msra.mxu0 0.0
      %399 = vmatprep.mubr.f32.mxu0 0.0
      %400 = vmatmul.mubr.f32.gmra.mrb[0].mxu0 %v333
      %v401 = vpop.f32.mrb[0].mxu0
      %v402 = vadd.f32 %v329, %v401
      %v403 = vpop.f32.mrb[0].mxu0
      %404 = vdwg.mxu0
      %409 = vrot.lane.b32.xlu0 %v319, 96
      %v410 = vpop.permute.xlu0 %409
      %411 = vrot.lane.b32.xlu0 %v320, 96
      %v412 = vpop.permute.xlu0 %411
      %413 = vrot.lane.b32.xlu0 %v321, 96
      %v414 = vpop.permute.xlu0 %413
      %415 = vrot.lane.b32.xlu0 %v322, 96
      %v416 = vpop.permute.xlu0 %415
      %421 = vrot.lane.b32.xlu0 %v329, 96
      %v422 = vpop.permute.xlu0 %421
      %v425 = vsel %vm331, %v324, 0
      %427 = vmatprep.subr.mxu0 0.0
      %428 = vmatpush1.msra.mxu0 %v410
      %429 = vmatprep.subr.mxu0 0.0
      %430 = vmatpush1.msra.mxu0 %v412
      %431 = vmatprep.subr.mxu0 0.0
      %432 = vmatpush1.msra.mxu0 %v414
      %433 = vmatprep.subr.mxu0 0.0
      %434 = vmatpush1.msra.mxu0 %v416
      %435 = vmatprep.subr.mxu0 0.0
      %436 = vmatpush1.msra.mxu0 0.0
      %437 = vmatprep.subr.mxu0 0.0
      %438 = vmatpush1.msra.mxu0 0.0
      %439 = vmatprep.subr.mxu0 0.0
      %440 = vmatpush1.msra.mxu0 0.0
      %441 = vmatprep.subr.mxu0 0.0
      %442 = vmatpush1.msra.mxu0 0.0
      %443 = vmatprep.subr.mxu0 0.0
      %444 = vmatpush1.msra.mxu0 0.0
      %445 = vmatprep.subr.mxu0 0.0
      %446 = vmatpush1.msra.mxu0 0.0
      %447 = vmatprep.subr.mxu0 0.0
      %448 = vmatpush1.msra.mxu0 0.0
      %449 = vmatprep.subr.mxu0 0.0
      %450 = vmatpush1.msra.mxu0 0.0
      %451 = vmatprep.subr.mxu0 0.0
      %452 = vmatpush1.msra.mxu0 0.0
      %453 = vmatprep.subr.mxu0 0.0
      %454 = vmatpush1.msra.mxu0 0.0
      %455 = vmatprep.subr.mxu0 0.0
      %456 = vmatpush1.msra.mxu0 0.0
      %457 = vmatprep.subr.mxu0 0.0
      %458 = vmatpush1.msra.mxu0 0.0
      %459 = vmatprep.subr.mxu0 0.0
      %460 = vmatpush1.msra.mxu0 0.0
      %461 = vmatprep.subr.mxu0 0.0
      %462 = vmatpush1.msra.mxu0 0.0
      %463 = vmatprep.subr.mxu0 0.0
      %464 = vmatpush1.msra.mxu0 0.0
      %465 = vmatprep.subr.mxu0 0.0
      %466 = vmatpush1.msra.mxu0 0.0
      %467 = vmatprep.subr.mxu0 0.0
      %468 = vmatpush1.msra.mxu0 0.0
      %469 = vmatprep.subr.mxu0 0.0
      %470 = vmatpush1.msra.mxu0 0.0
      %471 = vmatprep.subr.mxu0 0.0
      %472 = vmatpush1.msra.mxu0 0.0
      %473 = vmatprep.subr.mxu0 0.0
      %474 = vmatpush1.msra.mxu0 0.0
      %475 = vmatprep.subr.mxu0 0.0
      %476 = vmatpush1.msra.mxu0 0.0
      %477 = vmatprep.subr.mxu0 0.0
      %478 = vmatpush1.msra.mxu0 0.0
      %479 = vmatprep.subr.mxu0 0.0
      %480 = vmatpush1.msra.mxu0 0.0
      %481 = vmatprep.subr.mxu0 0.0
      %482 = vmatpush1.msra.mxu0 0.0
      %483 = vmatprep.subr.mxu0 0.0
      %484 = vmatpush1.msra.mxu0 0.0
      %485 = vmatprep.subr.mxu0 0.0
      %486 = vmatpush1.msra.mxu0 0.0
      %487 = vmatprep.subr.mxu0 0.0
      %488 = vmatpush1.msra.mxu0 0.0
      %489 = vmatprep.subr.mxu0 0.0
      %490 = vmatpush1.msra.mxu0 0.0
      %491 = vmatprep.mubr.f32.mxu0 0.0
      %492 = vmatmul.mubr.f32.gmra.mrb[0].mxu0 %v425
      %v493 = vpop.f32.mrb[0].mxu0
      %v494 = vadd.f32 %v422, %v493
      %v495 = vpop.f32.mrb[0].mxu0
      %496 = vdwg.mxu0
      %v497 = vld [vmem:[%s4] sm:$0xff]
      %v498 = vld [vmem:[%s4 + $0x8] sm:$0xff]
      %v499 = vld [vmem:[%s4 + $0x10] sm:$0xff]
      %v500 = vld [vmem:[%s4 + $0x18] sm:$0xff]
      %vm501 = vcmask 64512
      %v503 = vsel %vm501, %v402, 0
      %v506 = vsel %vm501, %v494, 0
      %508 = vmatprep.subr.mxu0 0.0
      %509 = vmatpush1.xpose.msra.mxu0 %v506
      %510 = vmatprep.subr.mxu0 0.0
      %511 = vmatpush1.xpose.msra.mxu0 0.0
      %512 = vmatprep.subr.mxu0 0.0
      %513 = vmatpush1.xpose.msra.mxu0 0.0
      %514 = vmatprep.subr.mxu0 0.0
      %515 = vmatpush1.xpose.msra.mxu0 0.0
      %516 = vmatprep.subr.mxu0 0.0
      %517 = vmatpush1.xpose.msra.mxu0 0.0
      %518 = vmatprep.subr.mxu0 0.0
      %519 = vmatpush1.xpose.msra.mxu0 0.0
      %520 = vmatprep.subr.mxu0 0.0
      %521 = vmatpush1.xpose.msra.mxu0 0.0
      %522 = vmatprep.subr.mxu0 0.0
      %523 = vmatpush1.xpose.msra.mxu0 0.0
      %524 = vmatprep.subr.mxu0 0.0
      %525 = vmatpush1.xpose.msra.mxu0 0.0
      %526 = vmatprep.subr.mxu0 0.0
      %527 = vmatpush1.xpose.msra.mxu0 0.0
      %528 = vmatprep.subr.mxu0 0.0
      %529 = vmatpush1.xpose.msra.mxu0 0.0
      %530 = vmatprep.subr.mxu0 0.0
      %531 = vmatpush1.xpose.msra.mxu0 0.0
      %532 = vmatprep.subr.mxu0 0.0
      %533 = vmatpush1.xpose.msra.mxu0 0.0
      %534 = vmatprep.subr.mxu0 0.0
      %535 = vmatpush1.xpose.msra.mxu0 0.0
      %536 = vmatprep.subr.mxu0 0.0
      %537 = vmatpush1.xpose.msra.mxu0 0.0
      %538 = vmatprep.subr.mxu0 0.0
      %539 = vmatpush1.xpose.msra.mxu0 0.0
      %540 = vmatprep.subr.mxu0 0.0
      %541 = vmatpush1.xpose.msra.mxu0 0.0
      %542 = vmatprep.subr.mxu0 0.0
      %543 = vmatpush1.xpose.msra.mxu0 0.0
      %544 = vmatprep.subr.mxu0 0.0
      %545 = vmatpush1.xpose.msra.mxu0 0.0
      %546 = vmatprep.subr.mxu0 0.0
      %547 = vmatpush1.xpose.msra.mxu0 0.0
      %548 = vmatprep.subr.mxu0 0.0
      %549 = vmatpush1.xpose.msra.mxu0 0.0
      %550 = vmatprep.subr.mxu0 0.0
      %551 = vmatpush1.xpose.msra.mxu0 0.0
      %552 = vmatprep.subr.mxu0 0.0
      %553 = vmatpush1.xpose.msra.mxu0 0.0
      %554 = vmatprep.subr.mxu0 0.0
      %555 = vmatpush1.xpose.msra.mxu0 0.0
      %556 = vmatprep.subr.mxu0 0.0
      %557 = vmatpush1.xpose.msra.mxu0 0.0
      %558 = vmatprep.subr.mxu0 0.0
      %559 = vmatpush1.xpose.msra.mxu0 0.0
      %560 = vmatprep.subr.mxu0 0.0
      %561 = vmatpush1.xpose.msra.mxu0 0.0
      %562 = vmatprep.subr.mxu0 0.0
      %563 = vmatpush1.xpose.msra.mxu0 0.0
      %564 = vmatprep.subr.mxu0 0.0
      %565 = vmatpush1.xpose.msra.mxu0 0.0
      %566 = vmatprep.subr.mxu0 0.0
      %567 = vmatpush1.xpose.msra.mxu0 0.0
      %568 = vmatprep.subr.mxu0 0.0
      %569 = vmatpush1.xpose.msra.mxu0 0.0
      %570 = vmatprep.subr.mxu0 0.0
      %571 = vmatpush1.xpose.msra.mxu0 0.0
      %572 = vmatprep.mubr.f32.mxu0 0.0
      %573 = vmatmul.mubr.f32.gmra.mrb[0].mxu0 %v503
      %v574 = vpop.f32.mrb[0].mxu0
      %v575 = vadd.f32 0.0, %v574
      %v576 = vpop.f32.mrb[0].mxu0
      %577 = vdwg.mxu0
      %v578 = vmul.f32 %v575, 0.35355338
      %v579 = vsel %vm501, %v578, -inf
      %580 = vmax.xlane.f32.xlu0 %v579
      %v581 = vpop.xlane.xlu0 %580
      %v582 = vsub.f32 %v578, %v581
      %v583 = vmul.f32 %v582, 1.442695
      %v584 = vpow.pop %v583
      %v585 = vsel %vm501, %v584, 0.0
      %586 = vadd.xlane.f32.xlu0 %v585
      %v587 = vpop.xlane.xlu0 %586
      %v588 = vrcp.pop %v587
      %v589 = vmul.f32 %v584, %v588
      %590 = vrot.lane.b32.xlu0 %v494, 96
      %v591 = vpop.permute.xlu0 %590
      %v594 = vsel %vm501, %v589, 0
      %596 = vmatprep.subr.mxu0 0.0
      %597 = vmatpush1.msra.mxu0 %v591
      %598 = vmatprep.subr.mxu0 0.0
      %599 = vmatpush1.msra.mxu0 0.0
      %600 = vmatprep.subr.mxu0 0.0
      %601 = vmatpush1.msra.mxu0 0.0
      %602 = vmatprep.subr.mxu0 0.0
      %603 = vmatpush1.msra.mxu0 0.0
      %604 = vmatprep.subr.mxu0 0.0
      %605 = vmatpush1.msra.mxu0 0.0
      %606 = vmatprep.subr.mxu0 0.0
      %607 = vmatpush1.msra.mxu0 0.0
      %608 = vmatprep.subr.mxu0 0.0
      %609 = vmatpush1.msra.mxu0 0.0
      %610 = vmatprep.subr.mxu0 0.0
      %611 = vmatpush1.msra.mxu0 0.0
      %612 = vmatprep.subr.mxu0 0.0
      %613 = vmatpush1.msra.mxu0 0.0
      %614 = vmatprep.subr.mxu0 0.0
      %615 = vmatpush1.msra.mxu0 0.0
      %616 = vmatprep.subr.mxu0 0.0
      %617 = vmatpush1.msra.mxu0 0.0
      %618 = vmatprep.subr.mxu0 0.0
      %619 = vmatpush1.msra.mxu0 0.0
      %620 = vmatprep.subr.mxu0 0.0
      %621 = vmatpush1.msra.mxu0 0.0
      %622 = vmatprep.subr.mxu0 0.0
      %623 = vmatpush1.msra.mxu0 0.0
      %624 = vmatprep.subr.mxu0 0.0
      %625 = vmatpush1.msra.mxu0 0.0
      %626 = vmatprep.subr.mxu0 0.0
      %627 = vmatpush1.msra.mxu0 0.0
      %628 = vmatprep.subr.mxu0 0.0
      %629 = vmatpush1.msra.mxu0 0.0
      %630 = vmatprep.subr.mxu0 0.0
      %631 = vmatpush1.msra.mxu0 0.0
      %632 = vmatprep.subr.mxu0 0.0
      %633 = vmatpush1.msra.mxu0 0.0
      %634 = vmatprep.subr.mxu0 0.0
      %635 = vmatpush1.msra.mxu0 0.0
      %636 = vmatprep.subr.mxu0 0.0
      %637 = vmatpush1.msra.mxu0 0.0
      %638 = vmatprep.subr.mxu0 0.0
      %639 = vmatpush1.msra.mxu0 0.0
      %640 = vmatprep.subr.mxu0 0.0
      %641 = vmatpush1.msra.mxu0 0.0
      %642 = vmatprep.subr.mxu0 0.0
      %643 = vmatpush1.msra.mxu0 0.0
      %644 = vmatprep.subr.mxu0 0.0
      %645 = vmatpush1.msra.mxu0 0.0
      %646 = vmatprep.subr.mxu0 0.0
      %647 = vmatpush1.msra.mxu0 0.0
      %648 = vmatprep.subr.mxu0 0.0
      %649 = vmatpush1.msra.mxu0 0.0
      %650 = vmatprep.subr.mxu0 0.0
      %651 = vmatpush1.msra.mxu0 0.0
      %652 = vmatprep.subr.mxu0 0.0
      %653 = vmatpush1.msra.mxu0 0.0
      %654 = vmatprep.subr.mxu0 0.0
      %655 = vmatpush1.msra.mxu0 0.0
      %656 = vmatprep.subr.mxu0 0.0
      %657 = vmatpush1.msra.mxu0 0.0
      %658 = vmatprep.subr.mxu0 0.0
      %659 = vmatpush1.msra.mxu0 0.0
      %660 = vmatprep.mubr.f32.mxu0 0.0
      %661 = vmatmul.mubr.f32.gmra.mrb[0].mxu0 %v594
      %v662 = vpop.f32.mrb[0].mxu0
      %v663 = vadd.f32 0.0, %v662
      %v664 = vpop.f32.mrb[0].mxu0
      %665 = vdwg.mxu0
      %666 = vrot.lane.b32.xlu0 %v402, 120
      %v667 = vpop.permute.xlu0 %666
      %668 = vrot.lane.b32.xlu0 %v494, 120
      %v669 = vpop.permute.xlu0 %668
      %v670 = vsel %vm501, %v667, 0
      %v672 = vsel %vm501, %v669, 0
      %674 = vmatprep.subr.mxu0 0.0
      %675 = vmatpush1.xpose.msra.mxu0 %v672
      %676 = vmatprep.subr.mxu0 0.0
      %677 = vmatpush1.xpose.msra.mxu0 0.0
      %678 = vmatprep.subr.mxu0 0.0
      %679 = vmatpush1.xpose.msra.mxu0 0.0
      %680 = vmatprep.subr.mxu0 0.0
      %681 = vmatpush1.xpose.msra.mxu0 0.0
      %682 = vmatprep.subr.mxu0 0.0
      %683 = vmatpush1.xpose.msra.mxu0 0.0
      %684 = vmatprep.subr.mxu0 0.0
      %685 = vmatpush1.xpose.msra.mxu0 0.0
      %686 = vmatprep.subr.mxu0 0.0
      %687 = vmatpush1.xpose.msra.mxu0 0.0
      %688 = vmatprep.subr.mxu0 0.0
      %689 = vmatpush1.xpose.msra.mxu0 0.0
      %690 = vmatprep.subr.mxu0 0.0
      %691 = vmatpush1.xpose.msra.mxu0 0.0
      %692 = vmatprep.subr.mxu0 0.0
      %693 = vmatpush1.xpose.msra.mxu0 0.0
      %694 = vmatprep.subr.mxu0 0.0
      %695 = vmatpush1.xpose.msra.mxu0 0.0
      %696 = vmatprep.subr.mxu0 0.0
      %697 = vmatpush1.xpose.msra.mxu0 0.0
      %698 = vmatprep.subr.mxu0 0.0
      %699 = vmatpush1.xpose.msra.mxu0 0.0
      %700 = vmatprep.subr.mxu0 0.0
      %701 = vmatpush1.xpose.msra.mxu0 0.0
      %702 = vmatprep.subr.mxu0 0.0
      %703 = vmatpush1.xpose.msra.mxu0 0.0
      %704 = vmatprep.subr.mxu0 0.0
      %705 = vmatpush1.xpose.msra.mxu0 0.0
      %706 = vmatprep.subr.mxu0 0.0
      %707 = vmatpush1.xpose.msra.mxu0 0.0
      %708 = vmatprep.subr.mxu0 0.0
      %709 = vmatpush1.xpose.msra.mxu0 0.0
      %710 = vmatprep.subr.mxu0 0.0
      %711 = vmatpush1.xpose.msra.mxu0 0.0
      %712 = vmatprep.subr.mxu0 0.0
      %713 = vmatpush1.xpose.msra.mxu0 0.0
      %714 = vmatprep.subr.mxu0 0.0
      %715 = vmatpush1.xpose.msra.mxu0 0.0
      %716 = vmatprep.subr.mxu0 0.0
      %717 = vmatpush1.xpose.msra.mxu0 0.0
      %718 = vmatprep.subr.mxu0 0.0
      %719 = vmatpush1.xpose.msra.mxu0 0.0
      %720 = vmatprep.subr.mxu0 0.0
      %721 = vmatpush1.xpose.msra.mxu0 0.0
      %722 = vmatprep.subr.mxu0 0.0
      %723 = vmatpush1.xpose.msra.mxu0 0.0
      %724 = vmatprep.subr.mxu0 0.0
      %725 = vmatpush1.xpose.msra.mxu0 0.0
      %726 = vmatprep.subr.mxu0 0.0
      %727 = vmatpush1.xpose.msra.mxu0 0.0
      %728 = vmatprep.subr.mxu0 0.0
      %729 = vmatpush1.xpose.msra.mxu0 0.0
      %730 = vmatprep.subr.mxu0 0.0
      %731 = vmatpush1.xpose.msra.mxu0 0.0
      %732 = vmatprep.subr.mxu0 0.0
      %733 = vmatpush1.xpose.msra.mxu0 0.0
      %734 = vmatprep.subr.mxu0 0.0
      %735 = vmatpush1.xpose.msra.mxu0 0.0
      %736 = vmatprep.subr.mxu0 0.0
      %737 = vmatpush1.xpose.msra.mxu0 0.0
      %738 = vmatprep.mubr.f32.mxu0 0.0
      %739 = vmatmul.mubr.f32.gmra.mrb[0].mxu0 %v670
      %v740 = vpop.f32.mrb[0].mxu0
      %v741 = vadd.f32 0.0, %v740
      %v742 = vpop.f32.mrb[0].mxu0
      %743 = vdwg.mxu0
      %v744 = vmul.f32 %v741, 0.35355338
      %v745 = vsel %vm501, %v744, -inf
      %746 = vmax.xlane.f32.xlu0 %v745
      %v747 = vpop.xlane.xlu0 %746
      %v748 = vsub.f32 %v744, %v747
      %v749 = vmul.f32 %v748, 1.442695
      %v750 = vpow.pop %v749
      %v751 = vsel %vm501, %v750, 0.0
      %752 = vadd.xlane.f32.xlu0 %v751
      %v753 = vpop.xlane.xlu0 %752
      %v754 = vrcp.pop %v753
      %v755 = vmul.f32 %v750, %v754
      %756 = vrot.lane.b32.xlu0 %v494, 88
      %v757 = vpop.permute.xlu0 %756
      %v760 = vsel %vm501, %v755, 0
      %762 = vmatprep.subr.mxu0 0.0
      %763 = vmatpush1.msra.mxu0 %v757
      %764 = vmatprep.subr.mxu0 0.0
      %765 = vmatpush1.msra.mxu0 0.0
      %766 = vmatprep.subr.mxu0 0.0
      %767 = vmatpush1.msra.mxu0 0.0
      %768 = vmatprep.subr.mxu0 0.0
      %769 = vmatpush1.msra.mxu0 0.0
      %770 = vmatprep.subr.mxu0 0.0
      %771 = vmatpush1.msra.mxu0 0.0
      %772 = vmatprep.subr.mxu0 0.0
      %773 = vmatpush1.msra.mxu0 0.0
      %774 = vmatprep.subr.mxu0 0.0
      %775 = vmatpush1.msra.mxu0 0.0
      %776 = vmatprep.subr.mxu0 0.0
      %777 = vmatpush1.msra.mxu0 0.0
      %778 = vmatprep.subr.mxu0 0.0
      %779 = vmatpush1.msra.mxu0 0.0
      %780 = vmatprep.subr.mxu0 0.0
      %781 = vmatpush1.msra.mxu0 0.0
      %782 = vmatprep.subr.mxu0 0.0
      %783 = vmatpush1.msra.mxu0 0.0
      %784 = vmatprep.subr.mxu0 0.0
      %785 = vmatpush1.msra.mxu0 0.0
      %786 = vmatprep.subr.mxu0 0.0
      %787 = vmatpush1.msra.mxu0 0.0
      %788 = vmatprep.subr.mxu0 0.0
      %789 = vmatpush1.msra.mxu0 0.0
      %790 = vmatprep.subr.mxu0 0.0
      %791 = vmatpush1.msra.mxu0 0.0
      %792 = vmatprep.subr.mxu0 0.0
      %793 = vmatpush1.msra.mxu0 0.0
      %794 = vmatprep.subr.mxu0 0.0
      %795 = vmatpush1.msra.mxu0 0.0
      %796 = vmatprep.subr.mxu0 0.0
      %797 = vmatpush1.msra.mxu0 0.0
      %798 = vmatprep.subr.mxu0 0.0
      %799 = vmatpush1.msra.mxu0 0.0
      %800 = vmatprep.subr.mxu0 0.0
      %801 = vmatpush1.msra.mxu0 0.0
      %802 = vmatprep.subr.mxu0 0.0
      %803 = vmatpush1.msra.mxu0 0.0
      %804 = vmatprep.subr.mxu0 0.0
      %805 = vmatpush1.msra.mxu0 0.0
      %806 = vmatprep.subr.mxu0 0.0
      %807 = vmatpush1.msra.mxu0 0.0
      %808 = vmatprep.subr.mxu0 0.0
      %809 = vmatpush1.msra.mxu0 0.0
      %810 = vmatprep.subr.mxu0 0.0
      %811 = vmatpush1.msra.mxu0 0.0
      %812 = vmatprep.subr.mxu0 0.0
      %813 = vmatpush1.msra.mxu0 0.0
      %814 = vmatprep.subr.mxu0 0.0
      %815 = vmatpush1.msra.mxu0 0.0
      %816 = vmatprep.subr.mxu0 0.0
      %817 = vmatpush1.msra.mxu0 0.0
      %818 = vmatprep.subr.mxu0 0.0
      %819 = vmatpush1.msra.mxu0 0.0
      %820 = vmatprep.subr.mxu0 0.0
      %821 = vmatpush1.msra.mxu0 0.0
      %822 = vmatprep.subr.mxu0 0.0
      %823 = vmatpush1.msra.mxu0 0.0
      %824 = vmatprep.subr.mxu0 0.0
      %825 = vmatpush1.msra.mxu0 0.0
      %826 = vmatprep.mubr.f32.mxu0 0.0
      %827 = vmatmul.mubr.f32.gmra.mrb[0].mxu0 %v760
      %v828 = vpop.f32.mrb[0].mxu0
      %v829 = vadd.f32 0.0, %v828
      %v830 = vpop.f32.mrb[0].mxu0
      %831 = vdwg.mxu0
      %v833 = vsel %vm501, %v829, 0
      %835 = vmatprep.subr.mxu0 0.0
      %836 = vmatpush1.msra.mxu0 %v498
      %837 = vmatprep.subr.mxu0 0.0
      %838 = vmatpush1.msra.mxu0 0.0
      %839 = vmatprep.subr.mxu0 0.0
      %840 = vmatpush1.msra.mxu0 0.0
      %841 = vmatprep.subr.mxu0 0.0
      %842 = vmatpush1.msra.mxu0 0.0
      %843 = vmatprep.subr.mxu0 0.0
      %844 = vmatpush1.msra.mxu0 0.0
      %845 = vmatprep.subr.mxu0 0.0
      %846 = vmatpush1.msra.mxu0 0.0
      %847 = vmatprep.subr.mxu0 0.0
      %848 = vmatpush1.msra.mxu0 0.0
      %849 = vmatprep.subr.mxu0 0.0
      %850 = vmatpush1.msra.mxu0 0.0
      %851 = vmatprep.subr.mxu0 0.0
      %852 = vmatpush1.msra.mxu0 0.0
      %853 = vmatprep.subr.mxu0 0.0
      %854 = vmatpush1.msra.mxu0 0.0
      %855 = vmatprep.subr.mxu0 0.0
      %856 = vmatpush1.msra.mxu0 0.0
      %857 = vmatprep.subr.mxu0 0.0
      %858 = vmatpush1.msra.mxu0 0.0
      %859 = vmatprep.subr.mxu0 0.0
      %860 = vmatpush1.msra.mxu0 0.0
      %861 = vmatprep.subr.mxu0 0.0
      %862 = vmatpush1.msra.mxu0 0.0
      %863 = vmatprep.subr.mxu0 0.0
      %864 = vmatpush1.msra.mxu0 0.0
      %865 = vmatprep.subr.mxu0 0.0
      %866 = vmatpush1.msra.mxu0 0.0
      %867 = vmatprep.subr.mxu0 0.0
      %868 = vmatpush1.msra.mxu0 0.0
      %869 = vmatprep.subr.mxu0 0.0
      %870 = vmatpush1.msra.mxu0 0.0
      %871 = vmatprep.subr.mxu0 0.0
      %872 = vmatpush1.msra.mxu0 0.0
      %873 = vmatprep.subr.mxu0 0.0
      %874 = vmatpush1.msra.mxu0 0.0
      %875 = vmatprep.subr.mxu0 0.0
      %876 = vmatpush1.msra.mxu0 0.0
      %877 = vmatprep.subr.mxu0 0.0
      %878 = vmatpush1.msra.mxu0 0.0
      %879 = vmatprep.subr.mxu0 0.0
      %880 = vmatpush1.msra.mxu0 0.0
      %881 = vmatprep.subr.mxu0 0.0
      %882 = vmatpush1.msra.mxu0 0.0
      %883 = vmatprep.subr.mxu0 0.0
      %884 = vmatpush1.msra.mxu0 0.0
      %885 = vmatprep.subr.mxu0 0.0
      %886 = vmatpush1.msra.mxu0 0.0
      %887 = vmatprep.subr.mxu0 0.0
      %888 = vmatpush1.msra.mxu0 0.0
      %889 = vmatprep.subr.mxu0 0.0
      %890 = vmatpush1.msra.mxu0 0.0
      %891 = vmatprep.subr.mxu0 0.0
      %892 = vmatpush1.msra.mxu0 0.0
      %893 = vmatprep.subr.mxu0 0.0
      %894 = vmatpush1.msra.mxu0 0.0
      %895 = vmatprep.subr.mxu0 0.0
      %896 = vmatpush1.msra.mxu0 0.0
      %897 = vmatprep.subr.mxu0 0.0
      %898 = vmatpush1.msra.mxu0 0.0
      %899 = vmatprep.mubr.f32.mxu0 0.0
      %900 = vmatmul.mubr.f32.gmra.mrb[0].mxu0 %v833
      %v901 = vpop.f32.mrb[0].mxu0
      %v902 = vadd.f32 0.0, %v901
      %v903 = vpop.f32.mrb[0].mxu0
      %904 = vdwg.mxu0
      %v906 = vsel %vm501, %v663, 0
      %908 = vmatprep.subr.mxu0 0.0
      %909 = vmatpush1.msra.mxu0 %v497
      %910 = vmatprep.subr.mxu0 0.0
      %911 = vmatpush1.msra.mxu0 0.0
      %912 = vmatprep.subr.mxu0 0.0
      %913 = vmatpush1.msra.mxu0 0.0
      %914 = vmatprep.subr.mxu0 0.0
      %915 = vmatpush1.msra.mxu0 0.0
      %916 = vmatprep.subr.mxu0 0.0
      %917 = vmatpush1.msra.mxu0 0.0
      %918 = vmatprep.subr.mxu0 0.0
      %919 = vmatpush1.msra.mxu0 0.0
      %920 = vmatprep.subr.mxu0 0.0
      %921 = vmatpush1.msra.mxu0 0.0
      %922 = vmatprep.subr.mxu0 0.0
      %923 = vmatpush1.msra.mxu0 0.0
      %924 = vmatprep.subr.mxu0 0.0
      %925 = vmatpush1.msra.mxu0 0.0
      %926 = vmatprep.subr.mxu0 0.0
      %927 = vmatpush1.msra.mxu0 0.0
      %928 = vmatprep.subr.mxu0 0.0
      %929 = vmatpush1.msra.mxu0 0.0
      %930 = vmatprep.subr.mxu0 0.0
      %931 = vmatpush1.msra.mxu0 0.0
      %932 = vmatprep.subr.mxu0 0.0
      %933 = vmatpush1.msra.mxu0 0.0
      %934 = vmatprep.subr.mxu0 0.0
      %935 = vmatpush1.msra.mxu0 0.0
      %936 = vmatprep.subr.mxu0 0.0
      %937 = vmatpush1.msra.mxu0 0.0
      %938 = vmatprep.subr.mxu0 0.0
      %939 = vmatpush1.msra.mxu0 0.0
      %940 = vmatprep.subr.mxu0 0.0
      %941 = vmatpush1.msra.mxu0 0.0
      %942 = vmatprep.subr.mxu0 0.0
      %943 = vmatpush1.msra.mxu0 0.0
      %944 = vmatprep.subr.mxu0 0.0
      %945 = vmatpush1.msra.mxu0 0.0
      %946 = vmatprep.subr.mxu0 0.0
      %947 = vmatpush1.msra.mxu0 0.0
      %948 = vmatprep.subr.mxu0 0.0
      %949 = vmatpush1.msra.mxu0 0.0
      %950 = vmatprep.subr.mxu0 0.0
      %951 = vmatpush1.msra.mxu0 0.0
      %952 = vmatprep.subr.mxu0 0.0
      %953 = vmatpush1.msra.mxu0 0.0
      %954 = vmatprep.subr.mxu0 0.0
      %955 = vmatpush1.msra.mxu0 0.0
      %956 = vmatprep.subr.mxu0 0.0
      %957 = vmatpush1.msra.mxu0 0.0
      %958 = vmatprep.subr.mxu0 0.0
      %959 = vmatpush1.msra.mxu0 0.0
      %960 = vmatprep.subr.mxu0 0.0
      %961 = vmatpush1.msra.mxu0 0.0
      %962 = vmatprep.subr.mxu0 0.0
      %963 = vmatpush1.msra.mxu0 0.0
      %964 = vmatprep.subr.mxu0 0.0
      %965 = vmatpush1.msra.mxu0 0.0
      %966 = vmatprep.subr.mxu0 0.0
      %967 = vmatpush1.msra.mxu0 0.0
      %968 = vmatprep.subr.mxu0 0.0
      %969 = vmatpush1.msra.mxu0 0.0
      %970 = vmatprep.subr.mxu0 0.0
      %971 = vmatpush1.msra.mxu0 0.0
      %972 = vmatprep.mubr.f32.mxu0 0.0
      %973 = vmatmul.mubr.f32.gmra.mrb[0].mxu0 %v906
      %v974 = vpop.f32.mrb[0].mxu0
      %v975 = vadd.f32 %v902, %v974
      %v976 = vpop.f32.mrb[0].mxu0
      %977 = vdwg.mxu0
      %978 = vrot.lane.b32.xlu0 %v402, 112
      %v979 = vpop.permute.xlu0 %978
      %980 = vrot.lane.b32.xlu0 %v494, 112
      %v981 = vpop.permute.xlu0 %980
      %v982 = vsel %vm501, %v979, 0
      %v984 = vsel %vm501, %v981, 0
      %986 = vmatprep.subr.mxu0 0.0
      %987 = vmatpush1.xpose.msra.mxu0 %v984
      %988 = vmatprep.subr.mxu0 0.0
      %989 = vmatpush1.xpose.msra.mxu0 0.0
      %990 = vmatprep.subr.mxu0 0.0
      %991 = vmatpush1.xpose.msra.mxu0 0.0
      %992 = vmatprep.subr.mxu0 0.0
      %993 = vmatpush1.xpose.msra.mxu0 0.0
      %994 = vmatprep.subr.mxu0 0.0
      %995 = vmatpush1.xpose.msra.mxu0 0.0
      %996 = vmatprep.subr.mxu0 0.0
      %997 = vmatpush1.xpose.msra.mxu0 0.0
      %998 = vmatprep.subr.mxu0 0.0
      %999 = vmatpush1.xpose.msra.mxu0 0.0
      %1000 = vmatprep.subr.mxu0 0.0
      %1001 = vmatpush1.xpose.msra.mxu0 0.0
      %1002 = vmatprep.subr.mxu0 0.0
      %1003 = vmatpush1.xpose.msra.mxu0 0.0
      %1004 = vmatprep.subr.mxu0 0.0
      %1005 = vmatpush1.xpose.msra.mxu0 0.0
      %1006 = vmatprep.subr.mxu0 0.0
      %1007 = vmatpush1.xpose.msra.mxu0 0.0
      %1008 = vmatprep.subr.mxu0 0.0
      %1009 = vmatpush1.xpose.msra.mxu0 0.0
      %1010 = vmatprep.subr.mxu0 0.0
      %1011 = vmatpush1.xpose.msra.mxu0 0.0
      %1012 = vmatprep.subr.mxu0 0.0
      %1013 = vmatpush1.xpose.msra.mxu0 0.0
      %1014 = vmatprep.subr.mxu0 0.0
      %1015 = vmatpush1.xpose.msra.mxu0 0.0
      %1016 = vmatprep.subr.mxu0 0.0
      %1017 = vmatpush1.xpose.msra.mxu0 0.0
      %1018 = vmatprep.subr.mxu0 0.0
      %1019 = vmatpush1.xpose.msra.mxu0 0.0
      %1020 = vmatprep.subr.mxu0 0.0
      %1021 = vmatpush1.xpose.msra.mxu0 0.0
      %1022 = vmatprep.subr.mxu0 0.0
      %1023 = vmatpush1.xpose.msra.mxu0 0.0
      %1024 = vmatprep.subr.mxu0 0.0
      %1025 = vmatpush1.xpose.msra.mxu0 0.0
      %1026 = vmatprep.subr.mxu0 0.0
      %1027 = vmatpush1.xpose.msra.mxu0 0.0
      %1028 = vmatprep.subr.mxu0 0.0
      %1029 = vmatpush1.xpose.msra.mxu0 0.0
      %1030 = vmatprep.subr.mxu0 0.0
      %1031 = vmatpush1.xpose.msra.mxu0 0.0
      %1032 = vmatprep.subr.mxu0 0.0
      %1033 = vmatpush1.xpose.msra.mxu0 0.0
      %1034 = vmatprep.subr.mxu0 0.0
      %1035 = vmatpush1.xpose.msra.mxu0 0.0
      %1036 = vmatprep.subr.mxu0 0.0
      %1037 = vmatpush1.xpose.msra.mxu0 0.0
      %1038 = vmatprep.subr.mxu0 0.0
      %1039 = vmatpush1.xpose.msra.mxu0 0.0
      %1040 = vmatprep.subr.mxu0 0.0
      %1041 = vmatpush1.xpose.msra.mxu0 0.0
      %1042 = vmatprep.subr.mxu0 0.0
      %1043 = vmatpush1.xpose.msra.mxu0 0.0
      %1044 = vmatprep.subr.mxu0 0.0
      %1045 = vmatpush1.xpose.msra.mxu0 0.0
      %1046 = vmatprep.subr.mxu0 0.0
      %1047 = vmatpush1.xpose.msra.mxu0 0.0
      %1048 = vmatprep.subr.mxu0 0.0
      %1049 = vmatpush1.xpose.msra.mxu0 0.0
      %1050 = vmatprep.mubr.f32.mxu0 0.0
      %1051 = vmatmul.mubr.f32.gmra.mrb[0].mxu0 %v982
      %v1052 = vpop.f32.mrb[0].mxu0
      %v1053 = vadd.f32 0.0, %v1052
      %v1054 = vpop.f32.mrb[0].mxu0
      %1055 = vdwg.mxu0
      %v1056 = vmul.f32 %v1053, 0.35355338
      %v1057 = vsel %vm501, %v1056, -inf
      %1058 = vmax.xlane.f32.xlu0 %v1057
      %v1059 = vpop.xlane.xlu0 %1058
      %v1060 = vsub.f32 %v1056, %v1059
      %v1061 = vmul.f32 %v1060, 1.442695
      %v1062 = vpow.pop %v1061
      %v1063 = vsel %vm501, %v1062, 0.0
      %1064 = vadd.xlane.f32.xlu0 %v1063
      %v1065 = vpop.xlane.xlu0 %1064
      %v1066 = vrcp.pop %v1065
      %v1067 = vmul.f32 %v1062, %v1066
      %1068 = vrot.lane.b32.xlu0 %v494, 80
      %v1069 = vpop.permute.xlu0 %1068
      %v1072 = vsel %vm501, %v1067, 0
      %1074 = vmatprep.subr.mxu0 0.0
      %1075 = vmatpush1.msra.mxu0 %v1069
      %1076 = vmatprep.subr.mxu0 0.0
      %1077 = vmatpush1.msra.mxu0 0.0
      %1078 = vmatprep.subr.mxu0 0.0
      %1079 = vmatpush1.msra.mxu0 0.0
      %1080 = vmatprep.subr.mxu0 0.0
      %1081 = vmatpush1.msra.mxu0 0.0
      %1082 = vmatprep.subr.mxu0 0.0
      %1083 = vmatpush1.msra.mxu0 0.0
      %1084 = vmatprep.subr.mxu0 0.0
      %1085 = vmatpush1.msra.mxu0 0.0
      %1086 = vmatprep.subr.mxu0 0.0
      %1087 = vmatpush1.msra.mxu0 0.0
      %1088 = vmatprep.subr.mxu0 0.0
      %1089 = vmatpush1.msra.mxu0 0.0
      %1090 = vmatprep.subr.mxu0 0.0
      %1091 = vmatpush1.msra.mxu0 0.0
      %1092 = vmatprep.subr.mxu0 0.0
      %1093 = vmatpush1.msra.mxu0 0.0
      %1094 = vmatprep.subr.mxu0 0.0
      %1095 = vmatpush1.msra.mxu0 0.0
      %1096 = vmatprep.subr.mxu0 0.0
      %1097 = vmatpush1.msra.mxu0 0.0
      %1098 = vmatprep.subr.mxu0 0.0
      %1099 = vmatpush1.msra.mxu0 0.0
      %1100 = vmatprep.subr.mxu0 0.0
      %1101 = vmatpush1.msra.mxu0 0.0
      %1102 = vmatprep.subr.mxu0 0.0
      %1103 = vmatpush1.msra.mxu0 0.0
      %1104 = vmatprep.subr.mxu0 0.0
      %1105 = vmatpush1.msra.mxu0 0.0
      %1106 = vmatprep.subr.mxu0 0.0
      %1107 = vmatpush1.msra.mxu0 0.0
      %1108 = vmatprep.subr.mxu0 0.0
      %1109 = vmatpush1.msra.mxu0 0.0
      %1110 = vmatprep.subr.mxu0 0.0
      %1111 = vmatpush1.msra.mxu0 0.0
      %1112 = vmatprep.subr.mxu0 0.0
      %1113 = vmatpush1.msra.mxu0 0.0
      %1114 = vmatprep.subr.mxu0 0.0
      %1115 = vmatpush1.msra.mxu0 0.0
      %1116 = vmatprep.subr.mxu0 0.0
      %1117 = vmatpush1.msra.mxu0 0.0
      %1118 = vmatprep.subr.mxu0 0.0
      %1119 = vmatpush1.msra.mxu0 0.0
      %1120 = vmatprep.subr.mxu0 0.0
      %1121 = vmatpush1.msra.mxu0 0.0
      %1122 = vmatprep.subr.mxu0 0.0
      %1123 = vmatpush1.msra.mxu0 0.0
      %1124 = vmatprep.subr.mxu0 0.0
      %1125 = vmatpush1.msra.mxu0 0.0
      %1126 = vmatprep.subr.mxu0 0.0
      %1127 = vmatpush1.msra.mxu0 0.0
      %1128 = vmatprep.subr.mxu0 0.0
      %1129 = vmatpush1.msra.mxu0 0.0
      %1130 = vmatprep.subr.mxu0 0.0
      %1131 = vmatpush1.msra.mxu0 0.0
      %1132 = vmatprep.subr.mxu0 0.0
      %1133 = vmatpush1.msra.mxu0 0.0
      %1134 = vmatprep.subr.mxu0 0.0
      %1135 = vmatpush1.msra.mxu0 0.0
      %1136 = vmatprep.subr.mxu0 0.0
      %1137 = vmatpush1.msra.mxu0 0.0
      %1138 = vmatprep.mubr.f32.mxu0 0.0
      %1139 = vmatmul.mubr.f32.gmra.mrb[0].mxu0 %v1072
      %v1140 = vpop.f32.mrb[0].mxu0
      %v1141 = vadd.f32 0.0, %v1140
      %v1142 = vpop.f32.mrb[0].mxu0
      %1143 = vdwg.mxu0
      %v1145 = vsel %vm501, %v1141, 0
      %1147 = vmatprep.subr.mxu0 0.0
      %1148 = vmatpush1.msra.mxu0 %v499
      %1149 = vmatprep.subr.mxu0 0.0
      %1150 = vmatpush1.msra.mxu0 0.0
      %1151 = vmatprep.subr.mxu0 0.0
      %1152 = vmatpush1.msra.mxu0 0.0
      %1153 = vmatprep.subr.mxu0 0.0
      %1154 = vmatpush1.msra.mxu0 0.0
      %1155 = vmatprep.subr.mxu0 0.0
      %1156 = vmatpush1.msra.mxu0 0.0
      %1157 = vmatprep.subr.mxu0 0.0
      %1158 = vmatpush1.msra.mxu0 0.0
      %1159 = vmatprep.subr.mxu0 0.0
      %1160 = vmatpush1.msra.mxu0 0.0
      %1161 = vmatprep.subr.mxu0 0.0
      %1162 = vmatpush1.msra.mxu0 0.0
      %1163 = vmatprep.subr.mxu0 0.0
      %1164 = vmatpush1.msra.mxu0 0.0
      %1165 = vmatprep.subr.mxu0 0.0
      %1166 = vmatpush1.msra.mxu0 0.0
      %1167 = vmatprep.subr.mxu0 0.0
      %1168 = vmatpush1.msra.mxu0 0.0
      %1169 = vmatprep.subr.mxu0 0.0
      %1170 = vmatpush1.msra.mxu0 0.0
      %1171 = vmatprep.subr.mxu0 0.0
      %1172 = vmatpush1.msra.mxu0 0.0
      %1173 = vmatprep.subr.mxu0 0.0
      %1174 = vmatpush1.msra.mxu0 0.0
      %1175 = vmatprep.subr.mxu0 0.0
      %1176 = vmatpush1.msra.mxu0 0.0
      %1177 = vmatprep.subr.mxu0 0.0
      %1178 = vmatpush1.msra.mxu0 0.0
      %1179 = vmatprep.subr.mxu0 0.0
      %1180 = vmatpush1.msra.mxu0 0.0
      %1181 = vmatprep.subr.mxu0 0.0
      %1182 = vmatpush1.msra.mxu0 0.0
      %1183 = vmatprep.subr.mxu0 0.0
      %1184 = vmatpush1.msra.mxu0 0.0
      %1185 = vmatprep.subr.mxu0 0.0
      %1186 = vmatpush1.msra.mxu0 0.0
      %1187 = vmatprep.subr.mxu0 0.0
      %1188 = vmatpush1.msra.mxu0 0.0
      %1189 = vmatprep.subr.mxu0 0.0
      %1190 = vmatpush1.msra.mxu0 0.0
      %1191 = vmatprep.subr.mxu0 0.0
      %1192 = vmatpush1.msra.mxu0 0.0
      %1193 = vmatprep.subr.mxu0 0.0
      %1194 = vmatpush1.msra.mxu0 0.0
      %1195 = vmatprep.subr.mxu0 0.0
      %1196 = vmatpush1.msra.mxu0 0.0
      %1197 = vmatprep.subr.mxu0 0.0
      %1198 = vmatpush1.msra.mxu0 0.0
      %1199 = vmatprep.subr.mxu0 0.0
      %1200 = vmatpush1.msra.mxu0 0.0
      %1201 = vmatprep.subr.mxu0 0.0
      %1202 = vmatpush1.msra.mxu0 0.0
      %1203 = vmatprep.subr.mxu0 0.0
      %1204 = vmatpush1.msra.mxu0 0.0
      %1205 = vmatprep.subr.mxu0 0.0
      %1206 = vmatpush1.msra.mxu0 0.0
      %1207 = vmatprep.subr.mxu0 0.0
      %1208 = vmatpush1.msra.mxu0 0.0
      %1209 = vmatprep.subr.mxu0 0.0
      %1210 = vmatpush1.msra.mxu0 0.0
      %1211 = vmatprep.mubr.f32.mxu0 0.0
      %1212 = vmatmul.mubr.f32.gmra.mrb[0].mxu0 %v1145
      %v1213 = vpop.f32.mrb[0].mxu0
      %v1214 = vadd.f32 0.0, %v1213
      %v1215 = vpop.f32.mrb[0].mxu0
      %1216 = vdwg.mxu0
      %v1217 = vadd.f32 %v975, %v1214
      %1218 = vrot.lane.b32.xlu0 %v402, 104
      %v1219 = vpop.permute.xlu0 %1218
      %1220 = vrot.lane.b32.xlu0 %v494, 104
      %v1221 = vpop.permute.xlu0 %1220
      %v1222 = vsel %vm501, %v1219, 0
      %v1224 = vsel %vm501, %v1221, 0
      %1226 = vmatprep.subr.mxu0 0.0
      %1227 = vmatpush1.xpose.msra.mxu0 %v1224
      %1228 = vmatprep.subr.mxu0 0.0
      %1229 = vmatpush1.xpose.msra.mxu0 0.0
      %1230 = vmatprep.subr.mxu0 0.0
      %1231 = vmatpush1.xpose.msra.mxu0 0.0
      %1232 = vmatprep.subr.mxu0 0.0
      %1233 = vmatpush1.xpose.msra.mxu0 0.0
      %1234 = vmatprep.subr.mxu0 0.0
      %1235 = vmatpush1.xpose.msra.mxu0 0.0
      %1236 = vmatprep.subr.mxu0 0.0
      %1237 = vmatpush1.xpose.msra.mxu0 0.0
      %1238 = vmatprep.subr.mxu0 0.0
      %1239 = vmatpush1.xpose.msra.mxu0 0.0
      %1240 = vmatprep.subr.mxu0 0.0
      %1241 = vmatpush1.xpose.msra.mxu0 0.0
      %1242 = vmatprep.subr.mxu0 0.0
      %1243 = vmatpush1.xpose.msra.mxu0 0.0
      %1244 = vmatprep.subr.mxu0 0.0
      %1245 = vmatpush1.xpose.msra.mxu0 0.0
      %1246 = vmatprep.subr.mxu0 0.0
      %1247 = vmatpush1.xpose.msra.mxu0 0.0
      %1248 = vmatprep.subr.mxu0 0.0
      %1249 = vmatpush1.xpose.msra.mxu0 0.0
      %1250 = vmatprep.subr.mxu0 0.0
      %1251 = vmatpush1.xpose.msra.mxu0 0.0
      %1252 = vmatprep.subr.mxu0 0.0
      %1253 = vmatpush1.xpose.msra.mxu0 0.0
      %1254 = vmatprep.subr.mxu0 0.0
      %1255 = vmatpush1.xpose.msra.mxu0 0.0
      %1256 = vmatprep.subr.mxu0 0.0
      %1257 = vmatpush1.xpose.msra.mxu0 0.0
      %1258 = vmatprep.subr.mxu0 0.0
      %1259 = vmatpush1.xpose.msra.mxu0 0.0
      %1260 = vmatprep.subr.mxu0 0.0
      %1261 = vmatpush1.xpose.msra.mxu0 0.0
      %1262 = vmatprep.subr.mxu0 0.0
      %1263 = vmatpush1.xpose.msra.mxu0 0.0
      %1264 = vmatprep.subr.mxu0 0.0
      %1265 = vmatpush1.xpose.msra.mxu0 0.0
      %1266 = vmatprep.subr.mxu0 0.0
      %1267 = vmatpush1.xpose.msra.mxu0 0.0
      %1268 = vmatprep.subr.mxu0 0.0
      %1269 = vmatpush1.xpose.msra.mxu0 0.0
      %1270 = vmatprep.subr.mxu0 0.0
      %1271 = vmatpush1.xpose.msra.mxu0 0.0
      %1272 = vmatprep.subr.mxu0 0.0
      %1273 = vmatpush1.xpose.msra.mxu0 0.0
      %1274 = vmatprep.subr.mxu0 0.0
      %1275 = vmatpush1.xpose.msra.mxu0 0.0
      %1276 = vmatprep.subr.mxu0 0.0
      %1277 = vmatpush1.xpose.msra.mxu0 0.0
      %1278 = vmatprep.subr.mxu0 0.0
      %1279 = vmatpush1.xpose.msra.mxu0 0.0
      %1280 = vmatprep.subr.mxu0 0.0
      %1281 = vmatpush1.xpose.msra.mxu0 0.0
      %1282 = vmatprep.subr.mxu0 0.0
      %1283 = vmatpush1.xpose.msra.mxu0 0.0
      %1284 = vmatprep.subr.mxu0 0.0
      %1285 = vmatpush1.xpose.msra.mxu0 0.0
      %1286 = vmatprep.subr.mxu0 0.0
      %1287 = vmatpush1.xpose.msra.mxu0 0.0
      %1288 = vmatprep.subr.mxu0 0.0
      %1289 = vmatpush1.xpose.msra.mxu0 0.0
      %1290 = vmatprep.mubr.f32.mxu0 0.0
      %1291 = vmatmul.mubr.f32.gmra.mrb[0].mxu0 %v1222
      %v1292 = vpop.f32.mrb[0].mxu0
      %v1293 = vadd.f32 0.0, %v1292
      %v1294 = vpop.f32.mrb[0].mxu0
      %1295 = vdwg.mxu0
      %v1296 = vmul.f32 %v1293, 0.35355338
      %v1297 = vsel %vm501, %v1296, -inf
      %1298 = vmax.xlane.f32.xlu0 %v1297
      %v1299 = vpop.xlane.xlu0 %1298
      %v1300 = vsub.f32 %v1296, %v1299
      %v1301 = vmul.f32 %v1300, 1.442695
      %v1302 = vpow.pop %v1301
      %v1303 = vsel %vm501, %v1302, 0.0
      %1304 = vadd.xlane.f32.xlu0 %v1303
      %v1305 = vpop.xlane.xlu0 %1304
      %v1306 = vrcp.pop %v1305
      %v1307 = vmul.f32 %v1302, %v1306
      %1308 = vrot.lane.b32.xlu0 %v494, 72
      %v1309 = vpop.permute.xlu0 %1308
      %v1312 = vsel %vm501, %v1307, 0
      %1314 = vmatprep.subr.mxu0 0.0
      %1315 = vmatpush1.msra.mxu0 %v1309
      %1316 = vmatprep.subr.mxu0 0.0
      %1317 = vmatpush1.msra.mxu0 0.0
      %1318 = vmatprep.subr.mxu0 0.0
      %1319 = vmatpush1.msra.mxu0 0.0
      %1320 = vmatprep.subr.mxu0 0.0
      %1321 = vmatpush1.msra.mxu0 0.0
      %1322 = vmatprep.subr.mxu0 0.0
      %1323 = vmatpush1.msra.mxu0 0.0
      %1324 = vmatprep.subr.mxu0 0.0
      %1325 = vmatpush1.msra.mxu0 0.0
      %1326 = vmatprep.subr.mxu0 0.0
      %1327 = vmatpush1.msra.mxu0 0.0
      %1328 = vmatprep.subr.mxu0 0.0
      %1329 = vmatpush1.msra.mxu0 0.0
      %1330 = vmatprep.subr.mxu0 0.0
      %1331 = vmatpush1.msra.mxu0 0.0
      %1332 = vmatprep.subr.mxu0 0.0
      %1333 = vmatpush1.msra.mxu0 0.0
      %1334 = vmatprep.subr.mxu0 0.0
      %1335 = vmatpush1.msra.mxu0 0.0
      %1336 = vmatprep.subr.mxu0 0.0
      %1337 = vmatpush1.msra.mxu0 0.0
      %1338 = vmatprep.subr.mxu0 0.0
      %1339 = vmatpush1.msra.mxu0 0.0
      %1340 = vmatprep.subr.mxu0 0.0
      %1341 = vmatpush1.msra.mxu0 0.0
      %1342 = vmatprep.subr.mxu0 0.0
      %1343 = vmatpush1.msra.mxu0 0.0
      %1344 = vmatprep.subr.mxu0 0.0
      %1345 = vmatpush1.msra.mxu0 0.0
      %1346 = vmatprep.subr.mxu0 0.0
      %1347 = vmatpush1.msra.mxu0 0.0
      %1348 = vmatprep.subr.mxu0 0.0
      %1349 = vmatpush1.msra.mxu0 0.0
      %1350 = vmatprep.subr.mxu0 0.0
      %1351 = vmatpush1.msra.mxu0 0.0
      %1352 = vmatprep.subr.mxu0 0.0
      %1353 = vmatpush1.msra.mxu0 0.0
      %1354 = vmatprep.subr.mxu0 0.0
      %1355 = vmatpush1.msra.mxu0 0.0
      %1356 = vmatprep.subr.mxu0 0.0
      %1357 = vmatpush1.msra.mxu0 0.0
      %1358 = vmatprep.subr.mxu0 0.0
      %1359 = vmatpush1.msra.mxu0 0.0
      %1360 = vmatprep.subr.mxu0 0.0
      %1361 = vmatpush1.msra.mxu0 0.0
      %1362 = vmatprep.subr.mxu0 0.0
      %1363 = vmatpush1.msra.mxu0 0.0
      %1364 = vmatprep.subr.mxu0 0.0
      %1365 = vmatpush1.msra.mxu0 0.0
      %1366 = vmatprep.subr.mxu0 0.0
      %1367 = vmatpush1.msra.mxu0 0.0
      %1368 = vmatprep.subr.mxu0 0.0
      %1369 = vmatpush1.msra.mxu0 0.0
      %1370 = vmatprep.subr.mxu0 0.0
      %1371 = vmatpush1.msra.mxu0 0.0
      %1372 = vmatprep.subr.mxu0 0.0
      %1373 = vmatpush1.msra.mxu0 0.0
      %1374 = vmatprep.subr.mxu0 0.0
      %1375 = vmatpush1.msra.mxu0 0.0
      %1376 = vmatprep.subr.mxu0 0.0
      %1377 = vmatpush1.msra.mxu0 0.0
      %1378 = vmatprep.mubr.f32.mxu0 0.0
      %1379 = vmatmul.mubr.f32.gmra.mrb[0].mxu0 %v1312
      %v1380 = vpop.f32.mrb[0].mxu0
      %v1381 = vadd.f32 0.0, %v1380
      %v1382 = vpop.f32.mrb[0].mxu0
      %1383 = vdwg.mxu0
      %v1385 = vsel %vm501, %v1381, 0
      %1387 = vmatprep.subr.mxu0 0.0
      %1388 = vmatpush1.msra.mxu0 %v500
      %1389 = vmatprep.subr.mxu0 0.0
      %1390 = vmatpush1.msra.mxu0 0.0
      %1391 = vmatprep.subr.mxu0 0.0
      %1392 = vmatpush1.msra.mxu0 0.0
      %1393 = vmatprep.subr.mxu0 0.0
      %1394 = vmatpush1.msra.mxu0 0.0
      %1395 = vmatprep.subr.mxu0 0.0
      %1396 = vmatpush1.msra.mxu0 0.0
      %1397 = vmatprep.subr.mxu0 0.0
      %1398 = vmatpush1.msra.mxu0 0.0
      %1399 = vmatprep.subr.mxu0 0.0
      %1400 = vmatpush1.msra.mxu0 0.0
      %1401 = vmatprep.subr.mxu0 0.0
      %1402 = vmatpush1.msra.mxu0 0.0
      %1403 = vmatprep.subr.mxu0 0.0
      %1404 = vmatpush1.msra.mxu0 0.0
      %1405 = vmatprep.subr.mxu0 0.0
      %1406 = vmatpush1.msra.mxu0 0.0
      %1407 = vmatprep.subr.mxu0 0.0
      %1408 = vmatpush1.msra.mxu0 0.0
      %1409 = vmatprep.subr.mxu0 0.0
      %1410 = vmatpush1.msra.mxu0 0.0
      %1411 = vmatprep.subr.mxu0 0.0
      %1412 = vmatpush1.msra.mxu0 0.0
      %1413 = vmatprep.subr.mxu0 0.0
      %1414 = vmatpush1.msra.mxu0 0.0
      %1415 = vmatprep.subr.mxu0 0.0
      %1416 = vmatpush1.msra.mxu0 0.0
      %1417 = vmatprep.subr.mxu0 0.0
      %1418 = vmatpush1.msra.mxu0 0.0
      %1419 = vmatprep.subr.mxu0 0.0
      %1420 = vmatpush1.msra.mxu0 0.0
      %1421 = vmatprep.subr.mxu0 0.0
      %1422 = vmatpush1.msra.mxu0 0.0
      %1423 = vmatprep.subr.mxu0 0.0
      %1424 = vmatpush1.msra.mxu0 0.0
      %1425 = vmatprep.subr.mxu0 0.0
      %1426 = vmatpush1.msra.mxu0 0.0
      %1427 = vmatprep.subr.mxu0 0.0
      %1428 = vmatpush1.msra.mxu0 0.0
      %1429 = vmatprep.subr.mxu0 0.0
      %1430 = vmatpush1.msra.mxu0 0.0
      %1431 = vmatprep.subr.mxu0 0.0
      %1432 = vmatpush1.msra.mxu0 0.0
      %1433 = vmatprep.subr.mxu0 0.0
      %1434 = vmatpush1.msra.mxu0 0.0
      %1435 = vmatprep.subr.mxu0 0.0
      %1436 = vmatpush1.msra.mxu0 0.0
      %1437 = vmatprep.subr.mxu0 0.0
      %1438 = vmatpush1.msra.mxu0 0.0
      %1439 = vmatprep.subr.mxu0 0.0
      %1440 = vmatpush1.msra.mxu0 0.0
      %1441 = vmatprep.subr.mxu0 0.0
      %1442 = vmatpush1.msra.mxu0 0.0
      %1443 = vmatprep.subr.mxu0 0.0
      %1444 = vmatpush1.msra.mxu0 0.0
      %1445 = vmatprep.subr.mxu0 0.0
      %1446 = vmatpush1.msra.mxu0 0.0
      %1447 = vmatprep.subr.mxu0 0.0
      %1448 = vmatpush1.msra.mxu0 0.0
      %1449 = vmatprep.subr.mxu0 0.0
      %1450 = vmatpush1.msra.mxu0 0.0
      %1451 = vmatprep.mubr.f32.mxu0 0.0
      %1452 = vmatmul.mubr.f32.gmra.mrb[0].mxu0 %v1385
      %v1453 = vpop.f32.mrb[0].mxu0
      %v1454 = vadd.f32 0.0, %v1453
      %v1455 = vpop.f32.mrb[0].mxu0
      %1456 = vdwg.mxu0
      %v1457 = vadd.f32 %v1217, %v1454
      %v1458 = vadd.f32 %v318, %v1457
      %v1459 = vld [vmem:[%s5] sm:$0x1]
      %v1461 = vlaneseq
      %v1462 = vshrl.u32 %v1461, 7
      %v1463 = vsub.s32 0, %v1462
      %v1464 = vrot.slane %v1459, %v1463
      %v1466 = vadd.f32 %v1458, %v1464
      %v1467 = vsel %vm331, %v1466, 0.0
      %1468 = vadd.xlane.f32.xlu0 %v1467
      %v1469 = vpop.xlane.xlu0 %1468
      %v1470 = vrcp.pop 32.0
      %v1471 = vmul.f32 %v1469, %v1470
      %v1472 = vsub.f32 %v1466, %v1471
      %v1473 = vmul.f32 %v1472, %v1472
      %v1474 = vsel %vm331, %v1473, 0.0
      %1475 = vadd.xlane.f32.xlu0 %v1474
      %v1476 = vpop.xlane.xlu0 %1475
      %v1477 = vmul.f32 %v1476, %v1470
      %v1478 = vadd.f32 %v1477, 1e-05
      %v1479 = vrsqrt.pop %v1478
      %v1480 = vmul.f32 %v1472, %v1479
      %v1481 = vld [vmem:[%s6] sm:$0x1]
      %v1483 = vlaneseq
      %v1484 = vshrl.u32 %v1483, 7
      %v1485 = vsub.s32 0, %v1484
      %v1486 = vrot.slane %v1481, %v1485
      %v1488 = vmul.f32 %v1480, %v1486
      %v1489 = vld [vmem:[%s7] sm:$0x1]
      %v1491 = vlaneseq
      %v1492 = vshrl.u32 %v1491, 7
      %v1493 = vsub.s32 0, %v1492
      %v1494 = vrot.slane %v1489, %v1493
      %v1496 = vadd.f32 %v1488, %v1494
      %1497 = vst.msk [vmem:[%s317] sm:$0xff] %vm331, %v1496
      %p1498 = scmp.lt.s32.totalorder %s19, 1
      %s1499 = scalar_select %p1498, %s19, 1
      %s1500 = smul.addr %s1499, 8
      %s1501 = scalar_lea.vmem %s8, %s1500
      // Predicated region
      $region53: #{time_series_transformer.20} parent=51 // pred_check
        %p1502 = pneg %p215
      $region54: #{time_series_transformer.20} parent=51 // pred_check_branch
        %1504 = sbr.rel (%p1502) target = $region56
      $region55: #{time_series_transformer.20} parent=51 // pred_region
        _
      $region56: #{time_series_transformer.20} parent=51 // pred_fallthru
        _
    $region52: #{time_series_transformer.20} parent=5 // pred_fallthru
      _
    %p1505 = scmp.le.s32.totalorder 2, %s14
    // Predicated region
    $region57: #{time_series_transformer.20} parent=5 // pred_check
      %p1506 = pneg %p1505
    $region58: #{time_series_transformer.20} parent=5 // pred_check_branch
      %1508 = sbr.rel (%p1506) target = $region60
    $region59: #{time_series_transformer.20} parent=5 // pred_region
      %s1509 = ssub.s32 %s14, 2
      // Predicated region
      $region61: #{time_series_transformer.20} parent=59 // pred_check
        %p1510 = pneg %p221
      $region62: #{time_series_transformer.20} parent=59 // pred_check_branch
        %1512 = sbr.rel (%p1510) target = $region64
      $region63: #{time_series_transformer.20} parent=59 // pred_region
        %p1513 = scmp.lt.s32.totalorder %s20, 1
        %s1514 = scalar_select %p1513, %s20, 1
        %s1515 = smul.addr %s1514, 8
        %s1516 = scalar_lea.vmem %s8, %s1515
      $region64: #{time_series_transformer.20} parent=59 // pred_fallthru
        _
    $region60: #{time_series_transformer.20} parent=5 // pred_fallthru
      _
  $region6: #{time_series_transformer.20} parent=0 // loop_footer
    %s18 = sadd.s32 1, %s14
  $region7: #{time_series_transformer.20} parent=0 // loop_footer_branch
    %13 = sbr.rel target = $region3
  $region8: #{time_series_transformer.20} parent=0 // loop_exit
    _

</llo_original>
